<compile_context>
chip_gen: v7x
topology: tpu7x:2x2x1
jax: 0.10.0
libtpu: 0.0.40
codegen_flags: <defaults>
</compile_context>

<pallas_src>
import jax
import jax.numpy as jnp
import numpy as np
from jax import lax
from jax.experimental import pallas as pl
from jax.experimental.pallas import tpu as pltpu


# ------------------------------ fused kernel --------------------------------

def cnn_fused_kernel(xp_ref, w1_ref, b1_ref, w2_ref, b2t_ref,
                     wf1_ref, bf1_ref, wf2_ref, bf2_ref, out_ref,
                     conv1_scr, pw1_scr, pad2_scr, conv2_scr, pw2_scr,
                     flat_scr):
    """Whole CNN forward for the (small) batch in one kernel invocation.

    xp_ref : (N, H+2, W+2, Cin)   zero-padded, channels-last input
    w1/w2  : conv weights flattened to (K*K*Cin, Cout), row order (kh, kw, cin)
    b1_ref : (1, C1)              conv1 bias
    b2t_ref: (1, Wo2*C2)          conv2 bias tiled along merged (wo, c) lanes
    wf1_ref: (Ho2*Wo2*C2, F1)     FC1 weight, rows permuted to (h, w, c) order
    out_ref: (N, num_classes)
    """
    N, Hp, Wp, Cin = xp_ref.shape
    H, W = Hp - 2, Wp - 2
    C1 = w1_ref.shape[1]
    C2 = w2_ref.shape[1]
    Ho1, Wo1 = H // 2, W // 2
    Ho2, Wo2 = Ho1 // 2, Wo1 // 2
    K = 3

    def conv_matmul(pad_ref, w_ref, h, w, cin):
        # Build im2col rows for every conv output position directly from the
        # VMEM-resident padded activation (static window reads), then a single
        # MXU matmul with M = N*h*w (batch + all pool phases in the M dim).
        taps = []
        for kh in range(K):
            for kw in range(K):
                t = pad_ref[:, kh:kh + h, kw:kw + w, :]        # (N, h, w, cin)
                taps.append(t.reshape(N * h * w, cin))
        xcol = jnp.concatenate(taps, axis=-1)                  # (N*h*w, K*K*cin)
        return jnp.dot(xcol, w_ref[...],
                       preferred_element_type=jnp.float32)     # (N*h*w, Cout)

    # ---------------- conv block 1: conv -> 2x2 maxpool -> +bias -> ReLU ----
    conv1_scr[...] = conv_matmul(xp_ref, w1_ref, H, W, Cin).reshape(N, H, W, C1)

    for wo in range(Wo1):                                      # pool along W
        a = conv1_scr[:, :, 2 * wo, :]
        b = conv1_scr[:, :, 2 * wo + 1, :]
        pw1_scr[:, :, wo, :] = jnp.maximum(a, b)

    # Pool along H, add bias, ReLU (2x2 max commutes with +bias and ReLU), and
    # write straight into the interior of the zero-padded layer-2 input.
    pad2_scr[...] = jnp.zeros(pad2_scr.shape, pad2_scr.dtype)
    for ho in range(Ho1):
        a = pw1_scr[:, 2 * ho, :, :]
        b = pw1_scr[:, 2 * ho + 1, :, :]
        act = jnp.maximum(jnp.maximum(a, b) + b1_ref[...], 0.0)   # (N, Wo1, C1)
        pad2_scr[:, ho + 1, 1:Wo1 + 1, :] = act
    # Dropout2d(p) is identity in eval mode -> intentionally omitted.

    # ---------------- conv block 2 ------------------------------------------
    conv2_scr[...] = conv_matmul(pad2_scr, w2_ref, Ho1, Wo1, C1).reshape(
        N, Ho1, Wo1, C2)

    for wo in range(Wo2):                  # pool along W; lanes become (wo, c)
        a = conv2_scr[:, :, 2 * wo, :]
        b = conv2_scr[:, :, 2 * wo + 1, :]
        pw2_scr[:, :, wo * C2:(wo + 1) * C2] = jnp.maximum(a, b)

    for ho in range(Ho2):                  # pool along H, +bias, ReLU, flatten
        a = pw2_scr[:, 2 * ho, :]
        b = pw2_scr[:, 2 * ho + 1, :]
        act = jnp.maximum(jnp.maximum(a, b) + b2t_ref[...], 0.0)  # (N, Wo2*C2)
        flat_scr[:, ho * Wo2 * C2:(ho + 1) * Wo2 * C2] = act

    # ---------------- FC head: Linear -> ReLU -> Linear ----------------------
    h1 = jnp.dot(flat_scr[...], wf1_ref[...],
                 preferred_element_type=jnp.float32) + bf1_ref[...]
    h1 = jnp.maximum(h1, 0.0)
    logits = jnp.dot(h1, wf2_ref[...],
                     preferred_element_type=jnp.float32) + bf2_ref[...]
    out_ref[...] = logits.astype(out_ref.dtype)


# ------------------------------- JAX wrapper ---------------------------------

def _full_spec(shape):
    nd = len(shape)
    return pl.BlockSpec(shape, lambda i, _nd=nd: (0,) * _nd)


def cnn_forward(x_nchw, params):
    """Lightweight layout prep + one fused pallas_call (eval-mode semantics)."""
    (w1, b1), (w2, b2) = params["conv"]
    (wf1, bf1), (wf2, bf2) = params["fc"]
    N, Cin, H, W = x_nchw.shape
    K = w1.shape[-1]                              # 3 (stride 1, 'same')
    C1, C2 = w1.shape[0], w2.shape[0]
    Ho1, Wo1 = H // 2, W // 2
    Ho2, Wo2 = Ho1 // 2, Wo1 // 2
    F1 = wf1.shape[1]
    NC = wf2.shape[1]

    # channels-last + 'same' zero padding of the (tiny) network input
    xp = jnp.pad(jnp.transpose(x_nchw, (0, 2, 3, 1)),
                 ((0, 0), (1, 1), (1, 1), (0, 0)))
    # conv weights -> (kh, kw, cin) x cout rows, matching the in-kernel tap order
    w1m = jnp.transpose(w1, (2, 3, 1, 0)).reshape(K * K * Cin, C1)
    w2m = jnp.transpose(w2, (2, 3, 1, 0)).reshape(K * K * C1, C2)
    # conv2 bias tiled along the merged (wo, c) lane axis used by the kernel
    b2t = jnp.tile(b2.reshape(1, C2), (1, Wo2))
    # FC1 weight rows: PyTorch NCHW-flatten order (c, h, w) -> kernel (h, w, c)
    wf1p = jnp.transpose(wf1.reshape(C2, Ho2, Wo2, F1),
                         (1, 2, 0, 3)).reshape(Ho2 * Wo2 * C2, F1)

    f32 = jnp.float32
    scratch_shapes = [
        pltpu.VMEM((N, H, W, C1), f32),               # conv1 output
        pltpu.VMEM((N, H, Wo1, C1), f32),             # conv1 after W-pool
        pltpu.VMEM((N, Ho1 + 2, Wo1 + 2, C1), f32),   # padded layer-2 input
        pltpu.VMEM((N, Ho1, Wo1, C2), f32),           # conv2 output
        pltpu.VMEM((N, Ho1, Wo2 * C2), f32),          # conv2 after W-pool
        pltpu.VMEM((N, Ho2 * Wo2 * C2), f32),         # flattened features
    ]

    operands = (xp, w1m, b1.reshape(1, C1), w2m, b2t,
                wf1p, bf1.reshape(1, F1), wf2, bf2.reshape(1, NC))

    # TODO(synk): for larger batch / resolution, add a parallel batch grid axis
    # (v7x megacore), M-tiling of the conv matmuls, and bf16 matmul operands
    # with f32 accumulation; at 16x16 / N=2 everything fits VMEM comfortably.
    return pl.pallas_call(
        cnn_fused_kernel,
        out_shape=jax.ShapeDtypeStruct((N, NC), jnp.float32),
        grid=(1,),
        in_specs=[_full_spec(a.shape) for a in operands],
        out_specs=_full_spec((N, NC)),
        scratch_shapes=scratch_shapes,
        compiler_params=pltpu.CompilerParams(
            dimension_semantics=("arbitrary",)),
    )(*operands)


# --------------------------- params & reference ------------------------------

def init_params(key, input_channels, conv_channels, flatten_size, fc_features,
                num_classes):
    params = {"conv": [], "fc": []}
    n_keys = 2 * (len(conv_channels) + len(fc_features) + 1)
    keys = jax.random.split(key, n_keys)
    ki = 0
    cin = input_channels
    for cout in conv_channels:
        w = 0.1 * jax.random.normal(keys[ki], (cout, cin, 3, 3), jnp.float32); ki += 1
        b = 0.1 * jax.random.normal(keys[ki], (cout,), jnp.float32); ki += 1
        params["conv"].append((w, b))
        cin = cout
    fin = flatten_size
    for fout in list(fc_features) + [num_classes]:
        w = 0.05 * jax.random.normal(keys[ki], (fin, fout), jnp.float32); ki += 1
        b = 0.05 * jax.random.normal(keys[ki], (fout,), jnp.float32); ki += 1
        params["fc"].append((w, b))
        fin = fout
    return params


def ref_forward(x, params):
    # Pure-JAX reference reproducing the PyTorch module in eval mode.
    y = x
    for (w, b) in params["conv"]:
        y = lax.conv_general_dilated(
            y, w, window_strides=(1, 1), padding=((1, 1), (1, 1)),
            dimension_numbers=("NCHW", "OIHW", "NCHW")) + b[None, :, None, None]
        y = jnp.maximum(y, 0.0)
        y = lax.reduce_window(y, -jnp.inf, lax.max, (1, 1, 2, 2), (1, 1, 2, 2),
                              "VALID")
    flat = y.reshape(y.shape[0], -1)
    (w1, b1), (w2, b2) = params["fc"]
    h = jnp.maximum(flat @ w1 + b1, 0.0)
    return h @ w2 + b2


# --------------------------------- main --------------------------------------

if __name__ == "__main__":
    key = jax.random.PRNGKey(0)
    kx, kp = jax.random.split(key)

    # Small shapes consistent with the module: CNN(input_channels=1,
    # input_size=(16, 16)) with default conv_layers=[32, 64], fc_layers=[128],
    # num_classes=10, batch=2.
    N, Cin, H, W = 2, 1, 16, 16
    conv_channels = [32, 64]
    num_classes = 10
    flatten_size = conv_channels[-1] * (H // 4) * (W // 4)   # 64 * 4 * 4 = 1024

    x = jax.random.normal(kx, (N, Cin, H, W), jnp.float32)
    params = init_params(kp, Cin, conv_channels, flatten_size, [128], num_classes)

    out = jax.jit(lambda xx: cnn_forward(xx, params))(x)
    out = jax.block_until_ready(out)

    ref = ref_forward(x, params)
    assert out.shape == (N, num_classes)
    np.testing.assert_allclose(np.asarray(out), np.asarray(ref),
                               rtol=1e-4, atol=1e-4)
    print("KERNEL_OK")
</pallas_src>

<mosaic_0001>
module attributes {stable_mosaic.version = 11 : i64} {
  func.func @cnn_fused_kernel(%arg0: i32, %arg1: memref<2x18x18x1xf32, #tpu.memory_space<vmem>>, %arg2: memref<9x32xf32, #tpu.memory_space<vmem>>, %arg3: memref<1x32xf32, #tpu.memory_space<vmem>>, %arg4: memref<288x64xf32, #tpu.memory_space<vmem>>, %arg5: memref<1x256xf32, #tpu.memory_space<vmem>>, %arg6: memref<1024x128xf32, #tpu.memory_space<vmem>>, %arg7: memref<1x128xf32, #tpu.memory_space<vmem>>, %arg8: memref<128x10xf32, #tpu.memory_space<vmem>>, %arg9: memref<1x10xf32, #tpu.memory_space<vmem>>, %arg10: memref<2x10xf32, #tpu.memory_space<vmem>>, %arg11: memref<2x16x16x32xf32, #tpu.memory_space<vmem>>, %arg12: memref<2x16x8x32xf32, #tpu.memory_space<vmem>>, %arg13: memref<2x10x10x32xf32, #tpu.memory_space<vmem>>, %arg14: memref<2x8x8x64xf32, #tpu.memory_space<vmem>>, %arg15: memref<2x8x256xf32, #tpu.memory_space<vmem>>, %arg16: memref<2x1024xf32, #tpu.memory_space<vmem>>) attributes {dimension_semantics = [#tpu.dimension_semantics<arbitrary>], iteration_bounds = array<i64: 1>, scalar_prefetch = 0 : i64, scratch_operands = 6 : i64, tpu.core_type = #tpu.core_type<tc>, window_params = [{pipeline_mode = #tpu.pipeline_mode<synchronous>, transform_indices = @transform_0, window_bounds = array<i64: 2, 18, 18, 1>}, {pipeline_mode = #tpu.pipeline_mode<synchronous>, transform_indices = @transform_1, window_bounds = array<i64: 9, 32>}, {pipeline_mode = #tpu.pipeline_mode<synchronous>, transform_indices = @transform_2, window_bounds = array<i64: 1, 32>}, {pipeline_mode = #tpu.pipeline_mode<synchronous>, transform_indices = @transform_3, window_bounds = array<i64: 288, 64>}, {pipeline_mode = #tpu.pipeline_mode<synchronous>, transform_indices = @transform_4, window_bounds = array<i64: 1, 256>}, {pipeline_mode = #tpu.pipeline_mode<synchronous>, transform_indices = @transform_5, window_bounds = array<i64: 1024, 128>}, {pipeline_mode = #tpu.pipeline_mode<synchronous>, transform_indices = @transform_6, window_bounds = array<i64: 1, 128>}, {pipeline_mode = #tpu.pipeline_mode<synchronous>, transform_indices = @transform_7, window_bounds = array<i64: 128, 10>}, {pipeline_mode = #tpu.pipeline_mode<synchronous>, transform_indices = @transform_8, window_bounds = array<i64: 1, 10>}, {pipeline_mode = #tpu.pipeline_mode<synchronous>, transform_indices = @transform_9, window_bounds = array<i64: 2, 10>}]} {
    %c0 = arith.constant 0 : index
    %c0_0 = arith.constant 0 : index
    %c0_1 = arith.constant 0 : index
    %c0_2 = arith.constant 0 : index
    %0 = vector.load %arg1[%c0, %c0_0, %c0_1, %c0_2] : memref<2x18x18x1xf32, #tpu.memory_space<vmem>>, vector<2x16x16x1xf32>
    %1 = vector.shape_cast %0 : vector<2x16x16x1xf32> to vector<512x1xf32>
    %c0_3 = arith.constant 0 : index
    %c0_4 = arith.constant 0 : index
    %c1 = arith.constant 1 : index
    %c0_5 = arith.constant 0 : index
    %2 = vector.load %arg1[%c0_3, %c0_4, %c1, %c0_5] : memref<2x18x18x1xf32, #tpu.memory_space<vmem>>, vector<2x16x16x1xf32>
    %3 = vector.shape_cast %2 : vector<2x16x16x1xf32> to vector<512x1xf32>
    %c0_6 = arith.constant 0 : index
    %c0_7 = arith.constant 0 : index
    %c2 = arith.constant 2 : index
    %c0_8 = arith.constant 0 : index
    %4 = vector.load %arg1[%c0_6, %c0_7, %c2, %c0_8] : memref<2x18x18x1xf32, #tpu.memory_space<vmem>>, vector<2x16x16x1xf32>
    %5 = vector.shape_cast %4 : vector<2x16x16x1xf32> to vector<512x1xf32>
    %c0_9 = arith.constant 0 : index
    %c1_10 = arith.constant 1 : index
    %c0_11 = arith.constant 0 : index
    %c0_12 = arith.constant 0 : index
    %6 = vector.load %arg1[%c0_9, %c1_10, %c0_11, %c0_12] : memref<2x18x18x1xf32, #tpu.memory_space<vmem>>, vector<2x16x16x1xf32>
    %7 = vector.shape_cast %6 : vector<2x16x16x1xf32> to vector<512x1xf32>
    %c0_13 = arith.constant 0 : index
    %c1_14 = arith.constant 1 : index
    %c1_15 = arith.constant 1 : index
    %c0_16 = arith.constant 0 : index
    %8 = vector.load %arg1[%c0_13, %c1_14, %c1_15, %c0_16] : memref<2x18x18x1xf32, #tpu.memory_space<vmem>>, vector<2x16x16x1xf32>
    %9 = vector.shape_cast %8 : vector<2x16x16x1xf32> to vector<512x1xf32>
    %c0_17 = arith.constant 0 : index
    %c1_18 = arith.constant 1 : index
    %c2_19 = arith.constant 2 : index
    %c0_20 = arith.constant 0 : index
    %10 = vector.load %arg1[%c0_17, %c1_18, %c2_19, %c0_20] : memref<2x18x18x1xf32, #tpu.memory_space<vmem>>, vector<2x16x16x1xf32>
    %11 = vector.shape_cast %10 : vector<2x16x16x1xf32> to vector<512x1xf32>
    %c0_21 = arith.constant 0 : index
    %c2_22 = arith.constant 2 : index
    %c0_23 = arith.constant 0 : index
    %c0_24 = arith.constant 0 : index
    %12 = vector.load %arg1[%c0_21, %c2_22, %c0_23, %c0_24] : memref<2x18x18x1xf32, #tpu.memory_space<vmem>>, vector<2x16x16x1xf32>
    %13 = vector.shape_cast %12 : vector<2x16x16x1xf32> to vector<512x1xf32>
    %c0_25 = arith.constant 0 : index
    %c2_26 = arith.constant 2 : index
    %c1_27 = arith.constant 1 : index
    %c0_28 = arith.constant 0 : index
    %14 = vector.load %arg1[%c0_25, %c2_26, %c1_27, %c0_28] : memref<2x18x18x1xf32, #tpu.memory_space<vmem>>, vector<2x16x16x1xf32>
    %15 = vector.shape_cast %14 : vector<2x16x16x1xf32> to vector<512x1xf32>
    %c0_29 = arith.constant 0 : index
    %c2_30 = arith.constant 2 : index
    %c2_31 = arith.constant 2 : index
    %c0_32 = arith.constant 0 : index
    %16 = vector.load %arg1[%c0_29, %c2_30, %c2_31, %c0_32] : memref<2x18x18x1xf32, #tpu.memory_space<vmem>>, vector<2x16x16x1xf32>
    %17 = vector.shape_cast %16 : vector<2x16x16x1xf32> to vector<512x1xf32>
    %18 = tpu.concatenate %1, %3, %5, %7, %9, %11, %13, %15, %17 in 1 : vector<512x1xf32>, vector<512x1xf32>, vector<512x1xf32>, vector<512x1xf32>, vector<512x1xf32>, vector<512x1xf32>, vector<512x1xf32>, vector<512x1xf32>, vector<512x1xf32> -> vector<512x9xf32>
    %c0_33 = arith.constant 0 : index
    %c0_34 = arith.constant 0 : index
    %19 = vector.load %arg2[%c0_33, %c0_34] : memref<9x32xf32, #tpu.memory_space<vmem>>, vector<9x32xf32>
    %cst = arith.constant dense<0.000000e+00> : vector<512x32xf32>
    %20 = tpu.matmul %18, %19, %cst {dimension_numbers = #tpu.dot_dimension_numbers<[1], [0], [0], [1], [0, 0, 1, 1], [], []>} : vector<512x9xf32>, vector<9x32xf32>, vector<512x32xf32> -> vector<512x32xf32>
    %21 = vector.shape_cast %20 : vector<512x32xf32> to vector<2x16x16x32xf32>
    %c0_35 = arith.constant 0 : index
    %c0_36 = arith.constant 0 : index
    %c0_37 = arith.constant 0 : index
    %c0_38 = arith.constant 0 : index
    %22 = vector.load %arg11[%c0_35, %c0_36, %c0_37, %c0_38] : memref<2x16x16x32xf32, #tpu.memory_space<vmem>>, vector<2x16x16x32xf32>
    tpu.vector_store %arg11[%c0_35, %c0_36, %c0_37, %c0_38], %21 {strides = array<i32>} : memref<2x16x16x32xf32, #tpu.memory_space<vmem>>, vector<2x16x16x32xf32>,
    %c0_39 = arith.constant 0 : index
    %c0_40 = arith.constant 0 : index
    %c0_41 = arith.constant 0 : index
    %c0_42 = arith.constant 0 : index
    %23 = vector.load %arg11[%c0_39, %c0_40, %c0_41, %c0_42] : memref<2x16x16x32xf32, #tpu.memory_space<vmem>>, vector<2x16x1x32xf32>
    %24 = vector.shape_cast %23 : vector<2x16x1x32xf32> to vector<2x16x32xf32>
    %c0_43 = arith.constant 0 : index
    %c0_44 = arith.constant 0 : index
    %c1_45 = arith.constant 1 : index
    %c0_46 = arith.constant 0 : index
    %25 = vector.load %arg11[%c0_43, %c0_44, %c1_45, %c0_46] : memref<2x16x16x32xf32, #tpu.memory_space<vmem>>, vector<2x16x1x32xf32>
    %26 = vector.shape_cast %25 : vector<2x16x1x32xf32> to vector<2x16x32xf32>
    %27 = arith.maximumf %24, %26 : vector<2x16x32xf32>
    %c0_47 = arith.constant 0 : index
    %c0_48 = arith.constant 0 : index
    %c0_49 = arith.constant 0 : index
    %c0_50 = arith.constant 0 : index
    %28 = vector.load %arg12[%c0_47, %c0_48, %c0_49, %c0_50] : memref<2x16x8x32xf32, #tpu.memory_space<vmem>>, vector<2x16x1x32xf32>
    %29 = vector.shape_cast %28 : vector<2x16x1x32xf32> to vector<2x16x32xf32>
    %30 = vector.shape_cast %27 : vector<2x16x32xf32> to vector<2x16x1x32xf32>
    tpu.vector_store %arg12[%c0_47, %c0_48, %c0_49, %c0_50], %30 {strides = array<i32>} : memref<2x16x8x32xf32, #tpu.memory_space<vmem>>, vector<2x16x1x32xf32>,
    %c0_51 = arith.constant 0 : index
    %c0_52 = arith.constant 0 : index
    %c2_53 = arith.constant 2 : index
    %c0_54 = arith.constant 0 : index
    %31 = vector.load %arg11[%c0_51, %c0_52, %c2_53, %c0_54] : memref<2x16x16x32xf32, #tpu.memory_space<vmem>>, vector<2x16x1x32xf32>
    %32 = vector.shape_cast %31 : vector<2x16x1x32xf32> to vector<2x16x32xf32>
    %c0_55 = arith.constant 0 : index
    %c0_56 = arith.constant 0 : index
    %c3 = arith.constant 3 : index
    %c0_57 = arith.constant 0 : index
    %33 = vector.load %arg11[%c0_55, %c0_56, %c3, %c0_57] : memref<2x16x16x32xf32, #tpu.memory_space<vmem>>, vector<2x16x1x32xf32>
    %34 = vector.shape_cast %33 : vector<2x16x1x32xf32> to vector<2x16x32xf32>
    %35 = arith.maximumf %32, %34 : vector<2x16x32xf32>
    %c0_58 = arith.constant 0 : index
    %c0_59 = arith.constant 0 : index
    %c1_60 = arith.constant 1 : index
    %c0_61 = arith.constant 0 : index
    %36 = vector.load %arg12[%c0_58, %c0_59, %c1_60, %c0_61] : memref<2x16x8x32xf32, #tpu.memory_space<vmem>>, vector<2x16x1x32xf32>
    %37 = vector.shape_cast %36 : vector<2x16x1x32xf32> to vector<2x16x32xf32>
    %38 = vector.shape_cast %35 : vector<2x16x32xf32> to vector<2x16x1x32xf32>
    tpu.vector_store %arg12[%c0_58, %c0_59, %c1_60, %c0_61], %38 {strides = array<i32>} : memref<2x16x8x32xf32, #tpu.memory_space<vmem>>, vector<2x16x1x32xf32>,
    %c0_62 = arith.constant 0 : index
    %c0_63 = arith.constant 0 : index
    %c4 = arith.constant 4 : index
    %c0_64 = arith.constant 0 : index
    %39 = vector.load %arg11[%c0_62, %c0_63, %c4, %c0_64] : memref<2x16x16x32xf32, #tpu.memory_space<vmem>>, vector<2x16x1x32xf32>
    %40 = vector.shape_cast %39 : vector<2x16x1x32xf32> to vector<2x16x32xf32>
    %c0_65 = arith.constant 0 : index
    %c0_66 = arith.constant 0 : index
    %c5 = arith.constant 5 : index
    %c0_67 = arith.constant 0 : index
    %41 = vector.load %arg11[%c0_65, %c0_66, %c5, %c0_67] : memref<2x16x16x32xf32, #tpu.memory_space<vmem>>, vector<2x16x1x32xf32>
    %42 = vector.shape_cast %41 : vector<2x16x1x32xf32> to vector<2x16x32xf32>
    %43 = arith.maximumf %40, %42 : vector<2x16x32xf32>
    %c0_68 = arith.constant 0 : index
    %c0_69 = arith.constant 0 : index
    %c2_70 = arith.constant 2 : index
    %c0_71 = arith.constant 0 : index
    %44 = vector.load %arg12[%c0_68, %c0_69, %c2_70, %c0_71] : memref<2x16x8x32xf32, #tpu.memory_space<vmem>>, vector<2x16x1x32xf32>
    %45 = vector.shape_cast %44 : vector<2x16x1x32xf32> to vector<2x16x32xf32>
    %46 = vector.shape_cast %43 : vector<2x16x32xf32> to vector<2x16x1x32xf32>
    tpu.vector_store %arg12[%c0_68, %c0_69, %c2_70, %c0_71], %46 {strides = array<i32>} : memref<2x16x8x32xf32, #tpu.memory_space<vmem>>, vector<2x16x1x32xf32>,
    %c0_72 = arith.constant 0 : index
    %c0_73 = arith.constant 0 : index
    %c6 = arith.constant 6 : index
    %c0_74 = arith.constant 0 : index
    %47 = vector.load %arg11[%c0_72, %c0_73, %c6, %c0_74] : memref<2x16x16x32xf32, #tpu.memory_space<vmem>>, vector<2x16x1x32xf32>
    %48 = vector.shape_cast %47 : vector<2x16x1x32xf32> to vector<2x16x32xf32>
    %c0_75 = arith.constant 0 : index
    %c0_76 = arith.constant 0 : index
    %c7 = arith.constant 7 : index
    %c0_77 = arith.constant 0 : index
    %49 = vector.load %arg11[%c0_75, %c0_76, %c7, %c0_77] : memref<2x16x16x32xf32, #tpu.memory_space<vmem>>, vector<2x16x1x32xf32>
    %50 = vector.shape_cast %49 : vector<2x16x1x32xf32> to vector<2x16x32xf32>
    %51 = arith.maximumf %48, %50 : vector<2x16x32xf32>
    %c0_78 = arith.constant 0 : index
    %c0_79 = arith.constant 0 : index
    %c3_80 = arith.constant 3 : index
    %c0_81 = arith.constant 0 : index
    %52 = vector.load %arg12[%c0_78, %c0_79, %c3_80, %c0_81] : memref<2x16x8x32xf32, #tpu.memory_space<vmem>>, vector<2x16x1x32xf32>
    %53 = vector.shape_cast %52 : vector<2x16x1x32xf32> to vector<2x16x32xf32>
    %54 = vector.shape_cast %51 : vector<2x16x32xf32> to vector<2x16x1x32xf32>
    tpu.vector_store %arg12[%c0_78, %c0_79, %c3_80, %c0_81], %54 {strides = array<i32>} : memref<2x16x8x32xf32, #tpu.memory_space<vmem>>, vector<2x16x1x32xf32>,
    %c0_82 = arith.constant 0 : index
    %c0_83 = arith.constant 0 : index
    %c8 = arith.constant 8 : index
    %c0_84 = arith.constant 0 : index
    %55 = vector.load %arg11[%c0_82, %c0_83, %c8, %c0_84] : memref<2x16x16x32xf32, #tpu.memory_space<vmem>>, vector<2x16x1x32xf32>
    %56 = vector.shape_cast %55 : vector<2x16x1x32xf32> to vector<2x16x32xf32>
    %c0_85 = arith.constant 0 : index
    %c0_86 = arith.constant 0 : index
    %c9 = arith.constant 9 : index
    %c0_87 = arith.constant 0 : index
    %57 = vector.load %arg11[%c0_85, %c0_86, %c9, %c0_87] : memref<2x16x16x32xf32, #tpu.memory_space<vmem>>, vector<2x16x1x32xf32>
    %58 = vector.shape_cast %57 : vector<2x16x1x32xf32> to vector<2x16x32xf32>
    %59 = arith.maximumf %56, %58 : vector<2x16x32xf32>
    %c0_88 = arith.constant 0 : index
    %c0_89 = arith.constant 0 : index
    %c4_90 = arith.constant 4 : index
    %c0_91 = arith.constant 0 : index
    %60 = vector.load %arg12[%c0_88, %c0_89, %c4_90, %c0_91] : memref<2x16x8x32xf32, #tpu.memory_space<vmem>>, vector<2x16x1x32xf32>
    %61 = vector.shape_cast %60 : vector<2x16x1x32xf32> to vector<2x16x32xf32>
    %62 = vector.shape_cast %59 : vector<2x16x32xf32> to vector<2x16x1x32xf32>
    tpu.vector_store %arg12[%c0_88, %c0_89, %c4_90, %c0_91], %62 {strides = array<i32>} : memref<2x16x8x32xf32, #tpu.memory_space<vmem>>, vector<2x16x1x32xf32>,
    %c0_92 = arith.constant 0 : index
    %c0_93 = arith.constant 0 : index
    %c10 = arith.constant 10 : index
    %c0_94 = arith.constant 0 : index
    %63 = vector.load %arg11[%c0_92, %c0_93, %c10, %c0_94] : memref<2x16x16x32xf32, #tpu.memory_space<vmem>>, vector<2x16x1x32xf32>
    %64 = vector.shape_cast %63 : vector<2x16x1x32xf32> to vector<2x16x32xf32>
    %c0_95 = arith.constant 0 : index
    %c0_96 = arith.constant 0 : index
    %c11 = arith.constant 11 : index
    %c0_97 = arith.constant 0 : index
    %65 = vector.load %arg11[%c0_95, %c0_96, %c11, %c0_97] : memref<2x16x16x32xf32, #tpu.memory_space<vmem>>, vector<2x16x1x32xf32>
    %66 = vector.shape_cast %65 : vector<2x16x1x32xf32> to vector<2x16x32xf32>
    %67 = arith.maximumf %64, %66 : vector<2x16x32xf32>
    %c0_98 = arith.constant 0 : index
    %c0_99 = arith.constant 0 : index
    %c5_100 = arith.constant 5 : index
    %c0_101 = arith.constant 0 : index
    %68 = vector.load %arg12[%c0_98, %c0_99, %c5_100, %c0_101] : memref<2x16x8x32xf32, #tpu.memory_space<vmem>>, vector<2x16x1x32xf32>
    %69 = vector.shape_cast %68 : vector<2x16x1x32xf32> to vector<2x16x32xf32>
    %70 = vector.shape_cast %67 : vector<2x16x32xf32> to vector<2x16x1x32xf32>
    tpu.vector_store %arg12[%c0_98, %c0_99, %c5_100, %c0_101], %70 {strides = array<i32>} : memref<2x16x8x32xf32, #tpu.memory_space<vmem>>, vector<2x16x1x32xf32>,
    %c0_102 = arith.constant 0 : index
    %c0_103 = arith.constant 0 : index
    %c12 = arith.constant 12 : index
    %c0_104 = arith.constant 0 : index
    %71 = vector.load %arg11[%c0_102, %c0_103, %c12, %c0_104] : memref<2x16x16x32xf32, #tpu.memory_space<vmem>>, vector<2x16x1x32xf32>
    %72 = vector.shape_cast %71 : vector<2x16x1x32xf32> to vector<2x16x32xf32>
    %c0_105 = arith.constant 0 : index
    %c0_106 = arith.constant 0 : index
    %c13 = arith.constant 13 : index
    %c0_107 = arith.constant 0 : index
    %73 = vector.load %arg11[%c0_105, %c0_106, %c13, %c0_107] : memref<2x16x16x32xf32, #tpu.memory_space<vmem>>, vector<2x16x1x32xf32>
    %74 = vector.shape_cast %73 : vector<2x16x1x32xf32> to vector<2x16x32xf32>
    %75 = arith.maximumf %72, %74 : vector<2x16x32xf32>
    %c0_108 = arith.constant 0 : index
    %c0_109 = arith.constant 0 : index
    %c6_110 = arith.constant 6 : index
    %c0_111 = arith.constant 0 : index
    %76 = vector.load %arg12[%c0_108, %c0_109, %c6_110, %c0_111] : memref<2x16x8x32xf32, #tpu.memory_space<vmem>>, vector<2x16x1x32xf32>
    %77 = vector.shape_cast %76 : vector<2x16x1x32xf32> to vector<2x16x32xf32>
    %78 = vector.shape_cast %75 : vector<2x16x32xf32> to vector<2x16x1x32xf32>
    tpu.vector_store %arg12[%c0_108, %c0_109, %c6_110, %c0_111], %78 {strides = array<i32>} : memref<2x16x8x32xf32, #tpu.memory_space<vmem>>, vector<2x16x1x32xf32>,
    %c0_112 = arith.constant 0 : index
    %c0_113 = arith.constant 0 : index
    %c14 = arith.constant 14 : index
    %c0_114 = arith.constant 0 : index
    %79 = vector.load %arg11[%c0_112, %c0_113, %c14, %c0_114] : memref<2x16x16x32xf32, #tpu.memory_space<vmem>>, vector<2x16x1x32xf32>
    %80 = vector.shape_cast %79 : vector<2x16x1x32xf32> to vector<2x16x32xf32>
    %c0_115 = arith.constant 0 : index
    %c0_116 = arith.constant 0 : index
    %c15 = arith.constant 15 : index
    %c0_117 = arith.constant 0 : index
    %81 = vector.load %arg11[%c0_115, %c0_116, %c15, %c0_117] : memref<2x16x16x32xf32, #tpu.memory_space<vmem>>, vector<2x16x1x32xf32>
    %82 = vector.shape_cast %81 : vector<2x16x1x32xf32> to vector<2x16x32xf32>
    %83 = arith.maximumf %80, %82 : vector<2x16x32xf32>
    %c0_118 = arith.constant 0 : index
    %c0_119 = arith.constant 0 : index
    %c7_120 = arith.constant 7 : index
    %c0_121 = arith.constant 0 : index
    %84 = vector.load %arg12[%c0_118, %c0_119, %c7_120, %c0_121] : memref<2x16x8x32xf32, #tpu.memory_space<vmem>>, vector<2x16x1x32xf32>
    %85 = vector.shape_cast %84 : vector<2x16x1x32xf32> to vector<2x16x32xf32>
    %86 = vector.shape_cast %83 : vector<2x16x32xf32> to vector<2x16x1x32xf32>
    tpu.vector_store %arg12[%c0_118, %c0_119, %c7_120, %c0_121], %86 {strides = array<i32>} : memref<2x16x8x32xf32, #tpu.memory_space<vmem>>, vector<2x16x1x32xf32>,
    %cst_122 = arith.constant 0.000000e+00 : f32
    %87 = vector.broadcast %cst_122 : f32 to vector<2x10x10x32xf32>
    %c0_123 = arith.constant 0 : index
    %c0_124 = arith.constant 0 : index
    %c0_125 = arith.constant 0 : index
    %c0_126 = arith.constant 0 : index
    %88 = vector.load %arg13[%c0_123, %c0_124, %c0_125, %c0_126] : memref<2x10x10x32xf32, #tpu.memory_space<vmem>>, vector<2x10x10x32xf32>
    tpu.vector_store %arg13[%c0_123, %c0_124, %c0_125, %c0_126], %87 {strides = array<i32>} : memref<2x10x10x32xf32, #tpu.memory_space<vmem>>, vector<2x10x10x32xf32>,
    %c0_127 = arith.constant 0 : index
    %c0_128 = arith.constant 0 : index
    %c0_129 = arith.constant 0 : index
    %c0_130 = arith.constant 0 : index
    %89 = vector.load %arg12[%c0_127, %c0_128, %c0_129, %c0_130] : memref<2x16x8x32xf32, #tpu.memory_space<vmem>>, vector<2x1x8x32xf32>
    %90 = vector.shape_cast %89 : vector<2x1x8x32xf32> to vector<2x8x32xf32>
    %c0_131 = arith.constant 0 : index
    %c1_132 = arith.constant 1 : index
    %c0_133 = arith.constant 0 : index
    %c0_134 = arith.constant 0 : index
    %91 = vector.load %arg12[%c0_131, %c1_132, %c0_133, %c0_134] : memref<2x16x8x32xf32, #tpu.memory_space<vmem>>, vector<2x1x8x32xf32>
    %92 = vector.shape_cast %91 : vector<2x1x8x32xf32> to vector<2x8x32xf32>
    %93 = arith.maximumf %90, %92 : vector<2x8x32xf32>
    %c0_135 = arith.constant 0 : index
    %c0_136 = arith.constant 0 : index
    %94 = vector.load %arg3[%c0_135, %c0_136] : memref<1x32xf32, #tpu.memory_space<vmem>>, vector<1x32xf32>
    %95 = vector.shape_cast %94 : vector<1x32xf32> to vector<1x1x32xf32>
    %96 = vector.broadcast %95 : vector<1x1x32xf32> to vector<2x8x32xf32>
    %97 = arith.addf %93, %96 : vector<2x8x32xf32>
    %cst_137 = arith.constant 0.000000e+00 : f32
    %98 = vector.broadcast %cst_137 : f32 to vector<2x8x32xf32>
    %99 = arith.maximumf %97, %98 : vector<2x8x32xf32>
    %c0_138 = arith.constant 0 : index
    %c1_139 = arith.constant 1 : index
    %c1_140 = arith.constant 1 : index
    %c0_141 = arith.constant 0 : index
    %100 = vector.load %arg13[%c0_138, %c1_139, %c1_140, %c0_141] : memref<2x10x10x32xf32, #tpu.memory_space<vmem>>, vector<2x1x8x32xf32>
    %101 = vector.shape_cast %100 : vector<2x1x8x32xf32> to vector<2x8x32xf32>
    %102 = vector.shape_cast %99 : vector<2x8x32xf32> to vector<2x1x8x32xf32>
    tpu.vector_store %arg13[%c0_138, %c1_139, %c1_140, %c0_141], %102 {strides = array<i32>} : memref<2x10x10x32xf32, #tpu.memory_space<vmem>>, vector<2x1x8x32xf32>,
    %c0_142 = arith.constant 0 : index
    %c2_143 = arith.constant 2 : index
    %c0_144 = arith.constant 0 : index
    %c0_145 = arith.constant 0 : index
    %103 = vector.load %arg12[%c0_142, %c2_143, %c0_144, %c0_145] : memref<2x16x8x32xf32, #tpu.memory_space<vmem>>, vector<2x1x8x32xf32>
    %104 = vector.shape_cast %103 : vector<2x1x8x32xf32> to vector<2x8x32xf32>
    %c0_146 = arith.constant 0 : index
    %c3_147 = arith.constant 3 : index
    %c0_148 = arith.constant 0 : index
    %c0_149 = arith.constant 0 : index
    %105 = vector.load %arg12[%c0_146, %c3_147, %c0_148, %c0_149] : memref<2x16x8x32xf32, #tpu.memory_space<vmem>>, vector<2x1x8x32xf32>
    %106 = vector.shape_cast %105 : vector<2x1x8x32xf32> to vector<2x8x32xf32>
    %107 = arith.maximumf %104, %106 : vector<2x8x32xf32>
    %c0_150 = arith.constant 0 : index
    %c0_151 = arith.constant 0 : index
    %108 = vector.load %arg3[%c0_150, %c0_151] : memref<1x32xf32, #tpu.memory_space<vmem>>, vector<1x32xf32>
    %109 = vector.shape_cast %108 : vector<1x32xf32> to vector<1x1x32xf32>
    %110 = vector.broadcast %109 : vector<1x1x32xf32> to vector<2x8x32xf32>
    %111 = arith.addf %107, %110 : vector<2x8x32xf32>
    %cst_152 = arith.constant 0.000000e+00 : f32
    %112 = vector.broadcast %cst_152 : f32 to vector<2x8x32xf32>
    %113 = arith.maximumf %111, %112 : vector<2x8x32xf32>
    %c0_153 = arith.constant 0 : index
    %c2_154 = arith.constant 2 : index
    %c1_155 = arith.constant 1 : index
    %c0_156 = arith.constant 0 : index
    %114 = vector.load %arg13[%c0_153, %c2_154, %c1_155, %c0_156] : memref<2x10x10x32xf32, #tpu.memory_space<vmem>>, vector<2x1x8x32xf32>
    %115 = vector.shape_cast %114 : vector<2x1x8x32xf32> to vector<2x8x32xf32>
    %116 = vector.shape_cast %113 : vector<2x8x32xf32> to vector<2x1x8x32xf32>
    tpu.vector_store %arg13[%c0_153, %c2_154, %c1_155, %c0_156], %116 {strides = array<i32>} : memref<2x10x10x32xf32, #tpu.memory_space<vmem>>, vector<2x1x8x32xf32>,
    %c0_157 = arith.constant 0 : index
    %c4_158 = arith.constant 4 : index
    %c0_159 = arith.constant 0 : index
    %c0_160 = arith.constant 0 : index
    %117 = vector.load %arg12[%c0_157, %c4_158, %c0_159, %c0_160] : memref<2x16x8x32xf32, #tpu.memory_space<vmem>>, vector<2x1x8x32xf32>
    %118 = vector.shape_cast %117 : vector<2x1x8x32xf32> to vector<2x8x32xf32>
    %c0_161 = arith.constant 0 : index
    %c5_162 = arith.constant 5 : index
    %c0_163 = arith.constant 0 : index
    %c0_164 = arith.constant 0 : index
    %119 = vector.load %arg12[%c0_161, %c5_162, %c0_163, %c0_164] : memref<2x16x8x32xf32, #tpu.memory_space<vmem>>, vector<2x1x8x32xf32>
    %120 = vector.shape_cast %119 : vector<2x1x8x32xf32> to vector<2x8x32xf32>
    %121 = arith.maximumf %118, %120 : vector<2x8x32xf32>
    %c0_165 = arith.constant 0 : index
    %c0_166 = arith.constant 0 : index
    %122 = vector.load %arg3[%c0_165, %c0_166] : memref<1x32xf32, #tpu.memory_space<vmem>>, vector<1x32xf32>
    %123 = vector.shape_cast %122 : vector<1x32xf32> to vector<1x1x32xf32>
    %124 = vector.broadcast %123 : vector<1x1x32xf32> to vector<2x8x32xf32>
    %125 = arith.addf %121, %124 : vector<2x8x32xf32>
    %cst_167 = arith.constant 0.000000e+00 : f32
    %126 = vector.broadcast %cst_167 : f32 to vector<2x8x32xf32>
    %127 = arith.maximumf %125, %126 : vector<2x8x32xf32>
    %c0_168 = arith.constant 0 : index
    %c3_169 = arith.constant 3 : index
    %c1_170 = arith.constant 1 : index
    %c0_171 = arith.constant 0 : index
    %128 = vector.load %arg13[%c0_168, %c3_169, %c1_170, %c0_171] : memref<2x10x10x32xf32, #tpu.memory_space<vmem>>, vector<2x1x8x32xf32>
    %129 = vector.shape_cast %128 : vector<2x1x8x32xf32> to vector<2x8x32xf32>
    %130 = vector.shape_cast %127 : vector<2x8x32xf32> to vector<2x1x8x32xf32>
    tpu.vector_store %arg13[%c0_168, %c3_169, %c1_170, %c0_171], %130 {strides = array<i32>} : memref<2x10x10x32xf32, #tpu.memory_space<vmem>>, vector<2x1x8x32xf32>,
    %c0_172 = arith.constant 0 : index
    %c6_173 = arith.constant 6 : index
    %c0_174 = arith.constant 0 : index
    %c0_175 = arith.constant 0 : index
    %131 = vector.load %arg12[%c0_172, %c6_173, %c0_174, %c0_175] : memref<2x16x8x32xf32, #tpu.memory_space<vmem>>, vector<2x1x8x32xf32>
    %132 = vector.shape_cast %131 : vector<2x1x8x32xf32> to vector<2x8x32xf32>
    %c0_176 = arith.constant 0 : index
    %c7_177 = arith.constant 7 : index
    %c0_178 = arith.constant 0 : index
    %c0_179 = arith.constant 0 : index
    %133 = vector.load %arg12[%c0_176, %c7_177, %c0_178, %c0_179] : memref<2x16x8x32xf32, #tpu.memory_space<vmem>>, vector<2x1x8x32xf32>
    %134 = vector.shape_cast %133 : vector<2x1x8x32xf32> to vector<2x8x32xf32>
    %135 = arith.maximumf %132, %134 : vector<2x8x32xf32>
    %c0_180 = arith.constant 0 : index
    %c0_181 = arith.constant 0 : index
    %136 = vector.load %arg3[%c0_180, %c0_181] : memref<1x32xf32, #tpu.memory_space<vmem>>, vector<1x32xf32>
    %137 = vector.shape_cast %136 : vector<1x32xf32> to vector<1x1x32xf32>
    %138 = vector.broadcast %137 : vector<1x1x32xf32> to vector<2x8x32xf32>
    %139 = arith.addf %135, %138 : vector<2x8x32xf32>
    %cst_182 = arith.constant 0.000000e+00 : f32
    %140 = vector.broadcast %cst_182 : f32 to vector<2x8x32xf32>
    %141 = arith.maximumf %139, %140 : vector<2x8x32xf32>
    %c0_183 = arith.constant 0 : index
    %c4_184 = arith.constant 4 : index
    %c1_185 = arith.constant 1 : index
    %c0_186 = arith.constant 0 : index
    %142 = vector.load %arg13[%c0_183, %c4_184, %c1_185, %c0_186] : memref<2x10x10x32xf32, #tpu.memory_space<vmem>>, vector<2x1x8x32xf32>
    %143 = vector.shape_cast %142 : vector<2x1x8x32xf32> to vector<2x8x32xf32>
    %144 = vector.shape_cast %141 : vector<2x8x32xf32> to vector<2x1x8x32xf32>
    tpu.vector_store %arg13[%c0_183, %c4_184, %c1_185, %c0_186], %144 {strides = array<i32>} : memref<2x10x10x32xf32, #tpu.memory_space<vmem>>, vector<2x1x8x32xf32>,
    %c0_187 = arith.constant 0 : index
    %c8_188 = arith.constant 8 : index
    %c0_189 = arith.constant 0 : index
    %c0_190 = arith.constant 0 : index
    %145 = vector.load %arg12[%c0_187, %c8_188, %c0_189, %c0_190] : memref<2x16x8x32xf32, #tpu.memory_space<vmem>>, vector<2x1x8x32xf32>
    %146 = vector.shape_cast %145 : vector<2x1x8x32xf32> to vector<2x8x32xf32>
    %c0_191 = arith.constant 0 : index
    %c9_192 = arith.constant 9 : index
    %c0_193 = arith.constant 0 : index
    %c0_194 = arith.constant 0 : index
    %147 = vector.load %arg12[%c0_191, %c9_192, %c0_193, %c0_194] : memref<2x16x8x32xf32, #tpu.memory_space<vmem>>, vector<2x1x8x32xf32>
    %148 = vector.shape_cast %147 : vector<2x1x8x32xf32> to vector<2x8x32xf32>
    %149 = arith.maximumf %146, %148 : vector<2x8x32xf32>
    %c0_195 = arith.constant 0 : index
    %c0_196 = arith.constant 0 : index
    %150 = vector.load %arg3[%c0_195, %c0_196] : memref<1x32xf32, #tpu.memory_space<vmem>>, vector<1x32xf32>
    %151 = vector.shape_cast %150 : vector<1x32xf32> to vector<1x1x32xf32>
    %152 = vector.broadcast %151 : vector<1x1x32xf32> to vector<2x8x32xf32>
    %153 = arith.addf %149, %152 : vector<2x8x32xf32>
    %cst_197 = arith.constant 0.000000e+00 : f32
    %154 = vector.broadcast %cst_197 : f32 to vector<2x8x32xf32>
    %155 = arith.maximumf %153, %154 : vector<2x8x32xf32>
    %c0_198 = arith.constant 0 : index
    %c5_199 = arith.constant 5 : index
    %c1_200 = arith.constant 1 : index
    %c0_201 = arith.constant 0 : index
    %156 = vector.load %arg13[%c0_198, %c5_199, %c1_200, %c0_201] : memref<2x10x10x32xf32, #tpu.memory_space<vmem>>, vector<2x1x8x32xf32>
    %157 = vector.shape_cast %156 : vector<2x1x8x32xf32> to vector<2x8x32xf32>
    %158 = vector.shape_cast %155 : vector<2x8x32xf32> to vector<2x1x8x32xf32>
    tpu.vector_store %arg13[%c0_198, %c5_199, %c1_200, %c0_201], %158 {strides = array<i32>} : memref<2x10x10x32xf32, #tpu.memory_space<vmem>>, vector<2x1x8x32xf32>,
    %c0_202 = arith.constant 0 : index
    %c10_203 = arith.constant 10 : index
    %c0_204 = arith.constant 0 : index
    %c0_205 = arith.constant 0 : index
    %159 = vector.load %arg12[%c0_202, %c10_203, %c0_204, %c0_205] : memref<2x16x8x32xf32, #tpu.memory_space<vmem>>, vector<2x1x8x32xf32>
    %160 = vector.shape_cast %159 : vector<2x1x8x32xf32> to vector<2x8x32xf32>
    %c0_206 = arith.constant 0 : index
    %c11_207 = arith.constant 11 : index
    %c0_208 = arith.constant 0 : index
    %c0_209 = arith.constant 0 : index
    %161 = vector.load %arg12[%c0_206, %c11_207, %c0_208, %c0_209] : memref<2x16x8x32xf32, #tpu.memory_space<vmem>>, vector<2x1x8x32xf32>
    %162 = vector.shape_cast %161 : vector<2x1x8x32xf32> to vector<2x8x32xf32>
    %163 = arith.maximumf %160, %162 : vector<2x8x32xf32>
    %c0_210 = arith.constant 0 : index
    %c0_211 = arith.constant 0 : index
    %164 = vector.load %arg3[%c0_210, %c0_211] : memref<1x32xf32, #tpu.memory_space<vmem>>, vector<1x32xf32>
    %165 = vector.shape_cast %164 : vector<1x32xf32> to vector<1x1x32xf32>
    %166 = vector.broadcast %165 : vector<1x1x32xf32> to vector<2x8x32xf32>
    %167 = arith.addf %163, %166 : vector<2x8x32xf32>
    %cst_212 = arith.constant 0.000000e+00 : f32
    %168 = vector.broadcast %cst_212 : f32 to vector<2x8x32xf32>
    %169 = arith.maximumf %167, %168 : vector<2x8x32xf32>
    %c0_213 = arith.constant 0 : index
    %c6_214 = arith.constant 6 : index
    %c1_215 = arith.constant 1 : index
    %c0_216 = arith.constant 0 : index
    %170 = vector.load %arg13[%c0_213, %c6_214, %c1_215, %c0_216] : memref<2x10x10x32xf32, #tpu.memory_space<vmem>>, vector<2x1x8x32xf32>
    %171 = vector.shape_cast %170 : vector<2x1x8x32xf32> to vector<2x8x32xf32>
    %172 = vector.shape_cast %169 : vector<2x8x32xf32> to vector<2x1x8x32xf32>
    tpu.vector_store %arg13[%c0_213, %c6_214, %c1_215, %c0_216], %172 {strides = array<i32>} : memref<2x10x10x32xf32, #tpu.memory_space<vmem>>, vector<2x1x8x32xf32>,
    %c0_217 = arith.constant 0 : index
    %c12_218 = arith.constant 12 : index
    %c0_219 = arith.constant 0 : index
    %c0_220 = arith.constant 0 : index
    %173 = vector.load %arg12[%c0_217, %c12_218, %c0_219, %c0_220] : memref<2x16x8x32xf32, #tpu.memory_space<vmem>>, vector<2x1x8x32xf32>
    %174 = vector.shape_cast %173 : vector<2x1x8x32xf32> to vector<2x8x32xf32>
    %c0_221 = arith.constant 0 : index
    %c13_222 = arith.constant 13 : index
    %c0_223 = arith.constant 0 : index
    %c0_224 = arith.constant 0 : index
    %175 = vector.load %arg12[%c0_221, %c13_222, %c0_223, %c0_224] : memref<2x16x8x32xf32, #tpu.memory_space<vmem>>, vector<2x1x8x32xf32>
    %176 = vector.shape_cast %175 : vector<2x1x8x32xf32> to vector<2x8x32xf32>
    %177 = arith.maximumf %174, %176 : vector<2x8x32xf32>
    %c0_225 = arith.constant 0 : index
    %c0_226 = arith.constant 0 : index
    %178 = vector.load %arg3[%c0_225, %c0_226] : memref<1x32xf32, #tpu.memory_space<vmem>>, vector<1x32xf32>
    %179 = vector.shape_cast %178 : vector<1x32xf32> to vector<1x1x32xf32>
    %180 = vector.broadcast %179 : vector<1x1x32xf32> to vector<2x8x32xf32>
    %181 = arith.addf %177, %180 : vector<2x8x32xf32>
    %cst_227 = arith.constant 0.000000e+00 : f32
    %182 = vector.broadcast %cst_227 : f32 to vector<2x8x32xf32>
    %183 = arith.maximumf %181, %182 : vector<2x8x32xf32>
    %c0_228 = arith.constant 0 : index
    %c7_229 = arith.constant 7 : index
    %c1_230 = arith.constant 1 : index
    %c0_231 = arith.constant 0 : index
    %184 = vector.load %arg13[%c0_228, %c7_229, %c1_230, %c0_231] : memref<2x10x10x32xf32, #tpu.memory_space<vmem>>, vector<2x1x8x32xf32>
    %185 = vector.shape_cast %184 : vector<2x1x8x32xf32> to vector<2x8x32xf32>
    %186 = vector.shape_cast %183 : vector<2x8x32xf32> to vector<2x1x8x32xf32>
    tpu.vector_store %arg13[%c0_228, %c7_229, %c1_230, %c0_231], %186 {strides = array<i32>} : memref<2x10x10x32xf32, #tpu.memory_space<vmem>>, vector<2x1x8x32xf32>,
    %c0_232 = arith.constant 0 : index
    %c14_233 = arith.constant 14 : index
    %c0_234 = arith.constant 0 : index
    %c0_235 = arith.constant 0 : index
    %187 = vector.load %arg12[%c0_232, %c14_233, %c0_234, %c0_235] : memref<2x16x8x32xf32, #tpu.memory_space<vmem>>, vector<2x1x8x32xf32>
    %188 = vector.shape_cast %187 : vector<2x1x8x32xf32> to vector<2x8x32xf32>
    %c0_236 = arith.constant 0 : index
    %c15_237 = arith.constant 15 : index
    %c0_238 = arith.constant 0 : index
    %c0_239 = arith.constant 0 : index
    %189 = vector.load %arg12[%c0_236, %c15_237, %c0_238, %c0_239] : memref<2x16x8x32xf32, #tpu.memory_space<vmem>>, vector<2x1x8x32xf32>
    %190 = vector.shape_cast %189 : vector<2x1x8x32xf32> to vector<2x8x32xf32>
    %191 = arith.maximumf %188, %190 : vector<2x8x32xf32>
    %c0_240 = arith.constant 0 : index
    %c0_241 = arith.constant 0 : index
    %192 = vector.load %arg3[%c0_240, %c0_241] : memref<1x32xf32, #tpu.memory_space<vmem>>, vector<1x32xf32>
    %193 = vector.shape_cast %192 : vector<1x32xf32> to vector<1x1x32xf32>
    %194 = vector.broadcast %193 : vector<1x1x32xf32> to vector<2x8x32xf32>
    %195 = arith.addf %191, %194 : vector<2x8x32xf32>
    %cst_242 = arith.constant 0.000000e+00 : f32
    %196 = vector.broadcast %cst_242 : f32 to vector<2x8x32xf32>
    %197 = arith.maximumf %195, %196 : vector<2x8x32xf32>
    %c0_243 = arith.constant 0 : index
    %c8_244 = arith.constant 8 : index
    %c1_245 = arith.constant 1 : index
    %c0_246 = arith.constant 0 : index
    %198 = vector.load %arg13[%c0_243, %c8_244, %c1_245, %c0_246] : memref<2x10x10x32xf32, #tpu.memory_space<vmem>>, vector<2x1x8x32xf32>
    %199 = vector.shape_cast %198 : vector<2x1x8x32xf32> to vector<2x8x32xf32>
    %200 = vector.shape_cast %197 : vector<2x8x32xf32> to vector<2x1x8x32xf32>
    tpu.vector_store %arg13[%c0_243, %c8_244, %c1_245, %c0_246], %200 {strides = array<i32>} : memref<2x10x10x32xf32, #tpu.memory_space<vmem>>, vector<2x1x8x32xf32>,
    %c0_247 = arith.constant 0 : index
    %c0_248 = arith.constant 0 : index
    %c0_249 = arith.constant 0 : index
    %c0_250 = arith.constant 0 : index
    %201 = vector.load %arg13[%c0_247, %c0_248, %c0_249, %c0_250] : memref<2x10x10x32xf32, #tpu.memory_space<vmem>>, vector<2x8x8x32xf32>
    %202 = vector.shape_cast %201 : vector<2x8x8x32xf32> to vector<128x32xf32>
    %c0_251 = arith.constant 0 : index
    %c0_252 = arith.constant 0 : index
    %c1_253 = arith.constant 1 : index
    %c0_254 = arith.constant 0 : index
    %203 = vector.load %arg13[%c0_251, %c0_252, %c1_253, %c0_254] : memref<2x10x10x32xf32, #tpu.memory_space<vmem>>, vector<2x8x8x32xf32>
    %204 = vector.shape_cast %203 : vector<2x8x8x32xf32> to vector<128x32xf32>
    %c0_255 = arith.constant 0 : index
    %c0_256 = arith.constant 0 : index
    %c2_257 = arith.constant 2 : index
    %c0_258 = arith.constant 0 : index
    %205 = vector.load %arg13[%c0_255, %c0_256, %c2_257, %c0_258] : memref<2x10x10x32xf32, #tpu.memory_space<vmem>>, vector<2x8x8x32xf32>
    %206 = vector.shape_cast %205 : vector<2x8x8x32xf32> to vector<128x32xf32>
    %c0_259 = arith.constant 0 : index
    %c1_260 = arith.constant 1 : index
    %c0_261 = arith.constant 0 : index
    %c0_262 = arith.constant 0 : index
    %207 = vector.load %arg13[%c0_259, %c1_260, %c0_261, %c0_262] : memref<2x10x10x32xf32, #tpu.memory_space<vmem>>, vector<2x8x8x32xf32>
    %208 = vector.shape_cast %207 : vector<2x8x8x32xf32> to vector<128x32xf32>
    %c0_263 = arith.constant 0 : index
    %c1_264 = arith.constant 1 : index
    %c1_265 = arith.constant 1 : index
    %c0_266 = arith.constant 0 : index
    %209 = vector.load %arg13[%c0_263, %c1_264, %c1_265, %c0_266] : memref<2x10x10x32xf32, #tpu.memory_space<vmem>>, vector<2x8x8x32xf32>
    %210 = vector.shape_cast %209 : vector<2x8x8x32xf32> to vector<128x32xf32>
    %c0_267 = arith.constant 0 : index
    %c1_268 = arith.constant 1 : index
    %c2_269 = arith.constant 2 : index
    %c0_270 = arith.constant 0 : index
    %211 = vector.load %arg13[%c0_267, %c1_268, %c2_269, %c0_270] : memref<2x10x10x32xf32, #tpu.memory_space<vmem>>, vector<2x8x8x32xf32>
    %212 = vector.shape_cast %211 : vector<2x8x8x32xf32> to vector<128x32xf32>
    %c0_271 = arith.constant 0 : index
    %c2_272 = arith.constant 2 : index
    %c0_273 = arith.constant 0 : index
    %c0_274 = arith.constant 0 : index
    %213 = vector.load %arg13[%c0_271, %c2_272, %c0_273, %c0_274] : memref<2x10x10x32xf32, #tpu.memory_space<vmem>>, vector<2x8x8x32xf32>
    %214 = vector.shape_cast %213 : vector<2x8x8x32xf32> to vector<128x32xf32>
    %c0_275 = arith.constant 0 : index
    %c2_276 = arith.constant 2 : index
    %c1_277 = arith.constant 1 : index
    %c0_278 = arith.constant 0 : index
    %215 = vector.load %arg13[%c0_275, %c2_276, %c1_277, %c0_278] : memref<2x10x10x32xf32, #tpu.memory_space<vmem>>, vector<2x8x8x32xf32>
    %216 = vector.shape_cast %215 : vector<2x8x8x32xf32> to vector<128x32xf32>
    %c0_279 = arith.constant 0 : index
    %c2_280 = arith.constant 2 : index
    %c2_281 = arith.constant 2 : index
    %c0_282 = arith.constant 0 : index
    %217 = vector.load %arg13[%c0_279, %c2_280, %c2_281, %c0_282] : memref<2x10x10x32xf32, #tpu.memory_space<vmem>>, vector<2x8x8x32xf32>
    %218 = vector.shape_cast %217 : vector<2x8x8x32xf32> to vector<128x32xf32>
    %219 = tpu.concatenate %202, %204, %206, %208, %210, %212, %214, %216, %218 in 1 : vector<128x32xf32>, vector<128x32xf32>, vector<128x32xf32>, vector<128x32xf32>, vector<128x32xf32>, vector<128x32xf32>, vector<128x32xf32>, vector<128x32xf32>, vector<128x32xf32> -> vector<128x288xf32>
    %c0_283 = arith.constant 0 : index
    %c0_284 = arith.constant 0 : index
    %220 = vector.load %arg4[%c0_283, %c0_284] : memref<288x64xf32, #tpu.memory_space<vmem>>, vector<288x64xf32>
    %cst_285 = arith.constant dense<0.000000e+00> : vector<128x64xf32>
    %221 = tpu.matmul %219, %220, %cst_285 {dimension_numbers = #tpu.dot_dimension_numbers<[1], [0], [0], [1], [0, 0, 1, 1], [], []>} : vector<128x288xf32>, vector<288x64xf32>, vector<128x64xf32> -> vector<128x64xf32>
    %222 = vector.shape_cast %221 : vector<128x64xf32> to vector<2x8x8x64xf32>
    %c0_286 = arith.constant 0 : index
    %c0_287 = arith.constant 0 : index
    %c0_288 = arith.constant 0 : index
    %c0_289 = arith.constant 0 : index
    %223 = vector.load %arg14[%c0_286, %c0_287, %c0_288, %c0_289] : memref<2x8x8x64xf32, #tpu.memory_space<vmem>>, vector<2x8x8x64xf32>
    tpu.vector_store %arg14[%c0_286, %c0_287, %c0_288, %c0_289], %222 {strides = array<i32>} : memref<2x8x8x64xf32, #tpu.memory_space<vmem>>, vector<2x8x8x64xf32>,
    %c0_290 = arith.constant 0 : index
    %c0_291 = arith.constant 0 : index
    %c0_292 = arith.constant 0 : index
    %c0_293 = arith.constant 0 : index
    %224 = vector.load %arg14[%c0_290, %c0_291, %c0_292, %c0_293] : memref<2x8x8x64xf32, #tpu.memory_space<vmem>>, vector<2x8x1x64xf32>
    %225 = vector.shape_cast %224 : vector<2x8x1x64xf32> to vector<2x8x64xf32>
    %c0_294 = arith.constant 0 : index
    %c0_295 = arith.constant 0 : index
    %c1_296 = arith.constant 1 : index
    %c0_297 = arith.constant 0 : index
    %226 = vector.load %arg14[%c0_294, %c0_295, %c1_296, %c0_297] : memref<2x8x8x64xf32, #tpu.memory_space<vmem>>, vector<2x8x1x64xf32>
    %227 = vector.shape_cast %226 : vector<2x8x1x64xf32> to vector<2x8x64xf32>
    %228 = arith.maximumf %225, %227 : vector<2x8x64xf32>
    %c0_298 = arith.constant 0 : index
    %c0_299 = arith.constant 0 : index
    %c0_300 = arith.constant 0 : index
    %229 = vector.load %arg15[%c0_298, %c0_299, %c0_300] : memref<2x8x256xf32, #tpu.memory_space<vmem>>, vector<2x8x64xf32>
    tpu.vector_store %arg15[%c0_298, %c0_299, %c0_300], %228 {strides = array<i32>} : memref<2x8x256xf32, #tpu.memory_space<vmem>>, vector<2x8x64xf32>,
    %c0_301 = arith.constant 0 : index
    %c0_302 = arith.constant 0 : index
    %c2_303 = arith.constant 2 : index
    %c0_304 = arith.constant 0 : index
    %230 = vector.load %arg14[%c0_301, %c0_302, %c2_303, %c0_304] : memref<2x8x8x64xf32, #tpu.memory_space<vmem>>, vector<2x8x1x64xf32>
    %231 = vector.shape_cast %230 : vector<2x8x1x64xf32> to vector<2x8x64xf32>
    %c0_305 = arith.constant 0 : index
    %c0_306 = arith.constant 0 : index
    %c3_307 = arith.constant 3 : index
    %c0_308 = arith.constant 0 : index
    %232 = vector.load %arg14[%c0_305, %c0_306, %c3_307, %c0_308] : memref<2x8x8x64xf32, #tpu.memory_space<vmem>>, vector<2x8x1x64xf32>
    %233 = vector.shape_cast %232 : vector<2x8x1x64xf32> to vector<2x8x64xf32>
    %234 = arith.maximumf %231, %233 : vector<2x8x64xf32>
    %c0_309 = arith.constant 0 : index
    %c0_310 = arith.constant 0 : index
    %c64 = arith.constant 64 : index
    %235 = vector.load %arg15[%c0_309, %c0_310, %c64] : memref<2x8x256xf32, #tpu.memory_space<vmem>>, vector<2x8x64xf32>
    tpu.vector_store %arg15[%c0_309, %c0_310, %c64], %234 {strides = array<i32>} : memref<2x8x256xf32, #tpu.memory_space<vmem>>, vector<2x8x64xf32>,
    %c0_311 = arith.constant 0 : index
    %c0_312 = arith.constant 0 : index
    %c4_313 = arith.constant 4 : index
    %c0_314 = arith.constant 0 : index
    %236 = vector.load %arg14[%c0_311, %c0_312, %c4_313, %c0_314] : memref<2x8x8x64xf32, #tpu.memory_space<vmem>>, vector<2x8x1x64xf32>
    %237 = vector.shape_cast %236 : vector<2x8x1x64xf32> to vector<2x8x64xf32>
    %c0_315 = arith.constant 0 : index
    %c0_316 = arith.constant 0 : index
    %c5_317 = arith.constant 5 : index
    %c0_318 = arith.constant 0 : index
    %238 = vector.load %arg14[%c0_315, %c0_316, %c5_317, %c0_318] : memref<2x8x8x64xf32, #tpu.memory_space<vmem>>, vector<2x8x1x64xf32>
    %239 = vector.shape_cast %238 : vector<2x8x1x64xf32> to vector<2x8x64xf32>
    %240 = arith.maximumf %237, %239 : vector<2x8x64xf32>
    %c0_319 = arith.constant 0 : index
    %c0_320 = arith.constant 0 : index
    %c128 = arith.constant 128 : index
    %241 = vector.load %arg15[%c0_319, %c0_320, %c128] : memref<2x8x256xf32, #tpu.memory_space<vmem>>, vector<2x8x64xf32>
    tpu.vector_store %arg15[%c0_319, %c0_320, %c128], %240 {strides = array<i32>} : memref<2x8x256xf32, #tpu.memory_space<vmem>>, vector<2x8x64xf32>,
    %c0_321 = arith.constant 0 : index
    %c0_322 = arith.constant 0 : index
    %c6_323 = arith.constant 6 : index
    %c0_324 = arith.constant 0 : index
    %242 = vector.load %arg14[%c0_321, %c0_322, %c6_323, %c0_324] : memref<2x8x8x64xf32, #tpu.memory_space<vmem>>, vector<2x8x1x64xf32>
    %243 = vector.shape_cast %242 : vector<2x8x1x64xf32> to vector<2x8x64xf32>
    %c0_325 = arith.constant 0 : index
    %c0_326 = arith.constant 0 : index
    %c7_327 = arith.constant 7 : index
    %c0_328 = arith.constant 0 : index
    %244 = vector.load %arg14[%c0_325, %c0_326, %c7_327, %c0_328] : memref<2x8x8x64xf32, #tpu.memory_space<vmem>>, vector<2x8x1x64xf32>
    %245 = vector.shape_cast %244 : vector<2x8x1x64xf32> to vector<2x8x64xf32>
    %246 = arith.maximumf %243, %245 : vector<2x8x64xf32>
    %c0_329 = arith.constant 0 : index
    %c0_330 = arith.constant 0 : index
    %c192 = arith.constant 192 : index
    %247 = vector.load %arg15[%c0_329, %c0_330, %c192] : memref<2x8x256xf32, #tpu.memory_space<vmem>>, vector<2x8x64xf32>
    tpu.vector_store %arg15[%c0_329, %c0_330, %c192], %246 {strides = array<i32>} : memref<2x8x256xf32, #tpu.memory_space<vmem>>, vector<2x8x64xf32>,
    %c0_331 = arith.constant 0 : index
    %c0_332 = arith.constant 0 : index
    %c0_333 = arith.constant 0 : index
    %248 = vector.load %arg15[%c0_331, %c0_332, %c0_333] : memref<2x8x256xf32, #tpu.memory_space<vmem>>, vector<2x1x256xf32>
    %249 = vector.shape_cast %248 : vector<2x1x256xf32> to vector<2x256xf32>
    %c0_334 = arith.constant 0 : index
    %c1_335 = arith.constant 1 : index
    %c0_336 = arith.constant 0 : index
    %250 = vector.load %arg15[%c0_334, %c1_335, %c0_336] : memref<2x8x256xf32, #tpu.memory_space<vmem>>, vector<2x1x256xf32>
    %251 = vector.shape_cast %250 : vector<2x1x256xf32> to vector<2x256xf32>
    %252 = arith.maximumf %249, %251 : vector<2x256xf32>
    %c0_337 = arith.constant 0 : index
    %c0_338 = arith.constant 0 : index
    %253 = vector.load %arg5[%c0_337, %c0_338] : memref<1x256xf32, #tpu.memory_space<vmem>>, vector<1x256xf32>
    %254 = vector.broadcast %253 : vector<1x256xf32> to vector<2x256xf32>
    %255 = arith.addf %252, %254 : vector<2x256xf32>
    %cst_339 = arith.constant 0.000000e+00 : f32
    %256 = vector.broadcast %cst_339 : f32 to vector<2x256xf32>
    %257 = arith.maximumf %255, %256 : vector<2x256xf32>
    %c0_340 = arith.constant 0 : index
    %c0_341 = arith.constant 0 : index
    %258 = vector.load %arg16[%c0_340, %c0_341] : memref<2x1024xf32, #tpu.memory_space<vmem>>, vector<2x256xf32>
    tpu.vector_store %arg16[%c0_340, %c0_341], %257 {strides = array<i32>} : memref<2x1024xf32, #tpu.memory_space<vmem>>, vector<2x256xf32>,
    %c0_342 = arith.constant 0 : index
    %c2_343 = arith.constant 2 : index
    %c0_344 = arith.constant 0 : index
    %259 = vector.load %arg15[%c0_342, %c2_343, %c0_344] : memref<2x8x256xf32, #tpu.memory_space<vmem>>, vector<2x1x256xf32>
    %260 = vector.shape_cast %259 : vector<2x1x256xf32> to vector<2x256xf32>
    %c0_345 = arith.constant 0 : index
    %c3_346 = arith.constant 3 : index
    %c0_347 = arith.constant 0 : index
    %261 = vector.load %arg15[%c0_345, %c3_346, %c0_347] : memref<2x8x256xf32, #tpu.memory_space<vmem>>, vector<2x1x256xf32>
    %262 = vector.shape_cast %261 : vector<2x1x256xf32> to vector<2x256xf32>
    %263 = arith.maximumf %260, %262 : vector<2x256xf32>
    %c0_348 = arith.constant 0 : index
    %c0_349 = arith.constant 0 : index
    %264 = vector.load %arg5[%c0_348, %c0_349] : memref<1x256xf32, #tpu.memory_space<vmem>>, vector<1x256xf32>
    %265 = vector.broadcast %264 : vector<1x256xf32> to vector<2x256xf32>
    %266 = arith.addf %263, %265 : vector<2x256xf32>
    %cst_350 = arith.constant 0.000000e+00 : f32
    %267 = vector.broadcast %cst_350 : f32 to vector<2x256xf32>
    %268 = arith.maximumf %266, %267 : vector<2x256xf32>
    %c0_351 = arith.constant 0 : index
    %c256 = arith.constant 256 : index
    %269 = vector.load %arg16[%c0_351, %c256] : memref<2x1024xf32, #tpu.memory_space<vmem>>, vector<2x256xf32>
    tpu.vector_store %arg16[%c0_351, %c256], %268 {strides = array<i32>} : memref<2x1024xf32, #tpu.memory_space<vmem>>, vector<2x256xf32>,
    %c0_352 = arith.constant 0 : index
    %c4_353 = arith.constant 4 : index
    %c0_354 = arith.constant 0 : index
    %270 = vector.load %arg15[%c0_352, %c4_353, %c0_354] : memref<2x8x256xf32, #tpu.memory_space<vmem>>, vector<2x1x256xf32>
    %271 = vector.shape_cast %270 : vector<2x1x256xf32> to vector<2x256xf32>
    %c0_355 = arith.constant 0 : index
    %c5_356 = arith.constant 5 : index
    %c0_357 = arith.constant 0 : index
    %272 = vector.load %arg15[%c0_355, %c5_356, %c0_357] : memref<2x8x256xf32, #tpu.memory_space<vmem>>, vector<2x1x256xf32>
    %273 = vector.shape_cast %272 : vector<2x1x256xf32> to vector<2x256xf32>
    %274 = arith.maximumf %271, %273 : vector<2x256xf32>
    %c0_358 = arith.constant 0 : index
    %c0_359 = arith.constant 0 : index
    %275 = vector.load %arg5[%c0_358, %c0_359] : memref<1x256xf32, #tpu.memory_space<vmem>>, vector<1x256xf32>
    %276 = vector.broadcast %275 : vector<1x256xf32> to vector<2x256xf32>
    %277 = arith.addf %274, %276 : vector<2x256xf32>
    %cst_360 = arith.constant 0.000000e+00 : f32
    %278 = vector.broadcast %cst_360 : f32 to vector<2x256xf32>
    %279 = arith.maximumf %277, %278 : vector<2x256xf32>
    %c0_361 = arith.constant 0 : index
    %c512 = arith.constant 512 : index
    %280 = vector.load %arg16[%c0_361, %c512] : memref<2x1024xf32, #tpu.memory_space<vmem>>, vector<2x256xf32>
    tpu.vector_store %arg16[%c0_361, %c512], %279 {strides = array<i32>} : memref<2x1024xf32, #tpu.memory_space<vmem>>, vector<2x256xf32>,
    %c0_362 = arith.constant 0 : index
    %c6_363 = arith.constant 6 : index
    %c0_364 = arith.constant 0 : index
    %281 = vector.load %arg15[%c0_362, %c6_363, %c0_364] : memref<2x8x256xf32, #tpu.memory_space<vmem>>, vector<2x1x256xf32>
    %282 = vector.shape_cast %281 : vector<2x1x256xf32> to vector<2x256xf32>
    %c0_365 = arith.constant 0 : index
    %c7_366 = arith.constant 7 : index
    %c0_367 = arith.constant 0 : index
    %283 = vector.load %arg15[%c0_365, %c7_366, %c0_367] : memref<2x8x256xf32, #tpu.memory_space<vmem>>, vector<2x1x256xf32>
    %284 = vector.shape_cast %283 : vector<2x1x256xf32> to vector<2x256xf32>
    %285 = arith.maximumf %282, %284 : vector<2x256xf32>
    %c0_368 = arith.constant 0 : index
    %c0_369 = arith.constant 0 : index
    %286 = vector.load %arg5[%c0_368, %c0_369] : memref<1x256xf32, #tpu.memory_space<vmem>>, vector<1x256xf32>
    %287 = vector.broadcast %286 : vector<1x256xf32> to vector<2x256xf32>
    %288 = arith.addf %285, %287 : vector<2x256xf32>
    %cst_370 = arith.constant 0.000000e+00 : f32
    %289 = vector.broadcast %cst_370 : f32 to vector<2x256xf32>
    %290 = arith.maximumf %288, %289 : vector<2x256xf32>
    %c0_371 = arith.constant 0 : index
    %c768 = arith.constant 768 : index
    %291 = vector.load %arg16[%c0_371, %c768] : memref<2x1024xf32, #tpu.memory_space<vmem>>, vector<2x256xf32>
    tpu.vector_store %arg16[%c0_371, %c768], %290 {strides = array<i32>} : memref<2x1024xf32, #tpu.memory_space<vmem>>, vector<2x256xf32>,
    %c0_372 = arith.constant 0 : index
    %c0_373 = arith.constant 0 : index
    %292 = vector.load %arg16[%c0_372, %c0_373] : memref<2x1024xf32, #tpu.memory_space<vmem>>, vector<2x1024xf32>
    %c0_374 = arith.constant 0 : index
    %c0_375 = arith.constant 0 : index
    %293 = vector.load %arg6[%c0_374, %c0_375] : memref<1024x128xf32, #tpu.memory_space<vmem>>, vector<1024x128xf32>
    %cst_376 = arith.constant dense<0.000000e+00> : vector<2x128xf32>
    %294 = tpu.matmul %292, %293, %cst_376 {dimension_numbers = #tpu.dot_dimension_numbers<[1], [0], [0], [1], [0, 0, 1, 1], [], []>} : vector<2x1024xf32>, vector<1024x128xf32>, vector<2x128xf32> -> vector<2x128xf32>
    %c0_377 = arith.constant 0 : index
    %c0_378 = arith.constant 0 : index
    %295 = vector.load %arg7[%c0_377, %c0_378] : memref<1x128xf32, #tpu.memory_space<vmem>>, vector<1x128xf32>
    %296 = vector.broadcast %295 : vector<1x128xf32> to vector<2x128xf32>
    %297 = arith.addf %294, %296 : vector<2x128xf32>
    %cst_379 = arith.constant 0.000000e+00 : f32
    %298 = vector.broadcast %cst_379 : f32 to vector<2x128xf32>
    %299 = arith.maximumf %297, %298 : vector<2x128xf32>
    %c0_380 = arith.constant 0 : index
    %c0_381 = arith.constant 0 : index
    %300 = vector.load %arg8[%c0_380, %c0_381] : memref<128x10xf32, #tpu.memory_space<vmem>>, vector<128x10xf32>
    %cst_382 = arith.constant dense<0.000000e+00> : vector<2x10xf32>
    %301 = tpu.matmul %299, %300, %cst_382 {dimension_numbers = #tpu.dot_dimension_numbers<[1], [0], [0], [1], [0, 0, 1, 1], [], []>} : vector<2x128xf32>, vector<128x10xf32>, vector<2x10xf32> -> vector<2x10xf32>
    %c0_383 = arith.constant 0 : index
    %c0_384 = arith.constant 0 : index
    %302 = vector.load %arg9[%c0_383, %c0_384] : memref<1x10xf32, #tpu.memory_space<vmem>>, vector<1x10xf32>
    %303 = vector.broadcast %302 : vector<1x10xf32> to vector<2x10xf32>
    %304 = arith.addf %301, %303 : vector<2x10xf32>
    %c0_385 = arith.constant 0 : index
    %c0_386 = arith.constant 0 : index
    %305 = vector.load %arg10[%c0_385, %c0_386] : memref<2x10xf32, #tpu.memory_space<vmem>>, vector<2x10xf32>
    tpu.vector_store %arg10[%c0_385, %c0_386], %304 {strides = array<i32>} : memref<2x10xf32, #tpu.memory_space<vmem>>, vector<2x10xf32>,
    return
  }
  func.func @transform_0(%arg0: i32) -> (i32, i32, i32, i32) {
    %c0_i32 = arith.constant 0 : i32
    %c0_i32_0 = arith.constant 0 : i32
    %c0_i32_1 = arith.constant 0 : i32
    %c0_i32_2 = arith.constant 0 : i32
    %c0_i32_3 = arith.constant 0 : i32
    return %c0_i32, %c0_i32_0, %c0_i32_1, %c0_i32_2 : i32, i32, i32, i32
  }
  func.func @transform_1(%arg0: i32) -> (i32, i32) {
    %c0_i32 = arith.constant 0 : i32
    %c0_i32_0 = arith.constant 0 : i32
    %c0_i32_1 = arith.constant 0 : i32
    return %c0_i32, %c0_i32_0 : i32, i32
  }
  func.func @transform_2(%arg0: i32) -> (i32, i32) {
    %c0_i32 = arith.constant 0 : i32
    %c0_i32_0 = arith.constant 0 : i32
    %c0_i32_1 = arith.constant 0 : i32
    return %c0_i32, %c0_i32_0 : i32, i32
  }
  func.func @transform_3(%arg0: i32) -> (i32, i32) {
    %c0_i32 = arith.constant 0 : i32
    %c0_i32_0 = arith.constant 0 : i32
    %c0_i32_1 = arith.constant 0 : i32
    return %c0_i32, %c0_i32_0 : i32, i32
  }
  func.func @transform_4(%arg0: i32) -> (i32, i32) {
    %c0_i32 = arith.constant 0 : i32
    %c0_i32_0 = arith.constant 0 : i32
    %c0_i32_1 = arith.constant 0 : i32
    return %c0_i32, %c0_i32_0 : i32, i32
  }
  func.func @transform_5(%arg0: i32) -> (i32, i32) {
    %c0_i32 = arith.constant 0 : i32
    %c0_i32_0 = arith.constant 0 : i32
    %c0_i32_1 = arith.constant 0 : i32
    return %c0_i32, %c0_i32_0 : i32, i32
  }
  func.func @transform_6(%arg0: i32) -> (i32, i32) {
    %c0_i32 = arith.constant 0 : i32
    %c0_i32_0 = arith.constant 0 : i32
    %c0_i32_1 = arith.constant 0 : i32
    return %c0_i32, %c0_i32_0 : i32, i32
  }
  func.func @transform_7(%arg0: i32) -> (i32, i32) {
    %c0_i32 = arith.constant 0 : i32
    %c0_i32_0 = arith.constant 0 : i32
    %c0_i32_1 = arith.constant 0 : i32
    return %c0_i32, %c0_i32_0 : i32, i32
  }
  func.func @transform_8(%arg0: i32) -> (i32, i32) {
    %c0_i32 = arith.constant 0 : i32
    %c0_i32_0 = arith.constant 0 : i32
    %c0_i32_1 = arith.constant 0 : i32
    return %c0_i32, %c0_i32_0 : i32, i32
  }
  func.func @transform_9(%arg0: i32) -> (i32, i32) {
    %c0_i32 = arith.constant 0 : i32
    %c0_i32_0 = arith.constant 0 : i32
    %c0_i32_1 = arith.constant 0 : i32
    return %c0_i32, %c0_i32_0 : i32, i32
  }
}

</mosaic_0001>

<llo_original>
// kernel: _lambda_.1
$region0: #{_lambda_.1}
  #allocation0 [shape = 'u32[]', space=smem, size = 0x4, offset = 0x4, fixed_abs, tag = 'smem constant byte address 0x4 - core index']
  #allocation1 [shape = 'u32[144,128]{1,0:T(1,128)}', space=vmem, size = 0x12000, scoped, tag = 'internal scratch']
  #allocation2 [shape = 'f32[2,16,16,32]{3,2,1,0:T(8,128)}', space=vmem, size = 0x40000, scoped, tag = 'scratch operand']
  #allocation3 [shape = 'f32[2,16,8,32]{3,2,1,0:T(8,128)}', space=vmem, size = 0x20000, scoped, tag = 'scratch operand']
  #allocation4 [shape = 'f32[2,10,10,32]{3,2,1,0:T(8,128)}', space=vmem, size = 0x28000, scoped, tag = 'scratch operand']
  #allocation5 [shape = 'f32[2,8,8,64]{3,2,1,0:T(8,128)}', space=vmem, size = 0x10000, scoped, tag = 'scratch operand']
  #allocation6 [shape = 'f32[2,8,256]{2,1,0:T(8,128)}', space=vmem, size = 0x4000, scoped, tag = 'scratch operand']
  #allocation7 [shape = 'f32[2,1024]{1,0:T(2,128)}', space=vmem, size = 0x2000, scoped, tag = 'scratch operand']
  %s0 = inlined_call_operand.vmem [shape: f32[2,18,18,1], index: 0, kind: input, shape index: {}]
  %s1 = inlined_call_operand.vmem [shape: f32[9,32], index: 1, kind: input, shape index: {}]
  %s2 = inlined_call_operand.vmem [shape: f32[1,32], index: 2, kind: input, shape index: {}]
  %s3 = inlined_call_operand.vmem [shape: f32[288,64], index: 3, kind: input, shape index: {}]
  %s4 = inlined_call_operand.vmem [shape: f32[1,256], index: 4, kind: input, shape index: {}]
  %s5 = inlined_call_operand.vmem [shape: f32[1024,128], index: 5, kind: input, shape index: {}]
  %s6 = inlined_call_operand.vmem [shape: f32[1,128], index: 6, kind: input, shape index: {}]
  %s7 = inlined_call_operand.vmem [shape: f32[128,10], index: 7, kind: input, shape index: {}]
  %s8 = inlined_call_operand.vmem [shape: f32[1,10], index: 8, kind: input, shape index: {}]
  %s9 = inlined_call_operand.hbm [shape: f32[2,10], index: 9, kind: output, shape index: {}]
  %s10 = sld [smem:[#allocation0]]
  $region46: #{_lambda_.1} parent=0
    _
  %s12 = ssub.s32 1, %s10
  %s13 = scalar_select 0, %s12, %s10
  $region1: #{_lambda_.1} parent=0
    #allocation8 [shape = 'u8[1024]{0}', space=vmem, size = 0x400, scoped, tag = 'output window, operand 0, single buffered']
    #allocation9 [shape = 's32[1]{0}', space=sflag, size = 0x4, scoped, tag = 'scoped memory for _lambda_.1']
    %14 = vsyncpa [#allocation9], 0
    // Predicated region
    $region2: #{_lambda_.1} parent=1 // pred_check
      _
    $region3: #{_lambda_.1} parent=1 // pred_check_branch
      %16 = sbr.rel (0) target = $region5
    $region4: #{_lambda_.1} parent=1 // pred_region
      _
    $region5: #{_lambda_.1} parent=1 // pred_fallthru
      _
    // Predicated region
    $region6: #{_lambda_.1} parent=1 // pred_check
      _
    $region7: #{_lambda_.1} parent=1 // pred_check_branch
      %18 = sbr.rel (0) target = $region9
    $region8: #{_lambda_.1} parent=1 // pred_region
      _
    $region9: #{_lambda_.1} parent=1 // pred_fallthru
      _
    // Predicated region
    $region10: #{_lambda_.1} parent=1 // pred_check
      _
    $region11: #{_lambda_.1} parent=1 // pred_check_branch
      %20 = sbr.rel (0) target = $region13
    $region12: #{_lambda_.1} parent=1 // pred_region
      _
    $region13: #{_lambda_.1} parent=1 // pred_fallthru
      _
    // Predicated region
    $region14: #{_lambda_.1} parent=1 // pred_check
      _
    $region15: #{_lambda_.1} parent=1 // pred_check_branch
      %22 = sbr.rel (0) target = $region17
    $region16: #{_lambda_.1} parent=1 // pred_region
      _
    $region17: #{_lambda_.1} parent=1 // pred_fallthru
      _
    // Predicated region
    $region18: #{_lambda_.1} parent=1 // pred_check
      _
    $region19: #{_lambda_.1} parent=1 // pred_check_branch
      %24 = sbr.rel (0) target = $region21
    $region20: #{_lambda_.1} parent=1 // pred_region
      _
    $region21: #{_lambda_.1} parent=1 // pred_fallthru
      _
    // Predicated region
    $region22: #{_lambda_.1} parent=1 // pred_check
      _
    $region23: #{_lambda_.1} parent=1 // pred_check_branch
      %26 = sbr.rel (0) target = $region25
    $region24: #{_lambda_.1} parent=1 // pred_region
      _
    $region25: #{_lambda_.1} parent=1 // pred_fallthru
      _
    // Predicated region
    $region26: #{_lambda_.1} parent=1 // pred_check
      _
    $region27: #{_lambda_.1} parent=1 // pred_check_branch
      %28 = sbr.rel (0) target = $region29
    $region28: #{_lambda_.1} parent=1 // pred_region
      _
    $region29: #{_lambda_.1} parent=1 // pred_fallthru
      _
    // Predicated region
    $region30: #{_lambda_.1} parent=1 // pred_check
      _
    $region31: #{_lambda_.1} parent=1 // pred_check_branch
      %30 = sbr.rel (0) target = $region33
    $region32: #{_lambda_.1} parent=1 // pred_region
      _
    $region33: #{_lambda_.1} parent=1 // pred_fallthru
      _
    // Predicated region
    $region34: #{_lambda_.1} parent=1 // pred_check
      _
    $region35: #{_lambda_.1} parent=1 // pred_check_branch
      %32 = sbr.rel (0) target = $region37
    $region36: #{_lambda_.1} parent=1 // pred_region
      _
    $region37: #{_lambda_.1} parent=1 // pred_fallthru
      _
    %v33 = vld [vmem:[%s0] sm:$0xff]
    %v34 = vld [vmem:[%s0 + $0x8] sm:$0xff]
    %v35 = vld [vmem:[%s0 + $0x18] sm:$0xff]
    %v36 = vld [vmem:[%s0 + $0x20] sm:$0xff]
    %v37 = vld [vmem:[%s0 + $0x30] sm:$0xff]
    %v38 = vld [vmem:[%s0 + $0x38] sm:$0xff]
    %v39 = vld [vmem:[%s0 + $0x48] sm:$0xff]
    %v40 = vld [vmem:[%s0 + $0x50] sm:$0xff]
    %v41 = vld [vmem:[%s0 + $0x60] sm:$0xff]
    %v42 = vld [vmem:[%s0 + $0x68] sm:$0xff]
    %v43 = vld [vmem:[%s0 + $0x78] sm:$0xff]
    %v44 = vld [vmem:[%s0 + $0x80] sm:$0xff]
    %v45 = vld [vmem:[%s0 + $0x90] sm:$0xff]
    %v46 = vld [vmem:[%s0 + $0x98] sm:$0xff]
    %v47 = vld [vmem:[%s0 + $0xa8] sm:$0xff]
    %v48 = vld [vmem:[%s0 + $0xb0] sm:$0xff]
    %v49 = vld [vmem:[%s0 + $0xc0] sm:$0xff]
    %v50 = vld [vmem:[%s0 + $0xc8] sm:$0xff]
    %v51 = vld [vmem:[%s0 + $0xd8] sm:$0xff]
    %v52 = vld [vmem:[%s0 + $0xe0] sm:$0xff]
    %v53 = vld [vmem:[%s0 + $0xf0] sm:$0xff]
    %v54 = vld [vmem:[%s0 + $0xf8] sm:$0xff]
    %v55 = vld [vmem:[%s0 + $0x108] sm:$0xff]
    %v56 = vld [vmem:[%s0 + $0x110] sm:$0xff]
    %v57 = vld [vmem:[%s0 + $0x120] sm:$0xff]
    %v58 = vld [vmem:[%s0 + $0x128] sm:$0xff]
    %v59 = vld [vmem:[%s0 + $0x138] sm:$0xff]
    %v60 = vld [vmem:[%s0 + $0x140] sm:$0xff]
    %v61 = vld [vmem:[%s0 + $0x150] sm:$0xff]
    %v62 = vld [vmem:[%s0 + $0x158] sm:$0xff]
    %v63 = vld [vmem:[%s0 + $0x168] sm:$0xff]
    %v64 = vld [vmem:[%s0 + $0x170] sm:$0xff]
    %v65 = vld [vmem:[%s0 + $0x1b0] sm:$0xff]
    %v66 = vld [vmem:[%s0 + $0x1b8] sm:$0xff]
    %v67 = vld [vmem:[%s0 + $0x1c8] sm:$0xff]
    %v68 = vld [vmem:[%s0 + $0x1d0] sm:$0xff]
    %v69 = vld [vmem:[%s0 + $0x1e0] sm:$0xff]
    %v70 = vld [vmem:[%s0 + $0x1e8] sm:$0xff]
    %v71 = vld [vmem:[%s0 + $0x1f8] sm:$0xff]
    %v72 = vld [vmem:[%s0 + $0x200] sm:$0xff]
    %v73 = vld [vmem:[%s0 + $0x210] sm:$0xff]
    %v74 = vld [vmem:[%s0 + $0x218] sm:$0xff]
    %v75 = vld [vmem:[%s0 + $0x228] sm:$0xff]
    %v76 = vld [vmem:[%s0 + $0x230] sm:$0xff]
    %v77 = vld [vmem:[%s0 + $0x240] sm:$0xff]
    %v78 = vld [vmem:[%s0 + $0x248] sm:$0xff]
    %v79 = vld [vmem:[%s0 + $0x258] sm:$0xff]
    %v80 = vld [vmem:[%s0 + $0x260] sm:$0xff]
    %v81 = vld [vmem:[%s0 + $0x270] sm:$0xff]
    %v82 = vld [vmem:[%s0 + $0x278] sm:$0xff]
    %v83 = vld [vmem:[%s0 + $0x288] sm:$0xff]
    %v84 = vld [vmem:[%s0 + $0x290] sm:$0xff]
    %v85 = vld [vmem:[%s0 + $0x2a0] sm:$0xff]
    %v86 = vld [vmem:[%s0 + $0x2a8] sm:$0xff]
    %v87 = vld [vmem:[%s0 + $0x2b8] sm:$0xff]
    %v88 = vld [vmem:[%s0 + $0x2c0] sm:$0xff]
    %v89 = vld [vmem:[%s0 + $0x2d0] sm:$0xff]
    %v90 = vld [vmem:[%s0 + $0x2d8] sm:$0xff]
    %v91 = vld [vmem:[%s0 + $0x2e8] sm:$0xff]
    %v92 = vld [vmem:[%s0 + $0x2f0] sm:$0xff]
    %v93 = vld [vmem:[%s0 + $0x300] sm:$0xff]
    %v94 = vld [vmem:[%s0 + $0x308] sm:$0xff]
    %v95 = vld [vmem:[%s0 + $0x318] sm:$0xff]
    %v96 = vld [vmem:[%s0 + $0x320] sm:$0xff]
    %v97 = vld [vmem:[%s0 + $0x1] sm:$0xff]
    %v98 = vld [vmem:[%s0 + $0x9] sm:$0xff]
    %v99 = vld [vmem:[%s0 + $0x19] sm:$0xff]
    %v100 = vld [vmem:[%s0 + $0x21] sm:$0xff]
    %v101 = vld [vmem:[%s0 + $0x31] sm:$0xff]
    %v102 = vld [vmem:[%s0 + $0x39] sm:$0xff]
    %v103 = vld [vmem:[%s0 + $0x49] sm:$0xff]
    %v104 = vld [vmem:[%s0 + $0x51] sm:$0xff]
    %v105 = vld [vmem:[%s0 + $0x61] sm:$0xff]
    %v106 = vld [vmem:[%s0 + $0x69] sm:$0xff]
    %v107 = vld [vmem:[%s0 + $0x79] sm:$0xff]
    %v108 = vld [vmem:[%s0 + $0x81] sm:$0xff]
    %v109 = vld [vmem:[%s0 + $0x91] sm:$0xff]
    %v110 = vld [vmem:[%s0 + $0x99] sm:$0xff]
    %v111 = vld [vmem:[%s0 + $0xa9] sm:$0xff]
    %v112 = vld [vmem:[%s0 + $0xb1] sm:$0xff]
    %v113 = vld [vmem:[%s0 + $0xc1] sm:$0xff]
    %v114 = vld [vmem:[%s0 + $0xc9] sm:$0xff]
    %v115 = vld [vmem:[%s0 + $0xd9] sm:$0xff]
    %v116 = vld [vmem:[%s0 + $0xe1] sm:$0xff]
    %v117 = vld [vmem:[%s0 + $0xf1] sm:$0xff]
    %v118 = vld [vmem:[%s0 + $0xf9] sm:$0xff]
    %v119 = vld [vmem:[%s0 + $0x109] sm:$0xff]
    %v120 = vld [vmem:[%s0 + $0x111] sm:$0xff]
    %v121 = vld [vmem:[%s0 + $0x121] sm:$0xff]
    %v122 = vld [vmem:[%s0 + $0x129] sm:$0xff]
    %v123 = vld [vmem:[%s0 + $0x139] sm:$0xff]
    %v124 = vld [vmem:[%s0 + $0x141] sm:$0xff]
    %v125 = vld [vmem:[%s0 + $0x151] sm:$0xff]
    %v126 = vld [vmem:[%s0 + $0x159] sm:$0xff]
    %v127 = vld [vmem:[%s0 + $0x169] sm:$0xff]
    %v128 = vld [vmem:[%s0 + $0x171] sm:$0xff]
    %v129 = vld [vmem:[%s0 + $0x1b1] sm:$0xff]
    %v130 = vld [vmem:[%s0 + $0x1b9] sm:$0xff]
    %v131 = vld [vmem:[%s0 + $0x1c9] sm:$0xff]
    %v132 = vld [vmem:[%s0 + $0x1d1] sm:$0xff]
    %v133 = vld [vmem:[%s0 + $0x1e1] sm:$0xff]
    %v134 = vld [vmem:[%s0 + $0x1e9] sm:$0xff]
    %v135 = vld [vmem:[%s0 + $0x1f9] sm:$0xff]
    %v136 = vld [vmem:[%s0 + $0x201] sm:$0xff]
    %v137 = vld [vmem:[%s0 + $0x211] sm:$0xff]
    %v138 = vld [vmem:[%s0 + $0x219] sm:$0xff]
    %v139 = vld [vmem:[%s0 + $0x229] sm:$0xff]
    %v140 = vld [vmem:[%s0 + $0x231] sm:$0xff]
    %v141 = vld [vmem:[%s0 + $0x241] sm:$0xff]
    %v142 = vld [vmem:[%s0 + $0x249] sm:$0xff]
    %v143 = vld [vmem:[%s0 + $0x259] sm:$0xff]
    %v144 = vld [vmem:[%s0 + $0x261] sm:$0xff]
    %v145 = vld [vmem:[%s0 + $0x271] sm:$0xff]
    %v146 = vld [vmem:[%s0 + $0x279] sm:$0xff]
    %v147 = vld [vmem:[%s0 + $0x289] sm:$0xff]
    %v148 = vld [vmem:[%s0 + $0x291] sm:$0xff]
    %v149 = vld [vmem:[%s0 + $0x2a1] sm:$0xff]
    %v150 = vld [vmem:[%s0 + $0x2a9] sm:$0xff]
    %v151 = vld [vmem:[%s0 + $0x2b9] sm:$0xff]
    %v152 = vld [vmem:[%s0 + $0x2c1] sm:$0xff]
    %v153 = vld [vmem:[%s0 + $0x2d1] sm:$0xff]
    %v154 = vld [vmem:[%s0 + $0x2d9] sm:$0xff]
    %v155 = vld [vmem:[%s0 + $0x2e9] sm:$0xff]
    %v156 = vld [vmem:[%s0 + $0x2f1] sm:$0xff]
    %v157 = vld [vmem:[%s0 + $0x301] sm:$0xff]
    %v158 = vld [vmem:[%s0 + $0x309] sm:$0xff]
    %v159 = vld [vmem:[%s0 + $0x319] sm:$0xff]
    %v160 = vld [vmem:[%s0 + $0x321] sm:$0xff]
    %v161 = vld [vmem:[%s0 + $0x2] sm:$0xff]
    %v162 = vld [vmem:[%s0 + $0xa] sm:$0xff]
    %v163 = vld [vmem:[%s0 + $0x1a] sm:$0xff]
    %v164 = vld [vmem:[%s0 + $0x22] sm:$0xff]
    %v165 = vld [vmem:[%s0 + $0x32] sm:$0xff]
    %v166 = vld [vmem:[%s0 + $0x3a] sm:$0xff]
    %v167 = vld [vmem:[%s0 + $0x4a] sm:$0xff]
    %v168 = vld [vmem:[%s0 + $0x52] sm:$0xff]
    %v169 = vld [vmem:[%s0 + $0x62] sm:$0xff]
    %v170 = vld [vmem:[%s0 + $0x6a] sm:$0xff]
    %v171 = vld [vmem:[%s0 + $0x7a] sm:$0xff]
    %v172 = vld [vmem:[%s0 + $0x82] sm:$0xff]
    %v173 = vld [vmem:[%s0 + $0x92] sm:$0xff]
    %v174 = vld [vmem:[%s0 + $0x9a] sm:$0xff]
    %v175 = vld [vmem:[%s0 + $0xaa] sm:$0xff]
    %v176 = vld [vmem:[%s0 + $0xb2] sm:$0xff]
    %v177 = vld [vmem:[%s0 + $0xc2] sm:$0xff]
    %v178 = vld [vmem:[%s0 + $0xca] sm:$0xff]
    %v179 = vld [vmem:[%s0 + $0xda] sm:$0xff]
    %v180 = vld [vmem:[%s0 + $0xe2] sm:$0xff]
    %v181 = vld [vmem:[%s0 + $0xf2] sm:$0xff]
    %v182 = vld [vmem:[%s0 + $0xfa] sm:$0xff]
    %v183 = vld [vmem:[%s0 + $0x10a] sm:$0xff]
    %v184 = vld [vmem:[%s0 + $0x112] sm:$0xff]
    %v185 = vld [vmem:[%s0 + $0x122] sm:$0xff]
    %v186 = vld [vmem:[%s0 + $0x12a] sm:$0xff]
    %v187 = vld [vmem:[%s0 + $0x13a] sm:$0xff]
    %v188 = vld [vmem:[%s0 + $0x142] sm:$0xff]
    %v189 = vld [vmem:[%s0 + $0x152] sm:$0xff]
    %v190 = vld [vmem:[%s0 + $0x15a] sm:$0xff]
    %v191 = vld [vmem:[%s0 + $0x16a] sm:$0xff]
    %v192 = vld [vmem:[%s0 + $0x172] sm:$0xff]
    %v193 = vld [vmem:[%s0 + $0x1b2] sm:$0xff]
    %v194 = vld [vmem:[%s0 + $0x1ba] sm:$0xff]
    %v195 = vld [vmem:[%s0 + $0x1ca] sm:$0xff]
    %v196 = vld [vmem:[%s0 + $0x1d2] sm:$0xff]
    %v197 = vld [vmem:[%s0 + $0x1e2] sm:$0xff]
    %v198 = vld [vmem:[%s0 + $0x1ea] sm:$0xff]
    %v199 = vld [vmem:[%s0 + $0x1fa] sm:$0xff]
    %v200 = vld [vmem:[%s0 + $0x202] sm:$0xff]
    %v201 = vld [vmem:[%s0 + $0x212] sm:$0xff]
    %v202 = vld [vmem:[%s0 + $0x21a] sm:$0xff]
    %v203 = vld [vmem:[%s0 + $0x22a] sm:$0xff]
    %v204 = vld [vmem:[%s0 + $0x232] sm:$0xff]
    %v205 = vld [vmem:[%s0 + $0x242] sm:$0xff]
    %v206 = vld [vmem:[%s0 + $0x24a] sm:$0xff]
    %v207 = vld [vmem:[%s0 + $0x25a] sm:$0xff]
    %v208 = vld [vmem:[%s0 + $0x262] sm:$0xff]
    %v209 = vld [vmem:[%s0 + $0x272] sm:$0xff]
    %v210 = vld [vmem:[%s0 + $0x27a] sm:$0xff]
    %v211 = vld [vmem:[%s0 + $0x28a] sm:$0xff]
    %v212 = vld [vmem:[%s0 + $0x292] sm:$0xff]
    %v213 = vld [vmem:[%s0 + $0x2a2] sm:$0xff]
    %v214 = vld [vmem:[%s0 + $0x2aa] sm:$0xff]
    %v215 = vld [vmem:[%s0 + $0x2ba] sm:$0xff]
    %v216 = vld [vmem:[%s0 + $0x2c2] sm:$0xff]
    %v217 = vld [vmem:[%s0 + $0x2d2] sm:$0xff]
    %v218 = vld [vmem:[%s0 + $0x2da] sm:$0xff]
    %v219 = vld [vmem:[%s0 + $0x2ea] sm:$0xff]
    %v220 = vld [vmem:[%s0 + $0x2f2] sm:$0xff]
    %v221 = vld [vmem:[%s0 + $0x302] sm:$0xff]
    %v222 = vld [vmem:[%s0 + $0x30a] sm:$0xff]
    %v223 = vld [vmem:[%s0 + $0x31a] sm:$0xff]
    %v224 = vld [vmem:[%s0 + $0x322] sm:$0xff]
    %s225 = scalar_lea.vmem %s0, 24
    %v226 = vld [vmem:[%s225] sm:$0xff]
    %v227 = vld [vmem:[%s225 + $0x8] sm:$0xff]
    %v228 = vld [vmem:[%s225 + $0x18] sm:$0xff]
    %v229 = vld [vmem:[%s225 + $0x20] sm:$0xff]
    %v230 = vld [vmem:[%s225 + $0x30] sm:$0xff]
    %v231 = vld [vmem:[%s225 + $0x38] sm:$0xff]
    %v232 = vld [vmem:[%s225 + $0x48] sm:$0xff]
    %v233 = vld [vmem:[%s225 + $0x50] sm:$0xff]
    %v234 = vld [vmem:[%s225 + $0x60] sm:$0xff]
    %v235 = vld [vmem:[%s225 + $0x68] sm:$0xff]
    %v236 = vld [vmem:[%s225 + $0x78] sm:$0xff]
    %v237 = vld [vmem:[%s225 + $0x80] sm:$0xff]
    %v238 = vld [vmem:[%s225 + $0x90] sm:$0xff]
    %v239 = vld [vmem:[%s225 + $0x98] sm:$0xff]
    %v240 = vld [vmem:[%s225 + $0xa8] sm:$0xff]
    %v241 = vld [vmem:[%s225 + $0xb0] sm:$0xff]
    %v242 = vld [vmem:[%s225 + $0xc0] sm:$0xff]
    %v243 = vld [vmem:[%s225 + $0xc8] sm:$0xff]
    %v244 = vld [vmem:[%s225 + $0xd8] sm:$0xff]
    %v245 = vld [vmem:[%s225 + $0xe0] sm:$0xff]
    %v246 = vld [vmem:[%s225 + $0xf0] sm:$0xff]
    %v247 = vld [vmem:[%s225 + $0xf8] sm:$0xff]
    %v248 = vld [vmem:[%s225 + $0x108] sm:$0xff]
    %v249 = vld [vmem:[%s225 + $0x110] sm:$0xff]
    %v250 = vld [vmem:[%s225 + $0x120] sm:$0xff]
    %v251 = vld [vmem:[%s225 + $0x128] sm:$0xff]
    %v252 = vld [vmem:[%s225 + $0x138] sm:$0xff]
    %v253 = vld [vmem:[%s225 + $0x140] sm:$0xff]
    %v254 = vld [vmem:[%s225 + $0x150] sm:$0xff]
    %v255 = vld [vmem:[%s225 + $0x158] sm:$0xff]
    %v256 = vld [vmem:[%s225 + $0x168] sm:$0xff]
    %v257 = vld [vmem:[%s225 + $0x170] sm:$0xff]
    %v258 = vld [vmem:[%s225 + $0x1b0] sm:$0xff]
    %v259 = vld [vmem:[%s225 + $0x1b8] sm:$0xff]
    %v260 = vld [vmem:[%s225 + $0x1c8] sm:$0xff]
    %v261 = vld [vmem:[%s225 + $0x1d0] sm:$0xff]
    %v262 = vld [vmem:[%s225 + $0x1e0] sm:$0xff]
    %v263 = vld [vmem:[%s225 + $0x1e8] sm:$0xff]
    %v264 = vld [vmem:[%s225 + $0x1f8] sm:$0xff]
    %v265 = vld [vmem:[%s225 + $0x200] sm:$0xff]
    %v266 = vld [vmem:[%s225 + $0x210] sm:$0xff]
    %v267 = vld [vmem:[%s225 + $0x218] sm:$0xff]
    %v268 = vld [vmem:[%s225 + $0x228] sm:$0xff]
    %v269 = vld [vmem:[%s225 + $0x230] sm:$0xff]
    %v270 = vld [vmem:[%s225 + $0x240] sm:$0xff]
    %v271 = vld [vmem:[%s225 + $0x248] sm:$0xff]
    %v272 = vld [vmem:[%s225 + $0x258] sm:$0xff]
    %v273 = vld [vmem:[%s225 + $0x260] sm:$0xff]
    %v274 = vld [vmem:[%s225 + $0x270] sm:$0xff]
    %v275 = vld [vmem:[%s225 + $0x278] sm:$0xff]
    %v276 = vld [vmem:[%s225 + $0x288] sm:$0xff]
    %v277 = vld [vmem:[%s225 + $0x290] sm:$0xff]
    %v278 = vld [vmem:[%s225 + $0x2a0] sm:$0xff]
    %v279 = vld [vmem:[%s225 + $0x2a8] sm:$0xff]
    %v280 = vld [vmem:[%s225 + $0x2b8] sm:$0xff]
    %v281 = vld [vmem:[%s225 + $0x2c0] sm:$0xff]
    %v282 = vld [vmem:[%s225 + $0x2d0] sm:$0xff]
    %v283 = vld [vmem:[%s225 + $0x2d8] sm:$0xff]
    %v284 = vld [vmem:[%s225 + $0x2e8] sm:$0xff]
    %v285 = vld [vmem:[%s225 + $0x2f0] sm:$0xff]
    %v286 = vld [vmem:[%s225 + $0x300] sm:$0xff]
    %v287 = vld [vmem:[%s225 + $0x308] sm:$0xff]
    %v288 = vld [vmem:[%s225 + $0x318] sm:$0xff]
    %v289 = vld [vmem:[%s225 + $0x320] sm:$0xff]
    %v290 = vld [vmem:[%s225 + $0x1] sm:$0xff]
    %v291 = vld [vmem:[%s225 + $0x9] sm:$0xff]
    %v292 = vld [vmem:[%s225 + $0x19] sm:$0xff]
    %v293 = vld [vmem:[%s225 + $0x21] sm:$0xff]
    %v294 = vld [vmem:[%s225 + $0x31] sm:$0xff]
    %v295 = vld [vmem:[%s225 + $0x39] sm:$0xff]
    %v296 = vld [vmem:[%s225 + $0x49] sm:$0xff]
    %v297 = vld [vmem:[%s225 + $0x51] sm:$0xff]
    %v298 = vld [vmem:[%s225 + $0x61] sm:$0xff]
    %v299 = vld [vmem:[%s225 + $0x69] sm:$0xff]
    %v300 = vld [vmem:[%s225 + $0x79] sm:$0xff]
    %v301 = vld [vmem:[%s225 + $0x81] sm:$0xff]
    %v302 = vld [vmem:[%s225 + $0x91] sm:$0xff]
    %v303 = vld [vmem:[%s225 + $0x99] sm:$0xff]
    %v304 = vld [vmem:[%s225 + $0xa9] sm:$0xff]
    %v305 = vld [vmem:[%s225 + $0xb1] sm:$0xff]
    %v306 = vld [vmem:[%s225 + $0xc1] sm:$0xff]
    %v307 = vld [vmem:[%s225 + $0xc9] sm:$0xff]
    %v308 = vld [vmem:[%s225 + $0xd9] sm:$0xff]
    %v309 = vld [vmem:[%s225 + $0xe1] sm:$0xff]
    %v310 = vld [vmem:[%s225 + $0xf1] sm:$0xff]
    %v311 = vld [vmem:[%s225 + $0xf9] sm:$0xff]
    %v312 = vld [vmem:[%s225 + $0x109] sm:$0xff]
    %v313 = vld [vmem:[%s225 + $0x111] sm:$0xff]
    %v314 = vld [vmem:[%s225 + $0x121] sm:$0xff]
    %v315 = vld [vmem:[%s225 + $0x129] sm:$0xff]
    %v316 = vld [vmem:[%s225 + $0x139] sm:$0xff]
    %v317 = vld [vmem:[%s225 + $0x141] sm:$0xff]
    %v318 = vld [vmem:[%s225 + $0x151] sm:$0xff]
    %v319 = vld [vmem:[%s225 + $0x159] sm:$0xff]
    %v320 = vld [vmem:[%s225 + $0x169] sm:$0xff]
    %v321 = vld [vmem:[%s225 + $0x171] sm:$0xff]
    %v322 = vld [vmem:[%s225 + $0x1b1] sm:$0xff]
    %v323 = vld [vmem:[%s225 + $0x1b9] sm:$0xff]
    %v324 = vld [vmem:[%s225 + $0x1c9] sm:$0xff]
    %v325 = vld [vmem:[%s225 + $0x1d1] sm:$0xff]
    %v326 = vld [vmem:[%s225 + $0x1e1] sm:$0xff]
    %v327 = vld [vmem:[%s225 + $0x1e9] sm:$0xff]
    %v328 = vld [vmem:[%s225 + $0x1f9] sm:$0xff]
    %v329 = vld [vmem:[%s225 + $0x201] sm:$0xff]
    %v330 = vld [vmem:[%s225 + $0x211] sm:$0xff]
    %v331 = vld [vmem:[%s225 + $0x219] sm:$0xff]
    %v332 = vld [vmem:[%s225 + $0x229] sm:$0xff]
    %v333 = vld [vmem:[%s225 + $0x231] sm:$0xff]
    %v334 = vld [vmem:[%s225 + $0x241] sm:$0xff]
    %v335 = vld [vmem:[%s225 + $0x249] sm:$0xff]
    %v336 = vld [vmem:[%s225 + $0x259] sm:$0xff]
    %v337 = vld [vmem:[%s225 + $0x261] sm:$0xff]
    %v338 = vld [vmem:[%s225 + $0x271] sm:$0xff]
    %v339 = vld [vmem:[%s225 + $0x279] sm:$0xff]
    %v340 = vld [vmem:[%s225 + $0x289] sm:$0xff]
    %v341 = vld [vmem:[%s225 + $0x291] sm:$0xff]
    %v342 = vld [vmem:[%s225 + $0x2a1] sm:$0xff]
    %v343 = vld [vmem:[%s225 + $0x2a9] sm:$0xff]
    %v344 = vld [vmem:[%s225 + $0x2b9] sm:$0xff]
    %v345 = vld [vmem:[%s225 + $0x2c1] sm:$0xff]
    %v346 = vld [vmem:[%s225 + $0x2d1] sm:$0xff]
    %v347 = vld [vmem:[%s225 + $0x2d9] sm:$0xff]
    %v348 = vld [vmem:[%s225 + $0x2e9] sm:$0xff]
    %v349 = vld [vmem:[%s225 + $0x2f1] sm:$0xff]
    %v350 = vld [vmem:[%s225 + $0x301] sm:$0xff]
    %v351 = vld [vmem:[%s225 + $0x309] sm:$0xff]
    %v352 = vld [vmem:[%s225 + $0x319] sm:$0xff]
    %v353 = vld [vmem:[%s225 + $0x321] sm:$0xff]
    %v354 = vld [vmem:[%s225 + $0x2] sm:$0xff]
    %v355 = vld [vmem:[%s225 + $0xa] sm:$0xff]
    %v356 = vld [vmem:[%s225 + $0x1a] sm:$0xff]
    %v357 = vld [vmem:[%s225 + $0x22] sm:$0xff]
    %v358 = vld [vmem:[%s225 + $0x32] sm:$0xff]
    %v359 = vld [vmem:[%s225 + $0x3a] sm:$0xff]
    %v360 = vld [vmem:[%s225 + $0x4a] sm:$0xff]
    %v361 = vld [vmem:[%s225 + $0x52] sm:$0xff]
    %v362 = vld [vmem:[%s225 + $0x62] sm:$0xff]
    %v363 = vld [vmem:[%s225 + $0x6a] sm:$0xff]
    %v364 = vld [vmem:[%s225 + $0x7a] sm:$0xff]
    %v365 = vld [vmem:[%s225 + $0x82] sm:$0xff]
    %v366 = vld [vmem:[%s225 + $0x92] sm:$0xff]
    %v367 = vld [vmem:[%s225 + $0x9a] sm:$0xff]
    %v368 = vld [vmem:[%s225 + $0xaa] sm:$0xff]
    %v369 = vld [vmem:[%s225 + $0xb2] sm:$0xff]
    %v370 = vld [vmem:[%s225 + $0xc2] sm:$0xff]
    %v371 = vld [vmem:[%s225 + $0xca] sm:$0xff]
    %v372 = vld [vmem:[%s225 + $0xda] sm:$0xff]
    %v373 = vld [vmem:[%s225 + $0xe2] sm:$0xff]
    %v374 = vld [vmem:[%s225 + $0xf2] sm:$0xff]
    %v375 = vld [vmem:[%s225 + $0xfa] sm:$0xff]
    %v376 = vld [vmem:[%s225 + $0x10a] sm:$0xff]
    %v377 = vld [vmem:[%s225 + $0x112] sm:$0xff]
    %v378 = vld [vmem:[%s225 + $0x122] sm:$0xff]
    %v379 = vld [vmem:[%s225 + $0x12a] sm:$0xff]
    %v380 = vld [vmem:[%s225 + $0x13a] sm:$0xff]
    %v381 = vld [vmem:[%s225 + $0x142] sm:$0xff]
    %v382 = vld [vmem:[%s225 + $0x152] sm:$0xff]
    %v383 = vld [vmem:[%s225 + $0x15a] sm:$0xff]
    %v384 = vld [vmem:[%s225 + $0x16a] sm:$0xff]
    %v385 = vld [vmem:[%s225 + $0x172] sm:$0xff]
    %v386 = vld [vmem:[%s225 + $0x1b2] sm:$0xff]
    %v387 = vld [vmem:[%s225 + $0x1ba] sm:$0xff]
    %v388 = vld [vmem:[%s225 + $0x1ca] sm:$0xff]
    %v389 = vld [vmem:[%s225 + $0x1d2] sm:$0xff]
    %v390 = vld [vmem:[%s225 + $0x1e2] sm:$0xff]
    %v391 = vld [vmem:[%s225 + $0x1ea] sm:$0xff]
    %v392 = vld [vmem:[%s225 + $0x1fa] sm:$0xff]
    %v393 = vld [vmem:[%s225 + $0x202] sm:$0xff]
    %v394 = vld [vmem:[%s225 + $0x212] sm:$0xff]
    %v395 = vld [vmem:[%s225 + $0x21a] sm:$0xff]
    %v396 = vld [vmem:[%s225 + $0x22a] sm:$0xff]
    %v397 = vld [vmem:[%s225 + $0x232] sm:$0xff]
    %v398 = vld [vmem:[%s225 + $0x242] sm:$0xff]
    %v399 = vld [vmem:[%s225 + $0x24a] sm:$0xff]
    %v400 = vld [vmem:[%s225 + $0x25a] sm:$0xff]
    %v401 = vld [vmem:[%s225 + $0x262] sm:$0xff]
    %v402 = vld [vmem:[%s225 + $0x272] sm:$0xff]
    %v403 = vld [vmem:[%s225 + $0x27a] sm:$0xff]
    %v404 = vld [vmem:[%s225 + $0x28a] sm:$0xff]
    %v405 = vld [vmem:[%s225 + $0x292] sm:$0xff]
    %v406 = vld [vmem:[%s225 + $0x2a2] sm:$0xff]
    %v407 = vld [vmem:[%s225 + $0x2aa] sm:$0xff]
    %v408 = vld [vmem:[%s225 + $0x2ba] sm:$0xff]
    %v409 = vld [vmem:[%s225 + $0x2c2] sm:$0xff]
    %v410 = vld [vmem:[%s225 + $0x2d2] sm:$0xff]
    %v411 = vld [vmem:[%s225 + $0x2da] sm:$0xff]
    %v412 = vld [vmem:[%s225 + $0x2ea] sm:$0xff]
    %v413 = vld [vmem:[%s225 + $0x2f2] sm:$0xff]
    %v414 = vld [vmem:[%s225 + $0x302] sm:$0xff]
    %v415 = vld [vmem:[%s225 + $0x30a] sm:$0xff]
    %v416 = vld [vmem:[%s225 + $0x31a] sm:$0xff]
    %v417 = vld [vmem:[%s225 + $0x322] sm:$0xff]
    %s418 = scalar_lea.vmem %s0, 48
    %v419 = vld [vmem:[%s418] sm:$0xff]
    %v420 = vld [vmem:[%s418 + $0x8] sm:$0xff]
    %v421 = vld [vmem:[%s418 + $0x18] sm:$0xff]
    %v422 = vld [vmem:[%s418 + $0x20] sm:$0xff]
    %v423 = vld [vmem:[%s418 + $0x30] sm:$0xff]
    %v424 = vld [vmem:[%s418 + $0x38] sm:$0xff]
    %v425 = vld [vmem:[%s418 + $0x48] sm:$0xff]
    %v426 = vld [vmem:[%s418 + $0x50] sm:$0xff]
    %v427 = vld [vmem:[%s418 + $0x60] sm:$0xff]
    %v428 = vld [vmem:[%s418 + $0x68] sm:$0xff]
    %v429 = vld [vmem:[%s418 + $0x78] sm:$0xff]
    %v430 = vld [vmem:[%s418 + $0x80] sm:$0xff]
    %v431 = vld [vmem:[%s418 + $0x90] sm:$0xff]
    %v432 = vld [vmem:[%s418 + $0x98] sm:$0xff]
    %v433 = vld [vmem:[%s418 + $0xa8] sm:$0xff]
    %v434 = vld [vmem:[%s418 + $0xb0] sm:$0xff]
    %v435 = vld [vmem:[%s418 + $0xc0] sm:$0xff]
    %v436 = vld [vmem:[%s418 + $0xc8] sm:$0xff]
    %v437 = vld [vmem:[%s418 + $0xd8] sm:$0xff]
    %v438 = vld [vmem:[%s418 + $0xe0] sm:$0xff]
    %v439 = vld [vmem:[%s418 + $0xf0] sm:$0xff]
    %v440 = vld [vmem:[%s418 + $0xf8] sm:$0xff]
    %v441 = vld [vmem:[%s418 + $0x108] sm:$0xff]
    %v442 = vld [vmem:[%s418 + $0x110] sm:$0xff]
    %v443 = vld [vmem:[%s418 + $0x120] sm:$0xff]
    %v444 = vld [vmem:[%s418 + $0x128] sm:$0xff]
    %v445 = vld [vmem:[%s418 + $0x138] sm:$0xff]
    %v446 = vld [vmem:[%s418 + $0x140] sm:$0xff]
    %v447 = vld [vmem:[%s418 + $0x150] sm:$0xff]
    %v448 = vld [vmem:[%s418 + $0x158] sm:$0xff]
    %v449 = vld [vmem:[%s418 + $0x168] sm:$0xff]
    %v450 = vld [vmem:[%s418 + $0x170] sm:$0xff]
    %v451 = vld [vmem:[%s418 + $0x1b0] sm:$0xff]
    %v452 = vld [vmem:[%s418 + $0x1b8] sm:$0xff]
    %v453 = vld [vmem:[%s418 + $0x1c8] sm:$0xff]
    %v454 = vld [vmem:[%s418 + $0x1d0] sm:$0xff]
    %v455 = vld [vmem:[%s418 + $0x1e0] sm:$0xff]
    %v456 = vld [vmem:[%s418 + $0x1e8] sm:$0xff]
    %v457 = vld [vmem:[%s418 + $0x1f8] sm:$0xff]
    %v458 = vld [vmem:[%s418 + $0x200] sm:$0xff]
    %v459 = vld [vmem:[%s418 + $0x210] sm:$0xff]
    %v460 = vld [vmem:[%s418 + $0x218] sm:$0xff]
    %v461 = vld [vmem:[%s418 + $0x228] sm:$0xff]
    %v462 = vld [vmem:[%s418 + $0x230] sm:$0xff]
    %v463 = vld [vmem:[%s418 + $0x240] sm:$0xff]
    %v464 = vld [vmem:[%s418 + $0x248] sm:$0xff]
    %v465 = vld [vmem:[%s418 + $0x258] sm:$0xff]
    %v466 = vld [vmem:[%s418 + $0x260] sm:$0xff]
    %v467 = vld [vmem:[%s418 + $0x270] sm:$0xff]
    %v468 = vld [vmem:[%s418 + $0x278] sm:$0xff]
    %v469 = vld [vmem:[%s418 + $0x288] sm:$0xff]
    %v470 = vld [vmem:[%s418 + $0x290] sm:$0xff]
    %v471 = vld [vmem:[%s418 + $0x2a0] sm:$0xff]
    %v472 = vld [vmem:[%s418 + $0x2a8] sm:$0xff]
    %v473 = vld [vmem:[%s418 + $0x2b8] sm:$0xff]
    %v474 = vld [vmem:[%s418 + $0x2c0] sm:$0xff]
    %v475 = vld [vmem:[%s418 + $0x2d0] sm:$0xff]
    %v476 = vld [vmem:[%s418 + $0x2d8] sm:$0xff]
    %v477 = vld [vmem:[%s418 + $0x2e8] sm:$0xff]
    %v478 = vld [vmem:[%s418 + $0x2f0] sm:$0xff]
    %v479 = vld [vmem:[%s418 + $0x300] sm:$0xff]
    %v480 = vld [vmem:[%s418 + $0x308] sm:$0xff]
    %v481 = vld [vmem:[%s418 + $0x318] sm:$0xff]
    %v482 = vld [vmem:[%s418 + $0x320] sm:$0xff]
    %v483 = vld [vmem:[%s418 + $0x1] sm:$0xff]
    %v484 = vld [vmem:[%s418 + $0x9] sm:$0xff]
    %v485 = vld [vmem:[%s418 + $0x19] sm:$0xff]
    %v486 = vld [vmem:[%s418 + $0x21] sm:$0xff]
    %v487 = vld [vmem:[%s418 + $0x31] sm:$0xff]
    %v488 = vld [vmem:[%s418 + $0x39] sm:$0xff]
    %v489 = vld [vmem:[%s418 + $0x49] sm:$0xff]
    %v490 = vld [vmem:[%s418 + $0x51] sm:$0xff]
    %v491 = vld [vmem:[%s418 + $0x61] sm:$0xff]
    %v492 = vld [vmem:[%s418 + $0x69] sm:$0xff]
    %v493 = vld [vmem:[%s418 + $0x79] sm:$0xff]
    %v494 = vld [vmem:[%s418 + $0x81] sm:$0xff]
    %v495 = vld [vmem:[%s418 + $0x91] sm:$0xff]
    %v496 = vld [vmem:[%s418 + $0x99] sm:$0xff]
    %v497 = vld [vmem:[%s418 + $0xa9] sm:$0xff]
    %v498 = vld [vmem:[%s418 + $0xb1] sm:$0xff]
    %v499 = vld [vmem:[%s418 + $0xc1] sm:$0xff]
    %v500 = vld [vmem:[%s418 + $0xc9] sm:$0xff]
    %v501 = vld [vmem:[%s418 + $0xd9] sm:$0xff]
    %v502 = vld [vmem:[%s418 + $0xe1] sm:$0xff]
    %v503 = vld [vmem:[%s418 + $0xf1] sm:$0xff]
    %v504 = vld [vmem:[%s418 + $0xf9] sm:$0xff]
    %v505 = vld [vmem:[%s418 + $0x109] sm:$0xff]
    %v506 = vld [vmem:[%s418 + $0x111] sm:$0xff]
    %v507 = vld [vmem:[%s418 + $0x121] sm:$0xff]
    %v508 = vld [vmem:[%s418 + $0x129] sm:$0xff]
    %v509 = vld [vmem:[%s418 + $0x139] sm:$0xff]
    %v510 = vld [vmem:[%s418 + $0x141] sm:$0xff]
    %v511 = vld [vmem:[%s418 + $0x151] sm:$0xff]
    %v512 = vld [vmem:[%s418 + $0x159] sm:$0xff]
    %v513 = vld [vmem:[%s418 + $0x169] sm:$0xff]
    %v514 = vld [vmem:[%s418 + $0x171] sm:$0xff]
    %v515 = vld [vmem:[%s418 + $0x1b1] sm:$0xff]
    %v516 = vld [vmem:[%s418 + $0x1b9] sm:$0xff]
    %v517 = vld [vmem:[%s418 + $0x1c9] sm:$0xff]
    %v518 = vld [vmem:[%s418 + $0x1d1] sm:$0xff]
    %v519 = vld [vmem:[%s418 + $0x1e1] sm:$0xff]
    %v520 = vld [vmem:[%s418 + $0x1e9] sm:$0xff]
    %v521 = vld [vmem:[%s418 + $0x1f9] sm:$0xff]
    %v522 = vld [vmem:[%s418 + $0x201] sm:$0xff]
    %v523 = vld [vmem:[%s418 + $0x211] sm:$0xff]
    %v524 = vld [vmem:[%s418 + $0x219] sm:$0xff]
    %v525 = vld [vmem:[%s418 + $0x229] sm:$0xff]
    %v526 = vld [vmem:[%s418 + $0x231] sm:$0xff]
    %v527 = vld [vmem:[%s418 + $0x241] sm:$0xff]
    %v528 = vld [vmem:[%s418 + $0x249] sm:$0xff]
    %v529 = vld [vmem:[%s418 + $0x259] sm:$0xff]
    %v530 = vld [vmem:[%s418 + $0x261] sm:$0xff]
    %v531 = vld [vmem:[%s418 + $0x271] sm:$0xff]
    %v532 = vld [vmem:[%s418 + $0x279] sm:$0xff]
    %v533 = vld [vmem:[%s418 + $0x289] sm:$0xff]
    %v534 = vld [vmem:[%s418 + $0x291] sm:$0xff]
    %v535 = vld [vmem:[%s418 + $0x2a1] sm:$0xff]
    %v536 = vld [vmem:[%s418 + $0x2a9] sm:$0xff]
    %v537 = vld [vmem:[%s418 + $0x2b9] sm:$0xff]
    %v538 = vld [vmem:[%s418 + $0x2c1] sm:$0xff]
    %v539 = vld [vmem:[%s418 + $0x2d1] sm:$0xff]
    %v540 = vld [vmem:[%s418 + $0x2d9] sm:$0xff]
    %v541 = vld [vmem:[%s418 + $0x2e9] sm:$0xff]
    %v542 = vld [vmem:[%s418 + $0x2f1] sm:$0xff]
    %v543 = vld [vmem:[%s418 + $0x301] sm:$0xff]
    %v544 = vld [vmem:[%s418 + $0x309] sm:$0xff]
    %v545 = vld [vmem:[%s418 + $0x319] sm:$0xff]
    %v546 = vld [vmem:[%s418 + $0x321] sm:$0xff]
    %v547 = vld [vmem:[%s418 + $0x2] sm:$0xff]
    %v548 = vld [vmem:[%s418 + $0xa] sm:$0xff]
    %v549 = vld [vmem:[%s418 + $0x1a] sm:$0xff]
    %v550 = vld [vmem:[%s418 + $0x22] sm:$0xff]
    %v551 = vld [vmem:[%s418 + $0x32] sm:$0xff]
    %v552 = vld [vmem:[%s418 + $0x3a] sm:$0xff]
    %v553 = vld [vmem:[%s418 + $0x4a] sm:$0xff]
    %v554 = vld [vmem:[%s418 + $0x52] sm:$0xff]
    %v555 = vld [vmem:[%s418 + $0x62] sm:$0xff]
    %v556 = vld [vmem:[%s418 + $0x6a] sm:$0xff]
    %v557 = vld [vmem:[%s418 + $0x7a] sm:$0xff]
    %v558 = vld [vmem:[%s418 + $0x82] sm:$0xff]
    %v559 = vld [vmem:[%s418 + $0x92] sm:$0xff]
    %v560 = vld [vmem:[%s418 + $0x9a] sm:$0xff]
    %v561 = vld [vmem:[%s418 + $0xaa] sm:$0xff]
    %v562 = vld [vmem:[%s418 + $0xb2] sm:$0xff]
    %v563 = vld [vmem:[%s418 + $0xc2] sm:$0xff]
    %v564 = vld [vmem:[%s418 + $0xca] sm:$0xff]
    %v565 = vld [vmem:[%s418 + $0xda] sm:$0xff]
    %v566 = vld [vmem:[%s418 + $0xe2] sm:$0xff]
    %v567 = vld [vmem:[%s418 + $0xf2] sm:$0xff]
    %v568 = vld [vmem:[%s418 + $0xfa] sm:$0xff]
    %v569 = vld [vmem:[%s418 + $0x10a] sm:$0xff]
    %v570 = vld [vmem:[%s418 + $0x112] sm:$0xff]
    %v571 = vld [vmem:[%s418 + $0x122] sm:$0xff]
    %v572 = vld [vmem:[%s418 + $0x12a] sm:$0xff]
    %v573 = vld [vmem:[%s418 + $0x13a] sm:$0xff]
    %v574 = vld [vmem:[%s418 + $0x142] sm:$0xff]
    %v575 = vld [vmem:[%s418 + $0x152] sm:$0xff]
    %v576 = vld [vmem:[%s418 + $0x15a] sm:$0xff]
    %v577 = vld [vmem:[%s418 + $0x16a] sm:$0xff]
    %v578 = vld [vmem:[%s418 + $0x172] sm:$0xff]
    %v579 = vld [vmem:[%s418 + $0x1b2] sm:$0xff]
    %v580 = vld [vmem:[%s418 + $0x1ba] sm:$0xff]
    %v581 = vld [vmem:[%s418 + $0x1ca] sm:$0xff]
    %v582 = vld [vmem:[%s418 + $0x1d2] sm:$0xff]
    %v583 = vld [vmem:[%s418 + $0x1e2] sm:$0xff]
    %v584 = vld [vmem:[%s418 + $0x1ea] sm:$0xff]
    %v585 = vld [vmem:[%s418 + $0x1fa] sm:$0xff]
    %v586 = vld [vmem:[%s418 + $0x202] sm:$0xff]
    %v587 = vld [vmem:[%s418 + $0x212] sm:$0xff]
    %v588 = vld [vmem:[%s418 + $0x21a] sm:$0xff]
    %v589 = vld [vmem:[%s418 + $0x22a] sm:$0xff]
    %v590 = vld [vmem:[%s418 + $0x232] sm:$0xff]
    %v591 = vld [vmem:[%s418 + $0x242] sm:$0xff]
    %v592 = vld [vmem:[%s418 + $0x24a] sm:$0xff]
    %v593 = vld [vmem:[%s418 + $0x25a] sm:$0xff]
    %v594 = vld [vmem:[%s418 + $0x262] sm:$0xff]
    %v595 = vld [vmem:[%s418 + $0x272] sm:$0xff]
    %v596 = vld [vmem:[%s418 + $0x27a] sm:$0xff]
    %v597 = vld [vmem:[%s418 + $0x28a] sm:$0xff]
    %v598 = vld [vmem:[%s418 + $0x292] sm:$0xff]
    %v599 = vld [vmem:[%s418 + $0x2a2] sm:$0xff]
    %v600 = vld [vmem:[%s418 + $0x2aa] sm:$0xff]
    %v601 = vld [vmem:[%s418 + $0x2ba] sm:$0xff]
    %v602 = vld [vmem:[%s418 + $0x2c2] sm:$0xff]
    %v603 = vld [vmem:[%s418 + $0x2d2] sm:$0xff]
    %v604 = vld [vmem:[%s418 + $0x2da] sm:$0xff]
    %v605 = vld [vmem:[%s418 + $0x2ea] sm:$0xff]
    %v606 = vld [vmem:[%s418 + $0x2f2] sm:$0xff]
    %v607 = vld [vmem:[%s418 + $0x302] sm:$0xff]
    %v608 = vld [vmem:[%s418 + $0x30a] sm:$0xff]
    %v609 = vld [vmem:[%s418 + $0x31a] sm:$0xff]
    %v610 = vld [vmem:[%s418 + $0x322] sm:$0xff]
    %675 = vrot.lane.b32.xlu0 %v97, 1
    %v676 = vpop.permute.xlu0 %675
    %677 = vrot.lane.b32.xlu0 %v98, 1
    %v678 = vpop.permute.xlu0 %677
    %679 = vrot.lane.b32.xlu0 %v99, 1
    %v680 = vpop.permute.xlu0 %679
    %681 = vrot.lane.b32.xlu0 %v100, 1
    %v682 = vpop.permute.xlu0 %681
    %683 = vrot.lane.b32.xlu0 %v101, 1
    %v684 = vpop.permute.xlu0 %683
    %685 = vrot.lane.b32.xlu0 %v102, 1
    %v686 = vpop.permute.xlu0 %685
    %687 = vrot.lane.b32.xlu0 %v103, 1
    %v688 = vpop.permute.xlu0 %687
    %689 = vrot.lane.b32.xlu0 %v104, 1
    %v690 = vpop.permute.xlu0 %689
    %691 = vrot.lane.b32.xlu0 %v105, 1
    %v692 = vpop.permute.xlu0 %691
    %693 = vrot.lane.b32.xlu0 %v106, 1
    %v694 = vpop.permute.xlu0 %693
    %695 = vrot.lane.b32.xlu0 %v107, 1
    %v696 = vpop.permute.xlu0 %695
    %697 = vrot.lane.b32.xlu0 %v108, 1
    %v698 = vpop.permute.xlu0 %697
    %699 = vrot.lane.b32.xlu0 %v109, 1
    %v700 = vpop.permute.xlu0 %699
    %701 = vrot.lane.b32.xlu0 %v110, 1
    %v702 = vpop.permute.xlu0 %701
    %703 = vrot.lane.b32.xlu0 %v111, 1
    %v704 = vpop.permute.xlu0 %703
    %705 = vrot.lane.b32.xlu0 %v112, 1
    %v706 = vpop.permute.xlu0 %705
    %707 = vrot.lane.b32.xlu0 %v113, 1
    %v708 = vpop.permute.xlu0 %707
    %709 = vrot.lane.b32.xlu0 %v114, 1
    %v710 = vpop.permute.xlu0 %709
    %711 = vrot.lane.b32.xlu0 %v115, 1
    %v712 = vpop.permute.xlu0 %711
    %713 = vrot.lane.b32.xlu0 %v116, 1
    %v714 = vpop.permute.xlu0 %713
    %715 = vrot.lane.b32.xlu0 %v117, 1
    %v716 = vpop.permute.xlu0 %715
    %717 = vrot.lane.b32.xlu0 %v118, 1
    %v718 = vpop.permute.xlu0 %717
    %719 = vrot.lane.b32.xlu0 %v119, 1
    %v720 = vpop.permute.xlu0 %719
    %721 = vrot.lane.b32.xlu0 %v120, 1
    %v722 = vpop.permute.xlu0 %721
    %723 = vrot.lane.b32.xlu0 %v121, 1
    %v724 = vpop.permute.xlu0 %723
    %725 = vrot.lane.b32.xlu0 %v122, 1
    %v726 = vpop.permute.xlu0 %725
    %727 = vrot.lane.b32.xlu0 %v123, 1
    %v728 = vpop.permute.xlu0 %727
    %729 = vrot.lane.b32.xlu0 %v124, 1
    %v730 = vpop.permute.xlu0 %729
    %731 = vrot.lane.b32.xlu0 %v125, 1
    %v732 = vpop.permute.xlu0 %731
    %733 = vrot.lane.b32.xlu0 %v126, 1
    %v734 = vpop.permute.xlu0 %733
    %735 = vrot.lane.b32.xlu0 %v127, 1
    %v736 = vpop.permute.xlu0 %735
    %737 = vrot.lane.b32.xlu0 %v128, 1
    %v738 = vpop.permute.xlu0 %737
    %739 = vrot.lane.b32.xlu0 %v129, 1
    %v740 = vpop.permute.xlu0 %739
    %741 = vrot.lane.b32.xlu0 %v130, 1
    %v742 = vpop.permute.xlu0 %741
    %743 = vrot.lane.b32.xlu0 %v131, 1
    %v744 = vpop.permute.xlu0 %743
    %745 = vrot.lane.b32.xlu0 %v132, 1
    %v746 = vpop.permute.xlu0 %745
    %747 = vrot.lane.b32.xlu0 %v133, 1
    %v748 = vpop.permute.xlu0 %747
    %749 = vrot.lane.b32.xlu0 %v134, 1
    %v750 = vpop.permute.xlu0 %749
    %751 = vrot.lane.b32.xlu0 %v135, 1
    %v752 = vpop.permute.xlu0 %751
    %753 = vrot.lane.b32.xlu0 %v136, 1
    %v754 = vpop.permute.xlu0 %753
    %755 = vrot.lane.b32.xlu0 %v137, 1
    %v756 = vpop.permute.xlu0 %755
    %757 = vrot.lane.b32.xlu0 %v138, 1
    %v758 = vpop.permute.xlu0 %757
    %759 = vrot.lane.b32.xlu0 %v139, 1
    %v760 = vpop.permute.xlu0 %759
    %761 = vrot.lane.b32.xlu0 %v140, 1
    %v762 = vpop.permute.xlu0 %761
    %763 = vrot.lane.b32.xlu0 %v141, 1
    %v764 = vpop.permute.xlu0 %763
    %765 = vrot.lane.b32.xlu0 %v142, 1
    %v766 = vpop.permute.xlu0 %765
    %767 = vrot.lane.b32.xlu0 %v143, 1
    %v768 = vpop.permute.xlu0 %767
    %769 = vrot.lane.b32.xlu0 %v144, 1
    %v770 = vpop.permute.xlu0 %769
    %771 = vrot.lane.b32.xlu0 %v145, 1
    %v772 = vpop.permute.xlu0 %771
    %773 = vrot.lane.b32.xlu0 %v146, 1
    %v774 = vpop.permute.xlu0 %773
    %775 = vrot.lane.b32.xlu0 %v147, 1
    %v776 = vpop.permute.xlu0 %775
    %777 = vrot.lane.b32.xlu0 %v148, 1
    %v778 = vpop.permute.xlu0 %777
    %779 = vrot.lane.b32.xlu0 %v149, 1
    %v780 = vpop.permute.xlu0 %779
    %781 = vrot.lane.b32.xlu0 %v150, 1
    %v782 = vpop.permute.xlu0 %781
    %783 = vrot.lane.b32.xlu0 %v151, 1
    %v784 = vpop.permute.xlu0 %783
    %785 = vrot.lane.b32.xlu0 %v152, 1
    %v786 = vpop.permute.xlu0 %785
    %787 = vrot.lane.b32.xlu0 %v153, 1
    %v788 = vpop.permute.xlu0 %787
    %789 = vrot.lane.b32.xlu0 %v154, 1
    %v790 = vpop.permute.xlu0 %789
    %791 = vrot.lane.b32.xlu0 %v155, 1
    %v792 = vpop.permute.xlu0 %791
    %793 = vrot.lane.b32.xlu0 %v156, 1
    %v794 = vpop.permute.xlu0 %793
    %795 = vrot.lane.b32.xlu0 %v157, 1
    %v796 = vpop.permute.xlu0 %795
    %797 = vrot.lane.b32.xlu0 %v158, 1
    %v798 = vpop.permute.xlu0 %797
    %799 = vrot.lane.b32.xlu0 %v159, 1
    %v800 = vpop.permute.xlu0 %799
    %801 = vrot.lane.b32.xlu0 %v160, 1
    %v802 = vpop.permute.xlu0 %801
    %931 = vrot.lane.b32.xlu0 %v161, 2
    %v932 = vpop.permute.xlu0 %931
    %933 = vrot.lane.b32.xlu0 %v162, 2
    %v934 = vpop.permute.xlu0 %933
    %935 = vrot.lane.b32.xlu0 %v163, 2
    %v936 = vpop.permute.xlu0 %935
    %937 = vrot.lane.b32.xlu0 %v164, 2
    %v938 = vpop.permute.xlu0 %937
    %939 = vrot.lane.b32.xlu0 %v165, 2
    %v940 = vpop.permute.xlu0 %939
    %941 = vrot.lane.b32.xlu0 %v166, 2
    %v942 = vpop.permute.xlu0 %941
    %943 = vrot.lane.b32.xlu0 %v167, 2
    %v944 = vpop.permute.xlu0 %943
    %945 = vrot.lane.b32.xlu0 %v168, 2
    %v946 = vpop.permute.xlu0 %945
    %947 = vrot.lane.b32.xlu0 %v169, 2
    %v948 = vpop.permute.xlu0 %947
    %949 = vrot.lane.b32.xlu0 %v170, 2
    %v950 = vpop.permute.xlu0 %949
    %951 = vrot.lane.b32.xlu0 %v171, 2
    %v952 = vpop.permute.xlu0 %951
    %953 = vrot.lane.b32.xlu0 %v172, 2
    %v954 = vpop.permute.xlu0 %953
    %955 = vrot.lane.b32.xlu0 %v173, 2
    %v956 = vpop.permute.xlu0 %955
    %957 = vrot.lane.b32.xlu0 %v174, 2
    %v958 = vpop.permute.xlu0 %957
    %959 = vrot.lane.b32.xlu0 %v175, 2
    %v960 = vpop.permute.xlu0 %959
    %961 = vrot.lane.b32.xlu0 %v176, 2
    %v962 = vpop.permute.xlu0 %961
    %963 = vrot.lane.b32.xlu0 %v177, 2
    %v964 = vpop.permute.xlu0 %963
    %965 = vrot.lane.b32.xlu0 %v178, 2
    %v966 = vpop.permute.xlu0 %965
    %967 = vrot.lane.b32.xlu0 %v179, 2
    %v968 = vpop.permute.xlu0 %967
    %969 = vrot.lane.b32.xlu0 %v180, 2
    %v970 = vpop.permute.xlu0 %969
    %971 = vrot.lane.b32.xlu0 %v181, 2
    %v972 = vpop.permute.xlu0 %971
    %973 = vrot.lane.b32.xlu0 %v182, 2
    %v974 = vpop.permute.xlu0 %973
    %975 = vrot.lane.b32.xlu0 %v183, 2
    %v976 = vpop.permute.xlu0 %975
    %977 = vrot.lane.b32.xlu0 %v184, 2
    %v978 = vpop.permute.xlu0 %977
    %979 = vrot.lane.b32.xlu0 %v185, 2
    %v980 = vpop.permute.xlu0 %979
    %981 = vrot.lane.b32.xlu0 %v186, 2
    %v982 = vpop.permute.xlu0 %981
    %983 = vrot.lane.b32.xlu0 %v187, 2
    %v984 = vpop.permute.xlu0 %983
    %985 = vrot.lane.b32.xlu0 %v188, 2
    %v986 = vpop.permute.xlu0 %985
    %987 = vrot.lane.b32.xlu0 %v189, 2
    %v988 = vpop.permute.xlu0 %987
    %989 = vrot.lane.b32.xlu0 %v190, 2
    %v990 = vpop.permute.xlu0 %989
    %991 = vrot.lane.b32.xlu0 %v191, 2
    %v992 = vpop.permute.xlu0 %991
    %993 = vrot.lane.b32.xlu0 %v192, 2
    %v994 = vpop.permute.xlu0 %993
    %995 = vrot.lane.b32.xlu0 %v193, 2
    %v996 = vpop.permute.xlu0 %995
    %997 = vrot.lane.b32.xlu0 %v194, 2
    %v998 = vpop.permute.xlu0 %997
    %999 = vrot.lane.b32.xlu0 %v195, 2
    %v1000 = vpop.permute.xlu0 %999
    %1001 = vrot.lane.b32.xlu0 %v196, 2
    %v1002 = vpop.permute.xlu0 %1001
    %1003 = vrot.lane.b32.xlu0 %v197, 2
    %v1004 = vpop.permute.xlu0 %1003
    %1005 = vrot.lane.b32.xlu0 %v198, 2
    %v1006 = vpop.permute.xlu0 %1005
    %1007 = vrot.lane.b32.xlu0 %v199, 2
    %v1008 = vpop.permute.xlu0 %1007
    %1009 = vrot.lane.b32.xlu0 %v200, 2
    %v1010 = vpop.permute.xlu0 %1009
    %1011 = vrot.lane.b32.xlu0 %v201, 2
    %v1012 = vpop.permute.xlu0 %1011
    %1013 = vrot.lane.b32.xlu0 %v202, 2
    %v1014 = vpop.permute.xlu0 %1013
    %1015 = vrot.lane.b32.xlu0 %v203, 2
    %v1016 = vpop.permute.xlu0 %1015
    %1017 = vrot.lane.b32.xlu0 %v204, 2
    %v1018 = vpop.permute.xlu0 %1017
    %1019 = vrot.lane.b32.xlu0 %v205, 2
    %v1020 = vpop.permute.xlu0 %1019
    %1021 = vrot.lane.b32.xlu0 %v206, 2
    %v1022 = vpop.permute.xlu0 %1021
    %1023 = vrot.lane.b32.xlu0 %v207, 2
    %v1024 = vpop.permute.xlu0 %1023
    %1025 = vrot.lane.b32.xlu0 %v208, 2
    %v1026 = vpop.permute.xlu0 %1025
    %1027 = vrot.lane.b32.xlu0 %v209, 2
    %v1028 = vpop.permute.xlu0 %1027
    %1029 = vrot.lane.b32.xlu0 %v210, 2
    %v1030 = vpop.permute.xlu0 %1029
    %1031 = vrot.lane.b32.xlu0 %v211, 2
    %v1032 = vpop.permute.xlu0 %1031
    %1033 = vrot.lane.b32.xlu0 %v212, 2
    %v1034 = vpop.permute.xlu0 %1033
    %1035 = vrot.lane.b32.xlu0 %v213, 2
    %v1036 = vpop.permute.xlu0 %1035
    %1037 = vrot.lane.b32.xlu0 %v214, 2
    %v1038 = vpop.permute.xlu0 %1037
    %1039 = vrot.lane.b32.xlu0 %v215, 2
    %v1040 = vpop.permute.xlu0 %1039
    %1041 = vrot.lane.b32.xlu0 %v216, 2
    %v1042 = vpop.permute.xlu0 %1041
    %1043 = vrot.lane.b32.xlu0 %v217, 2
    %v1044 = vpop.permute.xlu0 %1043
    %1045 = vrot.lane.b32.xlu0 %v218, 2
    %v1046 = vpop.permute.xlu0 %1045
    %1047 = vrot.lane.b32.xlu0 %v219, 2
    %v1048 = vpop.permute.xlu0 %1047
    %1049 = vrot.lane.b32.xlu0 %v220, 2
    %v1050 = vpop.permute.xlu0 %1049
    %1051 = vrot.lane.b32.xlu0 %v221, 2
    %v1052 = vpop.permute.xlu0 %1051
    %1053 = vrot.lane.b32.xlu0 %v222, 2
    %v1054 = vpop.permute.xlu0 %1053
    %1055 = vrot.lane.b32.xlu0 %v223, 2
    %v1056 = vpop.permute.xlu0 %1055
    %1057 = vrot.lane.b32.xlu0 %v224, 2
    %v1058 = vpop.permute.xlu0 %1057
    %1187 = vrot.lane.b32.xlu0 %v226, 3
    %v1188 = vpop.permute.xlu0 %1187
    %1189 = vrot.lane.b32.xlu0 %v227, 3
    %v1190 = vpop.permute.xlu0 %1189
    %1191 = vrot.lane.b32.xlu0 %v228, 3
    %v1192 = vpop.permute.xlu0 %1191
    %1193 = vrot.lane.b32.xlu0 %v229, 3
    %v1194 = vpop.permute.xlu0 %1193
    %1195 = vrot.lane.b32.xlu0 %v230, 3
    %v1196 = vpop.permute.xlu0 %1195
    %1197 = vrot.lane.b32.xlu0 %v231, 3
    %v1198 = vpop.permute.xlu0 %1197
    %1199 = vrot.lane.b32.xlu0 %v232, 3
    %v1200 = vpop.permute.xlu0 %1199
    %1201 = vrot.lane.b32.xlu0 %v233, 3
    %v1202 = vpop.permute.xlu0 %1201
    %1203 = vrot.lane.b32.xlu0 %v234, 3
    %v1204 = vpop.permute.xlu0 %1203
    %1205 = vrot.lane.b32.xlu0 %v235, 3
    %v1206 = vpop.permute.xlu0 %1205
    %1207 = vrot.lane.b32.xlu0 %v236, 3
    %v1208 = vpop.permute.xlu0 %1207
    %1209 = vrot.lane.b32.xlu0 %v237, 3
    %v1210 = vpop.permute.xlu0 %1209
    %1211 = vrot.lane.b32.xlu0 %v238, 3
    %v1212 = vpop.permute.xlu0 %1211
    %1213 = vrot.lane.b32.xlu0 %v239, 3
    %v1214 = vpop.permute.xlu0 %1213
    %1215 = vrot.lane.b32.xlu0 %v240, 3
    %v1216 = vpop.permute.xlu0 %1215
    %1217 = vrot.lane.b32.xlu0 %v241, 3
    %v1218 = vpop.permute.xlu0 %1217
    %1219 = vrot.lane.b32.xlu0 %v242, 3
    %v1220 = vpop.permute.xlu0 %1219
    %1221 = vrot.lane.b32.xlu0 %v243, 3
    %v1222 = vpop.permute.xlu0 %1221
    %1223 = vrot.lane.b32.xlu0 %v244, 3
    %v1224 = vpop.permute.xlu0 %1223
    %1225 = vrot.lane.b32.xlu0 %v245, 3
    %v1226 = vpop.permute.xlu0 %1225
    %1227 = vrot.lane.b32.xlu0 %v246, 3
    %v1228 = vpop.permute.xlu0 %1227
    %1229 = vrot.lane.b32.xlu0 %v247, 3
    %v1230 = vpop.permute.xlu0 %1229
    %1231 = vrot.lane.b32.xlu0 %v248, 3
    %v1232 = vpop.permute.xlu0 %1231
    %1233 = vrot.lane.b32.xlu0 %v249, 3
    %v1234 = vpop.permute.xlu0 %1233
    %1235 = vrot.lane.b32.xlu0 %v250, 3
    %v1236 = vpop.permute.xlu0 %1235
    %1237 = vrot.lane.b32.xlu0 %v251, 3
    %v1238 = vpop.permute.xlu0 %1237
    %1239 = vrot.lane.b32.xlu0 %v252, 3
    %v1240 = vpop.permute.xlu0 %1239
    %1241 = vrot.lane.b32.xlu0 %v253, 3
    %v1242 = vpop.permute.xlu0 %1241
    %1243 = vrot.lane.b32.xlu0 %v254, 3
    %v1244 = vpop.permute.xlu0 %1243
    %1245 = vrot.lane.b32.xlu0 %v255, 3
    %v1246 = vpop.permute.xlu0 %1245
    %1247 = vrot.lane.b32.xlu0 %v256, 3
    %v1248 = vpop.permute.xlu0 %1247
    %1249 = vrot.lane.b32.xlu0 %v257, 3
    %v1250 = vpop.permute.xlu0 %1249
    %1251 = vrot.lane.b32.xlu0 %v258, 3
    %v1252 = vpop.permute.xlu0 %1251
    %1253 = vrot.lane.b32.xlu0 %v259, 3
    %v1254 = vpop.permute.xlu0 %1253
    %1255 = vrot.lane.b32.xlu0 %v260, 3
    %v1256 = vpop.permute.xlu0 %1255
    %1257 = vrot.lane.b32.xlu0 %v261, 3
    %v1258 = vpop.permute.xlu0 %1257
    %1259 = vrot.lane.b32.xlu0 %v262, 3
    %v1260 = vpop.permute.xlu0 %1259
    %1261 = vrot.lane.b32.xlu0 %v263, 3
    %v1262 = vpop.permute.xlu0 %1261
    %1263 = vrot.lane.b32.xlu0 %v264, 3
    %v1264 = vpop.permute.xlu0 %1263
    %1265 = vrot.lane.b32.xlu0 %v265, 3
    %v1266 = vpop.permute.xlu0 %1265
    %1267 = vrot.lane.b32.xlu0 %v266, 3
    %v1268 = vpop.permute.xlu0 %1267
    %1269 = vrot.lane.b32.xlu0 %v267, 3
    %v1270 = vpop.permute.xlu0 %1269
    %1271 = vrot.lane.b32.xlu0 %v268, 3
    %v1272 = vpop.permute.xlu0 %1271
    %1273 = vrot.lane.b32.xlu0 %v269, 3
    %v1274 = vpop.permute.xlu0 %1273
    %1275 = vrot.lane.b32.xlu0 %v270, 3
    %v1276 = vpop.permute.xlu0 %1275
    %1277 = vrot.lane.b32.xlu0 %v271, 3
    %v1278 = vpop.permute.xlu0 %1277
    %1279 = vrot.lane.b32.xlu0 %v272, 3
    %v1280 = vpop.permute.xlu0 %1279
    %1281 = vrot.lane.b32.xlu0 %v273, 3
    %v1282 = vpop.permute.xlu0 %1281
    %1283 = vrot.lane.b32.xlu0 %v274, 3
    %v1284 = vpop.permute.xlu0 %1283
    %1285 = vrot.lane.b32.xlu0 %v275, 3
    %v1286 = vpop.permute.xlu0 %1285
    %1287 = vrot.lane.b32.xlu0 %v276, 3
    %v1288 = vpop.permute.xlu0 %1287
    %1289 = vrot.lane.b32.xlu0 %v277, 3
    %v1290 = vpop.permute.xlu0 %1289
    %1291 = vrot.lane.b32.xlu0 %v278, 3
    %v1292 = vpop.permute.xlu0 %1291
    %1293 = vrot.lane.b32.xlu0 %v279, 3
    %v1294 = vpop.permute.xlu0 %1293
    %1295 = vrot.lane.b32.xlu0 %v280, 3
    %v1296 = vpop.permute.xlu0 %1295
    %1297 = vrot.lane.b32.xlu0 %v281, 3
    %v1298 = vpop.permute.xlu0 %1297
    %1299 = vrot.lane.b32.xlu0 %v282, 3
    %v1300 = vpop.permute.xlu0 %1299
    %1301 = vrot.lane.b32.xlu0 %v283, 3
    %v1302 = vpop.permute.xlu0 %1301
    %1303 = vrot.lane.b32.xlu0 %v284, 3
    %v1304 = vpop.permute.xlu0 %1303
    %1305 = vrot.lane.b32.xlu0 %v285, 3
    %v1306 = vpop.permute.xlu0 %1305
    %1307 = vrot.lane.b32.xlu0 %v286, 3
    %v1308 = vpop.permute.xlu0 %1307
    %1309 = vrot.lane.b32.xlu0 %v287, 3
    %v1310 = vpop.permute.xlu0 %1309
    %1311 = vrot.lane.b32.xlu0 %v288, 3
    %v1312 = vpop.permute.xlu0 %1311
    %1313 = vrot.lane.b32.xlu0 %v289, 3
    %v1314 = vpop.permute.xlu0 %1313
    %1443 = vrot.lane.b32.xlu0 %v290, 4
    %v1444 = vpop.permute.xlu0 %1443
    %1445 = vrot.lane.b32.xlu0 %v291, 4
    %v1446 = vpop.permute.xlu0 %1445
    %1447 = vrot.lane.b32.xlu0 %v292, 4
    %v1448 = vpop.permute.xlu0 %1447
    %1449 = vrot.lane.b32.xlu0 %v293, 4
    %v1450 = vpop.permute.xlu0 %1449
    %1451 = vrot.lane.b32.xlu0 %v294, 4
    %v1452 = vpop.permute.xlu0 %1451
    %1453 = vrot.lane.b32.xlu0 %v295, 4
    %v1454 = vpop.permute.xlu0 %1453
    %1455 = vrot.lane.b32.xlu0 %v296, 4
    %v1456 = vpop.permute.xlu0 %1455
    %1457 = vrot.lane.b32.xlu0 %v297, 4
    %v1458 = vpop.permute.xlu0 %1457
    %1459 = vrot.lane.b32.xlu0 %v298, 4
    %v1460 = vpop.permute.xlu0 %1459
    %1461 = vrot.lane.b32.xlu0 %v299, 4
    %v1462 = vpop.permute.xlu0 %1461
    %1463 = vrot.lane.b32.xlu0 %v300, 4
    %v1464 = vpop.permute.xlu0 %1463
    %1465 = vrot.lane.b32.xlu0 %v301, 4
    %v1466 = vpop.permute.xlu0 %1465
    %1467 = vrot.lane.b32.xlu0 %v302, 4
    %v1468 = vpop.permute.xlu0 %1467
    %1469 = vrot.lane.b32.xlu0 %v303, 4
    %v1470 = vpop.permute.xlu0 %1469
    %1471 = vrot.lane.b32.xlu0 %v304, 4
    %v1472 = vpop.permute.xlu0 %1471
    %1473 = vrot.lane.b32.xlu0 %v305, 4
    %v1474 = vpop.permute.xlu0 %1473
    %1475 = vrot.lane.b32.xlu0 %v306, 4
    %v1476 = vpop.permute.xlu0 %1475
    %1477 = vrot.lane.b32.xlu0 %v307, 4
    %v1478 = vpop.permute.xlu0 %1477
    %1479 = vrot.lane.b32.xlu0 %v308, 4
    %v1480 = vpop.permute.xlu0 %1479
    %1481 = vrot.lane.b32.xlu0 %v309, 4
    %v1482 = vpop.permute.xlu0 %1481
    %1483 = vrot.lane.b32.xlu0 %v310, 4
    %v1484 = vpop.permute.xlu0 %1483
    %1485 = vrot.lane.b32.xlu0 %v311, 4
    %v1486 = vpop.permute.xlu0 %1485
    %1487 = vrot.lane.b32.xlu0 %v312, 4
    %v1488 = vpop.permute.xlu0 %1487
    %1489 = vrot.lane.b32.xlu0 %v313, 4
    %v1490 = vpop.permute.xlu0 %1489
    %1491 = vrot.lane.b32.xlu0 %v314, 4
    %v1492 = vpop.permute.xlu0 %1491
    %1493 = vrot.lane.b32.xlu0 %v315, 4
    %v1494 = vpop.permute.xlu0 %1493
    %1495 = vrot.lane.b32.xlu0 %v316, 4
    %v1496 = vpop.permute.xlu0 %1495
    %1497 = vrot.lane.b32.xlu0 %v317, 4
    %v1498 = vpop.permute.xlu0 %1497
    %1499 = vrot.lane.b32.xlu0 %v318, 4
    %v1500 = vpop.permute.xlu0 %1499
    %1501 = vrot.lane.b32.xlu0 %v319, 4
    %v1502 = vpop.permute.xlu0 %1501
    %1503 = vrot.lane.b32.xlu0 %v320, 4
    %v1504 = vpop.permute.xlu0 %1503
    %1505 = vrot.lane.b32.xlu0 %v321, 4
    %v1506 = vpop.permute.xlu0 %1505
    %1507 = vrot.lane.b32.xlu0 %v322, 4
    %v1508 = vpop.permute.xlu0 %1507
    %1509 = vrot.lane.b32.xlu0 %v323, 4
    %v1510 = vpop.permute.xlu0 %1509
    %1511 = vrot.lane.b32.xlu0 %v324, 4
    %v1512 = vpop.permute.xlu0 %1511
    %1513 = vrot.lane.b32.xlu0 %v325, 4
    %v1514 = vpop.permute.xlu0 %1513
    %1515 = vrot.lane.b32.xlu0 %v326, 4
    %v1516 = vpop.permute.xlu0 %1515
    %1517 = vrot.lane.b32.xlu0 %v327, 4
    %v1518 = vpop.permute.xlu0 %1517
    %1519 = vrot.lane.b32.xlu0 %v328, 4
    %v1520 = vpop.permute.xlu0 %1519
    %1521 = vrot.lane.b32.xlu0 %v329, 4
    %v1522 = vpop.permute.xlu0 %1521
    %1523 = vrot.lane.b32.xlu0 %v330, 4
    %v1524 = vpop.permute.xlu0 %1523
    %1525 = vrot.lane.b32.xlu0 %v331, 4
    %v1526 = vpop.permute.xlu0 %1525
    %1527 = vrot.lane.b32.xlu0 %v332, 4
    %v1528 = vpop.permute.xlu0 %1527
    %1529 = vrot.lane.b32.xlu0 %v333, 4
    %v1530 = vpop.permute.xlu0 %1529
    %1531 = vrot.lane.b32.xlu0 %v334, 4
    %v1532 = vpop.permute.xlu0 %1531
    %1533 = vrot.lane.b32.xlu0 %v335, 4
    %v1534 = vpop.permute.xlu0 %1533
    %1535 = vrot.lane.b32.xlu0 %v336, 4
    %v1536 = vpop.permute.xlu0 %1535
    %1537 = vrot.lane.b32.xlu0 %v337, 4
    %v1538 = vpop.permute.xlu0 %1537
    %1539 = vrot.lane.b32.xlu0 %v338, 4
    %v1540 = vpop.permute.xlu0 %1539
    %1541 = vrot.lane.b32.xlu0 %v339, 4
    %v1542 = vpop.permute.xlu0 %1541
    %1543 = vrot.lane.b32.xlu0 %v340, 4
    %v1544 = vpop.permute.xlu0 %1543
    %1545 = vrot.lane.b32.xlu0 %v341, 4
    %v1546 = vpop.permute.xlu0 %1545
    %1547 = vrot.lane.b32.xlu0 %v342, 4
    %v1548 = vpop.permute.xlu0 %1547
    %1549 = vrot.lane.b32.xlu0 %v343, 4
    %v1550 = vpop.permute.xlu0 %1549
    %1551 = vrot.lane.b32.xlu0 %v344, 4
    %v1552 = vpop.permute.xlu0 %1551
    %1553 = vrot.lane.b32.xlu0 %v345, 4
    %v1554 = vpop.permute.xlu0 %1553
    %1555 = vrot.lane.b32.xlu0 %v346, 4
    %v1556 = vpop.permute.xlu0 %1555
    %1557 = vrot.lane.b32.xlu0 %v347, 4
    %v1558 = vpop.permute.xlu0 %1557
    %1559 = vrot.lane.b32.xlu0 %v348, 4
    %v1560 = vpop.permute.xlu0 %1559
    %1561 = vrot.lane.b32.xlu0 %v349, 4
    %v1562 = vpop.permute.xlu0 %1561
    %1563 = vrot.lane.b32.xlu0 %v350, 4
    %v1564 = vpop.permute.xlu0 %1563
    %1565 = vrot.lane.b32.xlu0 %v351, 4
    %v1566 = vpop.permute.xlu0 %1565
    %1567 = vrot.lane.b32.xlu0 %v352, 4
    %v1568 = vpop.permute.xlu0 %1567
    %1569 = vrot.lane.b32.xlu0 %v353, 4
    %v1570 = vpop.permute.xlu0 %1569
    %1699 = vrot.lane.b32.xlu0 %v354, 5
    %v1700 = vpop.permute.xlu0 %1699
    %1701 = vrot.lane.b32.xlu0 %v355, 5
    %v1702 = vpop.permute.xlu0 %1701
    %1703 = vrot.lane.b32.xlu0 %v356, 5
    %v1704 = vpop.permute.xlu0 %1703
    %1705 = vrot.lane.b32.xlu0 %v357, 5
    %v1706 = vpop.permute.xlu0 %1705
    %1707 = vrot.lane.b32.xlu0 %v358, 5
    %v1708 = vpop.permute.xlu0 %1707
    %1709 = vrot.lane.b32.xlu0 %v359, 5
    %v1710 = vpop.permute.xlu0 %1709
    %1711 = vrot.lane.b32.xlu0 %v360, 5
    %v1712 = vpop.permute.xlu0 %1711
    %1713 = vrot.lane.b32.xlu0 %v361, 5
    %v1714 = vpop.permute.xlu0 %1713
    %1715 = vrot.lane.b32.xlu0 %v362, 5
    %v1716 = vpop.permute.xlu0 %1715
    %1717 = vrot.lane.b32.xlu0 %v363, 5
    %v1718 = vpop.permute.xlu0 %1717
    %1719 = vrot.lane.b32.xlu0 %v364, 5
    %v1720 = vpop.permute.xlu0 %1719
    %1721 = vrot.lane.b32.xlu0 %v365, 5
    %v1722 = vpop.permute.xlu0 %1721
    %1723 = vrot.lane.b32.xlu0 %v366, 5
    %v1724 = vpop.permute.xlu0 %1723
    %1725 = vrot.lane.b32.xlu0 %v367, 5
    %v1726 = vpop.permute.xlu0 %1725
    %1727 = vrot.lane.b32.xlu0 %v368, 5
    %v1728 = vpop.permute.xlu0 %1727
    %1729 = vrot.lane.b32.xlu0 %v369, 5
    %v1730 = vpop.permute.xlu0 %1729
    %1731 = vrot.lane.b32.xlu0 %v370, 5
    %v1732 = vpop.permute.xlu0 %1731
    %1733 = vrot.lane.b32.xlu0 %v371, 5
    %v1734 = vpop.permute.xlu0 %1733
    %1735 = vrot.lane.b32.xlu0 %v372, 5
    %v1736 = vpop.permute.xlu0 %1735
    %1737 = vrot.lane.b32.xlu0 %v373, 5
    %v1738 = vpop.permute.xlu0 %1737
    %1739 = vrot.lane.b32.xlu0 %v374, 5
    %v1740 = vpop.permute.xlu0 %1739
    %1741 = vrot.lane.b32.xlu0 %v375, 5
    %v1742 = vpop.permute.xlu0 %1741
    %1743 = vrot.lane.b32.xlu0 %v376, 5
    %v1744 = vpop.permute.xlu0 %1743
    %1745 = vrot.lane.b32.xlu0 %v377, 5
    %v1746 = vpop.permute.xlu0 %1745
    %1747 = vrot.lane.b32.xlu0 %v378, 5
    %v1748 = vpop.permute.xlu0 %1747
    %1749 = vrot.lane.b32.xlu0 %v379, 5
    %v1750 = vpop.permute.xlu0 %1749
    %1751 = vrot.lane.b32.xlu0 %v380, 5
    %v1752 = vpop.permute.xlu0 %1751
    %1753 = vrot.lane.b32.xlu0 %v381, 5
    %v1754 = vpop.permute.xlu0 %1753
    %1755 = vrot.lane.b32.xlu0 %v382, 5
    %v1756 = vpop.permute.xlu0 %1755
    %1757 = vrot.lane.b32.xlu0 %v383, 5
    %v1758 = vpop.permute.xlu0 %1757
    %1759 = vrot.lane.b32.xlu0 %v384, 5
    %v1760 = vpop.permute.xlu0 %1759
    %1761 = vrot.lane.b32.xlu0 %v385, 5
    %v1762 = vpop.permute.xlu0 %1761
    %1763 = vrot.lane.b32.xlu0 %v386, 5
    %v1764 = vpop.permute.xlu0 %1763
    %1765 = vrot.lane.b32.xlu0 %v387, 5
    %v1766 = vpop.permute.xlu0 %1765
    %1767 = vrot.lane.b32.xlu0 %v388, 5
    %v1768 = vpop.permute.xlu0 %1767
    %1769 = vrot.lane.b32.xlu0 %v389, 5
    %v1770 = vpop.permute.xlu0 %1769
    %1771 = vrot.lane.b32.xlu0 %v390, 5
    %v1772 = vpop.permute.xlu0 %1771
    %1773 = vrot.lane.b32.xlu0 %v391, 5
    %v1774 = vpop.permute.xlu0 %1773
    %1775 = vrot.lane.b32.xlu0 %v392, 5
    %v1776 = vpop.permute.xlu0 %1775
    %1777 = vrot.lane.b32.xlu0 %v393, 5
    %v1778 = vpop.permute.xlu0 %1777
    %1779 = vrot.lane.b32.xlu0 %v394, 5
    %v1780 = vpop.permute.xlu0 %1779
    %1781 = vrot.lane.b32.xlu0 %v395, 5
    %v1782 = vpop.permute.xlu0 %1781
    %1783 = vrot.lane.b32.xlu0 %v396, 5
    %v1784 = vpop.permute.xlu0 %1783
    %1785 = vrot.lane.b32.xlu0 %v397, 5
    %v1786 = vpop.permute.xlu0 %1785
    %1787 = vrot.lane.b32.xlu0 %v398, 5
    %v1788 = vpop.permute.xlu0 %1787
    %1789 = vrot.lane.b32.xlu0 %v399, 5
    %v1790 = vpop.permute.xlu0 %1789
    %1791 = vrot.lane.b32.xlu0 %v400, 5
    %v1792 = vpop.permute.xlu0 %1791
    %1793 = vrot.lane.b32.xlu0 %v401, 5
    %v1794 = vpop.permute.xlu0 %1793
    %1795 = vrot.lane.b32.xlu0 %v402, 5
    %v1796 = vpop.permute.xlu0 %1795
    %1797 = vrot.lane.b32.xlu0 %v403, 5
    %v1798 = vpop.permute.xlu0 %1797
    %1799 = vrot.lane.b32.xlu0 %v404, 5
    %v1800 = vpop.permute.xlu0 %1799
    %1801 = vrot.lane.b32.xlu0 %v405, 5
    %v1802 = vpop.permute.xlu0 %1801
    %1803 = vrot.lane.b32.xlu0 %v406, 5
    %v1804 = vpop.permute.xlu0 %1803
    %1805 = vrot.lane.b32.xlu0 %v407, 5
    %v1806 = vpop.permute.xlu0 %1805
    %1807 = vrot.lane.b32.xlu0 %v408, 5
    %v1808 = vpop.permute.xlu0 %1807
    %1809 = vrot.lane.b32.xlu0 %v409, 5
    %v1810 = vpop.permute.xlu0 %1809
    %1811 = vrot.lane.b32.xlu0 %v410, 5
    %v1812 = vpop.permute.xlu0 %1811
    %1813 = vrot.lane.b32.xlu0 %v411, 5
    %v1814 = vpop.permute.xlu0 %1813
    %1815 = vrot.lane.b32.xlu0 %v412, 5
    %v1816 = vpop.permute.xlu0 %1815
    %1817 = vrot.lane.b32.xlu0 %v413, 5
    %v1818 = vpop.permute.xlu0 %1817
    %1819 = vrot.lane.b32.xlu0 %v414, 5
    %v1820 = vpop.permute.xlu0 %1819
    %1821 = vrot.lane.b32.xlu0 %v415, 5
    %v1822 = vpop.permute.xlu0 %1821
    %1823 = vrot.lane.b32.xlu0 %v416, 5
    %v1824 = vpop.permute.xlu0 %1823
    %1825 = vrot.lane.b32.xlu0 %v417, 5
    %v1826 = vpop.permute.xlu0 %1825
    %1955 = vrot.lane.b32.xlu0 %v419, 6
    %v1956 = vpop.permute.xlu0 %1955
    %1957 = vrot.lane.b32.xlu0 %v420, 6
    %v1958 = vpop.permute.xlu0 %1957
    %1959 = vrot.lane.b32.xlu0 %v421, 6
    %v1960 = vpop.permute.xlu0 %1959
    %1961 = vrot.lane.b32.xlu0 %v422, 6
    %v1962 = vpop.permute.xlu0 %1961
    %1963 = vrot.lane.b32.xlu0 %v423, 6
    %v1964 = vpop.permute.xlu0 %1963
    %1965 = vrot.lane.b32.xlu0 %v424, 6
    %v1966 = vpop.permute.xlu0 %1965
    %1967 = vrot.lane.b32.xlu0 %v425, 6
    %v1968 = vpop.permute.xlu0 %1967
    %1969 = vrot.lane.b32.xlu0 %v426, 6
    %v1970 = vpop.permute.xlu0 %1969
    %1971 = vrot.lane.b32.xlu0 %v427, 6
    %v1972 = vpop.permute.xlu0 %1971
    %1973 = vrot.lane.b32.xlu0 %v428, 6
    %v1974 = vpop.permute.xlu0 %1973
    %1975 = vrot.lane.b32.xlu0 %v429, 6
    %v1976 = vpop.permute.xlu0 %1975
    %1977 = vrot.lane.b32.xlu0 %v430, 6
    %v1978 = vpop.permute.xlu0 %1977
    %1979 = vrot.lane.b32.xlu0 %v431, 6
    %v1980 = vpop.permute.xlu0 %1979
    %1981 = vrot.lane.b32.xlu0 %v432, 6
    %v1982 = vpop.permute.xlu0 %1981
    %1983 = vrot.lane.b32.xlu0 %v433, 6
    %v1984 = vpop.permute.xlu0 %1983
    %1985 = vrot.lane.b32.xlu0 %v434, 6
    %v1986 = vpop.permute.xlu0 %1985
    %1987 = vrot.lane.b32.xlu0 %v435, 6
    %v1988 = vpop.permute.xlu0 %1987
    %1989 = vrot.lane.b32.xlu0 %v436, 6
    %v1990 = vpop.permute.xlu0 %1989
    %1991 = vrot.lane.b32.xlu0 %v437, 6
    %v1992 = vpop.permute.xlu0 %1991
    %1993 = vrot.lane.b32.xlu0 %v438, 6
    %v1994 = vpop.permute.xlu0 %1993
    %1995 = vrot.lane.b32.xlu0 %v439, 6
    %v1996 = vpop.permute.xlu0 %1995
    %1997 = vrot.lane.b32.xlu0 %v440, 6
    %v1998 = vpop.permute.xlu0 %1997
    %1999 = vrot.lane.b32.xlu0 %v441, 6
    %v2000 = vpop.permute.xlu0 %1999
    %2001 = vrot.lane.b32.xlu0 %v442, 6
    %v2002 = vpop.permute.xlu0 %2001
    %2003 = vrot.lane.b32.xlu0 %v443, 6
    %v2004 = vpop.permute.xlu0 %2003
    %2005 = vrot.lane.b32.xlu0 %v444, 6
    %v2006 = vpop.permute.xlu0 %2005
    %2007 = vrot.lane.b32.xlu0 %v445, 6
    %v2008 = vpop.permute.xlu0 %2007
    %2009 = vrot.lane.b32.xlu0 %v446, 6
    %v2010 = vpop.permute.xlu0 %2009
    %2011 = vrot.lane.b32.xlu0 %v447, 6
    %v2012 = vpop.permute.xlu0 %2011
    %2013 = vrot.lane.b32.xlu0 %v448, 6
    %v2014 = vpop.permute.xlu0 %2013
    %2015 = vrot.lane.b32.xlu0 %v449, 6
    %v2016 = vpop.permute.xlu0 %2015
    %2017 = vrot.lane.b32.xlu0 %v450, 6
    %v2018 = vpop.permute.xlu0 %2017
    %2019 = vrot.lane.b32.xlu0 %v451, 6
    %v2020 = vpop.permute.xlu0 %2019
    %2021 = vrot.lane.b32.xlu0 %v452, 6
    %v2022 = vpop.permute.xlu0 %2021
    %2023 = vrot.lane.b32.xlu0 %v453, 6
    %v2024 = vpop.permute.xlu0 %2023
    %2025 = vrot.lane.b32.xlu0 %v454, 6
    %v2026 = vpop.permute.xlu0 %2025
    %2027 = vrot.lane.b32.xlu0 %v455, 6
    %v2028 = vpop.permute.xlu0 %2027
    %2029 = vrot.lane.b32.xlu0 %v456, 6
    %v2030 = vpop.permute.xlu0 %2029
    %2031 = vrot.lane.b32.xlu0 %v457, 6
    %v2032 = vpop.permute.xlu0 %2031
    %2033 = vrot.lane.b32.xlu0 %v458, 6
    %v2034 = vpop.permute.xlu0 %2033
    %2035 = vrot.lane.b32.xlu0 %v459, 6
    %v2036 = vpop.permute.xlu0 %2035
    %2037 = vrot.lane.b32.xlu0 %v460, 6
    %v2038 = vpop.permute.xlu0 %2037
    %2039 = vrot.lane.b32.xlu0 %v461, 6
    %v2040 = vpop.permute.xlu0 %2039
    %2041 = vrot.lane.b32.xlu0 %v462, 6
    %v2042 = vpop.permute.xlu0 %2041
    %2043 = vrot.lane.b32.xlu0 %v463, 6
    %v2044 = vpop.permute.xlu0 %2043
    %2045 = vrot.lane.b32.xlu0 %v464, 6
    %v2046 = vpop.permute.xlu0 %2045
    %2047 = vrot.lane.b32.xlu0 %v465, 6
    %v2048 = vpop.permute.xlu0 %2047
    %2049 = vrot.lane.b32.xlu0 %v466, 6
    %v2050 = vpop.permute.xlu0 %2049
    %2051 = vrot.lane.b32.xlu0 %v467, 6
    %v2052 = vpop.permute.xlu0 %2051
    %2053 = vrot.lane.b32.xlu0 %v468, 6
    %v2054 = vpop.permute.xlu0 %2053
    %2055 = vrot.lane.b32.xlu0 %v469, 6
    %v2056 = vpop.permute.xlu0 %2055
    %2057 = vrot.lane.b32.xlu0 %v470, 6
    %v2058 = vpop.permute.xlu0 %2057
    %2059 = vrot.lane.b32.xlu0 %v471, 6
    %v2060 = vpop.permute.xlu0 %2059
    %2061 = vrot.lane.b32.xlu0 %v472, 6
    %v2062 = vpop.permute.xlu0 %2061
    %2063 = vrot.lane.b32.xlu0 %v473, 6
    %v2064 = vpop.permute.xlu0 %2063
    %2065 = vrot.lane.b32.xlu0 %v474, 6
    %v2066 = vpop.permute.xlu0 %2065
    %2067 = vrot.lane.b32.xlu0 %v475, 6
    %v2068 = vpop.permute.xlu0 %2067
    %2069 = vrot.lane.b32.xlu0 %v476, 6
    %v2070 = vpop.permute.xlu0 %2069
    %2071 = vrot.lane.b32.xlu0 %v477, 6
    %v2072 = vpop.permute.xlu0 %2071
    %2073 = vrot.lane.b32.xlu0 %v478, 6
    %v2074 = vpop.permute.xlu0 %2073
    %2075 = vrot.lane.b32.xlu0 %v479, 6
    %v2076 = vpop.permute.xlu0 %2075
    %2077 = vrot.lane.b32.xlu0 %v480, 6
    %v2078 = vpop.permute.xlu0 %2077
    %2079 = vrot.lane.b32.xlu0 %v481, 6
    %v2080 = vpop.permute.xlu0 %2079
    %2081 = vrot.lane.b32.xlu0 %v482, 6
    %v2082 = vpop.permute.xlu0 %2081
    %2211 = vrot.lane.b32.xlu0 %v483, 7
    %v2212 = vpop.permute.xlu0 %2211
    %2213 = vrot.lane.b32.xlu0 %v484, 7
    %v2214 = vpop.permute.xlu0 %2213
    %2215 = vrot.lane.b32.xlu0 %v485, 7
    %v2216 = vpop.permute.xlu0 %2215
    %2217 = vrot.lane.b32.xlu0 %v486, 7
    %v2218 = vpop.permute.xlu0 %2217
    %2219 = vrot.lane.b32.xlu0 %v487, 7
    %v2220 = vpop.permute.xlu0 %2219
    %2221 = vrot.lane.b32.xlu0 %v488, 7
    %v2222 = vpop.permute.xlu0 %2221
    %2223 = vrot.lane.b32.xlu0 %v489, 7
    %v2224 = vpop.permute.xlu0 %2223
    %2225 = vrot.lane.b32.xlu0 %v490, 7
    %v2226 = vpop.permute.xlu0 %2225
    %2227 = vrot.lane.b32.xlu0 %v491, 7
    %v2228 = vpop.permute.xlu0 %2227
    %2229 = vrot.lane.b32.xlu0 %v492, 7
    %v2230 = vpop.permute.xlu0 %2229
    %2231 = vrot.lane.b32.xlu0 %v493, 7
    %v2232 = vpop.permute.xlu0 %2231
    %2233 = vrot.lane.b32.xlu0 %v494, 7
    %v2234 = vpop.permute.xlu0 %2233
    %2235 = vrot.lane.b32.xlu0 %v495, 7
    %v2236 = vpop.permute.xlu0 %2235
    %2237 = vrot.lane.b32.xlu0 %v496, 7
    %v2238 = vpop.permute.xlu0 %2237
    %2239 = vrot.lane.b32.xlu0 %v497, 7
    %v2240 = vpop.permute.xlu0 %2239
    %2241 = vrot.lane.b32.xlu0 %v498, 7
    %v2242 = vpop.permute.xlu0 %2241
    %2243 = vrot.lane.b32.xlu0 %v499, 7
    %v2244 = vpop.permute.xlu0 %2243
    %2245 = vrot.lane.b32.xlu0 %v500, 7
    %v2246 = vpop.permute.xlu0 %2245
    %2247 = vrot.lane.b32.xlu0 %v501, 7
    %v2248 = vpop.permute.xlu0 %2247
    %2249 = vrot.lane.b32.xlu0 %v502, 7
    %v2250 = vpop.permute.xlu0 %2249
    %2251 = vrot.lane.b32.xlu0 %v503, 7
    %v2252 = vpop.permute.xlu0 %2251
    %2253 = vrot.lane.b32.xlu0 %v504, 7
    %v2254 = vpop.permute.xlu0 %2253
    %2255 = vrot.lane.b32.xlu0 %v505, 7
    %v2256 = vpop.permute.xlu0 %2255
    %2257 = vrot.lane.b32.xlu0 %v506, 7
    %v2258 = vpop.permute.xlu0 %2257
    %2259 = vrot.lane.b32.xlu0 %v507, 7
    %v2260 = vpop.permute.xlu0 %2259
    %2261 = vrot.lane.b32.xlu0 %v508, 7
    %v2262 = vpop.permute.xlu0 %2261
    %2263 = vrot.lane.b32.xlu0 %v509, 7
    %v2264 = vpop.permute.xlu0 %2263
    %2265 = vrot.lane.b32.xlu0 %v510, 7
    %v2266 = vpop.permute.xlu0 %2265
    %2267 = vrot.lane.b32.xlu0 %v511, 7
    %v2268 = vpop.permute.xlu0 %2267
    %2269 = vrot.lane.b32.xlu0 %v512, 7
    %v2270 = vpop.permute.xlu0 %2269
    %2271 = vrot.lane.b32.xlu0 %v513, 7
    %v2272 = vpop.permute.xlu0 %2271
    %2273 = vrot.lane.b32.xlu0 %v514, 7
    %v2274 = vpop.permute.xlu0 %2273
    %2275 = vrot.lane.b32.xlu0 %v515, 7
    %v2276 = vpop.permute.xlu0 %2275
    %2277 = vrot.lane.b32.xlu0 %v516, 7
    %v2278 = vpop.permute.xlu0 %2277
    %2279 = vrot.lane.b32.xlu0 %v517, 7
    %v2280 = vpop.permute.xlu0 %2279
    %2281 = vrot.lane.b32.xlu0 %v518, 7
    %v2282 = vpop.permute.xlu0 %2281
    %2283 = vrot.lane.b32.xlu0 %v519, 7
    %v2284 = vpop.permute.xlu0 %2283
    %2285 = vrot.lane.b32.xlu0 %v520, 7
    %v2286 = vpop.permute.xlu0 %2285
    %2287 = vrot.lane.b32.xlu0 %v521, 7
    %v2288 = vpop.permute.xlu0 %2287
    %2289 = vrot.lane.b32.xlu0 %v522, 7
    %v2290 = vpop.permute.xlu0 %2289
    %2291 = vrot.lane.b32.xlu0 %v523, 7
    %v2292 = vpop.permute.xlu0 %2291
    %2293 = vrot.lane.b32.xlu0 %v524, 7
    %v2294 = vpop.permute.xlu0 %2293
    %2295 = vrot.lane.b32.xlu0 %v525, 7
    %v2296 = vpop.permute.xlu0 %2295
    %2297 = vrot.lane.b32.xlu0 %v526, 7
    %v2298 = vpop.permute.xlu0 %2297
    %2299 = vrot.lane.b32.xlu0 %v527, 7
    %v2300 = vpop.permute.xlu0 %2299
    %2301 = vrot.lane.b32.xlu0 %v528, 7
    %v2302 = vpop.permute.xlu0 %2301
    %2303 = vrot.lane.b32.xlu0 %v529, 7
    %v2304 = vpop.permute.xlu0 %2303
    %2305 = vrot.lane.b32.xlu0 %v530, 7
    %v2306 = vpop.permute.xlu0 %2305
    %2307 = vrot.lane.b32.xlu0 %v531, 7
    %v2308 = vpop.permute.xlu0 %2307
    %2309 = vrot.lane.b32.xlu0 %v532, 7
    %v2310 = vpop.permute.xlu0 %2309
    %2311 = vrot.lane.b32.xlu0 %v533, 7
    %v2312 = vpop.permute.xlu0 %2311
    %2313 = vrot.lane.b32.xlu0 %v534, 7
    %v2314 = vpop.permute.xlu0 %2313
    %2315 = vrot.lane.b32.xlu0 %v535, 7
    %v2316 = vpop.permute.xlu0 %2315
    %2317 = vrot.lane.b32.xlu0 %v536, 7
    %v2318 = vpop.permute.xlu0 %2317
    %2319 = vrot.lane.b32.xlu0 %v537, 7
    %v2320 = vpop.permute.xlu0 %2319
    %2321 = vrot.lane.b32.xlu0 %v538, 7
    %v2322 = vpop.permute.xlu0 %2321
    %2323 = vrot.lane.b32.xlu0 %v539, 7
    %v2324 = vpop.permute.xlu0 %2323
    %2325 = vrot.lane.b32.xlu0 %v540, 7
    %v2326 = vpop.permute.xlu0 %2325
    %2327 = vrot.lane.b32.xlu0 %v541, 7
    %v2328 = vpop.permute.xlu0 %2327
    %2329 = vrot.lane.b32.xlu0 %v542, 7
    %v2330 = vpop.permute.xlu0 %2329
    %2331 = vrot.lane.b32.xlu0 %v543, 7
    %v2332 = vpop.permute.xlu0 %2331
    %2333 = vrot.lane.b32.xlu0 %v544, 7
    %v2334 = vpop.permute.xlu0 %2333
    %2335 = vrot.lane.b32.xlu0 %v545, 7
    %v2336 = vpop.permute.xlu0 %2335
    %2337 = vrot.lane.b32.xlu0 %v546, 7
    %v2338 = vpop.permute.xlu0 %2337
    %2467 = vrot.lane.b32.xlu0 %v547, 8
    %v2468 = vpop.permute.xlu0 %2467
    %2469 = vrot.lane.b32.xlu0 %v548, 8
    %v2470 = vpop.permute.xlu0 %2469
    %2471 = vrot.lane.b32.xlu0 %v549, 8
    %v2472 = vpop.permute.xlu0 %2471
    %2473 = vrot.lane.b32.xlu0 %v550, 8
    %v2474 = vpop.permute.xlu0 %2473
    %2475 = vrot.lane.b32.xlu0 %v551, 8
    %v2476 = vpop.permute.xlu0 %2475
    %2477 = vrot.lane.b32.xlu0 %v552, 8
    %v2478 = vpop.permute.xlu0 %2477
    %2479 = vrot.lane.b32.xlu0 %v553, 8
    %v2480 = vpop.permute.xlu0 %2479
    %2481 = vrot.lane.b32.xlu0 %v554, 8
    %v2482 = vpop.permute.xlu0 %2481
    %2483 = vrot.lane.b32.xlu0 %v555, 8
    %v2484 = vpop.permute.xlu0 %2483
    %2485 = vrot.lane.b32.xlu0 %v556, 8
    %v2486 = vpop.permute.xlu0 %2485
    %2487 = vrot.lane.b32.xlu0 %v557, 8
    %v2488 = vpop.permute.xlu0 %2487
    %2489 = vrot.lane.b32.xlu0 %v558, 8
    %v2490 = vpop.permute.xlu0 %2489
    %2491 = vrot.lane.b32.xlu0 %v559, 8
    %v2492 = vpop.permute.xlu0 %2491
    %2493 = vrot.lane.b32.xlu0 %v560, 8
    %v2494 = vpop.permute.xlu0 %2493
    %2495 = vrot.lane.b32.xlu0 %v561, 8
    %v2496 = vpop.permute.xlu0 %2495
    %2497 = vrot.lane.b32.xlu0 %v562, 8
    %v2498 = vpop.permute.xlu0 %2497
    %2499 = vrot.lane.b32.xlu0 %v563, 8
    %v2500 = vpop.permute.xlu0 %2499
    %2501 = vrot.lane.b32.xlu0 %v564, 8
    %v2502 = vpop.permute.xlu0 %2501
    %2503 = vrot.lane.b32.xlu0 %v565, 8
    %v2504 = vpop.permute.xlu0 %2503
    %2505 = vrot.lane.b32.xlu0 %v566, 8
    %v2506 = vpop.permute.xlu0 %2505
    %2507 = vrot.lane.b32.xlu0 %v567, 8
    %v2508 = vpop.permute.xlu0 %2507
    %2509 = vrot.lane.b32.xlu0 %v568, 8
    %v2510 = vpop.permute.xlu0 %2509
    %2511 = vrot.lane.b32.xlu0 %v569, 8
    %v2512 = vpop.permute.xlu0 %2511
    %2513 = vrot.lane.b32.xlu0 %v570, 8
    %v2514 = vpop.permute.xlu0 %2513
    %2515 = vrot.lane.b32.xlu0 %v571, 8
    %v2516 = vpop.permute.xlu0 %2515
    %2517 = vrot.lane.b32.xlu0 %v572, 8
    %v2518 = vpop.permute.xlu0 %2517
    %2519 = vrot.lane.b32.xlu0 %v573, 8
    %v2520 = vpop.permute.xlu0 %2519
    %2521 = vrot.lane.b32.xlu0 %v574, 8
    %v2522 = vpop.permute.xlu0 %2521
    %2523 = vrot.lane.b32.xlu0 %v575, 8
    %v2524 = vpop.permute.xlu0 %2523
    %2525 = vrot.lane.b32.xlu0 %v576, 8
    %v2526 = vpop.permute.xlu0 %2525
    %2527 = vrot.lane.b32.xlu0 %v577, 8
    %v2528 = vpop.permute.xlu0 %2527
    %2529 = vrot.lane.b32.xlu0 %v578, 8
    %v2530 = vpop.permute.xlu0 %2529
    %2531 = vrot.lane.b32.xlu0 %v579, 8
    %v2532 = vpop.permute.xlu0 %2531
    %2533 = vrot.lane.b32.xlu0 %v580, 8
    %v2534 = vpop.permute.xlu0 %2533
    %2535 = vrot.lane.b32.xlu0 %v581, 8
    %v2536 = vpop.permute.xlu0 %2535
    %2537 = vrot.lane.b32.xlu0 %v582, 8
    %v2538 = vpop.permute.xlu0 %2537
    %2539 = vrot.lane.b32.xlu0 %v583, 8
    %v2540 = vpop.permute.xlu0 %2539
    %2541 = vrot.lane.b32.xlu0 %v584, 8
    %v2542 = vpop.permute.xlu0 %2541
    %2543 = vrot.lane.b32.xlu0 %v585, 8
    %v2544 = vpop.permute.xlu0 %2543
    %2545 = vrot.lane.b32.xlu0 %v586, 8
    %v2546 = vpop.permute.xlu0 %2545
    %2547 = vrot.lane.b32.xlu0 %v587, 8
    %v2548 = vpop.permute.xlu0 %2547
    %2549 = vrot.lane.b32.xlu0 %v588, 8
    %v2550 = vpop.permute.xlu0 %2549
    %2551 = vrot.lane.b32.xlu0 %v589, 8
    %v2552 = vpop.permute.xlu0 %2551
    %2553 = vrot.lane.b32.xlu0 %v590, 8
    %v2554 = vpop.permute.xlu0 %2553
    %2555 = vrot.lane.b32.xlu0 %v591, 8
    %v2556 = vpop.permute.xlu0 %2555
    %2557 = vrot.lane.b32.xlu0 %v592, 8
    %v2558 = vpop.permute.xlu0 %2557
    %2559 = vrot.lane.b32.xlu0 %v593, 8
    %v2560 = vpop.permute.xlu0 %2559
    %2561 = vrot.lane.b32.xlu0 %v594, 8
    %v2562 = vpop.permute.xlu0 %2561
    %2563 = vrot.lane.b32.xlu0 %v595, 8
    %v2564 = vpop.permute.xlu0 %2563
    %2565 = vrot.lane.b32.xlu0 %v596, 8
    %v2566 = vpop.permute.xlu0 %2565
    %2567 = vrot.lane.b32.xlu0 %v597, 8
    %v2568 = vpop.permute.xlu0 %2567
    %2569 = vrot.lane.b32.xlu0 %v598, 8
    %v2570 = vpop.permute.xlu0 %2569
    %2571 = vrot.lane.b32.xlu0 %v599, 8
    %v2572 = vpop.permute.xlu0 %2571
    %2573 = vrot.lane.b32.xlu0 %v600, 8
    %v2574 = vpop.permute.xlu0 %2573
    %2575 = vrot.lane.b32.xlu0 %v601, 8
    %v2576 = vpop.permute.xlu0 %2575
    %2577 = vrot.lane.b32.xlu0 %v602, 8
    %v2578 = vpop.permute.xlu0 %2577
    %2579 = vrot.lane.b32.xlu0 %v603, 8
    %v2580 = vpop.permute.xlu0 %2579
    %2581 = vrot.lane.b32.xlu0 %v604, 8
    %v2582 = vpop.permute.xlu0 %2581
    %2583 = vrot.lane.b32.xlu0 %v605, 8
    %v2584 = vpop.permute.xlu0 %2583
    %2585 = vrot.lane.b32.xlu0 %v606, 8
    %v2586 = vpop.permute.xlu0 %2585
    %2587 = vrot.lane.b32.xlu0 %v607, 8
    %v2588 = vpop.permute.xlu0 %2587
    %2589 = vrot.lane.b32.xlu0 %v608, 8
    %v2590 = vpop.permute.xlu0 %2589
    %2591 = vrot.lane.b32.xlu0 %v609, 8
    %v2592 = vpop.permute.xlu0 %2591
    %2593 = vrot.lane.b32.xlu0 %v610, 8
    %v2594 = vpop.permute.xlu0 %2593
    %vm2659 = vcmask 7168
    %v2660 = vsel %vm2659, %v33, %v676
    %v2661 = vsel %vm2659, %v34, %v678
    %v2662 = vsel %vm2659, %v35, %v680
    %v2663 = vsel %vm2659, %v36, %v682
    %v2664 = vsel %vm2659, %v37, %v684
    %v2665 = vsel %vm2659, %v38, %v686
    %v2666 = vsel %vm2659, %v39, %v688
    %v2667 = vsel %vm2659, %v40, %v690
    %v2668 = vsel %vm2659, %v41, %v692
    %v2669 = vsel %vm2659, %v42, %v694
    %v2670 = vsel %vm2659, %v43, %v696
    %v2671 = vsel %vm2659, %v44, %v698
    %v2672 = vsel %vm2659, %v45, %v700
    %v2673 = vsel %vm2659, %v46, %v702
    %v2674 = vsel %vm2659, %v47, %v704
    %v2675 = vsel %vm2659, %v48, %v706
    %v2676 = vsel %vm2659, %v49, %v708
    %v2677 = vsel %vm2659, %v50, %v710
    %v2678 = vsel %vm2659, %v51, %v712
    %v2679 = vsel %vm2659, %v52, %v714
    %v2680 = vsel %vm2659, %v53, %v716
    %v2681 = vsel %vm2659, %v54, %v718
    %v2682 = vsel %vm2659, %v55, %v720
    %v2683 = vsel %vm2659, %v56, %v722
    %v2684 = vsel %vm2659, %v57, %v724
    %v2685 = vsel %vm2659, %v58, %v726
    %v2686 = vsel %vm2659, %v59, %v728
    %v2687 = vsel %vm2659, %v60, %v730
    %v2688 = vsel %vm2659, %v61, %v732
    %v2689 = vsel %vm2659, %v62, %v734
    %v2690 = vsel %vm2659, %v63, %v736
    %v2691 = vsel %vm2659, %v64, %v738
    %v2692 = vsel %vm2659, %v65, %v740
    %v2693 = vsel %vm2659, %v66, %v742
    %v2694 = vsel %vm2659, %v67, %v744
    %v2695 = vsel %vm2659, %v68, %v746
    %v2696 = vsel %vm2659, %v69, %v748
    %v2697 = vsel %vm2659, %v70, %v750
    %v2698 = vsel %vm2659, %v71, %v752
    %v2699 = vsel %vm2659, %v72, %v754
    %v2700 = vsel %vm2659, %v73, %v756
    %v2701 = vsel %vm2659, %v74, %v758
    %v2702 = vsel %vm2659, %v75, %v760
    %v2703 = vsel %vm2659, %v76, %v762
    %v2704 = vsel %vm2659, %v77, %v764
    %v2705 = vsel %vm2659, %v78, %v766
    %v2706 = vsel %vm2659, %v79, %v768
    %v2707 = vsel %vm2659, %v80, %v770
    %v2708 = vsel %vm2659, %v81, %v772
    %v2709 = vsel %vm2659, %v82, %v774
    %v2710 = vsel %vm2659, %v83, %v776
    %v2711 = vsel %vm2659, %v84, %v778
    %v2712 = vsel %vm2659, %v85, %v780
    %v2713 = vsel %vm2659, %v86, %v782
    %v2714 = vsel %vm2659, %v87, %v784
    %v2715 = vsel %vm2659, %v88, %v786
    %v2716 = vsel %vm2659, %v89, %v788
    %v2717 = vsel %vm2659, %v90, %v790
    %v2718 = vsel %vm2659, %v91, %v792
    %v2719 = vsel %vm2659, %v92, %v794
    %v2720 = vsel %vm2659, %v93, %v796
    %v2721 = vsel %vm2659, %v94, %v798
    %v2722 = vsel %vm2659, %v95, %v800
    %v2723 = vsel %vm2659, %v96, %v802
    %vm2724 = vcmask 15360
    %v2725 = vsel %vm2724, %v2660, %v932
    %v2726 = vsel %vm2724, %v2661, %v934
    %v2727 = vsel %vm2724, %v2662, %v936
    %v2728 = vsel %vm2724, %v2663, %v938
    %v2729 = vsel %vm2724, %v2664, %v940
    %v2730 = vsel %vm2724, %v2665, %v942
    %v2731 = vsel %vm2724, %v2666, %v944
    %v2732 = vsel %vm2724, %v2667, %v946
    %v2733 = vsel %vm2724, %v2668, %v948
    %v2734 = vsel %vm2724, %v2669, %v950
    %v2735 = vsel %vm2724, %v2670, %v952
    %v2736 = vsel %vm2724, %v2671, %v954
    %v2737 = vsel %vm2724, %v2672, %v956
    %v2738 = vsel %vm2724, %v2673, %v958
    %v2739 = vsel %vm2724, %v2674, %v960
    %v2740 = vsel %vm2724, %v2675, %v962
    %v2741 = vsel %vm2724, %v2676, %v964
    %v2742 = vsel %vm2724, %v2677, %v966
    %v2743 = vsel %vm2724, %v2678, %v968
    %v2744 = vsel %vm2724, %v2679, %v970
    %v2745 = vsel %vm2724, %v2680, %v972
    %v2746 = vsel %vm2724, %v2681, %v974
    %v2747 = vsel %vm2724, %v2682, %v976
    %v2748 = vsel %vm2724, %v2683, %v978
    %v2749 = vsel %vm2724, %v2684, %v980
    %v2750 = vsel %vm2724, %v2685, %v982
    %v2751 = vsel %vm2724, %v2686, %v984
    %v2752 = vsel %vm2724, %v2687, %v986
    %v2753 = vsel %vm2724, %v2688, %v988
    %v2754 = vsel %vm2724, %v2689, %v990
    %v2755 = vsel %vm2724, %v2690, %v992
    %v2756 = vsel %vm2724, %v2691, %v994
    %v2757 = vsel %vm2724, %v2692, %v996
    %v2758 = vsel %vm2724, %v2693, %v998
    %v2759 = vsel %vm2724, %v2694, %v1000
    %v2760 = vsel %vm2724, %v2695, %v1002
    %v2761 = vsel %vm2724, %v2696, %v1004
    %v2762 = vsel %vm2724, %v2697, %v1006
    %v2763 = vsel %vm2724, %v2698, %v1008
    %v2764 = vsel %vm2724, %v2699, %v1010
    %v2765 = vsel %vm2724, %v2700, %v1012
    %v2766 = vsel %vm2724, %v2701, %v1014
    %v2767 = vsel %vm2724, %v2702, %v1016
    %v2768 = vsel %vm2724, %v2703, %v1018
    %v2769 = vsel %vm2724, %v2704, %v1020
    %v2770 = vsel %vm2724, %v2705, %v1022
    %v2771 = vsel %vm2724, %v2706, %v1024
    %v2772 = vsel %vm2724, %v2707, %v1026
    %v2773 = vsel %vm2724, %v2708, %v1028
    %v2774 = vsel %vm2724, %v2709, %v1030
    %v2775 = vsel %vm2724, %v2710, %v1032
    %v2776 = vsel %vm2724, %v2711, %v1034
    %v2777 = vsel %vm2724, %v2712, %v1036
    %v2778 = vsel %vm2724, %v2713, %v1038
    %v2779 = vsel %vm2724, %v2714, %v1040
    %v2780 = vsel %vm2724, %v2715, %v1042
    %v2781 = vsel %vm2724, %v2716, %v1044
    %v2782 = vsel %vm2724, %v2717, %v1046
    %v2783 = vsel %vm2724, %v2718, %v1048
    %v2784 = vsel %vm2724, %v2719, %v1050
    %v2785 = vsel %vm2724, %v2720, %v1052
    %v2786 = vsel %vm2724, %v2721, %v1054
    %v2787 = vsel %vm2724, %v2722, %v1056
    %v2788 = vsel %vm2724, %v2723, %v1058
    %vm2789 = vcmask 23552
    %v2790 = vsel %vm2789, %v2725, %v1188
    %v2791 = vsel %vm2789, %v2726, %v1190
    %v2792 = vsel %vm2789, %v2727, %v1192
    %v2793 = vsel %vm2789, %v2728, %v1194
    %v2794 = vsel %vm2789, %v2729, %v1196
    %v2795 = vsel %vm2789, %v2730, %v1198
    %v2796 = vsel %vm2789, %v2731, %v1200
    %v2797 = vsel %vm2789, %v2732, %v1202
    %v2798 = vsel %vm2789, %v2733, %v1204
    %v2799 = vsel %vm2789, %v2734, %v1206
    %v2800 = vsel %vm2789, %v2735, %v1208
    %v2801 = vsel %vm2789, %v2736, %v1210
    %v2802 = vsel %vm2789, %v2737, %v1212
    %v2803 = vsel %vm2789, %v2738, %v1214
    %v2804 = vsel %vm2789, %v2739, %v1216
    %v2805 = vsel %vm2789, %v2740, %v1218
    %v2806 = vsel %vm2789, %v2741, %v1220
    %v2807 = vsel %vm2789, %v2742, %v1222
    %v2808 = vsel %vm2789, %v2743, %v1224
    %v2809 = vsel %vm2789, %v2744, %v1226
    %v2810 = vsel %vm2789, %v2745, %v1228
    %v2811 = vsel %vm2789, %v2746, %v1230
    %v2812 = vsel %vm2789, %v2747, %v1232
    %v2813 = vsel %vm2789, %v2748, %v1234
    %v2814 = vsel %vm2789, %v2749, %v1236
    %v2815 = vsel %vm2789, %v2750, %v1238
    %v2816 = vsel %vm2789, %v2751, %v1240
    %v2817 = vsel %vm2789, %v2752, %v1242
    %v2818 = vsel %vm2789, %v2753, %v1244
    %v2819 = vsel %vm2789, %v2754, %v1246
    %v2820 = vsel %vm2789, %v2755, %v1248
    %v2821 = vsel %vm2789, %v2756, %v1250
    %v2822 = vsel %vm2789, %v2757, %v1252
    %v2823 = vsel %vm2789, %v2758, %v1254
    %v2824 = vsel %vm2789, %v2759, %v1256
    %v2825 = vsel %vm2789, %v2760, %v1258
    %v2826 = vsel %vm2789, %v2761, %v1260
    %v2827 = vsel %vm2789, %v2762, %v1262
    %v2828 = vsel %vm2789, %v2763, %v1264
    %v2829 = vsel %vm2789, %v2764, %v1266
    %v2830 = vsel %vm2789, %v2765, %v1268
    %v2831 = vsel %vm2789, %v2766, %v1270
    %v2832 = vsel %vm2789, %v2767, %v1272
    %v2833 = vsel %vm2789, %v2768, %v1274
    %v2834 = vsel %vm2789, %v2769, %v1276
    %v2835 = vsel %vm2789, %v2770, %v1278
    %v2836 = vsel %vm2789, %v2771, %v1280
    %v2837 = vsel %vm2789, %v2772, %v1282
    %v2838 = vsel %vm2789, %v2773, %v1284
    %v2839 = vsel %vm2789, %v2774, %v1286
    %v2840 = vsel %vm2789, %v2775, %v1288
    %v2841 = vsel %vm2789, %v2776, %v1290
    %v2842 = vsel %vm2789, %v2777, %v1292
    %v2843 = vsel %vm2789, %v2778, %v1294
    %v2844 = vsel %vm2789, %v2779, %v1296
    %v2845 = vsel %vm2789, %v2780, %v1298
    %v2846 = vsel %vm2789, %v2781, %v1300
    %v2847 = vsel %vm2789, %v2782, %v1302
    %v2848 = vsel %vm2789, %v2783, %v1304
    %v2849 = vsel %vm2789, %v2784, %v1306
    %v2850 = vsel %vm2789, %v2785, %v1308
    %v2851 = vsel %vm2789, %v2786, %v1310
    %v2852 = vsel %vm2789, %v2787, %v1312
    %v2853 = vsel %vm2789, %v2788, %v1314
    %vm2854 = vcmask 31744
    %v2855 = vsel %vm2854, %v2790, %v1444
    %v2856 = vsel %vm2854, %v2791, %v1446
    %v2857 = vsel %vm2854, %v2792, %v1448
    %v2858 = vsel %vm2854, %v2793, %v1450
    %v2859 = vsel %vm2854, %v2794, %v1452
    %v2860 = vsel %vm2854, %v2795, %v1454
    %v2861 = vsel %vm2854, %v2796, %v1456
    %v2862 = vsel %vm2854, %v2797, %v1458
    %v2863 = vsel %vm2854, %v2798, %v1460
    %v2864 = vsel %vm2854, %v2799, %v1462
    %v2865 = vsel %vm2854, %v2800, %v1464
    %v2866 = vsel %vm2854, %v2801, %v1466
    %v2867 = vsel %vm2854, %v2802, %v1468
    %v2868 = vsel %vm2854, %v2803, %v1470
    %v2869 = vsel %vm2854, %v2804, %v1472
    %v2870 = vsel %vm2854, %v2805, %v1474
    %v2871 = vsel %vm2854, %v2806, %v1476
    %v2872 = vsel %vm2854, %v2807, %v1478
    %v2873 = vsel %vm2854, %v2808, %v1480
    %v2874 = vsel %vm2854, %v2809, %v1482
    %v2875 = vsel %vm2854, %v2810, %v1484
    %v2876 = vsel %vm2854, %v2811, %v1486
    %v2877 = vsel %vm2854, %v2812, %v1488
    %v2878 = vsel %vm2854, %v2813, %v1490
    %v2879 = vsel %vm2854, %v2814, %v1492
    %v2880 = vsel %vm2854, %v2815, %v1494
    %v2881 = vsel %vm2854, %v2816, %v1496
    %v2882 = vsel %vm2854, %v2817, %v1498
    %v2883 = vsel %vm2854, %v2818, %v1500
    %v2884 = vsel %vm2854, %v2819, %v1502
    %v2885 = vsel %vm2854, %v2820, %v1504
    %v2886 = vsel %vm2854, %v2821, %v1506
    %v2887 = vsel %vm2854, %v2822, %v1508
    %v2888 = vsel %vm2854, %v2823, %v1510
    %v2889 = vsel %vm2854, %v2824, %v1512
    %v2890 = vsel %vm2854, %v2825, %v1514
    %v2891 = vsel %vm2854, %v2826, %v1516
    %v2892 = vsel %vm2854, %v2827, %v1518
    %v2893 = vsel %vm2854, %v2828, %v1520
    %v2894 = vsel %vm2854, %v2829, %v1522
    %v2895 = vsel %vm2854, %v2830, %v1524
    %v2896 = vsel %vm2854, %v2831, %v1526
    %v2897 = vsel %vm2854, %v2832, %v1528
    %v2898 = vsel %vm2854, %v2833, %v1530
    %v2899 = vsel %vm2854, %v2834, %v1532
    %v2900 = vsel %vm2854, %v2835, %v1534
    %v2901 = vsel %vm2854, %v2836, %v1536
    %v2902 = vsel %vm2854, %v2837, %v1538
    %v2903 = vsel %vm2854, %v2838, %v1540
    %v2904 = vsel %vm2854, %v2839, %v1542
    %v2905 = vsel %vm2854, %v2840, %v1544
    %v2906 = vsel %vm2854, %v2841, %v1546
    %v2907 = vsel %vm2854, %v2842, %v1548
    %v2908 = vsel %vm2854, %v2843, %v1550
    %v2909 = vsel %vm2854, %v2844, %v1552
    %v2910 = vsel %vm2854, %v2845, %v1554
    %v2911 = vsel %vm2854, %v2846, %v1556
    %v2912 = vsel %vm2854, %v2847, %v1558
    %v2913 = vsel %vm2854, %v2848, %v1560
    %v2914 = vsel %vm2854, %v2849, %v1562
    %v2915 = vsel %vm2854, %v2850, %v1564
    %v2916 = vsel %vm2854, %v2851, %v1566
    %v2917 = vsel %vm2854, %v2852, %v1568
    %v2918 = vsel %vm2854, %v2853, %v1570
    %vm2919 = vcmask 39936
    %v2920 = vsel %vm2919, %v2855, %v1700
    %v2921 = vsel %vm2919, %v2856, %v1702
    %v2922 = vsel %vm2919, %v2857, %v1704
    %v2923 = vsel %vm2919, %v2858, %v1706
    %v2924 = vsel %vm2919, %v2859, %v1708
    %v2925 = vsel %vm2919, %v2860, %v1710
    %v2926 = vsel %vm2919, %v2861, %v1712
    %v2927 = vsel %vm2919, %v2862, %v1714
    %v2928 = vsel %vm2919, %v2863, %v1716
    %v2929 = vsel %vm2919, %v2864, %v1718
    %v2930 = vsel %vm2919, %v2865, %v1720
    %v2931 = vsel %vm2919, %v2866, %v1722
    %v2932 = vsel %vm2919, %v2867, %v1724
    %v2933 = vsel %vm2919, %v2868, %v1726
    %v2934 = vsel %vm2919, %v2869, %v1728
    %v2935 = vsel %vm2919, %v2870, %v1730
    %v2936 = vsel %vm2919, %v2871, %v1732
    %v2937 = vsel %vm2919, %v2872, %v1734
    %v2938 = vsel %vm2919, %v2873, %v1736
    %v2939 = vsel %vm2919, %v2874, %v1738
    %v2940 = vsel %vm2919, %v2875, %v1740
    %v2941 = vsel %vm2919, %v2876, %v1742
    %v2942 = vsel %vm2919, %v2877, %v1744
    %v2943 = vsel %vm2919, %v2878, %v1746
    %v2944 = vsel %vm2919, %v2879, %v1748
    %v2945 = vsel %vm2919, %v2880, %v1750
    %v2946 = vsel %vm2919, %v2881, %v1752
    %v2947 = vsel %vm2919, %v2882, %v1754
    %v2948 = vsel %vm2919, %v2883, %v1756
    %v2949 = vsel %vm2919, %v2884, %v1758
    %v2950 = vsel %vm2919, %v2885, %v1760
    %v2951 = vsel %vm2919, %v2886, %v1762
    %v2952 = vsel %vm2919, %v2887, %v1764
    %v2953 = vsel %vm2919, %v2888, %v1766
    %v2954 = vsel %vm2919, %v2889, %v1768
    %v2955 = vsel %vm2919, %v2890, %v1770
    %v2956 = vsel %vm2919, %v2891, %v1772
    %v2957 = vsel %vm2919, %v2892, %v1774
    %v2958 = vsel %vm2919, %v2893, %v1776
    %v2959 = vsel %vm2919, %v2894, %v1778
    %v2960 = vsel %vm2919, %v2895, %v1780
    %v2961 = vsel %vm2919, %v2896, %v1782
    %v2962 = vsel %vm2919, %v2897, %v1784
    %v2963 = vsel %vm2919, %v2898, %v1786
    %v2964 = vsel %vm2919, %v2899, %v1788
    %v2965 = vsel %vm2919, %v2900, %v1790
    %v2966 = vsel %vm2919, %v2901, %v1792
    %v2967 = vsel %vm2919, %v2902, %v1794
    %v2968 = vsel %vm2919, %v2903, %v1796
    %v2969 = vsel %vm2919, %v2904, %v1798
    %v2970 = vsel %vm2919, %v2905, %v1800
    %v2971 = vsel %vm2919, %v2906, %v1802
    %v2972 = vsel %vm2919, %v2907, %v1804
    %v2973 = vsel %vm2919, %v2908, %v1806
    %v2974 = vsel %vm2919, %v2909, %v1808
    %v2975 = vsel %vm2919, %v2910, %v1810
    %v2976 = vsel %vm2919, %v2911, %v1812
    %v2977 = vsel %vm2919, %v2912, %v1814
    %v2978 = vsel %vm2919, %v2913, %v1816
    %v2979 = vsel %vm2919, %v2914, %v1818
    %v2980 = vsel %vm2919, %v2915, %v1820
    %v2981 = vsel %vm2919, %v2916, %v1822
    %v2982 = vsel %vm2919, %v2917, %v1824
    %v2983 = vsel %vm2919, %v2918, %v1826
    %vm2984 = vcmask 48128
    %v2985 = vsel %vm2984, %v2920, %v1956
    %v2986 = vsel %vm2984, %v2921, %v1958
    %v2987 = vsel %vm2984, %v2922, %v1960
    %v2988 = vsel %vm2984, %v2923, %v1962
    %v2989 = vsel %vm2984, %v2924, %v1964
    %v2990 = vsel %vm2984, %v2925, %v1966
    %v2991 = vsel %vm2984, %v2926, %v1968
    %v2992 = vsel %vm2984, %v2927, %v1970
    %v2993 = vsel %vm2984, %v2928, %v1972
    %v2994 = vsel %vm2984, %v2929, %v1974
    %v2995 = vsel %vm2984, %v2930, %v1976
    %v2996 = vsel %vm2984, %v2931, %v1978
    %v2997 = vsel %vm2984, %v2932, %v1980
    %v2998 = vsel %vm2984, %v2933, %v1982
    %v2999 = vsel %vm2984, %v2934, %v1984
    %v3000 = vsel %vm2984, %v2935, %v1986
    %v3001 = vsel %vm2984, %v2936, %v1988
    %v3002 = vsel %vm2984, %v2937, %v1990
    %v3003 = vsel %vm2984, %v2938, %v1992
    %v3004 = vsel %vm2984, %v2939, %v1994
    %v3005 = vsel %vm2984, %v2940, %v1996
    %v3006 = vsel %vm2984, %v2941, %v1998
    %v3007 = vsel %vm2984, %v2942, %v2000
    %v3008 = vsel %vm2984, %v2943, %v2002
    %v3009 = vsel %vm2984, %v2944, %v2004
    %v3010 = vsel %vm2984, %v2945, %v2006
    %v3011 = vsel %vm2984, %v2946, %v2008
    %v3012 = vsel %vm2984, %v2947, %v2010
    %v3013 = vsel %vm2984, %v2948, %v2012
    %v3014 = vsel %vm2984, %v2949, %v2014
    %v3015 = vsel %vm2984, %v2950, %v2016
    %v3016 = vsel %vm2984, %v2951, %v2018
    %v3017 = vsel %vm2984, %v2952, %v2020
    %v3018 = vsel %vm2984, %v2953, %v2022
    %v3019 = vsel %vm2984, %v2954, %v2024
    %v3020 = vsel %vm2984, %v2955, %v2026
    %v3021 = vsel %vm2984, %v2956, %v2028
    %v3022 = vsel %vm2984, %v2957, %v2030
    %v3023 = vsel %vm2984, %v2958, %v2032
    %v3024 = vsel %vm2984, %v2959, %v2034
    %v3025 = vsel %vm2984, %v2960, %v2036
    %v3026 = vsel %vm2984, %v2961, %v2038
    %v3027 = vsel %vm2984, %v2962, %v2040
    %v3028 = vsel %vm2984, %v2963, %v2042
    %v3029 = vsel %vm2984, %v2964, %v2044
    %v3030 = vsel %vm2984, %v2965, %v2046
    %v3031 = vsel %vm2984, %v2966, %v2048
    %v3032 = vsel %vm2984, %v2967, %v2050
    %v3033 = vsel %vm2984, %v2968, %v2052
    %v3034 = vsel %vm2984, %v2969, %v2054
    %v3035 = vsel %vm2984, %v2970, %v2056
    %v3036 = vsel %vm2984, %v2971, %v2058
    %v3037 = vsel %vm2984, %v2972, %v2060
    %v3038 = vsel %vm2984, %v2973, %v2062
    %v3039 = vsel %vm2984, %v2974, %v2064
    %v3040 = vsel %vm2984, %v2975, %v2066
    %v3041 = vsel %vm2984, %v2976, %v2068
    %v3042 = vsel %vm2984, %v2977, %v2070
    %v3043 = vsel %vm2984, %v2978, %v2072
    %v3044 = vsel %vm2984, %v2979, %v2074
    %v3045 = vsel %vm2984, %v2980, %v2076
    %v3046 = vsel %vm2984, %v2981, %v2078
    %v3047 = vsel %vm2984, %v2982, %v2080
    %v3048 = vsel %vm2984, %v2983, %v2082
    %vm3049 = vcmask 56320
    %v3050 = vsel %vm3049, %v2985, %v2212
    %v3051 = vsel %vm3049, %v2986, %v2214
    %v3052 = vsel %vm3049, %v2987, %v2216
    %v3053 = vsel %vm3049, %v2988, %v2218
    %v3054 = vsel %vm3049, %v2989, %v2220
    %v3055 = vsel %vm3049, %v2990, %v2222
    %v3056 = vsel %vm3049, %v2991, %v2224
    %v3057 = vsel %vm3049, %v2992, %v2226
    %v3058 = vsel %vm3049, %v2993, %v2228
    %v3059 = vsel %vm3049, %v2994, %v2230
    %v3060 = vsel %vm3049, %v2995, %v2232
    %v3061 = vsel %vm3049, %v2996, %v2234
    %v3062 = vsel %vm3049, %v2997, %v2236
    %v3063 = vsel %vm3049, %v2998, %v2238
    %v3064 = vsel %vm3049, %v2999, %v2240
    %v3065 = vsel %vm3049, %v3000, %v2242
    %v3066 = vsel %vm3049, %v3001, %v2244
    %v3067 = vsel %vm3049, %v3002, %v2246
    %v3068 = vsel %vm3049, %v3003, %v2248
    %v3069 = vsel %vm3049, %v3004, %v2250
    %v3070 = vsel %vm3049, %v3005, %v2252
    %v3071 = vsel %vm3049, %v3006, %v2254
    %v3072 = vsel %vm3049, %v3007, %v2256
    %v3073 = vsel %vm3049, %v3008, %v2258
    %v3074 = vsel %vm3049, %v3009, %v2260
    %v3075 = vsel %vm3049, %v3010, %v2262
    %v3076 = vsel %vm3049, %v3011, %v2264
    %v3077 = vsel %vm3049, %v3012, %v2266
    %v3078 = vsel %vm3049, %v3013, %v2268
    %v3079 = vsel %vm3049, %v3014, %v2270
    %v3080 = vsel %vm3049, %v3015, %v2272
    %v3081 = vsel %vm3049, %v3016, %v2274
    %v3082 = vsel %vm3049, %v3017, %v2276
    %v3083 = vsel %vm3049, %v3018, %v2278
    %v3084 = vsel %vm3049, %v3019, %v2280
    %v3085 = vsel %vm3049, %v3020, %v2282
    %v3086 = vsel %vm3049, %v3021, %v2284
    %v3087 = vsel %vm3049, %v3022, %v2286
    %v3088 = vsel %vm3049, %v3023, %v2288
    %v3089 = vsel %vm3049, %v3024, %v2290
    %v3090 = vsel %vm3049, %v3025, %v2292
    %v3091 = vsel %vm3049, %v3026, %v2294
    %v3092 = vsel %vm3049, %v3027, %v2296
    %v3093 = vsel %vm3049, %v3028, %v2298
    %v3094 = vsel %vm3049, %v3029, %v2300
    %v3095 = vsel %vm3049, %v3030, %v2302
    %v3096 = vsel %vm3049, %v3031, %v2304
    %v3097 = vsel %vm3049, %v3032, %v2306
    %v3098 = vsel %vm3049, %v3033, %v2308
    %v3099 = vsel %vm3049, %v3034, %v2310
    %v3100 = vsel %vm3049, %v3035, %v2312
    %v3101 = vsel %vm3049, %v3036, %v2314
    %v3102 = vsel %vm3049, %v3037, %v2316
    %v3103 = vsel %vm3049, %v3038, %v2318
    %v3104 = vsel %vm3049, %v3039, %v2320
    %v3105 = vsel %vm3049, %v3040, %v2322
    %v3106 = vsel %vm3049, %v3041, %v2324
    %v3107 = vsel %vm3049, %v3042, %v2326
    %v3108 = vsel %vm3049, %v3043, %v2328
    %v3109 = vsel %vm3049, %v3044, %v2330
    %v3110 = vsel %vm3049, %v3045, %v2332
    %v3111 = vsel %vm3049, %v3046, %v2334
    %v3112 = vsel %vm3049, %v3047, %v2336
    %v3113 = vsel %vm3049, %v3048, %v2338
    %vm3114 = vcmask 64512
    %v3115 = vsel %vm3114, %v3050, %v2468
    %v3116 = vsel %vm3114, %v3051, %v2470
    %v3117 = vsel %vm3114, %v3052, %v2472
    %v3118 = vsel %vm3114, %v3053, %v2474
    %v3119 = vsel %vm3114, %v3054, %v2476
    %v3120 = vsel %vm3114, %v3055, %v2478
    %v3121 = vsel %vm3114, %v3056, %v2480
    %v3122 = vsel %vm3114, %v3057, %v2482
    %v3123 = vsel %vm3114, %v3058, %v2484
    %v3124 = vsel %vm3114, %v3059, %v2486
    %v3125 = vsel %vm3114, %v3060, %v2488
    %v3126 = vsel %vm3114, %v3061, %v2490
    %v3127 = vsel %vm3114, %v3062, %v2492
    %v3128 = vsel %vm3114, %v3063, %v2494
    %v3129 = vsel %vm3114, %v3064, %v2496
    %v3130 = vsel %vm3114, %v3065, %v2498
    %v3131 = vsel %vm3114, %v3066, %v2500
    %v3132 = vsel %vm3114, %v3067, %v2502
    %v3133 = vsel %vm3114, %v3068, %v2504
    %v3134 = vsel %vm3114, %v3069, %v2506
    %v3135 = vsel %vm3114, %v3070, %v2508
    %v3136 = vsel %vm3114, %v3071, %v2510
    %v3137 = vsel %vm3114, %v3072, %v2512
    %v3138 = vsel %vm3114, %v3073, %v2514
    %v3139 = vsel %vm3114, %v3074, %v2516
    %v3140 = vsel %vm3114, %v3075, %v2518
    %v3141 = vsel %vm3114, %v3076, %v2520
    %v3142 = vsel %vm3114, %v3077, %v2522
    %v3143 = vsel %vm3114, %v3078, %v2524
    %v3144 = vsel %vm3114, %v3079, %v2526
    %v3145 = vsel %vm3114, %v3080, %v2528
    %v3146 = vsel %vm3114, %v3081, %v2530
    %v3147 = vsel %vm3114, %v3082, %v2532
    %v3148 = vsel %vm3114, %v3083, %v2534
    %v3149 = vsel %vm3114, %v3084, %v2536
    %v3150 = vsel %vm3114, %v3085, %v2538
    %v3151 = vsel %vm3114, %v3086, %v2540
    %v3152 = vsel %vm3114, %v3087, %v2542
    %v3153 = vsel %vm3114, %v3088, %v2544
    %v3154 = vsel %vm3114, %v3089, %v2546
    %v3155 = vsel %vm3114, %v3090, %v2548
    %v3156 = vsel %vm3114, %v3091, %v2550
    %v3157 = vsel %vm3114, %v3092, %v2552
    %v3158 = vsel %vm3114, %v3093, %v2554
    %v3159 = vsel %vm3114, %v3094, %v2556
    %v3160 = vsel %vm3114, %v3095, %v2558
    %v3161 = vsel %vm3114, %v3096, %v2560
    %v3162 = vsel %vm3114, %v3097, %v2562
    %v3163 = vsel %vm3114, %v3098, %v2564
    %v3164 = vsel %vm3114, %v3099, %v2566
    %v3165 = vsel %vm3114, %v3100, %v2568
    %v3166 = vsel %vm3114, %v3101, %v2570
    %v3167 = vsel %vm3114, %v3102, %v2572
    %v3168 = vsel %vm3114, %v3103, %v2574
    %v3169 = vsel %vm3114, %v3104, %v2576
    %v3170 = vsel %vm3114, %v3105, %v2578
    %v3171 = vsel %vm3114, %v3106, %v2580
    %v3172 = vsel %vm3114, %v3107, %v2582
    %v3173 = vsel %vm3114, %v3108, %v2584
    %v3174 = vsel %vm3114, %v3109, %v2586
    %v3175 = vsel %vm3114, %v3110, %v2588
    %v3176 = vsel %vm3114, %v3111, %v2590
    %v3177 = vsel %vm3114, %v3112, %v2592
    %v3178 = vsel %vm3114, %v3113, %v2594
    %v3179 = vld [vmem:[%s1] sm:$0xff]
    %v3180 = vld [vmem:[%s1 + $0x8] sm:$0x1]
    %vm3181 = vcmask 72704
    %v3183 = vsel %vm3181, %v3115, 0
    %v3186 = vsel %vm3181, %v3116, 0
    %v3189 = vsel %vm3181, %v3117, 0
    %v3192 = vsel %vm3181, %v3118, 0
    %v3195 = vsel %vm3181, %v3119, 0
    %v3198 = vsel %vm3181, %v3120, 0
    %v3201 = vsel %vm3181, %v3121, 0
    %v3204 = vsel %vm3181, %v3122, 0
    %v3207 = vsel %vm3181, %v3123, 0
    %v3210 = vsel %vm3181, %v3124, 0
    %v3213 = vsel %vm3181, %v3125, 0
    %v3216 = vsel %vm3181, %v3126, 0
    %v3219 = vsel %vm3181, %v3127, 0
    %v3222 = vsel %vm3181, %v3128, 0
    %v3225 = vsel %vm3181, %v3129, 0
    %v3228 = vsel %vm3181, %v3130, 0
    %v3231 = vsel %vm3181, %v3131, 0
    %v3234 = vsel %vm3181, %v3132, 0
    %v3237 = vsel %vm3181, %v3133, 0
    %v3240 = vsel %vm3181, %v3134, 0
    %v3243 = vsel %vm3181, %v3135, 0
    %v3246 = vsel %vm3181, %v3136, 0
    %v3249 = vsel %vm3181, %v3137, 0
    %v3252 = vsel %vm3181, %v3138, 0
    %v3255 = vsel %vm3181, %v3139, 0
    %v3258 = vsel %vm3181, %v3140, 0
    %v3261 = vsel %vm3181, %v3141, 0
    %v3264 = vsel %vm3181, %v3142, 0
    %v3267 = vsel %vm3181, %v3143, 0
    %v3270 = vsel %vm3181, %v3144, 0
    %v3273 = vsel %vm3181, %v3145, 0
    %v3276 = vsel %vm3181, %v3146, 0
    %v3279 = vsel %vm3181, %v3147, 0
    %v3282 = vsel %vm3181, %v3148, 0
    %v3285 = vsel %vm3181, %v3149, 0
    %v3288 = vsel %vm3181, %v3150, 0
    %v3291 = vsel %vm3181, %v3151, 0
    %v3294 = vsel %vm3181, %v3152, 0
    %v3297 = vsel %vm3181, %v3153, 0
    %v3300 = vsel %vm3181, %v3154, 0
    %v3303 = vsel %vm3181, %v3155, 0
    %v3306 = vsel %vm3181, %v3156, 0
    %v3309 = vsel %vm3181, %v3157, 0
    %v3312 = vsel %vm3181, %v3158, 0
    %v3315 = vsel %vm3181, %v3159, 0
    %v3318 = vsel %vm3181, %v3160, 0
    %v3321 = vsel %vm3181, %v3161, 0
    %v3324 = vsel %vm3181, %v3162, 0
    %v3327 = vsel %vm3181, %v3163, 0
    %v3330 = vsel %vm3181, %v3164, 0
    %v3333 = vsel %vm3181, %v3165, 0
    %v3336 = vsel %vm3181, %v3166, 0
    %v3339 = vsel %vm3181, %v3167, 0
    %v3342 = vsel %vm3181, %v3168, 0
    %v3345 = vsel %vm3181, %v3169, 0
    %v3348 = vsel %vm3181, %v3170, 0
    %v3351 = vsel %vm3181, %v3171, 0
    %v3354 = vsel %vm3181, %v3172, 0
    %v3357 = vsel %vm3181, %v3173, 0
    %v3360 = vsel %vm3181, %v3174, 0
    %v3363 = vsel %vm3181, %v3175, 0
    %v3366 = vsel %vm3181, %v3176, 0
    %v3369 = vsel %vm3181, %v3177, 0
    %v3372 = vsel %vm3181, %v3178, 0
    %vm3374 = vcmask 1040384
    %v3376 = vsel %vm3374, %v3180, 0
    %3378 = vmatprep.subr.mxu0 0.0
    %3379 = vmatpush1.msra.mxu0 %v3179
    %3380 = vmatprep.subr.mxu0 0.0
    %3381 = vmatpush1.msra.mxu0 %v3376
    %3382 = vmatprep.subr.mxu0 0.0
    %3383 = vmatpush1.msra.mxu0 0.0
    %3384 = vmatprep.subr.mxu0 0.0
    %3385 = vmatpush1.msra.mxu0 0.0
    %3386 = vmatprep.subr.mxu0 0.0
    %3387 = vmatpush1.msra.mxu0 0.0
    %3388 = vmatprep.subr.mxu0 0.0
    %3389 = vmatpush1.msra.mxu0 0.0
    %3390 = vmatprep.subr.mxu0 0.0
    %3391 = vmatpush1.msra.mxu0 0.0
    %3392 = vmatprep.subr.mxu0 0.0
    %3393 = vmatpush1.msra.mxu0 0.0
    %3394 = vmatprep.subr.mxu0 0.0
    %3395 = vmatpush1.msra.mxu0 0.0
    %3396 = vmatprep.subr.mxu0 0.0
    %3397 = vmatpush1.msra.mxu0 0.0
    %3398 = vmatprep.subr.mxu0 0.0
    %3399 = vmatpush1.msra.mxu0 0.0
    %3400 = vmatprep.subr.mxu0 0.0
    %3401 = vmatpush1.msra.mxu0 0.0
    %3402 = vmatprep.subr.mxu0 0.0
    %3403 = vmatpush1.msra.mxu0 0.0
    %3404 = vmatprep.subr.mxu0 0.0
    %3405 = vmatpush1.msra.mxu0 0.0
    %3406 = vmatprep.subr.mxu0 0.0
    %3407 = vmatpush1.msra.mxu0 0.0
    %3408 = vmatprep.subr.mxu0 0.0
    %3409 = vmatpush1.msra.mxu0 0.0
    %3410 = vmatprep.subr.mxu0 0.0
    %3411 = vmatpush1.msra.mxu0 0.0
    %3412 = vmatprep.subr.mxu0 0.0
    %3413 = vmatpush1.msra.mxu0 0.0
    %3414 = vmatprep.subr.mxu0 0.0
    %3415 = vmatpush1.msra.mxu0 0.0
    %3416 = vmatprep.subr.mxu0 0.0
    %3417 = vmatpush1.msra.mxu0 0.0
    %3418 = vmatprep.subr.mxu0 0.0
    %3419 = vmatpush1.msra.mxu0 0.0
    %3420 = vmatprep.subr.mxu0 0.0
    %3421 = vmatpush1.msra.mxu0 0.0
    %3422 = vmatprep.subr.mxu0 0.0
    %3423 = vmatpush1.msra.mxu0 0.0
    %3424 = vmatprep.subr.mxu0 0.0
    %3425 = vmatpush1.msra.mxu0 0.0
    %3426 = vmatprep.subr.mxu0 0.0
    %3427 = vmatpush1.msra.mxu0 0.0
    %3428 = vmatprep.subr.mxu0 0.0
    %3429 = vmatpush1.msra.mxu0 0.0
    %3430 = vmatprep.subr.mxu0 0.0
    %3431 = vmatpush1.msra.mxu0 0.0
    %3432 = vmatprep.subr.mxu0 0.0
    %3433 = vmatpush1.msra.mxu0 0.0
    %3434 = vmatprep.subr.mxu0 0.0
    %3435 = vmatpush1.msra.mxu0 0.0
    %3436 = vmatprep.subr.mxu0 0.0
    %3437 = vmatpush1.msra.mxu0 0.0
    %3438 = vmatprep.subr.mxu0 0.0
    %3439 = vmatpush1.msra.mxu0 0.0
    %3440 = vmatprep.subr.mxu0 0.0
    %3441 = vmatpush1.msra.mxu0 0.0
    %3442 = vmatprep.mubr.f32.mxu0 0.0
    %3443 = vmatmul.mubr.f32.gmra.mrb[0].mxu0 %v3183
    %v3444 = vpop.f32.mrb[0].mxu0
    %v3445 = vadd.f32 0.0, %v3444
    %v3446 = vpop.f32.mrb[0].mxu0
    %3447 = vmatprep.mubr.f32.mxu0 0.0
    %3448 = vmatmul.mubr.f32.gmra.mrb[0].mxu0 %v3186
    %v3449 = vpop.f32.mrb[0].mxu0
    %v3450 = vadd.f32 0.0, %v3449
    %v3451 = vpop.f32.mrb[0].mxu0
    %3452 = vmatprep.mubr.f32.mxu0 0.0
    %3453 = vmatmul.mubr.f32.gmra.mrb[0].mxu0 %v3189
    %v3454 = vpop.f32.mrb[0].mxu0
    %v3455 = vadd.f32 0.0, %v3454
    %v3456 = vpop.f32.mrb[0].mxu0
    %3457 = vmatprep.mubr.f32.mxu0 0.0
    %3458 = vmatmul.mubr.f32.gmra.mrb[0].mxu0 %v3192
    %v3459 = vpop.f32.mrb[0].mxu0
    %v3460 = vadd.f32 0.0, %v3459
    %v3461 = vpop.f32.mrb[0].mxu0
    %3462 = vmatprep.mubr.f32.mxu0 0.0
    %3463 = vmatmul.mubr.f32.gmra.mrb[0].mxu0 %v3195
    %v3464 = vpop.f32.mrb[0].mxu0
    %v3465 = vadd.f32 0.0, %v3464
    %v3466 = vpop.f32.mrb[0].mxu0
    %3467 = vmatprep.mubr.f32.mxu0 0.0
    %3468 = vmatmul.mubr.f32.gmra.mrb[0].mxu0 %v3198
    %v3469 = vpop.f32.mrb[0].mxu0
    %v3470 = vadd.f32 0.0, %v3469
    %v3471 = vpop.f32.mrb[0].mxu0
    %3472 = vmatprep.mubr.f32.mxu0 0.0
    %3473 = vmatmul.mubr.f32.gmra.mrb[0].mxu0 %v3201
    %v3474 = vpop.f32.mrb[0].mxu0
    %v3475 = vadd.f32 0.0, %v3474
    %v3476 = vpop.f32.mrb[0].mxu0
    %3477 = vmatprep.mubr.f32.mxu0 0.0
    %3478 = vmatmul.mubr.f32.gmra.mrb[0].mxu0 %v3204
    %v3479 = vpop.f32.mrb[0].mxu0
    %v3480 = vadd.f32 0.0, %v3479
    %v3481 = vpop.f32.mrb[0].mxu0
    %3482 = vmatprep.mubr.f32.mxu0 0.0
    %3483 = vmatmul.mubr.f32.gmra.mrb[0].mxu0 %v3207
    %v3484 = vpop.f32.mrb[0].mxu0
    %v3485 = vadd.f32 0.0, %v3484
    %v3486 = vpop.f32.mrb[0].mxu0
    %3487 = vmatprep.mubr.f32.mxu0 0.0
    %3488 = vmatmul.mubr.f32.gmra.mrb[0].mxu0 %v3210
    %v3489 = vpop.f32.mrb[0].mxu0
    %v3490 = vadd.f32 0.0, %v3489
    %v3491 = vpop.f32.mrb[0].mxu0
    %3492 = vmatprep.mubr.f32.mxu0 0.0
    %3493 = vmatmul.mubr.f32.gmra.mrb[0].mxu0 %v3213
    %v3494 = vpop.f32.mrb[0].mxu0
    %v3495 = vadd.f32 0.0, %v3494
    %v3496 = vpop.f32.mrb[0].mxu0
    %3497 = vmatprep.mubr.f32.mxu0 0.0
    %3498 = vmatmul.mubr.f32.gmra.mrb[0].mxu0 %v3216
    %v3499 = vpop.f32.mrb[0].mxu0
    %v3500 = vadd.f32 0.0, %v3499
    %v3501 = vpop.f32.mrb[0].mxu0
    %3502 = vmatprep.mubr.f32.mxu0 0.0
    %3503 = vmatmul.mubr.f32.gmra.mrb[0].mxu0 %v3219
    %v3504 = vpop.f32.mrb[0].mxu0
    %v3505 = vadd.f32 0.0, %v3504
    %v3506 = vpop.f32.mrb[0].mxu0
    %3507 = vmatprep.mubr.f32.mxu0 0.0
    %3508 = vmatmul.mubr.f32.gmra.mrb[0].mxu0 %v3222
    %v3509 = vpop.f32.mrb[0].mxu0
    %v3510 = vadd.f32 0.0, %v3509
    %v3511 = vpop.f32.mrb[0].mxu0
    %3512 = vmatprep.mubr.f32.mxu0 0.0
    %3513 = vmatmul.mubr.f32.gmra.mrb[0].mxu0 %v3225
    %v3514 = vpop.f32.mrb[0].mxu0
    %v3515 = vadd.f32 0.0, %v3514
    %v3516 = vpop.f32.mrb[0].mxu0
    %3517 = vmatprep.mubr.f32.mxu0 0.0
    %3518 = vmatmul.mubr.f32.gmra.mrb[0].mxu0 %v3228
    %v3519 = vpop.f32.mrb[0].mxu0
    %v3520 = vadd.f32 0.0, %v3519
    %v3521 = vpop.f32.mrb[0].mxu0
    %3522 = vmatprep.mubr.f32.mxu0 0.0
    %3523 = vmatmul.mubr.f32.gmra.mrb[0].mxu0 %v3231
    %v3524 = vpop.f32.mrb[0].mxu0
    %v3525 = vadd.f32 0.0, %v3524
    %v3526 = vpop.f32.mrb[0].mxu0
    %3527 = vmatprep.mubr.f32.mxu0 0.0
    %3528 = vmatmul.mubr.f32.gmra.mrb[0].mxu0 %v3234
    %v3529 = vpop.f32.mrb[0].mxu0
    %v3530 = vadd.f32 0.0, %v3529
    %v3531 = vpop.f32.mrb[0].mxu0
    %3532 = vmatprep.mubr.f32.mxu0 0.0
    %3533 = vmatmul.mubr.f32.gmra.mrb[0].mxu0 %v3237
    %v3534 = vpop.f32.mrb[0].mxu0
    %v3535 = vadd.f32 0.0, %v3534
    %v3536 = vpop.f32.mrb[0].mxu0
    %3537 = vmatprep.mubr.f32.mxu0 0.0
    %3538 = vmatmul.mubr.f32.gmra.mrb[0].mxu0 %v3240
    %v3539 = vpop.f32.mrb[0].mxu0
    %v3540 = vadd.f32 0.0, %v3539
    %v3541 = vpop.f32.mrb[0].mxu0
    %3542 = vmatprep.mubr.f32.mxu0 0.0
    %3543 = vmatmul.mubr.f32.gmra.mrb[0].mxu0 %v3243
    %v3544 = vpop.f32.mrb[0].mxu0
    %v3545 = vadd.f32 0.0, %v3544
    %v3546 = vpop.f32.mrb[0].mxu0
    %3547 = vmatprep.mubr.f32.mxu0 0.0
    %3548 = vmatmul.mubr.f32.gmra.mrb[0].mxu0 %v3246
    %v3549 = vpop.f32.mrb[0].mxu0
    %v3550 = vadd.f32 0.0, %v3549
    %v3551 = vpop.f32.mrb[0].mxu0
    %3552 = vmatprep.mubr.f32.mxu0 0.0
    %3553 = vmatmul.mubr.f32.gmra.mrb[0].mxu0 %v3249
    %v3554 = vpop.f32.mrb[0].mxu0
    %v3555 = vadd.f32 0.0, %v3554
    %v3556 = vpop.f32.mrb[0].mxu0
    %3557 = vmatprep.mubr.f32.mxu0 0.0
    %3558 = vmatmul.mubr.f32.gmra.mrb[0].mxu0 %v3252
    %v3559 = vpop.f32.mrb[0].mxu0
    %v3560 = vadd.f32 0.0, %v3559
    %v3561 = vpop.f32.mrb[0].mxu0
    %3562 = vmatprep.mubr.f32.mxu0 0.0
    %3563 = vmatmul.mubr.f32.gmra.mrb[0].mxu0 %v3255
    %v3564 = vpop.f32.mrb[0].mxu0
    %v3565 = vadd.f32 0.0, %v3564
    %v3566 = vpop.f32.mrb[0].mxu0
    %3567 = vmatprep.mubr.f32.mxu0 0.0
    %3568 = vmatmul.mubr.f32.gmra.mrb[0].mxu0 %v3258
    %v3569 = vpop.f32.mrb[0].mxu0
    %v3570 = vadd.f32 0.0, %v3569
    %v3571 = vpop.f32.mrb[0].mxu0
    %3572 = vmatprep.mubr.f32.mxu0 0.0
    %3573 = vmatmul.mubr.f32.gmra.mrb[0].mxu0 %v3261
    %v3574 = vpop.f32.mrb[0].mxu0
    %v3575 = vadd.f32 0.0, %v3574
    %v3576 = vpop.f32.mrb[0].mxu0
    %3577 = vmatprep.mubr.f32.mxu0 0.0
    %3578 = vmatmul.mubr.f32.gmra.mrb[0].mxu0 %v3264
    %v3579 = vpop.f32.mrb[0].mxu0
    %v3580 = vadd.f32 0.0, %v3579
    %v3581 = vpop.f32.mrb[0].mxu0
    %3582 = vmatprep.mubr.f32.mxu0 0.0
    %3583 = vmatmul.mubr.f32.gmra.mrb[0].mxu0 %v3267
    %v3584 = vpop.f32.mrb[0].mxu0
    %v3585 = vadd.f32 0.0, %v3584
    %v3586 = vpop.f32.mrb[0].mxu0
    %3587 = vmatprep.mubr.f32.mxu0 0.0
    %3588 = vmatmul.mubr.f32.gmra.mrb[0].mxu0 %v3270
    %v3589 = vpop.f32.mrb[0].mxu0
    %v3590 = vadd.f32 0.0, %v3589
    %v3591 = vpop.f32.mrb[0].mxu0
    %3592 = vmatprep.mubr.f32.mxu0 0.0
    %3593 = vmatmul.mubr.f32.gmra.mrb[0].mxu0 %v3273
    %v3594 = vpop.f32.mrb[0].mxu0
    %v3595 = vadd.f32 0.0, %v3594
    %v3596 = vpop.f32.mrb[0].mxu0
    %3597 = vmatprep.mubr.f32.mxu0 0.0
    %3598 = vmatmul.mubr.f32.gmra.mrb[0].mxu0 %v3276
    %v3599 = vpop.f32.mrb[0].mxu0
    %v3600 = vadd.f32 0.0, %v3599
    %v3601 = vpop.f32.mrb[0].mxu0
    %3602 = vmatprep.mubr.f32.mxu0 0.0
    %3603 = vmatmul.mubr.f32.gmra.mrb[0].mxu0 %v3279
    %v3604 = vpop.f32.mrb[0].mxu0
    %v3605 = vadd.f32 0.0, %v3604
    %v3606 = vpop.f32.mrb[0].mxu0
    %3607 = vmatprep.mubr.f32.mxu0 0.0
    %3608 = vmatmul.mubr.f32.gmra.mrb[0].mxu0 %v3282
    %v3609 = vpop.f32.mrb[0].mxu0
    %v3610 = vadd.f32 0.0, %v3609
    %v3611 = vpop.f32.mrb[0].mxu0
    %3612 = vmatprep.mubr.f32.mxu0 0.0
    %3613 = vmatmul.mubr.f32.gmra.mrb[0].mxu0 %v3285
    %v3614 = vpop.f32.mrb[0].mxu0
    %v3615 = vadd.f32 0.0, %v3614
    %v3616 = vpop.f32.mrb[0].mxu0
    %3617 = vmatprep.mubr.f32.mxu0 0.0
    %3618 = vmatmul.mubr.f32.gmra.mrb[0].mxu0 %v3288
    %v3619 = vpop.f32.mrb[0].mxu0
    %v3620 = vadd.f32 0.0, %v3619
    %v3621 = vpop.f32.mrb[0].mxu0
    %3622 = vmatprep.mubr.f32.mxu0 0.0
    %3623 = vmatmul.mubr.f32.gmra.mrb[0].mxu0 %v3291
    %v3624 = vpop.f32.mrb[0].mxu0
    %v3625 = vadd.f32 0.0, %v3624
    %v3626 = vpop.f32.mrb[0].mxu0
    %3627 = vmatprep.mubr.f32.mxu0 0.0
    %3628 = vmatmul.mubr.f32.gmra.mrb[0].mxu0 %v3294
    %v3629 = vpop.f32.mrb[0].mxu0
    %v3630 = vadd.f32 0.0, %v3629
    %v3631 = vpop.f32.mrb[0].mxu0
    %3632 = vmatprep.mubr.f32.mxu0 0.0
    %3633 = vmatmul.mubr.f32.gmra.mrb[0].mxu0 %v3297
    %v3634 = vpop.f32.mrb[0].mxu0
    %v3635 = vadd.f32 0.0, %v3634
    %v3636 = vpop.f32.mrb[0].mxu0
    %3637 = vmatprep.mubr.f32.mxu0 0.0
    %3638 = vmatmul.mubr.f32.gmra.mrb[0].mxu0 %v3300
    %v3639 = vpop.f32.mrb[0].mxu0
    %v3640 = vadd.f32 0.0, %v3639
    %v3641 = vpop.f32.mrb[0].mxu0
    %3642 = vmatprep.mubr.f32.mxu0 0.0
    %3643 = vmatmul.mubr.f32.gmra.mrb[0].mxu0 %v3303
    %v3644 = vpop.f32.mrb[0].mxu0
    %v3645 = vadd.f32 0.0, %v3644
    %v3646 = vpop.f32.mrb[0].mxu0
    %3647 = vmatprep.mubr.f32.mxu0 0.0
    %3648 = vmatmul.mubr.f32.gmra.mrb[0].mxu0 %v3306
    %v3649 = vpop.f32.mrb[0].mxu0
    %v3650 = vadd.f32 0.0, %v3649
    %v3651 = vpop.f32.mrb[0].mxu0
    %3652 = vmatprep.mubr.f32.mxu0 0.0
    %3653 = vmatmul.mubr.f32.gmra.mrb[0].mxu0 %v3309
    %v3654 = vpop.f32.mrb[0].mxu0
    %v3655 = vadd.f32 0.0, %v3654
    %v3656 = vpop.f32.mrb[0].mxu0
    %3657 = vmatprep.mubr.f32.mxu0 0.0
    %3658 = vmatmul.mubr.f32.gmra.mrb[0].mxu0 %v3312
    %v3659 = vpop.f32.mrb[0].mxu0
    %v3660 = vadd.f32 0.0, %v3659
    %v3661 = vpop.f32.mrb[0].mxu0
    %3662 = vmatprep.mubr.f32.mxu0 0.0
    %3663 = vmatmul.mubr.f32.gmra.mrb[0].mxu0 %v3315
    %v3664 = vpop.f32.mrb[0].mxu0
    %v3665 = vadd.f32 0.0, %v3664
    %v3666 = vpop.f32.mrb[0].mxu0
    %3667 = vmatprep.mubr.f32.mxu0 0.0
    %3668 = vmatmul.mubr.f32.gmra.mrb[0].mxu0 %v3318
    %v3669 = vpop.f32.mrb[0].mxu0
    %v3670 = vadd.f32 0.0, %v3669
    %v3671 = vpop.f32.mrb[0].mxu0
    %3672 = vmatprep.mubr.f32.mxu0 0.0
    %3673 = vmatmul.mubr.f32.gmra.mrb[0].mxu0 %v3321
    %v3674 = vpop.f32.mrb[0].mxu0
    %v3675 = vadd.f32 0.0, %v3674
    %v3676 = vpop.f32.mrb[0].mxu0
    %3677 = vmatprep.mubr.f32.mxu0 0.0
    %3678 = vmatmul.mubr.f32.gmra.mrb[0].mxu0 %v3324
    %v3679 = vpop.f32.mrb[0].mxu0
    %v3680 = vadd.f32 0.0, %v3679
    %v3681 = vpop.f32.mrb[0].mxu0
    %3682 = vmatprep.mubr.f32.mxu0 0.0
    %3683 = vmatmul.mubr.f32.gmra.mrb[0].mxu0 %v3327
    %v3684 = vpop.f32.mrb[0].mxu0
    %v3685 = vadd.f32 0.0, %v3684
    %v3686 = vpop.f32.mrb[0].mxu0
    %3687 = vmatprep.mubr.f32.mxu0 0.0
    %3688 = vmatmul.mubr.f32.gmra.mrb[0].mxu0 %v3330
    %v3689 = vpop.f32.mrb[0].mxu0
    %v3690 = vadd.f32 0.0, %v3689
    %v3691 = vpop.f32.mrb[0].mxu0
    %3692 = vmatprep.mubr.f32.mxu0 0.0
    %3693 = vmatmul.mubr.f32.gmra.mrb[0].mxu0 %v3333
    %v3694 = vpop.f32.mrb[0].mxu0
    %v3695 = vadd.f32 0.0, %v3694
    %v3696 = vpop.f32.mrb[0].mxu0
    %3697 = vmatprep.mubr.f32.mxu0 0.0
    %3698 = vmatmul.mubr.f32.gmra.mrb[0].mxu0 %v3336
    %v3699 = vpop.f32.mrb[0].mxu0
    %v3700 = vadd.f32 0.0, %v3699
    %v3701 = vpop.f32.mrb[0].mxu0
    %3702 = vmatprep.mubr.f32.mxu0 0.0
    %3703 = vmatmul.mubr.f32.gmra.mrb[0].mxu0 %v3339
    %v3704 = vpop.f32.mrb[0].mxu0
    %v3705 = vadd.f32 0.0, %v3704
    %v3706 = vpop.f32.mrb[0].mxu0
    %3707 = vmatprep.mubr.f32.mxu0 0.0
    %3708 = vmatmul.mubr.f32.gmra.mrb[0].mxu0 %v3342
    %v3709 = vpop.f32.mrb[0].mxu0
    %v3710 = vadd.f32 0.0, %v3709
    %v3711 = vpop.f32.mrb[0].mxu0
    %3712 = vmatprep.mubr.f32.mxu0 0.0
    %3713 = vmatmul.mubr.f32.gmra.mrb[0].mxu0 %v3345
    %v3714 = vpop.f32.mrb[0].mxu0
    %v3715 = vadd.f32 0.0, %v3714
    %v3716 = vpop.f32.mrb[0].mxu0
    %3717 = vmatprep.mubr.f32.mxu0 0.0
    %3718 = vmatmul.mubr.f32.gmra.mrb[0].mxu0 %v3348
    %v3719 = vpop.f32.mrb[0].mxu0
    %v3720 = vadd.f32 0.0, %v3719
    %v3721 = vpop.f32.mrb[0].mxu0
    %3722 = vmatprep.mubr.f32.mxu0 0.0
    %3723 = vmatmul.mubr.f32.gmra.mrb[0].mxu0 %v3351
    %v3724 = vpop.f32.mrb[0].mxu0
    %v3725 = vadd.f32 0.0, %v3724
    %v3726 = vpop.f32.mrb[0].mxu0
    %3727 = vmatprep.mubr.f32.mxu0 0.0
    %3728 = vmatmul.mubr.f32.gmra.mrb[0].mxu0 %v3354
    %v3729 = vpop.f32.mrb[0].mxu0
    %v3730 = vadd.f32 0.0, %v3729
    %v3731 = vpop.f32.mrb[0].mxu0
    %3732 = vmatprep.mubr.f32.mxu0 0.0
    %3733 = vmatmul.mubr.f32.gmra.mrb[0].mxu0 %v3357
    %v3734 = vpop.f32.mrb[0].mxu0
    %v3735 = vadd.f32 0.0, %v3734
    %v3736 = vpop.f32.mrb[0].mxu0
    %3737 = vmatprep.mubr.f32.mxu0 0.0
    %3738 = vmatmul.mubr.f32.gmra.mrb[0].mxu0 %v3360
    %v3739 = vpop.f32.mrb[0].mxu0
    %v3740 = vadd.f32 0.0, %v3739
    %v3741 = vpop.f32.mrb[0].mxu0
    %3742 = vmatprep.mubr.f32.mxu0 0.0
    %3743 = vmatmul.mubr.f32.gmra.mrb[0].mxu0 %v3363
    %v3744 = vpop.f32.mrb[0].mxu0
    %v3745 = vadd.f32 0.0, %v3744
    %v3746 = vpop.f32.mrb[0].mxu0
    %3747 = vmatprep.mubr.f32.mxu0 0.0
    %3748 = vmatmul.mubr.f32.gmra.mrb[0].mxu0 %v3366
    %v3749 = vpop.f32.mrb[0].mxu0
    %v3750 = vadd.f32 0.0, %v3749
    %v3751 = vpop.f32.mrb[0].mxu0
    %3752 = vmatprep.mubr.f32.mxu0 0.0
    %3753 = vmatmul.mubr.f32.gmra.mrb[0].mxu0 %v3369
    %v3754 = vpop.f32.mrb[0].mxu0
    %v3755 = vadd.f32 0.0, %v3754
    %v3756 = vpop.f32.mrb[0].mxu0
    %3757 = vmatprep.mubr.f32.mxu0 0.0
    %3758 = vmatmul.mubr.f32.gmra.mrb[0].mxu0 %v3372
    %v3759 = vpop.f32.mrb[0].mxu0
    %v3760 = vadd.f32 0.0, %v3759
    %v3761 = vpop.f32.mrb[0].mxu0
    %3762 = vdwg.mxu0
    %vm3763 = vcmask 261120
    %3764 = vst.msk [vmem:[#allocation2] sm:$0xff] %vm3763, %v3445
    %3765 = vst.msk [vmem:[#allocation2 + $0x8] sm:$0xff] %vm3763, %v3450
    %3766 = vst.msk [vmem:[#allocation2 + $0x10] sm:$0xff] %vm3763, %v3455
    %3767 = vst.msk [vmem:[#allocation2 + $0x18] sm:$0xff] %vm3763, %v3460
    %3768 = vst.msk [vmem:[#allocation2 + $0x20] sm:$0xff] %vm3763, %v3465
    %3769 = vst.msk [vmem:[#allocation2 + $0x28] sm:$0xff] %vm3763, %v3470
    %3770 = vst.msk [vmem:[#allocation2 + $0x30] sm:$0xff] %vm3763, %v3475
    %3771 = vst.msk [vmem:[#allocation2 + $0x38] sm:$0xff] %vm3763, %v3480
    %3772 = vst.msk [vmem:[#allocation2 + $0x40] sm:$0xff] %vm3763, %v3485
    %3773 = vst.msk [vmem:[#allocation2 + $0x48] sm:$0xff] %vm3763, %v3490
    %3774 = vst.msk [vmem:[#allocation2 + $0x50] sm:$0xff] %vm3763, %v3495
    %3775 = vst.msk [vmem:[#allocation2 + $0x58] sm:$0xff] %vm3763, %v3500
    %3776 = vst.msk [vmem:[#allocation2 + $0x60] sm:$0xff] %vm3763, %v3505
    %3777 = vst.msk [vmem:[#allocation2 + $0x68] sm:$0xff] %vm3763, %v3510
    %3778 = vst.msk [vmem:[#allocation2 + $0x70] sm:$0xff] %vm3763, %v3515
    %3779 = vst.msk [vmem:[#allocation2 + $0x78] sm:$0xff] %vm3763, %v3520
    %3780 = vst.msk [vmem:[#allocation2 + $0x80] sm:$0xff] %vm3763, %v3525
    %3781 = vst.msk [vmem:[#allocation2 + $0x88] sm:$0xff] %vm3763, %v3530
    %3782 = vst.msk [vmem:[#allocation2 + $0x90] sm:$0xff] %vm3763, %v3535
    %3783 = vst.msk [vmem:[#allocation2 + $0x98] sm:$0xff] %vm3763, %v3540
    %3784 = vst.msk [vmem:[#allocation2 + $0xa0] sm:$0xff] %vm3763, %v3545
    %3785 = vst.msk [vmem:[#allocation2 + $0xa8] sm:$0xff] %vm3763, %v3550
    %3786 = vst.msk [vmem:[#allocation2 + $0xb0] sm:$0xff] %vm3763, %v3555
    %3787 = vst.msk [vmem:[#allocation2 + $0xb8] sm:$0xff] %vm3763, %v3560
    %3788 = vst.msk [vmem:[#allocation2 + $0xc0] sm:$0xff] %vm3763, %v3565
    %3789 = vst.msk [vmem:[#allocation2 + $0xc8] sm:$0xff] %vm3763, %v3570
    %3790 = vst.msk [vmem:[#allocation2 + $0xd0] sm:$0xff] %vm3763, %v3575
    %3791 = vst.msk [vmem:[#allocation2 + $0xd8] sm:$0xff] %vm3763, %v3580
    %3792 = vst.msk [vmem:[#allocation2 + $0xe0] sm:$0xff] %vm3763, %v3585
    %3793 = vst.msk [vmem:[#allocation2 + $0xe8] sm:$0xff] %vm3763, %v3590
    %3794 = vst.msk [vmem:[#allocation2 + $0xf0] sm:$0xff] %vm3763, %v3595
    %3795 = vst.msk [vmem:[#allocation2 + $0xf8] sm:$0xff] %vm3763, %v3600
    %3796 = vst.msk [vmem:[#allocation2 + $0x100] sm:$0xff] %vm3763, %v3605
    %3797 = vst.msk [vmem:[#allocation2 + $0x108] sm:$0xff] %vm3763, %v3610
    %3798 = vst.msk [vmem:[#allocation2 + $0x110] sm:$0xff] %vm3763, %v3615
    %3799 = vst.msk [vmem:[#allocation2 + $0x118] sm:$0xff] %vm3763, %v3620
    %3800 = vst.msk [vmem:[#allocation2 + $0x120] sm:$0xff] %vm3763, %v3625
    %3801 = vst.msk [vmem:[#allocation2 + $0x128] sm:$0xff] %vm3763, %v3630
    %3802 = vst.msk [vmem:[#allocation2 + $0x130] sm:$0xff] %vm3763, %v3635
    %3803 = vst.msk [vmem:[#allocation2 + $0x138] sm:$0xff] %vm3763, %v3640
    %3804 = vst.msk [vmem:[#allocation2 + $0x140] sm:$0xff] %vm3763, %v3645
    %3805 = vst.msk [vmem:[#allocation2 + $0x148] sm:$0xff] %vm3763, %v3650
    %3806 = vst.msk [vmem:[#allocation2 + $0x150] sm:$0xff] %vm3763, %v3655
    %3807 = vst.msk [vmem:[#allocation2 + $0x158] sm:$0xff] %vm3763, %v3660
    %3808 = vst.msk [vmem:[#allocation2 + $0x160] sm:$0xff] %vm3763, %v3665
    %3809 = vst.msk [vmem:[#allocation2 + $0x168] sm:$0xff] %vm3763, %v3670
    %3810 = vst.msk [vmem:[#allocation2 + $0x170] sm:$0xff] %vm3763, %v3675
    %3811 = vst.msk [vmem:[#allocation2 + $0x178] sm:$0xff] %vm3763, %v3680
    %3812 = vst.msk [vmem:[#allocation2 + $0x180] sm:$0xff] %vm3763, %v3685
    %3813 = vst.msk [vmem:[#allocation2 + $0x188] sm:$0xff] %vm3763, %v3690
    %3814 = vst.msk [vmem:[#allocation2 + $0x190] sm:$0xff] %vm3763, %v3695
    %3815 = vst.msk [vmem:[#allocation2 + $0x198] sm:$0xff] %vm3763, %v3700
    %3816 = vst.msk [vmem:[#allocation2 + $0x1a0] sm:$0xff] %vm3763, %v3705
    %3817 = vst.msk [vmem:[#allocation2 + $0x1a8] sm:$0xff] %vm3763, %v3710
    %3818 = vst.msk [vmem:[#allocation2 + $0x1b0] sm:$0xff] %vm3763, %v3715
    %3819 = vst.msk [vmem:[#allocation2 + $0x1b8] sm:$0xff] %vm3763, %v3720
    %3820 = vst.msk [vmem:[#allocation2 + $0x1c0] sm:$0xff] %vm3763, %v3725
    %3821 = vst.msk [vmem:[#allocation2 + $0x1c8] sm:$0xff] %vm3763, %v3730
    %3822 = vst.msk [vmem:[#allocation2 + $0x1d0] sm:$0xff] %vm3763, %v3735
    %3823 = vst.msk [vmem:[#allocation2 + $0x1d8] sm:$0xff] %vm3763, %v3740
    %3824 = vst.msk [vmem:[#allocation2 + $0x1e0] sm:$0xff] %vm3763, %v3745
    %3825 = vst.msk [vmem:[#allocation2 + $0x1e8] sm:$0xff] %vm3763, %v3750
    %3826 = vst.msk [vmem:[#allocation2 + $0x1f0] sm:$0xff] %vm3763, %v3755
    %3827 = vst.msk [vmem:[#allocation2 + $0x1f8] sm:$0xff] %vm3763, %v3760
    %v3828 = vld [vmem:[#allocation2] sm:$0x1]
    %v3829 = vld [vmem:[#allocation2 + $0x10] sm:$0x1]
    %v3830 = vld [vmem:[#allocation2 + $0x20] sm:$0x1]
    %v3831 = vld [vmem:[#allocation2 + $0x30] sm:$0x1]
    %v3832 = vld [vmem:[#allocation2 + $0x40] sm:$0x1]
    %v3833 = vld [vmem:[#allocation2 + $0x50] sm:$0x1]
    %v3834 = vld [vmem:[#allocation2 + $0x60] sm:$0x1]
    %v3835 = vld [vmem:[#allocation2 + $0x70] sm:$0x1]
    %v3836 = vld [vmem:[#allocation2 + $0x80] sm:$0x1]
    %v3837 = vld [vmem:[#allocation2 + $0x90] sm:$0x1]
    %v3838 = vld [vmem:[#allocation2 + $0xa0] sm:$0x1]
    %v3839 = vld [vmem:[#allocation2 + $0xb0] sm:$0x1]
    %v3840 = vld [vmem:[#allocation2 + $0xc0] sm:$0x1]
    %v3841 = vld [vmem:[#allocation2 + $0xd0] sm:$0x1]
    %v3842 = vld [vmem:[#allocation2 + $0xe0] sm:$0x1]
    %v3843 = vld [vmem:[#allocation2 + $0xf0] sm:$0x1]
    %v3844 = vld [vmem:[#allocation2 + $0x100] sm:$0x1]
    %v3845 = vld [vmem:[#allocation2 + $0x110] sm:$0x1]
    %v3846 = vld [vmem:[#allocation2 + $0x120] sm:$0x1]
    %v3847 = vld [vmem:[#allocation2 + $0x130] sm:$0x1]
    %v3848 = vld [vmem:[#allocation2 + $0x140] sm:$0x1]
    %v3849 = vld [vmem:[#allocation2 + $0x150] sm:$0x1]
    %v3850 = vld [vmem:[#allocation2 + $0x160] sm:$0x1]
    %v3851 = vld [vmem:[#allocation2 + $0x170] sm:$0x1]
    %v3852 = vld [vmem:[#allocation2 + $0x180] sm:$0x1]
    %v3853 = vld [vmem:[#allocation2 + $0x190] sm:$0x1]
    %v3854 = vld [vmem:[#allocation2 + $0x1a0] sm:$0x1]
    %v3855 = vld [vmem:[#allocation2 + $0x1b0] sm:$0x1]
    %v3856 = vld [vmem:[#allocation2 + $0x1c0] sm:$0x1]
    %v3857 = vld [vmem:[#allocation2 + $0x1d0] sm:$0x1]
    %v3858 = vld [vmem:[#allocation2 + $0x1e0] sm:$0x1]
    %v3859 = vld [vmem:[#allocation2 + $0x1f0] sm:$0x1]
    %v3860 = vld [vmem:[#allocation2 + $0x1] sm:$0x1]
    %v3861 = vld [vmem:[#allocation2 + $0x11] sm:$0x1]
    %v3862 = vld [vmem:[#allocation2 + $0x21] sm:$0x1]
    %v3863 = vld [vmem:[#allocation2 + $0x31] sm:$0x1]
    %v3864 = vld [vmem:[#allocation2 + $0x41] sm:$0x1]
    %v3865 = vld [vmem:[#allocation2 + $0x51] sm:$0x1]
    %v3866 = vld [vmem:[#allocation2 + $0x61] sm:$0x1]
    %v3867 = vld [vmem:[#allocation2 + $0x71] sm:$0x1]
    %v3868 = vld [vmem:[#allocation2 + $0x81] sm:$0x1]
    %v3869 = vld [vmem:[#allocation2 + $0x91] sm:$0x1]
    %v3870 = vld [vmem:[#allocation2 + $0xa1] sm:$0x1]
    %v3871 = vld [vmem:[#allocation2 + $0xb1] sm:$0x1]
    %v3872 = vld [vmem:[#allocation2 + $0xc1] sm:$0x1]
    %v3873 = vld [vmem:[#allocation2 + $0xd1] sm:$0x1]
    %v3874 = vld [vmem:[#allocation2 + $0xe1] sm:$0x1]
    %v3875 = vld [vmem:[#allocation2 + $0xf1] sm:$0x1]
    %v3876 = vld [vmem:[#allocation2 + $0x101] sm:$0x1]
    %v3877 = vld [vmem:[#allocation2 + $0x111] sm:$0x1]
    %v3878 = vld [vmem:[#allocation2 + $0x121] sm:$0x1]
    %v3879 = vld [vmem:[#allocation2 + $0x131] sm:$0x1]
    %v3880 = vld [vmem:[#allocation2 + $0x141] sm:$0x1]
    %v3881 = vld [vmem:[#allocation2 + $0x151] sm:$0x1]
    %v3882 = vld [vmem:[#allocation2 + $0x161] sm:$0x1]
    %v3883 = vld [vmem:[#allocation2 + $0x171] sm:$0x1]
    %v3884 = vld [vmem:[#allocation2 + $0x181] sm:$0x1]
    %v3885 = vld [vmem:[#allocation2 + $0x191] sm:$0x1]
    %v3886 = vld [vmem:[#allocation2 + $0x1a1] sm:$0x1]
    %v3887 = vld [vmem:[#allocation2 + $0x1b1] sm:$0x1]
    %v3888 = vld [vmem:[#allocation2 + $0x1c1] sm:$0x1]
    %v3889 = vld [vmem:[#allocation2 + $0x1d1] sm:$0x1]
    %v3890 = vld [vmem:[#allocation2 + $0x1e1] sm:$0x1]
    %v3891 = vld [vmem:[#allocation2 + $0x1f1] sm:$0x1]
    %v3892 = vmax.f32 %v3828, %v3860
    %v3893 = vmax.f32 %v3829, %v3861
    %v3894 = vmax.f32 %v3830, %v3862
    %v3895 = vmax.f32 %v3831, %v3863
    %v3896 = vmax.f32 %v3832, %v3864
    %v3897 = vmax.f32 %v3833, %v3865
    %v3898 = vmax.f32 %v3834, %v3866
    %v3899 = vmax.f32 %v3835, %v3867
    %v3900 = vmax.f32 %v3836, %v3868
    %v3901 = vmax.f32 %v3837, %v3869
    %v3902 = vmax.f32 %v3838, %v3870
    %v3903 = vmax.f32 %v3839, %v3871
    %v3904 = vmax.f32 %v3840, %v3872
    %v3905 = vmax.f32 %v3841, %v3873
    %v3906 = vmax.f32 %v3842, %v3874
    %v3907 = vmax.f32 %v3843, %v3875
    %v3908 = vmax.f32 %v3844, %v3876
    %v3909 = vmax.f32 %v3845, %v3877
    %v3910 = vmax.f32 %v3846, %v3878
    %v3911 = vmax.f32 %v3847, %v3879
    %v3912 = vmax.f32 %v3848, %v3880
    %v3913 = vmax.f32 %v3849, %v3881
    %v3914 = vmax.f32 %v3850, %v3882
    %v3915 = vmax.f32 %v3851, %v3883
    %v3916 = vmax.f32 %v3852, %v3884
    %v3917 = vmax.f32 %v3853, %v3885
    %v3918 = vmax.f32 %v3854, %v3886
    %v3919 = vmax.f32 %v3855, %v3887
    %v3920 = vmax.f32 %v3856, %v3888
    %v3921 = vmax.f32 %v3857, %v3889
    %v3922 = vmax.f32 %v3858, %v3890
    %v3923 = vmax.f32 %v3859, %v3891
    %vm3924 = vcmask 253952
    %3925 = vst.msk [vmem:[#allocation3] sm:$0x1] %vm3924, %v3892
    %3926 = vst.msk [vmem:[#allocation3 + $0x8] sm:$0x1] %vm3924, %v3893
    %3927 = vst.msk [vmem:[#allocation3 + $0x10] sm:$0x1] %vm3924, %v3894
    %3928 = vst.msk [vmem:[#allocation3 + $0x18] sm:$0x1] %vm3924, %v3895
    %3929 = vst.msk [vmem:[#allocation3 + $0x20] sm:$0x1] %vm3924, %v3896
    %3930 = vst.msk [vmem:[#allocation3 + $0x28] sm:$0x1] %vm3924, %v3897
    %3931 = vst.msk [vmem:[#allocation3 + $0x30] sm:$0x1] %vm3924, %v3898
    %3932 = vst.msk [vmem:[#allocation3 + $0x38] sm:$0x1] %vm3924, %v3899
    %3933 = vst.msk [vmem:[#allocation3 + $0x40] sm:$0x1] %vm3924, %v3900
    %3934 = vst.msk [vmem:[#allocation3 + $0x48] sm:$0x1] %vm3924, %v3901
    %3935 = vst.msk [vmem:[#allocation3 + $0x50] sm:$0x1] %vm3924, %v3902
    %3936 = vst.msk [vmem:[#allocation3 + $0x58] sm:$0x1] %vm3924, %v3903
    %3937 = vst.msk [vmem:[#allocation3 + $0x60] sm:$0x1] %vm3924, %v3904
    %3938 = vst.msk [vmem:[#allocation3 + $0x68] sm:$0x1] %vm3924, %v3905
    %3939 = vst.msk [vmem:[#allocation3 + $0x70] sm:$0x1] %vm3924, %v3906
    %3940 = vst.msk [vmem:[#allocation3 + $0x78] sm:$0x1] %vm3924, %v3907
    %3941 = vst.msk [vmem:[#allocation3 + $0x80] sm:$0x1] %vm3924, %v3908
    %3942 = vst.msk [vmem:[#allocation3 + $0x88] sm:$0x1] %vm3924, %v3909
    %3943 = vst.msk [vmem:[#allocation3 + $0x90] sm:$0x1] %vm3924, %v3910
    %3944 = vst.msk [vmem:[#allocation3 + $0x98] sm:$0x1] %vm3924, %v3911
    %3945 = vst.msk [vmem:[#allocation3 + $0xa0] sm:$0x1] %vm3924, %v3912
    %3946 = vst.msk [vmem:[#allocation3 + $0xa8] sm:$0x1] %vm3924, %v3913
    %3947 = vst.msk [vmem:[#allocation3 + $0xb0] sm:$0x1] %vm3924, %v3914
    %3948 = vst.msk [vmem:[#allocation3 + $0xb8] sm:$0x1] %vm3924, %v3915
    %3949 = vst.msk [vmem:[#allocation3 + $0xc0] sm:$0x1] %vm3924, %v3916
    %3950 = vst.msk [vmem:[#allocation3 + $0xc8] sm:$0x1] %vm3924, %v3917
    %3951 = vst.msk [vmem:[#allocation3 + $0xd0] sm:$0x1] %vm3924, %v3918
    %3952 = vst.msk [vmem:[#allocation3 + $0xd8] sm:$0x1] %vm3924, %v3919
    %3953 = vst.msk [vmem:[#allocation3 + $0xe0] sm:$0x1] %vm3924, %v3920
    %3954 = vst.msk [vmem:[#allocation3 + $0xe8] sm:$0x1] %vm3924, %v3921
    %3955 = vst.msk [vmem:[#allocation3 + $0xf0] sm:$0x1] %vm3924, %v3922
    %3956 = vst.msk [vmem:[#allocation3 + $0xf8] sm:$0x1] %vm3924, %v3923
    %v3957 = vld [vmem:[#allocation2 + $0x2] sm:$0x1]
    %v3958 = vld [vmem:[#allocation2 + $0x12] sm:$0x1]
    %v3959 = vld [vmem:[#allocation2 + $0x22] sm:$0x1]
    %v3960 = vld [vmem:[#allocation2 + $0x32] sm:$0x1]
    %v3961 = vld [vmem:[#allocation2 + $0x42] sm:$0x1]
    %v3962 = vld [vmem:[#allocation2 + $0x52] sm:$0x1]
    %v3963 = vld [vmem:[#allocation2 + $0x62] sm:$0x1]
    %v3964 = vld [vmem:[#allocation2 + $0x72] sm:$0x1]
    %v3965 = vld [vmem:[#allocation2 + $0x82] sm:$0x1]
    %v3966 = vld [vmem:[#allocation2 + $0x92] sm:$0x1]
    %v3967 = vld [vmem:[#allocation2 + $0xa2] sm:$0x1]
    %v3968 = vld [vmem:[#allocation2 + $0xb2] sm:$0x1]
    %v3969 = vld [vmem:[#allocation2 + $0xc2] sm:$0x1]
    %v3970 = vld [vmem:[#allocation2 + $0xd2] sm:$0x1]
    %v3971 = vld [vmem:[#allocation2 + $0xe2] sm:$0x1]
    %v3972 = vld [vmem:[#allocation2 + $0xf2] sm:$0x1]
    %v3973 = vld [vmem:[#allocation2 + $0x102] sm:$0x1]
    %v3974 = vld [vmem:[#allocation2 + $0x112] sm:$0x1]
    %v3975 = vld [vmem:[#allocation2 + $0x122] sm:$0x1]
    %v3976 = vld [vmem:[#allocation2 + $0x132] sm:$0x1]
    %v3977 = vld [vmem:[#allocation2 + $0x142] sm:$0x1]
    %v3978 = vld [vmem:[#allocation2 + $0x152] sm:$0x1]
    %v3979 = vld [vmem:[#allocation2 + $0x162] sm:$0x1]
    %v3980 = vld [vmem:[#allocation2 + $0x172] sm:$0x1]
    %v3981 = vld [vmem:[#allocation2 + $0x182] sm:$0x1]
    %v3982 = vld [vmem:[#allocation2 + $0x192] sm:$0x1]
    %v3983 = vld [vmem:[#allocation2 + $0x1a2] sm:$0x1]
    %v3984 = vld [vmem:[#allocation2 + $0x1b2] sm:$0x1]
    %v3985 = vld [vmem:[#allocation2 + $0x1c2] sm:$0x1]
    %v3986 = vld [vmem:[#allocation2 + $0x1d2] sm:$0x1]
    %v3987 = vld [vmem:[#allocation2 + $0x1e2] sm:$0x1]
    %v3988 = vld [vmem:[#allocation2 + $0x1f2] sm:$0x1]
    %v3989 = vld [vmem:[#allocation2 + $0x3] sm:$0x1]
    %v3990 = vld [vmem:[#allocation2 + $0x13] sm:$0x1]
    %v3991 = vld [vmem:[#allocation2 + $0x23] sm:$0x1]
    %v3992 = vld [vmem:[#allocation2 + $0x33] sm:$0x1]
    %v3993 = vld [vmem:[#allocation2 + $0x43] sm:$0x1]
    %v3994 = vld [vmem:[#allocation2 + $0x53] sm:$0x1]
    %v3995 = vld [vmem:[#allocation2 + $0x63] sm:$0x1]
    %v3996 = vld [vmem:[#allocation2 + $0x73] sm:$0x1]
    %v3997 = vld [vmem:[#allocation2 + $0x83] sm:$0x1]
    %v3998 = vld [vmem:[#allocation2 + $0x93] sm:$0x1]
    %v3999 = vld [vmem:[#allocation2 + $0xa3] sm:$0x1]
    %v4000 = vld [vmem:[#allocation2 + $0xb3] sm:$0x1]
    %v4001 = vld [vmem:[#allocation2 + $0xc3] sm:$0x1]
    %v4002 = vld [vmem:[#allocation2 + $0xd3] sm:$0x1]
    %v4003 = vld [vmem:[#allocation2 + $0xe3] sm:$0x1]
    %v4004 = vld [vmem:[#allocation2 + $0xf3] sm:$0x1]
    %v4005 = vld [vmem:[#allocation2 + $0x103] sm:$0x1]
    %v4006 = vld [vmem:[#allocation2 + $0x113] sm:$0x1]
    %v4007 = vld [vmem:[#allocation2 + $0x123] sm:$0x1]
    %v4008 = vld [vmem:[#allocation2 + $0x133] sm:$0x1]
    %v4009 = vld [vmem:[#allocation2 + $0x143] sm:$0x1]
    %v4010 = vld [vmem:[#allocation2 + $0x153] sm:$0x1]
    %v4011 = vld [vmem:[#allocation2 + $0x163] sm:$0x1]
    %v4012 = vld [vmem:[#allocation2 + $0x173] sm:$0x1]
    %v4013 = vld [vmem:[#allocation2 + $0x183] sm:$0x1]
    %v4014 = vld [vmem:[#allocation2 + $0x193] sm:$0x1]
    %v4015 = vld [vmem:[#allocation2 + $0x1a3] sm:$0x1]
    %v4016 = vld [vmem:[#allocation2 + $0x1b3] sm:$0x1]
    %v4017 = vld [vmem:[#allocation2 + $0x1c3] sm:$0x1]
    %v4018 = vld [vmem:[#allocation2 + $0x1d3] sm:$0x1]
    %v4019 = vld [vmem:[#allocation2 + $0x1e3] sm:$0x1]
    %v4020 = vld [vmem:[#allocation2 + $0x1f3] sm:$0x1]
    %v4021 = vmax.f32 %v3957, %v3989
    %v4022 = vmax.f32 %v3958, %v3990
    %v4023 = vmax.f32 %v3959, %v3991
    %v4024 = vmax.f32 %v3960, %v3992
    %v4025 = vmax.f32 %v3961, %v3993
    %v4026 = vmax.f32 %v3962, %v3994
    %v4027 = vmax.f32 %v3963, %v3995
    %v4028 = vmax.f32 %v3964, %v3996
    %v4029 = vmax.f32 %v3965, %v3997
    %v4030 = vmax.f32 %v3966, %v3998
    %v4031 = vmax.f32 %v3967, %v3999
    %v4032 = vmax.f32 %v3968, %v4000
    %v4033 = vmax.f32 %v3969, %v4001
    %v4034 = vmax.f32 %v3970, %v4002
    %v4035 = vmax.f32 %v3971, %v4003
    %v4036 = vmax.f32 %v3972, %v4004
    %v4037 = vmax.f32 %v3973, %v4005
    %v4038 = vmax.f32 %v3974, %v4006
    %v4039 = vmax.f32 %v3975, %v4007
    %v4040 = vmax.f32 %v3976, %v4008
    %v4041 = vmax.f32 %v3977, %v4009
    %v4042 = vmax.f32 %v3978, %v4010
    %v4043 = vmax.f32 %v3979, %v4011
    %v4044 = vmax.f32 %v3980, %v4012
    %v4045 = vmax.f32 %v3981, %v4013
    %v4046 = vmax.f32 %v3982, %v4014
    %v4047 = vmax.f32 %v3983, %v4015
    %v4048 = vmax.f32 %v3984, %v4016
    %v4049 = vmax.f32 %v3985, %v4017
    %v4050 = vmax.f32 %v3986, %v4018
    %v4051 = vmax.f32 %v3987, %v4019
    %v4052 = vmax.f32 %v3988, %v4020
    %4053 = vst.msk [vmem:[#allocation3 + $0x1] sm:$0x1] %vm3924, %v4021
    %4054 = vst.msk [vmem:[#allocation3 + $0x9] sm:$0x1] %vm3924, %v4022
    %4055 = vst.msk [vmem:[#allocation3 + $0x11] sm:$0x1] %vm3924, %v4023
    %4056 = vst.msk [vmem:[#allocation3 + $0x19] sm:$0x1] %vm3924, %v4024
    %4057 = vst.msk [vmem:[#allocation3 + $0x21] sm:$0x1] %vm3924, %v4025
    %4058 = vst.msk [vmem:[#allocation3 + $0x29] sm:$0x1] %vm3924, %v4026
    %4059 = vst.msk [vmem:[#allocation3 + $0x31] sm:$0x1] %vm3924, %v4027
    %4060 = vst.msk [vmem:[#allocation3 + $0x39] sm:$0x1] %vm3924, %v4028
    %4061 = vst.msk [vmem:[#allocation3 + $0x41] sm:$0x1] %vm3924, %v4029
    %4062 = vst.msk [vmem:[#allocation3 + $0x49] sm:$0x1] %vm3924, %v4030
    %4063 = vst.msk [vmem:[#allocation3 + $0x51] sm:$0x1] %vm3924, %v4031
    %4064 = vst.msk [vmem:[#allocation3 + $0x59] sm:$0x1] %vm3924, %v4032
    %4065 = vst.msk [vmem:[#allocation3 + $0x61] sm:$0x1] %vm3924, %v4033
    %4066 = vst.msk [vmem:[#allocation3 + $0x69] sm:$0x1] %vm3924, %v4034
    %4067 = vst.msk [vmem:[#allocation3 + $0x71] sm:$0x1] %vm3924, %v4035
    %4068 = vst.msk [vmem:[#allocation3 + $0x79] sm:$0x1] %vm3924, %v4036
    %4069 = vst.msk [vmem:[#allocation3 + $0x81] sm:$0x1] %vm3924, %v4037
    %4070 = vst.msk [vmem:[#allocation3 + $0x89] sm:$0x1] %vm3924, %v4038
    %4071 = vst.msk [vmem:[#allocation3 + $0x91] sm:$0x1] %vm3924, %v4039
    %4072 = vst.msk [vmem:[#allocation3 + $0x99] sm:$0x1] %vm3924, %v4040
    %4073 = vst.msk [vmem:[#allocation3 + $0xa1] sm:$0x1] %vm3924, %v4041
    %4074 = vst.msk [vmem:[#allocation3 + $0xa9] sm:$0x1] %vm3924, %v4042
    %4075 = vst.msk [vmem:[#allocation3 + $0xb1] sm:$0x1] %vm3924, %v4043
    %4076 = vst.msk [vmem:[#allocation3 + $0xb9] sm:$0x1] %vm3924, %v4044
    %4077 = vst.msk [vmem:[#allocation3 + $0xc1] sm:$0x1] %vm3924, %v4045
    %4078 = vst.msk [vmem:[#allocation3 + $0xc9] sm:$0x1] %vm3924, %v4046
    %4079 = vst.msk [vmem:[#allocation3 + $0xd1] sm:$0x1] %vm3924, %v4047
    %4080 = vst.msk [vmem:[#allocation3 + $0xd9] sm:$0x1] %vm3924, %v4048
    %4081 = vst.msk [vmem:[#allocation3 + $0xe1] sm:$0x1] %vm3924, %v4049
    %4082 = vst.msk [vmem:[#allocation3 + $0xe9] sm:$0x1] %vm3924, %v4050
    %4083 = vst.msk [vmem:[#allocation3 + $0xf1] sm:$0x1] %vm3924, %v4051
    %4084 = vst.msk [vmem:[#allocation3 + $0xf9] sm:$0x1] %vm3924, %v4052
    %v4085 = vld [vmem:[#allocation2 + $0x4] sm:$0x1]
    %v4086 = vld [vmem:[#allocation2 + $0x14] sm:$0x1]
    %v4087 = vld [vmem:[#allocation2 + $0x24] sm:$0x1]
    %v4088 = vld [vmem:[#allocation2 + $0x34] sm:$0x1]
    %v4089 = vld [vmem:[#allocation2 + $0x44] sm:$0x1]
    %v4090 = vld [vmem:[#allocation2 + $0x54] sm:$0x1]
    %v4091 = vld [vmem:[#allocation2 + $0x64] sm:$0x1]
    %v4092 = vld [vmem:[#allocation2 + $0x74] sm:$0x1]
    %v4093 = vld [vmem:[#allocation2 + $0x84] sm:$0x1]
    %v4094 = vld [vmem:[#allocation2 + $0x94] sm:$0x1]
    %v4095 = vld [vmem:[#allocation2 + $0xa4] sm:$0x1]
    %v4096 = vld [vmem:[#allocation2 + $0xb4] sm:$0x1]
    %v4097 = vld [vmem:[#allocation2 + $0xc4] sm:$0x1]
    %v4098 = vld [vmem:[#allocation2 + $0xd4] sm:$0x1]
    %v4099 = vld [vmem:[#allocation2 + $0xe4] sm:$0x1]
    %v4100 = vld [vmem:[#allocation2 + $0xf4] sm:$0x1]
    %v4101 = vld [vmem:[#allocation2 + $0x104] sm:$0x1]
    %v4102 = vld [vmem:[#allocation2 + $0x114] sm:$0x1]
    %v4103 = vld [vmem:[#allocation2 + $0x124] sm:$0x1]
    %v4104 = vld [vmem:[#allocation2 + $0x134] sm:$0x1]
    %v4105 = vld [vmem:[#allocation2 + $0x144] sm:$0x1]
    %v4106 = vld [vmem:[#allocation2 + $0x154] sm:$0x1]
    %v4107 = vld [vmem:[#allocation2 + $0x164] sm:$0x1]
    %v4108 = vld [vmem:[#allocation2 + $0x174] sm:$0x1]
    %v4109 = vld [vmem:[#allocation2 + $0x184] sm:$0x1]
    %v4110 = vld [vmem:[#allocation2 + $0x194] sm:$0x1]
    %v4111 = vld [vmem:[#allocation2 + $0x1a4] sm:$0x1]
    %v4112 = vld [vmem:[#allocation2 + $0x1b4] sm:$0x1]
    %v4113 = vld [vmem:[#allocation2 + $0x1c4] sm:$0x1]
    %v4114 = vld [vmem:[#allocation2 + $0x1d4] sm:$0x1]
    %v4115 = vld [vmem:[#allocation2 + $0x1e4] sm:$0x1]
    %v4116 = vld [vmem:[#allocation2 + $0x1f4] sm:$0x1]
    %v4117 = vld [vmem:[#allocation2 + $0x5] sm:$0x1]
    %v4118 = vld [vmem:[#allocation2 + $0x15] sm:$0x1]
    %v4119 = vld [vmem:[#allocation2 + $0x25] sm:$0x1]
    %v4120 = vld [vmem:[#allocation2 + $0x35] sm:$0x1]
    %v4121 = vld [vmem:[#allocation2 + $0x45] sm:$0x1]
    %v4122 = vld [vmem:[#allocation2 + $0x55] sm:$0x1]
    %v4123 = vld [vmem:[#allocation2 + $0x65] sm:$0x1]
    %v4124 = vld [vmem:[#allocation2 + $0x75] sm:$0x1]
    %v4125 = vld [vmem:[#allocation2 + $0x85] sm:$0x1]
    %v4126 = vld [vmem:[#allocation2 + $0x95] sm:$0x1]
    %v4127 = vld [vmem:[#allocation2 + $0xa5] sm:$0x1]
    %v4128 = vld [vmem:[#allocation2 + $0xb5] sm:$0x1]
    %v4129 = vld [vmem:[#allocation2 + $0xc5] sm:$0x1]
    %v4130 = vld [vmem:[#allocation2 + $0xd5] sm:$0x1]
    %v4131 = vld [vmem:[#allocation2 + $0xe5] sm:$0x1]
    %v4132 = vld [vmem:[#allocation2 + $0xf5] sm:$0x1]
    %v4133 = vld [vmem:[#allocation2 + $0x105] sm:$0x1]
    %v4134 = vld [vmem:[#allocation2 + $0x115] sm:$0x1]
    %v4135 = vld [vmem:[#allocation2 + $0x125] sm:$0x1]
    %v4136 = vld [vmem:[#allocation2 + $0x135] sm:$0x1]
    %v4137 = vld [vmem:[#allocation2 + $0x145] sm:$0x1]
    %v4138 = vld [vmem:[#allocation2 + $0x155] sm:$0x1]
    %v4139 = vld [vmem:[#allocation2 + $0x165] sm:$0x1]
    %v4140 = vld [vmem:[#allocation2 + $0x175] sm:$0x1]
    %v4141 = vld [vmem:[#allocation2 + $0x185] sm:$0x1]
    %v4142 = vld [vmem:[#allocation2 + $0x195] sm:$0x1]
    %v4143 = vld [vmem:[#allocation2 + $0x1a5] sm:$0x1]
    %v4144 = vld [vmem:[#allocation2 + $0x1b5] sm:$0x1]
    %v4145 = vld [vmem:[#allocation2 + $0x1c5] sm:$0x1]
    %v4146 = vld [vmem:[#allocation2 + $0x1d5] sm:$0x1]
    %v4147 = vld [vmem:[#allocation2 + $0x1e5] sm:$0x1]
    %v4148 = vld [vmem:[#allocation2 + $0x1f5] sm:$0x1]
    %v4149 = vmax.f32 %v4085, %v4117
    %v4150 = vmax.f32 %v4086, %v4118
    %v4151 = vmax.f32 %v4087, %v4119
    %v4152 = vmax.f32 %v4088, %v4120
    %v4153 = vmax.f32 %v4089, %v4121
    %v4154 = vmax.f32 %v4090, %v4122
    %v4155 = vmax.f32 %v4091, %v4123
    %v4156 = vmax.f32 %v4092, %v4124
    %v4157 = vmax.f32 %v4093, %v4125
    %v4158 = vmax.f32 %v4094, %v4126
    %v4159 = vmax.f32 %v4095, %v4127
    %v4160 = vmax.f32 %v4096, %v4128
    %v4161 = vmax.f32 %v4097, %v4129
    %v4162 = vmax.f32 %v4098, %v4130
    %v4163 = vmax.f32 %v4099, %v4131
    %v4164 = vmax.f32 %v4100, %v4132
    %v4165 = vmax.f32 %v4101, %v4133
    %v4166 = vmax.f32 %v4102, %v4134
    %v4167 = vmax.f32 %v4103, %v4135
    %v4168 = vmax.f32 %v4104, %v4136
    %v4169 = vmax.f32 %v4105, %v4137
    %v4170 = vmax.f32 %v4106, %v4138
    %v4171 = vmax.f32 %v4107, %v4139
    %v4172 = vmax.f32 %v4108, %v4140
    %v4173 = vmax.f32 %v4109, %v4141
    %v4174 = vmax.f32 %v4110, %v4142
    %v4175 = vmax.f32 %v4111, %v4143
    %v4176 = vmax.f32 %v4112, %v4144
    %v4177 = vmax.f32 %v4113, %v4145
    %v4178 = vmax.f32 %v4114, %v4146
    %v4179 = vmax.f32 %v4115, %v4147
    %v4180 = vmax.f32 %v4116, %v4148
    %4181 = vst.msk [vmem:[#allocation3 + $0x2] sm:$0x1] %vm3924, %v4149
    %4182 = vst.msk [vmem:[#allocation3 + $0xa] sm:$0x1] %vm3924, %v4150
    %4183 = vst.msk [vmem:[#allocation3 + $0x12] sm:$0x1] %vm3924, %v4151
    %4184 = vst.msk [vmem:[#allocation3 + $0x1a] sm:$0x1] %vm3924, %v4152
    %4185 = vst.msk [vmem:[#allocation3 + $0x22] sm:$0x1] %vm3924, %v4153
    %4186 = vst.msk [vmem:[#allocation3 + $0x2a] sm:$0x1] %vm3924, %v4154
    %4187 = vst.msk [vmem:[#allocation3 + $0x32] sm:$0x1] %vm3924, %v4155
    %4188 = vst.msk [vmem:[#allocation3 + $0x3a] sm:$0x1] %vm3924, %v4156
    %4189 = vst.msk [vmem:[#allocation3 + $0x42] sm:$0x1] %vm3924, %v4157
    %4190 = vst.msk [vmem:[#allocation3 + $0x4a] sm:$0x1] %vm3924, %v4158
    %4191 = vst.msk [vmem:[#allocation3 + $0x52] sm:$0x1] %vm3924, %v4159
    %4192 = vst.msk [vmem:[#allocation3 + $0x5a] sm:$0x1] %vm3924, %v4160
    %4193 = vst.msk [vmem:[#allocation3 + $0x62] sm:$0x1] %vm3924, %v4161
    %4194 = vst.msk [vmem:[#allocation3 + $0x6a] sm:$0x1] %vm3924, %v4162
    %4195 = vst.msk [vmem:[#allocation3 + $0x72] sm:$0x1] %vm3924, %v4163
    %4196 = vst.msk [vmem:[#allocation3 + $0x7a] sm:$0x1] %vm3924, %v4164
    %4197 = vst.msk [vmem:[#allocation3 + $0x82] sm:$0x1] %vm3924, %v4165
    %4198 = vst.msk [vmem:[#allocation3 + $0x8a] sm:$0x1] %vm3924, %v4166
    %4199 = vst.msk [vmem:[#allocation3 + $0x92] sm:$0x1] %vm3924, %v4167
    %4200 = vst.msk [vmem:[#allocation3 + $0x9a] sm:$0x1] %vm3924, %v4168
    %4201 = vst.msk [vmem:[#allocation3 + $0xa2] sm:$0x1] %vm3924, %v4169
    %4202 = vst.msk [vmem:[#allocation3 + $0xaa] sm:$0x1] %vm3924, %v4170
    %4203 = vst.msk [vmem:[#allocation3 + $0xb2] sm:$0x1] %vm3924, %v4171
    %4204 = vst.msk [vmem:[#allocation3 + $0xba] sm:$0x1] %vm3924, %v4172
    %4205 = vst.msk [vmem:[#allocation3 + $0xc2] sm:$0x1] %vm3924, %v4173
    %4206 = vst.msk [vmem:[#allocation3 + $0xca] sm:$0x1] %vm3924, %v4174
    %4207 = vst.msk [vmem:[#allocation3 + $0xd2] sm:$0x1] %vm3924, %v4175
    %4208 = vst.msk [vmem:[#allocation3 + $0xda] sm:$0x1] %vm3924, %v4176
    %4209 = vst.msk [vmem:[#allocation3 + $0xe2] sm:$0x1] %vm3924, %v4177
    %4210 = vst.msk [vmem:[#allocation3 + $0xea] sm:$0x1] %vm3924, %v4178
    %4211 = vst.msk [vmem:[#allocation3 + $0xf2] sm:$0x1] %vm3924, %v4179
    %4212 = vst.msk [vmem:[#allocation3 + $0xfa] sm:$0x1] %vm3924, %v4180
    %v4213 = vld [vmem:[#allocation2 + $0x6] sm:$0x1]
    %v4214 = vld [vmem:[#allocation2 + $0x16] sm:$0x1]
    %v4215 = vld [vmem:[#allocation2 + $0x26] sm:$0x1]
    %v4216 = vld [vmem:[#allocation2 + $0x36] sm:$0x1]
    %v4217 = vld [vmem:[#allocation2 + $0x46] sm:$0x1]
    %v4218 = vld [vmem:[#allocation2 + $0x56] sm:$0x1]
    %v4219 = vld [vmem:[#allocation2 + $0x66] sm:$0x1]
    %v4220 = vld [vmem:[#allocation2 + $0x76] sm:$0x1]
    %v4221 = vld [vmem:[#allocation2 + $0x86] sm:$0x1]
    %v4222 = vld [vmem:[#allocation2 + $0x96] sm:$0x1]
    %v4223 = vld [vmem:[#allocation2 + $0xa6] sm:$0x1]
    %v4224 = vld [vmem:[#allocation2 + $0xb6] sm:$0x1]
    %v4225 = vld [vmem:[#allocation2 + $0xc6] sm:$0x1]
    %v4226 = vld [vmem:[#allocation2 + $0xd6] sm:$0x1]
    %v4227 = vld [vmem:[#allocation2 + $0xe6] sm:$0x1]
    %v4228 = vld [vmem:[#allocation2 + $0xf6] sm:$0x1]
    %v4229 = vld [vmem:[#allocation2 + $0x106] sm:$0x1]
    %v4230 = vld [vmem:[#allocation2 + $0x116] sm:$0x1]
    %v4231 = vld [vmem:[#allocation2 + $0x126] sm:$0x1]
    %v4232 = vld [vmem:[#allocation2 + $0x136] sm:$0x1]
    %v4233 = vld [vmem:[#allocation2 + $0x146] sm:$0x1]
    %v4234 = vld [vmem:[#allocation2 + $0x156] sm:$0x1]
    %v4235 = vld [vmem:[#allocation2 + $0x166] sm:$0x1]
    %v4236 = vld [vmem:[#allocation2 + $0x176] sm:$0x1]
    %v4237 = vld [vmem:[#allocation2 + $0x186] sm:$0x1]
    %v4238 = vld [vmem:[#allocation2 + $0x196] sm:$0x1]
    %v4239 = vld [vmem:[#allocation2 + $0x1a6] sm:$0x1]
    %v4240 = vld [vmem:[#allocation2 + $0x1b6] sm:$0x1]
    %v4241 = vld [vmem:[#allocation2 + $0x1c6] sm:$0x1]
    %v4242 = vld [vmem:[#allocation2 + $0x1d6] sm:$0x1]
    %v4243 = vld [vmem:[#allocation2 + $0x1e6] sm:$0x1]
    %v4244 = vld [vmem:[#allocation2 + $0x1f6] sm:$0x1]
    %v4245 = vld [vmem:[#allocation2 + $0x7] sm:$0x1]
    %v4246 = vld [vmem:[#allocation2 + $0x17] sm:$0x1]
    %v4247 = vld [vmem:[#allocation2 + $0x27] sm:$0x1]
    %v4248 = vld [vmem:[#allocation2 + $0x37] sm:$0x1]
    %v4249 = vld [vmem:[#allocation2 + $0x47] sm:$0x1]
    %v4250 = vld [vmem:[#allocation2 + $0x57] sm:$0x1]
    %v4251 = vld [vmem:[#allocation2 + $0x67] sm:$0x1]
    %v4252 = vld [vmem:[#allocation2 + $0x77] sm:$0x1]
    %v4253 = vld [vmem:[#allocation2 + $0x87] sm:$0x1]
    %v4254 = vld [vmem:[#allocation2 + $0x97] sm:$0x1]
    %v4255 = vld [vmem:[#allocation2 + $0xa7] sm:$0x1]
    %v4256 = vld [vmem:[#allocation2 + $0xb7] sm:$0x1]
    %v4257 = vld [vmem:[#allocation2 + $0xc7] sm:$0x1]
    %v4258 = vld [vmem:[#allocation2 + $0xd7] sm:$0x1]
    %v4259 = vld [vmem:[#allocation2 + $0xe7] sm:$0x1]
    %v4260 = vld [vmem:[#allocation2 + $0xf7] sm:$0x1]
    %v4261 = vld [vmem:[#allocation2 + $0x107] sm:$0x1]
    %v4262 = vld [vmem:[#allocation2 + $0x117] sm:$0x1]
    %v4263 = vld [vmem:[#allocation2 + $0x127] sm:$0x1]
    %v4264 = vld [vmem:[#allocation2 + $0x137] sm:$0x1]
    %v4265 = vld [vmem:[#allocation2 + $0x147] sm:$0x1]
    %v4266 = vld [vmem:[#allocation2 + $0x157] sm:$0x1]
    %v4267 = vld [vmem:[#allocation2 + $0x167] sm:$0x1]
    %v4268 = vld [vmem:[#allocation2 + $0x177] sm:$0x1]
    %v4269 = vld [vmem:[#allocation2 + $0x187] sm:$0x1]
    %v4270 = vld [vmem:[#allocation2 + $0x197] sm:$0x1]
    %v4271 = vld [vmem:[#allocation2 + $0x1a7] sm:$0x1]
    %v4272 = vld [vmem:[#allocation2 + $0x1b7] sm:$0x1]
    %v4273 = vld [vmem:[#allocation2 + $0x1c7] sm:$0x1]
    %v4274 = vld [vmem:[#allocation2 + $0x1d7] sm:$0x1]
    %v4275 = vld [vmem:[#allocation2 + $0x1e7] sm:$0x1]
    %v4276 = vld [vmem:[#allocation2 + $0x1f7] sm:$0x1]
    %v4277 = vmax.f32 %v4213, %v4245
    %v4278 = vmax.f32 %v4214, %v4246
    %v4279 = vmax.f32 %v4215, %v4247
    %v4280 = vmax.f32 %v4216, %v4248
    %v4281 = vmax.f32 %v4217, %v4249
    %v4282 = vmax.f32 %v4218, %v4250
    %v4283 = vmax.f32 %v4219, %v4251
    %v4284 = vmax.f32 %v4220, %v4252
    %v4285 = vmax.f32 %v4221, %v4253
    %v4286 = vmax.f32 %v4222, %v4254
    %v4287 = vmax.f32 %v4223, %v4255
    %v4288 = vmax.f32 %v4224, %v4256
    %v4289 = vmax.f32 %v4225, %v4257
    %v4290 = vmax.f32 %v4226, %v4258
    %v4291 = vmax.f32 %v4227, %v4259
    %v4292 = vmax.f32 %v4228, %v4260
    %v4293 = vmax.f32 %v4229, %v4261
    %v4294 = vmax.f32 %v4230, %v4262
    %v4295 = vmax.f32 %v4231, %v4263
    %v4296 = vmax.f32 %v4232, %v4264
    %v4297 = vmax.f32 %v4233, %v4265
    %v4298 = vmax.f32 %v4234, %v4266
    %v4299 = vmax.f32 %v4235, %v4267
    %v4300 = vmax.f32 %v4236, %v4268
    %v4301 = vmax.f32 %v4237, %v4269
    %v4302 = vmax.f32 %v4238, %v4270
    %v4303 = vmax.f32 %v4239, %v4271
    %v4304 = vmax.f32 %v4240, %v4272
    %v4305 = vmax.f32 %v4241, %v4273
    %v4306 = vmax.f32 %v4242, %v4274
    %v4307 = vmax.f32 %v4243, %v4275
    %v4308 = vmax.f32 %v4244, %v4276
    %4309 = vst.msk [vmem:[#allocation3 + $0x3] sm:$0x1] %vm3924, %v4277
    %4310 = vst.msk [vmem:[#allocation3 + $0xb] sm:$0x1] %vm3924, %v4278
    %4311 = vst.msk [vmem:[#allocation3 + $0x13] sm:$0x1] %vm3924, %v4279
    %4312 = vst.msk [vmem:[#allocation3 + $0x1b] sm:$0x1] %vm3924, %v4280
    %4313 = vst.msk [vmem:[#allocation3 + $0x23] sm:$0x1] %vm3924, %v4281
    %4314 = vst.msk [vmem:[#allocation3 + $0x2b] sm:$0x1] %vm3924, %v4282
    %4315 = vst.msk [vmem:[#allocation3 + $0x33] sm:$0x1] %vm3924, %v4283
    %4316 = vst.msk [vmem:[#allocation3 + $0x3b] sm:$0x1] %vm3924, %v4284
    %4317 = vst.msk [vmem:[#allocation3 + $0x43] sm:$0x1] %vm3924, %v4285
    %4318 = vst.msk [vmem:[#allocation3 + $0x4b] sm:$0x1] %vm3924, %v4286
    %4319 = vst.msk [vmem:[#allocation3 + $0x53] sm:$0x1] %vm3924, %v4287
    %4320 = vst.msk [vmem:[#allocation3 + $0x5b] sm:$0x1] %vm3924, %v4288
    %4321 = vst.msk [vmem:[#allocation3 + $0x63] sm:$0x1] %vm3924, %v4289
    %4322 = vst.msk [vmem:[#allocation3 + $0x6b] sm:$0x1] %vm3924, %v4290
    %4323 = vst.msk [vmem:[#allocation3 + $0x73] sm:$0x1] %vm3924, %v4291
    %4324 = vst.msk [vmem:[#allocation3 + $0x7b] sm:$0x1] %vm3924, %v4292
    %4325 = vst.msk [vmem:[#allocation3 + $0x83] sm:$0x1] %vm3924, %v4293
    %4326 = vst.msk [vmem:[#allocation3 + $0x8b] sm:$0x1] %vm3924, %v4294
    %4327 = vst.msk [vmem:[#allocation3 + $0x93] sm:$0x1] %vm3924, %v4295
    %4328 = vst.msk [vmem:[#allocation3 + $0x9b] sm:$0x1] %vm3924, %v4296
    %4329 = vst.msk [vmem:[#allocation3 + $0xa3] sm:$0x1] %vm3924, %v4297
    %4330 = vst.msk [vmem:[#allocation3 + $0xab] sm:$0x1] %vm3924, %v4298
    %4331 = vst.msk [vmem:[#allocation3 + $0xb3] sm:$0x1] %vm3924, %v4299
    %4332 = vst.msk [vmem:[#allocation3 + $0xbb] sm:$0x1] %vm3924, %v4300
    %4333 = vst.msk [vmem:[#allocation3 + $0xc3] sm:$0x1] %vm3924, %v4301
    %4334 = vst.msk [vmem:[#allocation3 + $0xcb] sm:$0x1] %vm3924, %v4302
    %4335 = vst.msk [vmem:[#allocation3 + $0xd3] sm:$0x1] %vm3924, %v4303
    %4336 = vst.msk [vmem:[#allocation3 + $0xdb] sm:$0x1] %vm3924, %v4304
    %4337 = vst.msk [vmem:[#allocation3 + $0xe3] sm:$0x1] %vm3924, %v4305
    %4338 = vst.msk [vmem:[#allocation3 + $0xeb] sm:$0x1] %vm3924, %v4306
    %4339 = vst.msk [vmem:[#allocation3 + $0xf3] sm:$0x1] %vm3924, %v4307
    %4340 = vst.msk [vmem:[#allocation3 + $0xfb] sm:$0x1] %vm3924, %v4308
    %v4341 = vld [vmem:[#allocation2 + $0x8] sm:$0x1]
    %v4342 = vld [vmem:[#allocation2 + $0x18] sm:$0x1]
    %v4343 = vld [vmem:[#allocation2 + $0x28] sm:$0x1]
    %v4344 = vld [vmem:[#allocation2 + $0x38] sm:$0x1]
    %v4345 = vld [vmem:[#allocation2 + $0x48] sm:$0x1]
    %v4346 = vld [vmem:[#allocation2 + $0x58] sm:$0x1]
    %v4347 = vld [vmem:[#allocation2 + $0x68] sm:$0x1]
    %v4348 = vld [vmem:[#allocation2 + $0x78] sm:$0x1]
    %v4349 = vld [vmem:[#allocation2 + $0x88] sm:$0x1]
    %v4350 = vld [vmem:[#allocation2 + $0x98] sm:$0x1]
    %v4351 = vld [vmem:[#allocation2 + $0xa8] sm:$0x1]
    %v4352 = vld [vmem:[#allocation2 + $0xb8] sm:$0x1]
    %v4353 = vld [vmem:[#allocation2 + $0xc8] sm:$0x1]
    %v4354 = vld [vmem:[#allocation2 + $0xd8] sm:$0x1]
    %v4355 = vld [vmem:[#allocation2 + $0xe8] sm:$0x1]
    %v4356 = vld [vmem:[#allocation2 + $0xf8] sm:$0x1]
    %v4357 = vld [vmem:[#allocation2 + $0x108] sm:$0x1]
    %v4358 = vld [vmem:[#allocation2 + $0x118] sm:$0x1]
    %v4359 = vld [vmem:[#allocation2 + $0x128] sm:$0x1]
    %v4360 = vld [vmem:[#allocation2 + $0x138] sm:$0x1]
    %v4361 = vld [vmem:[#allocation2 + $0x148] sm:$0x1]
    %v4362 = vld [vmem:[#allocation2 + $0x158] sm:$0x1]
    %v4363 = vld [vmem:[#allocation2 + $0x168] sm:$0x1]
    %v4364 = vld [vmem:[#allocation2 + $0x178] sm:$0x1]
    %v4365 = vld [vmem:[#allocation2 + $0x188] sm:$0x1]
    %v4366 = vld [vmem:[#allocation2 + $0x198] sm:$0x1]
    %v4367 = vld [vmem:[#allocation2 + $0x1a8] sm:$0x1]
    %v4368 = vld [vmem:[#allocation2 + $0x1b8] sm:$0x1]
    %v4369 = vld [vmem:[#allocation2 + $0x1c8] sm:$0x1]
    %v4370 = vld [vmem:[#allocation2 + $0x1d8] sm:$0x1]
    %v4371 = vld [vmem:[#allocation2 + $0x1e8] sm:$0x1]
    %v4372 = vld [vmem:[#allocation2 + $0x1f8] sm:$0x1]
    %v4373 = vld [vmem:[#allocation2 + $0x9] sm:$0x1]
    %v4374 = vld [vmem:[#allocation2 + $0x19] sm:$0x1]
    %v4375 = vld [vmem:[#allocation2 + $0x29] sm:$0x1]
    %v4376 = vld [vmem:[#allocation2 + $0x39] sm:$0x1]
    %v4377 = vld [vmem:[#allocation2 + $0x49] sm:$0x1]
    %v4378 = vld [vmem:[#allocation2 + $0x59] sm:$0x1]
    %v4379 = vld [vmem:[#allocation2 + $0x69] sm:$0x1]
    %v4380 = vld [vmem:[#allocation2 + $0x79] sm:$0x1]
    %v4381 = vld [vmem:[#allocation2 + $0x89] sm:$0x1]
    %v4382 = vld [vmem:[#allocation2 + $0x99] sm:$0x1]
    %v4383 = vld [vmem:[#allocation2 + $0xa9] sm:$0x1]
    %v4384 = vld [vmem:[#allocation2 + $0xb9] sm:$0x1]
    %v4385 = vld [vmem:[#allocation2 + $0xc9] sm:$0x1]
    %v4386 = vld [vmem:[#allocation2 + $0xd9] sm:$0x1]
    %v4387 = vld [vmem:[#allocation2 + $0xe9] sm:$0x1]
    %v4388 = vld [vmem:[#allocation2 + $0xf9] sm:$0x1]
    %v4389 = vld [vmem:[#allocation2 + $0x109] sm:$0x1]
    %v4390 = vld [vmem:[#allocation2 + $0x119] sm:$0x1]
    %v4391 = vld [vmem:[#allocation2 + $0x129] sm:$0x1]
    %v4392 = vld [vmem:[#allocation2 + $0x139] sm:$0x1]
    %v4393 = vld [vmem:[#allocation2 + $0x149] sm:$0x1]
    %v4394 = vld [vmem:[#allocation2 + $0x159] sm:$0x1]
    %v4395 = vld [vmem:[#allocation2 + $0x169] sm:$0x1]
    %v4396 = vld [vmem:[#allocation2 + $0x179] sm:$0x1]
    %v4397 = vld [vmem:[#allocation2 + $0x189] sm:$0x1]
    %v4398 = vld [vmem:[#allocation2 + $0x199] sm:$0x1]
    %v4399 = vld [vmem:[#allocation2 + $0x1a9] sm:$0x1]
    %v4400 = vld [vmem:[#allocation2 + $0x1b9] sm:$0x1]
    %v4401 = vld [vmem:[#allocation2 + $0x1c9] sm:$0x1]
    %v4402 = vld [vmem:[#allocation2 + $0x1d9] sm:$0x1]
    %v4403 = vld [vmem:[#allocation2 + $0x1e9] sm:$0x1]
    %v4404 = vld [vmem:[#allocation2 + $0x1f9] sm:$0x1]
    %v4405 = vmax.f32 %v4341, %v4373
    %v4406 = vmax.f32 %v4342, %v4374
    %v4407 = vmax.f32 %v4343, %v4375
    %v4408 = vmax.f32 %v4344, %v4376
    %v4409 = vmax.f32 %v4345, %v4377
    %v4410 = vmax.f32 %v4346, %v4378
    %v4411 = vmax.f32 %v4347, %v4379
    %v4412 = vmax.f32 %v4348, %v4380
    %v4413 = vmax.f32 %v4349, %v4381
    %v4414 = vmax.f32 %v4350, %v4382
    %v4415 = vmax.f32 %v4351, %v4383
    %v4416 = vmax.f32 %v4352, %v4384
    %v4417 = vmax.f32 %v4353, %v4385
    %v4418 = vmax.f32 %v4354, %v4386
    %v4419 = vmax.f32 %v4355, %v4387
    %v4420 = vmax.f32 %v4356, %v4388
    %v4421 = vmax.f32 %v4357, %v4389
    %v4422 = vmax.f32 %v4358, %v4390
    %v4423 = vmax.f32 %v4359, %v4391
    %v4424 = vmax.f32 %v4360, %v4392
    %v4425 = vmax.f32 %v4361, %v4393
    %v4426 = vmax.f32 %v4362, %v4394
    %v4427 = vmax.f32 %v4363, %v4395
    %v4428 = vmax.f32 %v4364, %v4396
    %v4429 = vmax.f32 %v4365, %v4397
    %v4430 = vmax.f32 %v4366, %v4398
    %v4431 = vmax.f32 %v4367, %v4399
    %v4432 = vmax.f32 %v4368, %v4400
    %v4433 = vmax.f32 %v4369, %v4401
    %v4434 = vmax.f32 %v4370, %v4402
    %v4435 = vmax.f32 %v4371, %v4403
    %v4436 = vmax.f32 %v4372, %v4404
    %4437 = vst.msk [vmem:[#allocation3 + $0x4] sm:$0x1] %vm3924, %v4405
    %4438 = vst.msk [vmem:[#allocation3 + $0xc] sm:$0x1] %vm3924, %v4406
    %4439 = vst.msk [vmem:[#allocation3 + $0x14] sm:$0x1] %vm3924, %v4407
    %4440 = vst.msk [vmem:[#allocation3 + $0x1c] sm:$0x1] %vm3924, %v4408
    %4441 = vst.msk [vmem:[#allocation3 + $0x24] sm:$0x1] %vm3924, %v4409
    %4442 = vst.msk [vmem:[#allocation3 + $0x2c] sm:$0x1] %vm3924, %v4410
    %4443 = vst.msk [vmem:[#allocation3 + $0x34] sm:$0x1] %vm3924, %v4411
    %4444 = vst.msk [vmem:[#allocation3 + $0x3c] sm:$0x1] %vm3924, %v4412
    %4445 = vst.msk [vmem:[#allocation3 + $0x44] sm:$0x1] %vm3924, %v4413
    %4446 = vst.msk [vmem:[#allocation3 + $0x4c] sm:$0x1] %vm3924, %v4414
    %4447 = vst.msk [vmem:[#allocation3 + $0x54] sm:$0x1] %vm3924, %v4415
    %4448 = vst.msk [vmem:[#allocation3 + $0x5c] sm:$0x1] %vm3924, %v4416
    %4449 = vst.msk [vmem:[#allocation3 + $0x64] sm:$0x1] %vm3924, %v4417
    %4450 = vst.msk [vmem:[#allocation3 + $0x6c] sm:$0x1] %vm3924, %v4418
    %4451 = vst.msk [vmem:[#allocation3 + $0x74] sm:$0x1] %vm3924, %v4419
    %4452 = vst.msk [vmem:[#allocation3 + $0x7c] sm:$0x1] %vm3924, %v4420
    %4453 = vst.msk [vmem:[#allocation3 + $0x84] sm:$0x1] %vm3924, %v4421
    %4454 = vst.msk [vmem:[#allocation3 + $0x8c] sm:$0x1] %vm3924, %v4422
    %4455 = vst.msk [vmem:[#allocation3 + $0x94] sm:$0x1] %vm3924, %v4423
    %4456 = vst.msk [vmem:[#allocation3 + $0x9c] sm:$0x1] %vm3924, %v4424
    %4457 = vst.msk [vmem:[#allocation3 + $0xa4] sm:$0x1] %vm3924, %v4425
    %4458 = vst.msk [vmem:[#allocation3 + $0xac] sm:$0x1] %vm3924, %v4426
    %4459 = vst.msk [vmem:[#allocation3 + $0xb4] sm:$0x1] %vm3924, %v4427
    %4460 = vst.msk [vmem:[#allocation3 + $0xbc] sm:$0x1] %vm3924, %v4428
    %4461 = vst.msk [vmem:[#allocation3 + $0xc4] sm:$0x1] %vm3924, %v4429
    %4462 = vst.msk [vmem:[#allocation3 + $0xcc] sm:$0x1] %vm3924, %v4430
    %4463 = vst.msk [vmem:[#allocation3 + $0xd4] sm:$0x1] %vm3924, %v4431
    %4464 = vst.msk [vmem:[#allocation3 + $0xdc] sm:$0x1] %vm3924, %v4432
    %4465 = vst.msk [vmem:[#allocation3 + $0xe4] sm:$0x1] %vm3924, %v4433
    %4466 = vst.msk [vmem:[#allocation3 + $0xec] sm:$0x1] %vm3924, %v4434
    %4467 = vst.msk [vmem:[#allocation3 + $0xf4] sm:$0x1] %vm3924, %v4435
    %4468 = vst.msk [vmem:[#allocation3 + $0xfc] sm:$0x1] %vm3924, %v4436
    %v4469 = vld [vmem:[#allocation2 + $0xa] sm:$0x1]
    %v4470 = vld [vmem:[#allocation2 + $0x1a] sm:$0x1]
    %v4471 = vld [vmem:[#allocation2 + $0x2a] sm:$0x1]
    %v4472 = vld [vmem:[#allocation2 + $0x3a] sm:$0x1]
    %v4473 = vld [vmem:[#allocation2 + $0x4a] sm:$0x1]
    %v4474 = vld [vmem:[#allocation2 + $0x5a] sm:$0x1]
    %v4475 = vld [vmem:[#allocation2 + $0x6a] sm:$0x1]
    %v4476 = vld [vmem:[#allocation2 + $0x7a] sm:$0x1]
    %v4477 = vld [vmem:[#allocation2 + $0x8a] sm:$0x1]
    %v4478 = vld [vmem:[#allocation2 + $0x9a] sm:$0x1]
    %v4479 = vld [vmem:[#allocation2 + $0xaa] sm:$0x1]
    %v4480 = vld [vmem:[#allocation2 + $0xba] sm:$0x1]
    %v4481 = vld [vmem:[#allocation2 + $0xca] sm:$0x1]
    %v4482 = vld [vmem:[#allocation2 + $0xda] sm:$0x1]
    %v4483 = vld [vmem:[#allocation2 + $0xea] sm:$0x1]
    %v4484 = vld [vmem:[#allocation2 + $0xfa] sm:$0x1]
    %v4485 = vld [vmem:[#allocation2 + $0x10a] sm:$0x1]
    %v4486 = vld [vmem:[#allocation2 + $0x11a] sm:$0x1]
    %v4487 = vld [vmem:[#allocation2 + $0x12a] sm:$0x1]
    %v4488 = vld [vmem:[#allocation2 + $0x13a] sm:$0x1]
    %v4489 = vld [vmem:[#allocation2 + $0x14a] sm:$0x1]
    %v4490 = vld [vmem:[#allocation2 + $0x15a] sm:$0x1]
    %v4491 = vld [vmem:[#allocation2 + $0x16a] sm:$0x1]
    %v4492 = vld [vmem:[#allocation2 + $0x17a] sm:$0x1]
    %v4493 = vld [vmem:[#allocation2 + $0x18a] sm:$0x1]
    %v4494 = vld [vmem:[#allocation2 + $0x19a] sm:$0x1]
    %v4495 = vld [vmem:[#allocation2 + $0x1aa] sm:$0x1]
    %v4496 = vld [vmem:[#allocation2 + $0x1ba] sm:$0x1]
    %v4497 = vld [vmem:[#allocation2 + $0x1ca] sm:$0x1]
    %v4498 = vld [vmem:[#allocation2 + $0x1da] sm:$0x1]
    %v4499 = vld [vmem:[#allocation2 + $0x1ea] sm:$0x1]
    %v4500 = vld [vmem:[#allocation2 + $0x1fa] sm:$0x1]
    %v4501 = vld [vmem:[#allocation2 + $0xb] sm:$0x1]
    %v4502 = vld [vmem:[#allocation2 + $0x1b] sm:$0x1]
    %v4503 = vld [vmem:[#allocation2 + $0x2b] sm:$0x1]
    %v4504 = vld [vmem:[#allocation2 + $0x3b] sm:$0x1]
    %v4505 = vld [vmem:[#allocation2 + $0x4b] sm:$0x1]
    %v4506 = vld [vmem:[#allocation2 + $0x5b] sm:$0x1]
    %v4507 = vld [vmem:[#allocation2 + $0x6b] sm:$0x1]
    %v4508 = vld [vmem:[#allocation2 + $0x7b] sm:$0x1]
    %v4509 = vld [vmem:[#allocation2 + $0x8b] sm:$0x1]
    %v4510 = vld [vmem:[#allocation2 + $0x9b] sm:$0x1]
    %v4511 = vld [vmem:[#allocation2 + $0xab] sm:$0x1]
    %v4512 = vld [vmem:[#allocation2 + $0xbb] sm:$0x1]
    %v4513 = vld [vmem:[#allocation2 + $0xcb] sm:$0x1]
    %v4514 = vld [vmem:[#allocation2 + $0xdb] sm:$0x1]
    %v4515 = vld [vmem:[#allocation2 + $0xeb] sm:$0x1]
    %v4516 = vld [vmem:[#allocation2 + $0xfb] sm:$0x1]
    %v4517 = vld [vmem:[#allocation2 + $0x10b] sm:$0x1]
    %v4518 = vld [vmem:[#allocation2 + $0x11b] sm:$0x1]
    %v4519 = vld [vmem:[#allocation2 + $0x12b] sm:$0x1]
    %v4520 = vld [vmem:[#allocation2 + $0x13b] sm:$0x1]
    %v4521 = vld [vmem:[#allocation2 + $0x14b] sm:$0x1]
    %v4522 = vld [vmem:[#allocation2 + $0x15b] sm:$0x1]
    %v4523 = vld [vmem:[#allocation2 + $0x16b] sm:$0x1]
    %v4524 = vld [vmem:[#allocation2 + $0x17b] sm:$0x1]
    %v4525 = vld [vmem:[#allocation2 + $0x18b] sm:$0x1]
    %v4526 = vld [vmem:[#allocation2 + $0x19b] sm:$0x1]
    %v4527 = vld [vmem:[#allocation2 + $0x1ab] sm:$0x1]
    %v4528 = vld [vmem:[#allocation2 + $0x1bb] sm:$0x1]
    %v4529 = vld [vmem:[#allocation2 + $0x1cb] sm:$0x1]
    %v4530 = vld [vmem:[#allocation2 + $0x1db] sm:$0x1]
    %v4531 = vld [vmem:[#allocation2 + $0x1eb] sm:$0x1]
    %v4532 = vld [vmem:[#allocation2 + $0x1fb] sm:$0x1]
    %v4533 = vmax.f32 %v4469, %v4501
    %v4534 = vmax.f32 %v4470, %v4502
    %v4535 = vmax.f32 %v4471, %v4503
    %v4536 = vmax.f32 %v4472, %v4504
    %v4537 = vmax.f32 %v4473, %v4505
    %v4538 = vmax.f32 %v4474, %v4506
    %v4539 = vmax.f32 %v4475, %v4507
    %v4540 = vmax.f32 %v4476, %v4508
    %v4541 = vmax.f32 %v4477, %v4509
    %v4542 = vmax.f32 %v4478, %v4510
    %v4543 = vmax.f32 %v4479, %v4511
    %v4544 = vmax.f32 %v4480, %v4512
    %v4545 = vmax.f32 %v4481, %v4513
    %v4546 = vmax.f32 %v4482, %v4514
    %v4547 = vmax.f32 %v4483, %v4515
    %v4548 = vmax.f32 %v4484, %v4516
    %v4549 = vmax.f32 %v4485, %v4517
    %v4550 = vmax.f32 %v4486, %v4518
    %v4551 = vmax.f32 %v4487, %v4519
    %v4552 = vmax.f32 %v4488, %v4520
    %v4553 = vmax.f32 %v4489, %v4521
    %v4554 = vmax.f32 %v4490, %v4522
    %v4555 = vmax.f32 %v4491, %v4523
    %v4556 = vmax.f32 %v4492, %v4524
    %v4557 = vmax.f32 %v4493, %v4525
    %v4558 = vmax.f32 %v4494, %v4526
    %v4559 = vmax.f32 %v4495, %v4527
    %v4560 = vmax.f32 %v4496, %v4528
    %v4561 = vmax.f32 %v4497, %v4529
    %v4562 = vmax.f32 %v4498, %v4530
    %v4563 = vmax.f32 %v4499, %v4531
    %v4564 = vmax.f32 %v4500, %v4532
    %4565 = vst.msk [vmem:[#allocation3 + $0x5] sm:$0x1] %vm3924, %v4533
    %4566 = vst.msk [vmem:[#allocation3 + $0xd] sm:$0x1] %vm3924, %v4534
    %4567 = vst.msk [vmem:[#allocation3 + $0x15] sm:$0x1] %vm3924, %v4535
    %4568 = vst.msk [vmem:[#allocation3 + $0x1d] sm:$0x1] %vm3924, %v4536
    %4569 = vst.msk [vmem:[#allocation3 + $0x25] sm:$0x1] %vm3924, %v4537
    %4570 = vst.msk [vmem:[#allocation3 + $0x2d] sm:$0x1] %vm3924, %v4538
    %4571 = vst.msk [vmem:[#allocation3 + $0x35] sm:$0x1] %vm3924, %v4539
    %4572 = vst.msk [vmem:[#allocation3 + $0x3d] sm:$0x1] %vm3924, %v4540
    %4573 = vst.msk [vmem:[#allocation3 + $0x45] sm:$0x1] %vm3924, %v4541
    %4574 = vst.msk [vmem:[#allocation3 + $0x4d] sm:$0x1] %vm3924, %v4542
    %4575 = vst.msk [vmem:[#allocation3 + $0x55] sm:$0x1] %vm3924, %v4543
    %4576 = vst.msk [vmem:[#allocation3 + $0x5d] sm:$0x1] %vm3924, %v4544
    %4577 = vst.msk [vmem:[#allocation3 + $0x65] sm:$0x1] %vm3924, %v4545
    %4578 = vst.msk [vmem:[#allocation3 + $0x6d] sm:$0x1] %vm3924, %v4546
    %4579 = vst.msk [vmem:[#allocation3 + $0x75] sm:$0x1] %vm3924, %v4547
    %4580 = vst.msk [vmem:[#allocation3 + $0x7d] sm:$0x1] %vm3924, %v4548
    %4581 = vst.msk [vmem:[#allocation3 + $0x85] sm:$0x1] %vm3924, %v4549
    %4582 = vst.msk [vmem:[#allocation3 + $0x8d] sm:$0x1] %vm3924, %v4550
    %4583 = vst.msk [vmem:[#allocation3 + $0x95] sm:$0x1] %vm3924, %v4551
    %4584 = vst.msk [vmem:[#allocation3 + $0x9d] sm:$0x1] %vm3924, %v4552
    %4585 = vst.msk [vmem:[#allocation3 + $0xa5] sm:$0x1] %vm3924, %v4553
    %4586 = vst.msk [vmem:[#allocation3 + $0xad] sm:$0x1] %vm3924, %v4554
    %4587 = vst.msk [vmem:[#allocation3 + $0xb5] sm:$0x1] %vm3924, %v4555
    %4588 = vst.msk [vmem:[#allocation3 + $0xbd] sm:$0x1] %vm3924, %v4556
    %4589 = vst.msk [vmem:[#allocation3 + $0xc5] sm:$0x1] %vm3924, %v4557
    %4590 = vst.msk [vmem:[#allocation3 + $0xcd] sm:$0x1] %vm3924, %v4558
    %4591 = vst.msk [vmem:[#allocation3 + $0xd5] sm:$0x1] %vm3924, %v4559
    %4592 = vst.msk [vmem:[#allocation3 + $0xdd] sm:$0x1] %vm3924, %v4560
    %4593 = vst.msk [vmem:[#allocation3 + $0xe5] sm:$0x1] %vm3924, %v4561
    %4594 = vst.msk [vmem:[#allocation3 + $0xed] sm:$0x1] %vm3924, %v4562
    %4595 = vst.msk [vmem:[#allocation3 + $0xf5] sm:$0x1] %vm3924, %v4563
    %4596 = vst.msk [vmem:[#allocation3 + $0xfd] sm:$0x1] %vm3924, %v4564
    %v4597 = vld [vmem:[#allocation2 + $0xc] sm:$0x1]
    %v4598 = vld [vmem:[#allocation2 + $0x1c] sm:$0x1]
    %v4599 = vld [vmem:[#allocation2 + $0x2c] sm:$0x1]
    %v4600 = vld [vmem:[#allocation2 + $0x3c] sm:$0x1]
    %v4601 = vld [vmem:[#allocation2 + $0x4c] sm:$0x1]
    %v4602 = vld [vmem:[#allocation2 + $0x5c] sm:$0x1]
    %v4603 = vld [vmem:[#allocation2 + $0x6c] sm:$0x1]
    %v4604 = vld [vmem:[#allocation2 + $0x7c] sm:$0x1]
    %v4605 = vld [vmem:[#allocation2 + $0x8c] sm:$0x1]
    %v4606 = vld [vmem:[#allocation2 + $0x9c] sm:$0x1]
    %v4607 = vld [vmem:[#allocation2 + $0xac] sm:$0x1]
    %v4608 = vld [vmem:[#allocation2 + $0xbc] sm:$0x1]
    %v4609 = vld [vmem:[#allocation2 + $0xcc] sm:$0x1]
    %v4610 = vld [vmem:[#allocation2 + $0xdc] sm:$0x1]
    %v4611 = vld [vmem:[#allocation2 + $0xec] sm:$0x1]
    %v4612 = vld [vmem:[#allocation2 + $0xfc] sm:$0x1]
    %v4613 = vld [vmem:[#allocation2 + $0x10c] sm:$0x1]
    %v4614 = vld [vmem:[#allocation2 + $0x11c] sm:$0x1]
    %v4615 = vld [vmem:[#allocation2 + $0x12c] sm:$0x1]
    %v4616 = vld [vmem:[#allocation2 + $0x13c] sm:$0x1]
    %v4617 = vld [vmem:[#allocation2 + $0x14c] sm:$0x1]
    %v4618 = vld [vmem:[#allocation2 + $0x15c] sm:$0x1]
    %v4619 = vld [vmem:[#allocation2 + $0x16c] sm:$0x1]
    %v4620 = vld [vmem:[#allocation2 + $0x17c] sm:$0x1]
    %v4621 = vld [vmem:[#allocation2 + $0x18c] sm:$0x1]
    %v4622 = vld [vmem:[#allocation2 + $0x19c] sm:$0x1]
    %v4623 = vld [vmem:[#allocation2 + $0x1ac] sm:$0x1]
    %v4624 = vld [vmem:[#allocation2 + $0x1bc] sm:$0x1]
    %v4625 = vld [vmem:[#allocation2 + $0x1cc] sm:$0x1]
    %v4626 = vld [vmem:[#allocation2 + $0x1dc] sm:$0x1]
    %v4627 = vld [vmem:[#allocation2 + $0x1ec] sm:$0x1]
    %v4628 = vld [vmem:[#allocation2 + $0x1fc] sm:$0x1]
    %v4629 = vld [vmem:[#allocation2 + $0xd] sm:$0x1]
    %v4630 = vld [vmem:[#allocation2 + $0x1d] sm:$0x1]
    %v4631 = vld [vmem:[#allocation2 + $0x2d] sm:$0x1]
    %v4632 = vld [vmem:[#allocation2 + $0x3d] sm:$0x1]
    %v4633 = vld [vmem:[#allocation2 + $0x4d] sm:$0x1]
    %v4634 = vld [vmem:[#allocation2 + $0x5d] sm:$0x1]
    %v4635 = vld [vmem:[#allocation2 + $0x6d] sm:$0x1]
    %v4636 = vld [vmem:[#allocation2 + $0x7d] sm:$0x1]
    %v4637 = vld [vmem:[#allocation2 + $0x8d] sm:$0x1]
    %v4638 = vld [vmem:[#allocation2 + $0x9d] sm:$0x1]
    %v4639 = vld [vmem:[#allocation2 + $0xad] sm:$0x1]
    %v4640 = vld [vmem:[#allocation2 + $0xbd] sm:$0x1]
    %v4641 = vld [vmem:[#allocation2 + $0xcd] sm:$0x1]
    %v4642 = vld [vmem:[#allocation2 + $0xdd] sm:$0x1]
    %v4643 = vld [vmem:[#allocation2 + $0xed] sm:$0x1]
    %v4644 = vld [vmem:[#allocation2 + $0xfd] sm:$0x1]
    %v4645 = vld [vmem:[#allocation2 + $0x10d] sm:$0x1]
    %v4646 = vld [vmem:[#allocation2 + $0x11d] sm:$0x1]
    %v4647 = vld [vmem:[#allocation2 + $0x12d] sm:$0x1]
    %v4648 = vld [vmem:[#allocation2 + $0x13d] sm:$0x1]
    %v4649 = vld [vmem:[#allocation2 + $0x14d] sm:$0x1]
    %v4650 = vld [vmem:[#allocation2 + $0x15d] sm:$0x1]
    %v4651 = vld [vmem:[#allocation2 + $0x16d] sm:$0x1]
    %v4652 = vld [vmem:[#allocation2 + $0x17d] sm:$0x1]
    %v4653 = vld [vmem:[#allocation2 + $0x18d] sm:$0x1]
    %v4654 = vld [vmem:[#allocation2 + $0x19d] sm:$0x1]
    %v4655 = vld [vmem:[#allocation2 + $0x1ad] sm:$0x1]
    %v4656 = vld [vmem:[#allocation2 + $0x1bd] sm:$0x1]
    %v4657 = vld [vmem:[#allocation2 + $0x1cd] sm:$0x1]
    %v4658 = vld [vmem:[#allocation2 + $0x1dd] sm:$0x1]
    %v4659 = vld [vmem:[#allocation2 + $0x1ed] sm:$0x1]
    %v4660 = vld [vmem:[#allocation2 + $0x1fd] sm:$0x1]
    %v4661 = vmax.f32 %v4597, %v4629
    %v4662 = vmax.f32 %v4598, %v4630
    %v4663 = vmax.f32 %v4599, %v4631
    %v4664 = vmax.f32 %v4600, %v4632
    %v4665 = vmax.f32 %v4601, %v4633
    %v4666 = vmax.f32 %v4602, %v4634
    %v4667 = vmax.f32 %v4603, %v4635
    %v4668 = vmax.f32 %v4604, %v4636
    %v4669 = vmax.f32 %v4605, %v4637
    %v4670 = vmax.f32 %v4606, %v4638
    %v4671 = vmax.f32 %v4607, %v4639
    %v4672 = vmax.f32 %v4608, %v4640
    %v4673 = vmax.f32 %v4609, %v4641
    %v4674 = vmax.f32 %v4610, %v4642
    %v4675 = vmax.f32 %v4611, %v4643
    %v4676 = vmax.f32 %v4612, %v4644
    %v4677 = vmax.f32 %v4613, %v4645
    %v4678 = vmax.f32 %v4614, %v4646
    %v4679 = vmax.f32 %v4615, %v4647
    %v4680 = vmax.f32 %v4616, %v4648
    %v4681 = vmax.f32 %v4617, %v4649
    %v4682 = vmax.f32 %v4618, %v4650
    %v4683 = vmax.f32 %v4619, %v4651
    %v4684 = vmax.f32 %v4620, %v4652
    %v4685 = vmax.f32 %v4621, %v4653
    %v4686 = vmax.f32 %v4622, %v4654
    %v4687 = vmax.f32 %v4623, %v4655
    %v4688 = vmax.f32 %v4624, %v4656
    %v4689 = vmax.f32 %v4625, %v4657
    %v4690 = vmax.f32 %v4626, %v4658
    %v4691 = vmax.f32 %v4627, %v4659
    %v4692 = vmax.f32 %v4628, %v4660
    %4693 = vst.msk [vmem:[#allocation3 + $0x6] sm:$0x1] %vm3924, %v4661
    %4694 = vst.msk [vmem:[#allocation3 + $0xe] sm:$0x1] %vm3924, %v4662
    %4695 = vst.msk [vmem:[#allocation3 + $0x16] sm:$0x1] %vm3924, %v4663
    %4696 = vst.msk [vmem:[#allocation3 + $0x1e] sm:$0x1] %vm3924, %v4664
    %4697 = vst.msk [vmem:[#allocation3 + $0x26] sm:$0x1] %vm3924, %v4665
    %4698 = vst.msk [vmem:[#allocation3 + $0x2e] sm:$0x1] %vm3924, %v4666
    %4699 = vst.msk [vmem:[#allocation3 + $0x36] sm:$0x1] %vm3924, %v4667
    %4700 = vst.msk [vmem:[#allocation3 + $0x3e] sm:$0x1] %vm3924, %v4668
    %4701 = vst.msk [vmem:[#allocation3 + $0x46] sm:$0x1] %vm3924, %v4669
    %4702 = vst.msk [vmem:[#allocation3 + $0x4e] sm:$0x1] %vm3924, %v4670
    %4703 = vst.msk [vmem:[#allocation3 + $0x56] sm:$0x1] %vm3924, %v4671
    %4704 = vst.msk [vmem:[#allocation3 + $0x5e] sm:$0x1] %vm3924, %v4672
    %4705 = vst.msk [vmem:[#allocation3 + $0x66] sm:$0x1] %vm3924, %v4673
    %4706 = vst.msk [vmem:[#allocation3 + $0x6e] sm:$0x1] %vm3924, %v4674
    %4707 = vst.msk [vmem:[#allocation3 + $0x76] sm:$0x1] %vm3924, %v4675
    %4708 = vst.msk [vmem:[#allocation3 + $0x7e] sm:$0x1] %vm3924, %v4676
    %4709 = vst.msk [vmem:[#allocation3 + $0x86] sm:$0x1] %vm3924, %v4677
    %4710 = vst.msk [vmem:[#allocation3 + $0x8e] sm:$0x1] %vm3924, %v4678
    %4711 = vst.msk [vmem:[#allocation3 + $0x96] sm:$0x1] %vm3924, %v4679
    %4712 = vst.msk [vmem:[#allocation3 + $0x9e] sm:$0x1] %vm3924, %v4680
    %4713 = vst.msk [vmem:[#allocation3 + $0xa6] sm:$0x1] %vm3924, %v4681
    %4714 = vst.msk [vmem:[#allocation3 + $0xae] sm:$0x1] %vm3924, %v4682
    %4715 = vst.msk [vmem:[#allocation3 + $0xb6] sm:$0x1] %vm3924, %v4683
    %4716 = vst.msk [vmem:[#allocation3 + $0xbe] sm:$0x1] %vm3924, %v4684
    %4717 = vst.msk [vmem:[#allocation3 + $0xc6] sm:$0x1] %vm3924, %v4685
    %4718 = vst.msk [vmem:[#allocation3 + $0xce] sm:$0x1] %vm3924, %v4686
    %4719 = vst.msk [vmem:[#allocation3 + $0xd6] sm:$0x1] %vm3924, %v4687
    %4720 = vst.msk [vmem:[#allocation3 + $0xde] sm:$0x1] %vm3924, %v4688
    %4721 = vst.msk [vmem:[#allocation3 + $0xe6] sm:$0x1] %vm3924, %v4689
    %4722 = vst.msk [vmem:[#allocation3 + $0xee] sm:$0x1] %vm3924, %v4690
    %4723 = vst.msk [vmem:[#allocation3 + $0xf6] sm:$0x1] %vm3924, %v4691
    %4724 = vst.msk [vmem:[#allocation3 + $0xfe] sm:$0x1] %vm3924, %v4692
    %v4725 = vld [vmem:[#allocation2 + $0xe] sm:$0x1]
    %v4726 = vld [vmem:[#allocation2 + $0x1e] sm:$0x1]
    %v4727 = vld [vmem:[#allocation2 + $0x2e] sm:$0x1]
    %v4728 = vld [vmem:[#allocation2 + $0x3e] sm:$0x1]
    %v4729 = vld [vmem:[#allocation2 + $0x4e] sm:$0x1]
    %v4730 = vld [vmem:[#allocation2 + $0x5e] sm:$0x1]
    %v4731 = vld [vmem:[#allocation2 + $0x6e] sm:$0x1]
    %v4732 = vld [vmem:[#allocation2 + $0x7e] sm:$0x1]
    %v4733 = vld [vmem:[#allocation2 + $0x8e] sm:$0x1]
    %v4734 = vld [vmem:[#allocation2 + $0x9e] sm:$0x1]
    %v4735 = vld [vmem:[#allocation2 + $0xae] sm:$0x1]
    %v4736 = vld [vmem:[#allocation2 + $0xbe] sm:$0x1]
    %v4737 = vld [vmem:[#allocation2 + $0xce] sm:$0x1]
    %v4738 = vld [vmem:[#allocation2 + $0xde] sm:$0x1]
    %v4739 = vld [vmem:[#allocation2 + $0xee] sm:$0x1]
    %v4740 = vld [vmem:[#allocation2 + $0xfe] sm:$0x1]
    %v4741 = vld [vmem:[#allocation2 + $0x10e] sm:$0x1]
    %v4742 = vld [vmem:[#allocation2 + $0x11e] sm:$0x1]
    %v4743 = vld [vmem:[#allocation2 + $0x12e] sm:$0x1]
    %v4744 = vld [vmem:[#allocation2 + $0x13e] sm:$0x1]
    %v4745 = vld [vmem:[#allocation2 + $0x14e] sm:$0x1]
    %v4746 = vld [vmem:[#allocation2 + $0x15e] sm:$0x1]
    %v4747 = vld [vmem:[#allocation2 + $0x16e] sm:$0x1]
    %v4748 = vld [vmem:[#allocation2 + $0x17e] sm:$0x1]
    %v4749 = vld [vmem:[#allocation2 + $0x18e] sm:$0x1]
    %v4750 = vld [vmem:[#allocation2 + $0x19e] sm:$0x1]
    %v4751 = vld [vmem:[#allocation2 + $0x1ae] sm:$0x1]
    %v4752 = vld [vmem:[#allocation2 + $0x1be] sm:$0x1]
    %v4753 = vld [vmem:[#allocation2 + $0x1ce] sm:$0x1]
    %v4754 = vld [vmem:[#allocation2 + $0x1de] sm:$0x1]
    %v4755 = vld [vmem:[#allocation2 + $0x1ee] sm:$0x1]
    %v4756 = vld [vmem:[#allocation2 + $0x1fe] sm:$0x1]
    %v4757 = vld [vmem:[#allocation2 + $0xf] sm:$0x1]
    %v4758 = vld [vmem:[#allocation2 + $0x1f] sm:$0x1]
    %v4759 = vld [vmem:[#allocation2 + $0x2f] sm:$0x1]
    %v4760 = vld [vmem:[#allocation2 + $0x3f] sm:$0x1]
    %v4761 = vld [vmem:[#allocation2 + $0x4f] sm:$0x1]
    %v4762 = vld [vmem:[#allocation2 + $0x5f] sm:$0x1]
    %v4763 = vld [vmem:[#allocation2 + $0x6f] sm:$0x1]
    %v4764 = vld [vmem:[#allocation2 + $0x7f] sm:$0x1]
    %v4765 = vld [vmem:[#allocation2 + $0x8f] sm:$0x1]
    %v4766 = vld [vmem:[#allocation2 + $0x9f] sm:$0x1]
    %v4767 = vld [vmem:[#allocation2 + $0xaf] sm:$0x1]
    %v4768 = vld [vmem:[#allocation2 + $0xbf] sm:$0x1]
    %v4769 = vld [vmem:[#allocation2 + $0xcf] sm:$0x1]
    %v4770 = vld [vmem:[#allocation2 + $0xdf] sm:$0x1]
    %v4771 = vld [vmem:[#allocation2 + $0xef] sm:$0x1]
    %v4772 = vld [vmem:[#allocation2 + $0xff] sm:$0x1]
    %v4773 = vld [vmem:[#allocation2 + $0x10f] sm:$0x1]
    %v4774 = vld [vmem:[#allocation2 + $0x11f] sm:$0x1]
    %v4775 = vld [vmem:[#allocation2 + $0x12f] sm:$0x1]
    %v4776 = vld [vmem:[#allocation2 + $0x13f] sm:$0x1]
    %v4777 = vld [vmem:[#allocation2 + $0x14f] sm:$0x1]
    %v4778 = vld [vmem:[#allocation2 + $0x15f] sm:$0x1]
    %v4779 = vld [vmem:[#allocation2 + $0x16f] sm:$0x1]
    %v4780 = vld [vmem:[#allocation2 + $0x17f] sm:$0x1]
    %v4781 = vld [vmem:[#allocation2 + $0x18f] sm:$0x1]
    %v4782 = vld [vmem:[#allocation2 + $0x19f] sm:$0x1]
    %v4783 = vld [vmem:[#allocation2 + $0x1af] sm:$0x1]
    %v4784 = vld [vmem:[#allocation2 + $0x1bf] sm:$0x1]
    %v4785 = vld [vmem:[#allocation2 + $0x1cf] sm:$0x1]
    %v4786 = vld [vmem:[#allocation2 + $0x1df] sm:$0x1]
    %v4787 = vld [vmem:[#allocation2 + $0x1ef] sm:$0x1]
    %v4788 = vld [vmem:[#allocation2 + $0x1ff] sm:$0x1]
    %v4789 = vmax.f32 %v4725, %v4757
    %v4790 = vmax.f32 %v4726, %v4758
    %v4791 = vmax.f32 %v4727, %v4759
    %v4792 = vmax.f32 %v4728, %v4760
    %v4793 = vmax.f32 %v4729, %v4761
    %v4794 = vmax.f32 %v4730, %v4762
    %v4795 = vmax.f32 %v4731, %v4763
    %v4796 = vmax.f32 %v4732, %v4764
    %v4797 = vmax.f32 %v4733, %v4765
    %v4798 = vmax.f32 %v4734, %v4766
    %v4799 = vmax.f32 %v4735, %v4767
    %v4800 = vmax.f32 %v4736, %v4768
    %v4801 = vmax.f32 %v4737, %v4769
    %v4802 = vmax.f32 %v4738, %v4770
    %v4803 = vmax.f32 %v4739, %v4771
    %v4804 = vmax.f32 %v4740, %v4772
    %v4805 = vmax.f32 %v4741, %v4773
    %v4806 = vmax.f32 %v4742, %v4774
    %v4807 = vmax.f32 %v4743, %v4775
    %v4808 = vmax.f32 %v4744, %v4776
    %v4809 = vmax.f32 %v4745, %v4777
    %v4810 = vmax.f32 %v4746, %v4778
    %v4811 = vmax.f32 %v4747, %v4779
    %v4812 = vmax.f32 %v4748, %v4780
    %v4813 = vmax.f32 %v4749, %v4781
    %v4814 = vmax.f32 %v4750, %v4782
    %v4815 = vmax.f32 %v4751, %v4783
    %v4816 = vmax.f32 %v4752, %v4784
    %v4817 = vmax.f32 %v4753, %v4785
    %v4818 = vmax.f32 %v4754, %v4786
    %v4819 = vmax.f32 %v4755, %v4787
    %v4820 = vmax.f32 %v4756, %v4788
    %4821 = vst.msk [vmem:[#allocation3 + $0x7] sm:$0x1] %vm3924, %v4789
    %4822 = vst.msk [vmem:[#allocation3 + $0xf] sm:$0x1] %vm3924, %v4790
    %4823 = vst.msk [vmem:[#allocation3 + $0x17] sm:$0x1] %vm3924, %v4791
    %4824 = vst.msk [vmem:[#allocation3 + $0x1f] sm:$0x1] %vm3924, %v4792
    %4825 = vst.msk [vmem:[#allocation3 + $0x27] sm:$0x1] %vm3924, %v4793
    %4826 = vst.msk [vmem:[#allocation3 + $0x2f] sm:$0x1] %vm3924, %v4794
    %4827 = vst.msk [vmem:[#allocation3 + $0x37] sm:$0x1] %vm3924, %v4795
    %4828 = vst.msk [vmem:[#allocation3 + $0x3f] sm:$0x1] %vm3924, %v4796
    %4829 = vst.msk [vmem:[#allocation3 + $0x47] sm:$0x1] %vm3924, %v4797
    %4830 = vst.msk [vmem:[#allocation3 + $0x4f] sm:$0x1] %vm3924, %v4798
    %4831 = vst.msk [vmem:[#allocation3 + $0x57] sm:$0x1] %vm3924, %v4799
    %4832 = vst.msk [vmem:[#allocation3 + $0x5f] sm:$0x1] %vm3924, %v4800
    %4833 = vst.msk [vmem:[#allocation3 + $0x67] sm:$0x1] %vm3924, %v4801
    %4834 = vst.msk [vmem:[#allocation3 + $0x6f] sm:$0x1] %vm3924, %v4802
    %4835 = vst.msk [vmem:[#allocation3 + $0x77] sm:$0x1] %vm3924, %v4803
    %4836 = vst.msk [vmem:[#allocation3 + $0x7f] sm:$0x1] %vm3924, %v4804
    %4837 = vst.msk [vmem:[#allocation3 + $0x87] sm:$0x1] %vm3924, %v4805
    %4838 = vst.msk [vmem:[#allocation3 + $0x8f] sm:$0x1] %vm3924, %v4806
    %4839 = vst.msk [vmem:[#allocation3 + $0x97] sm:$0x1] %vm3924, %v4807
    %4840 = vst.msk [vmem:[#allocation3 + $0x9f] sm:$0x1] %vm3924, %v4808
    %4841 = vst.msk [vmem:[#allocation3 + $0xa7] sm:$0x1] %vm3924, %v4809
    %4842 = vst.msk [vmem:[#allocation3 + $0xaf] sm:$0x1] %vm3924, %v4810
    %4843 = vst.msk [vmem:[#allocation3 + $0xb7] sm:$0x1] %vm3924, %v4811
    %4844 = vst.msk [vmem:[#allocation3 + $0xbf] sm:$0x1] %vm3924, %v4812
    %4845 = vst.msk [vmem:[#allocation3 + $0xc7] sm:$0x1] %vm3924, %v4813
    %4846 = vst.msk [vmem:[#allocation3 + $0xcf] sm:$0x1] %vm3924, %v4814
    %4847 = vst.msk [vmem:[#allocation3 + $0xd7] sm:$0x1] %vm3924, %v4815
    %4848 = vst.msk [vmem:[#allocation3 + $0xdf] sm:$0x1] %vm3924, %v4816
    %4849 = vst.msk [vmem:[#allocation3 + $0xe7] sm:$0x1] %vm3924, %v4817
    %4850 = vst.msk [vmem:[#allocation3 + $0xef] sm:$0x1] %vm3924, %v4818
    %4851 = vst.msk [vmem:[#allocation3 + $0xf7] sm:$0x1] %vm3924, %v4819
    %4852 = vst.msk [vmem:[#allocation3 + $0xff] sm:$0x1] %vm3924, %v4820
    %4853 = vst.msk [vmem:[#allocation4] sm:$0xff] %vm3763, 0.0
    %vm4854 = vcmask 254976
    %4855 = vst.msk [vmem:[#allocation4 + $0x8] sm:$0x3] %vm4854, 0.0
    %4856 = vst.msk [vmem:[#allocation4 + $0x10] sm:$0xff] %vm3763, 0.0
    %4857 = vst.msk [vmem:[#allocation4 + $0x18] sm:$0x3] %vm4854, 0.0
    %4858 = vst.msk [vmem:[#allocation4 + $0x20] sm:$0xff] %vm3763, 0.0
    %4859 = vst.msk [vmem:[#allocation4 + $0x28] sm:$0x3] %vm4854, 0.0
    %4860 = vst.msk [vmem:[#allocation4 + $0x30] sm:$0xff] %vm3763, 0.0
    %4861 = vst.msk [vmem:[#allocation4 + $0x38] sm:$0x3] %vm4854, 0.0
    %4862 = vst.msk [vmem:[#allocation4 + $0x40] sm:$0xff] %vm3763, 0.0
    %4863 = vst.msk [vmem:[#allocation4 + $0x48] sm:$0x3] %vm4854, 0.0
    %4864 = vst.msk [vmem:[#allocation4 + $0x50] sm:$0xff] %vm3763, 0.0
    %4865 = vst.msk [vmem:[#allocation4 + $0x58] sm:$0x3] %vm4854, 0.0
    %4866 = vst.msk [vmem:[#allocation4 + $0x60] sm:$0xff] %vm3763, 0.0
    %4867 = vst.msk [vmem:[#allocation4 + $0x68] sm:$0x3] %vm4854, 0.0
    %4868 = vst.msk [vmem:[#allocation4 + $0x70] sm:$0xff] %vm3763, 0.0
    %4869 = vst.msk [vmem:[#allocation4 + $0x78] sm:$0x3] %vm4854, 0.0
    %4870 = vst.msk [vmem:[#allocation4 + $0x80] sm:$0xff] %vm3763, 0.0
    %4871 = vst.msk [vmem:[#allocation4 + $0x88] sm:$0x3] %vm4854, 0.0
    %4872 = vst.msk [vmem:[#allocation4 + $0x90] sm:$0xff] %vm3763, 0.0
    %4873 = vst.msk [vmem:[#allocation4 + $0x98] sm:$0x3] %vm4854, 0.0
    %4874 = vst.msk [vmem:[#allocation4 + $0xa0] sm:$0xff] %vm3763, 0.0
    %4875 = vst.msk [vmem:[#allocation4 + $0xa8] sm:$0x3] %vm4854, 0.0
    %4876 = vst.msk [vmem:[#allocation4 + $0xb0] sm:$0xff] %vm3763, 0.0
    %4877 = vst.msk [vmem:[#allocation4 + $0xb8] sm:$0x3] %vm4854, 0.0
    %4878 = vst.msk [vmem:[#allocation4 + $0xc0] sm:$0xff] %vm3763, 0.0
    %4879 = vst.msk [vmem:[#allocation4 + $0xc8] sm:$0x3] %vm4854, 0.0
    %4880 = vst.msk [vmem:[#allocation4 + $0xd0] sm:$0xff] %vm3763, 0.0
    %4881 = vst.msk [vmem:[#allocation4 + $0xd8] sm:$0x3] %vm4854, 0.0
    %4882 = vst.msk [vmem:[#allocation4 + $0xe0] sm:$0xff] %vm3763, 0.0
    %4883 = vst.msk [vmem:[#allocation4 + $0xe8] sm:$0x3] %vm4854, 0.0
    %4884 = vst.msk [vmem:[#allocation4 + $0xf0] sm:$0xff] %vm3763, 0.0
    %4885 = vst.msk [vmem:[#allocation4 + $0xf8] sm:$0x3] %vm4854, 0.0
    %4886 = vst.msk [vmem:[#allocation4 + $0x100] sm:$0xff] %vm3763, 0.0
    %4887 = vst.msk [vmem:[#allocation4 + $0x108] sm:$0x3] %vm4854, 0.0
    %4888 = vst.msk [vmem:[#allocation4 + $0x110] sm:$0xff] %vm3763, 0.0
    %4889 = vst.msk [vmem:[#allocation4 + $0x118] sm:$0x3] %vm4854, 0.0
    %4890 = vst.msk [vmem:[#allocation4 + $0x120] sm:$0xff] %vm3763, 0.0
    %4891 = vst.msk [vmem:[#allocation4 + $0x128] sm:$0x3] %vm4854, 0.0
    %4892 = vst.msk [vmem:[#allocation4 + $0x130] sm:$0xff] %vm3763, 0.0
    %4893 = vst.msk [vmem:[#allocation4 + $0x138] sm:$0x3] %vm4854, 0.0
    %v4894 = vld [vmem:[#allocation3] sm:$0xff]
    %v4895 = vld [vmem:[#allocation3 + $0x80] sm:$0xff]
    %s4896 = scalar_lea.vmem [#allocation3], 8
    %v4897 = vld [vmem:[%s4896] sm:$0xff]
    %v4898 = vld [vmem:[%s4896 + $0x80] sm:$0xff]
    %v4899 = vmax.f32 %v4894, %v4897
    %v4900 = vmax.f32 %v4895, %v4898
    %v4901 = vld [vmem:[%s2] sm:$0x1]
    %v4903 = vlaneseq
    %v4904 = vshrl.u32 %v4903, 7
    %v4905 = vsub.s32 0, %v4904
    %v4906 = vrot.slane %v4901, %v4905
    %v4908 = vadd.f32 %v4899, %v4906
    %v4909 = vadd.f32 %v4900, %v4906
    %v4910 = vmax.f32 %v4908, 0.0
    %v4911 = vmax.f32 %v4909, 0.0
    %s4912 = scalar_lea.vmem [#allocation4], 16
    %4913 = vst.msk [vmem:[%s4912 + $0x1] sm:$0xff] %vm3763, %v4910
    %4914 = vst.msk [vmem:[%s4912 + $0xa1] sm:$0xff] %vm3763, %v4911
    %s4915 = scalar_lea.vmem [#allocation3], 16
    %v4916 = vld [vmem:[%s4915] sm:$0xff]
    %v4917 = vld [vmem:[%s4915 + $0x80] sm:$0xff]
    %s4918 = scalar_lea.vmem [#allocation3], 24
    %v4919 = vld [vmem:[%s4918] sm:$0xff]
    %v4920 = vld [vmem:[%s4918 + $0x80] sm:$0xff]
    %v4921 = vmax.f32 %v4916, %v4919
    %v4922 = vmax.f32 %v4917, %v4920
    %v4923 = vld [vmem:[%s2] sm:$0x1]
    %v4925 = vlaneseq
    %v4926 = vshrl.u32 %v4925, 7
    %v4927 = vsub.s32 0, %v4926
    %v4928 = vrot.slane %v4923, %v4927
    %v4930 = vadd.f32 %v4921, %v4928
    %v4931 = vadd.f32 %v4922, %v4928
    %v4932 = vmax.f32 %v4930, 0.0
    %v4933 = vmax.f32 %v4931, 0.0
    %s4934 = scalar_lea.vmem [#allocation4], 32
    %4935 = vst.msk [vmem:[%s4934 + $0x1] sm:$0xff] %vm3763, %v4932
    %4936 = vst.msk [vmem:[%s4934 + $0xa1] sm:$0xff] %vm3763, %v4933
    %s4937 = scalar_lea.vmem [#allocation3], 32
    %v4938 = vld [vmem:[%s4937] sm:$0xff]
    %v4939 = vld [vmem:[%s4937 + $0x80] sm:$0xff]
    %s4940 = scalar_lea.vmem [#allocation3], 40
    %v4941 = vld [vmem:[%s4940] sm:$0xff]
    %v4942 = vld [vmem:[%s4940 + $0x80] sm:$0xff]
    %v4943 = vmax.f32 %v4938, %v4941
    %v4944 = vmax.f32 %v4939, %v4942
    %v4945 = vld [vmem:[%s2] sm:$0x1]
    %v4947 = vlaneseq
    %v4948 = vshrl.u32 %v4947, 7
    %v4949 = vsub.s32 0, %v4948
    %v4950 = vrot.slane %v4945, %v4949
    %v4952 = vadd.f32 %v4943, %v4950
    %v4953 = vadd.f32 %v4944, %v4950
    %v4954 = vmax.f32 %v4952, 0.0
    %v4955 = vmax.f32 %v4953, 0.0
    %s4956 = scalar_lea.vmem [#allocation4], 48
    %4957 = vst.msk [vmem:[%s4956 + $0x1] sm:$0xff] %vm3763, %v4954
    %4958 = vst.msk [vmem:[%s4956 + $0xa1] sm:$0xff] %vm3763, %v4955
    %s4959 = scalar_lea.vmem [#allocation3], 48
    %v4960 = vld [vmem:[%s4959] sm:$0xff]
    %v4961 = vld [vmem:[%s4959 + $0x80] sm:$0xff]
    %s4962 = scalar_lea.vmem [#allocation3], 56
    %v4963 = vld [vmem:[%s4962] sm:$0xff]
    %v4964 = vld [vmem:[%s4962 + $0x80] sm:$0xff]
    %v4965 = vmax.f32 %v4960, %v4963
    %v4966 = vmax.f32 %v4961, %v4964
    %v4967 = vld [vmem:[%s2] sm:$0x1]
    %v4969 = vlaneseq
    %v4970 = vshrl.u32 %v4969, 7
    %v4971 = vsub.s32 0, %v4970
    %v4972 = vrot.slane %v4967, %v4971
    %v4974 = vadd.f32 %v4965, %v4972
    %v4975 = vadd.f32 %v4966, %v4972
    %v4976 = vmax.f32 %v4974, 0.0
    %v4977 = vmax.f32 %v4975, 0.0
    %s4978 = scalar_lea.vmem [#allocation4], 64
    %4979 = vst.msk [vmem:[%s4978 + $0x1] sm:$0xff] %vm3763, %v4976
    %4980 = vst.msk [vmem:[%s4978 + $0xa1] sm:$0xff] %vm3763, %v4977
    %s4981 = scalar_lea.vmem [#allocation3], 64
    %v4982 = vld [vmem:[%s4981] sm:$0xff]
    %v4983 = vld [vmem:[%s4981 + $0x80] sm:$0xff]
    %s4984 = scalar_lea.vmem [#allocation3], 72
    %v4985 = vld [vmem:[%s4984] sm:$0xff]
    %v4986 = vld [vmem:[%s4984 + $0x80] sm:$0xff]
    %v4987 = vmax.f32 %v4982, %v4985
    %v4988 = vmax.f32 %v4983, %v4986
    %v4989 = vld [vmem:[%s2] sm:$0x1]
    %v4991 = vlaneseq
    %v4992 = vshrl.u32 %v4991, 7
    %v4993 = vsub.s32 0, %v4992
    %v4994 = vrot.slane %v4989, %v4993
    %v4996 = vadd.f32 %v4987, %v4994
    %v4997 = vadd.f32 %v4988, %v4994
    %v4998 = vmax.f32 %v4996, 0.0
    %v4999 = vmax.f32 %v4997, 0.0
    %s5000 = scalar_lea.vmem [#allocation4], 80
    %5001 = vst.msk [vmem:[%s5000 + $0x1] sm:$0xff] %vm3763, %v4998
    %5002 = vst.msk [vmem:[%s5000 + $0xa1] sm:$0xff] %vm3763, %v4999
    %s5003 = scalar_lea.vmem [#allocation3], 80
    %v5004 = vld [vmem:[%s5003] sm:$0xff]
    %v5005 = vld [vmem:[%s5003 + $0x80] sm:$0xff]
    %s5006 = scalar_lea.vmem [#allocation3], 88
    %v5007 = vld [vmem:[%s5006] sm:$0xff]
    %v5008 = vld [vmem:[%s5006 + $0x80] sm:$0xff]
    %v5009 = vmax.f32 %v5004, %v5007
    %v5010 = vmax.f32 %v5005, %v5008
    %v5011 = vld [vmem:[%s2] sm:$0x1]
    %v5013 = vlaneseq
    %v5014 = vshrl.u32 %v5013, 7
    %v5015 = vsub.s32 0, %v5014
    %v5016 = vrot.slane %v5011, %v5015
    %v5018 = vadd.f32 %v5009, %v5016
    %v5019 = vadd.f32 %v5010, %v5016
    %v5020 = vmax.f32 %v5018, 0.0
    %v5021 = vmax.f32 %v5019, 0.0
    %s5022 = scalar_lea.vmem [#allocation4], 96
    %5023 = vst.msk [vmem:[%s5022 + $0x1] sm:$0xff] %vm3763, %v5020
    %5024 = vst.msk [vmem:[%s5022 + $0xa1] sm:$0xff] %vm3763, %v5021
    %s5025 = scalar_lea.vmem [#allocation3], 96
    %v5026 = vld [vmem:[%s5025] sm:$0xff]
    %v5027 = vld [vmem:[%s5025 + $0x80] sm:$0xff]
    %s5028 = scalar_lea.vmem [#allocation3], 104
    %v5029 = vld [vmem:[%s5028] sm:$0xff]
    %v5030 = vld [vmem:[%s5028 + $0x80] sm:$0xff]
    %v5031 = vmax.f32 %v5026, %v5029
    %v5032 = vmax.f32 %v5027, %v5030
    %v5033 = vld [vmem:[%s2] sm:$0x1]
    %v5035 = vlaneseq
    %v5036 = vshrl.u32 %v5035, 7
    %v5037 = vsub.s32 0, %v5036
    %v5038 = vrot.slane %v5033, %v5037
    %v5040 = vadd.f32 %v5031, %v5038
    %v5041 = vadd.f32 %v5032, %v5038
    %v5042 = vmax.f32 %v5040, 0.0
    %v5043 = vmax.f32 %v5041, 0.0
    %s5044 = scalar_lea.vmem [#allocation4], 112
    %5045 = vst.msk [vmem:[%s5044 + $0x1] sm:$0xff] %vm3763, %v5042
    %5046 = vst.msk [vmem:[%s5044 + $0xa1] sm:$0xff] %vm3763, %v5043
    %s5047 = scalar_lea.vmem [#allocation3], 112
    %v5048 = vld [vmem:[%s5047] sm:$0xff]
    %v5049 = vld [vmem:[%s5047 + $0x80] sm:$0xff]
    %s5050 = scalar_lea.vmem [#allocation3], 120
    %v5051 = vld [vmem:[%s5050] sm:$0xff]
    %v5052 = vld [vmem:[%s5050 + $0x80] sm:$0xff]
    %v5053 = vmax.f32 %v5048, %v5051
    %v5054 = vmax.f32 %v5049, %v5052
    %v5055 = vld [vmem:[%s2] sm:$0x1]
    %v5057 = vlaneseq
    %v5058 = vshrl.u32 %v5057, 7
    %v5059 = vsub.s32 0, %v5058
    %v5060 = vrot.slane %v5055, %v5059
    %v5062 = vadd.f32 %v5053, %v5060
    %v5063 = vadd.f32 %v5054, %v5060
    %v5064 = vmax.f32 %v5062, 0.0
    %v5065 = vmax.f32 %v5063, 0.0
    %s5066 = scalar_lea.vmem [#allocation4], 128
    %5067 = vst.msk [vmem:[%s5066 + $0x1] sm:$0xff] %vm3763, %v5064
    %5068 = vst.msk [vmem:[%s5066 + $0xa1] sm:$0xff] %vm3763, %v5065
    %v5069 = vld [vmem:[#allocation4] sm:$0xff]
    %v5070 = vld [vmem:[#allocation4 + $0x10] sm:$0xff]
    %v5071 = vld [vmem:[#allocation4 + $0x20] sm:$0xff]
    %v5072 = vld [vmem:[#allocation4 + $0x30] sm:$0xff]
    %v5073 = vld [vmem:[#allocation4 + $0x40] sm:$0xff]
    %v5074 = vld [vmem:[#allocation4 + $0x50] sm:$0xff]
    %v5075 = vld [vmem:[#allocation4 + $0x60] sm:$0xff]
    %v5076 = vld [vmem:[#allocation4 + $0x70] sm:$0xff]
    %v5077 = vld [vmem:[#allocation4 + $0xa0] sm:$0xff]
    %v5078 = vld [vmem:[#allocation4 + $0xb0] sm:$0xff]
    %v5079 = vld [vmem:[#allocation4 + $0xc0] sm:$0xff]
    %v5080 = vld [vmem:[#allocation4 + $0xd0] sm:$0xff]
    %v5081 = vld [vmem:[#allocation4 + $0xe0] sm:$0xff]
    %v5082 = vld [vmem:[#allocation4 + $0xf0] sm:$0xff]
    %v5083 = vld [vmem:[#allocation4 + $0x100] sm:$0xff]
    %v5084 = vld [vmem:[#allocation4 + $0x110] sm:$0xff]
    %v5085 = vld [vmem:[#allocation4 + $0x1] sm:$0xff]
    %v5086 = vld [vmem:[#allocation4 + $0x11] sm:$0xff]
    %v5087 = vld [vmem:[#allocation4 + $0x21] sm:$0xff]
    %v5088 = vld [vmem:[#allocation4 + $0x31] sm:$0xff]
    %v5089 = vld [vmem:[#allocation4 + $0x41] sm:$0xff]
    %v5090 = vld [vmem:[#allocation4 + $0x51] sm:$0xff]
    %v5091 = vld [vmem:[#allocation4 + $0x61] sm:$0xff]
    %v5092 = vld [vmem:[#allocation4 + $0x71] sm:$0xff]
    %v5093 = vld [vmem:[#allocation4 + $0xa1] sm:$0xff]
    %v5094 = vld [vmem:[#allocation4 + $0xb1] sm:$0xff]
    %v5095 = vld [vmem:[#allocation4 + $0xc1] sm:$0xff]
    %v5096 = vld [vmem:[#allocation4 + $0xd1] sm:$0xff]
    %v5097 = vld [vmem:[#allocation4 + $0xe1] sm:$0xff]
    %v5098 = vld [vmem:[#allocation4 + $0xf1] sm:$0xff]
    %v5099 = vld [vmem:[#allocation4 + $0x101] sm:$0xff]
    %v5100 = vld [vmem:[#allocation4 + $0x111] sm:$0xff]
    %v5101 = vld [vmem:[#allocation4 + $0x2] sm:$0xff]
    %v5102 = vld [vmem:[#allocation4 + $0x12] sm:$0xff]
    %v5103 = vld [vmem:[#allocation4 + $0x22] sm:$0xff]
    %v5104 = vld [vmem:[#allocation4 + $0x32] sm:$0xff]
    %v5105 = vld [vmem:[#allocation4 + $0x42] sm:$0xff]
    %v5106 = vld [vmem:[#allocation4 + $0x52] sm:$0xff]
    %v5107 = vld [vmem:[#allocation4 + $0x62] sm:$0xff]
    %v5108 = vld [vmem:[#allocation4 + $0x72] sm:$0xff]
    %v5109 = vld [vmem:[#allocation4 + $0xa2] sm:$0xff]
    %v5110 = vld [vmem:[#allocation4 + $0xb2] sm:$0xff]
    %v5111 = vld [vmem:[#allocation4 + $0xc2] sm:$0xff]
    %v5112 = vld [vmem:[#allocation4 + $0xd2] sm:$0xff]
    %v5113 = vld [vmem:[#allocation4 + $0xe2] sm:$0xff]
    %v5114 = vld [vmem:[#allocation4 + $0xf2] sm:$0xff]
    %v5115 = vld [vmem:[#allocation4 + $0x102] sm:$0xff]
    %v5116 = vld [vmem:[#allocation4 + $0x112] sm:$0xff]
    %v5117 = vld [vmem:[%s4912] sm:$0xff]
    %v5118 = vld [vmem:[%s4912 + $0x10] sm:$0xff]
    %v5119 = vld [vmem:[%s4912 + $0x20] sm:$0xff]
    %v5120 = vld [vmem:[%s4912 + $0x30] sm:$0xff]
    %v5121 = vld [vmem:[%s4912 + $0x40] sm:$0xff]
    %v5122 = vld [vmem:[%s4912 + $0x50] sm:$0xff]
    %v5123 = vld [vmem:[%s4912 + $0x60] sm:$0xff]
    %v5124 = vld [vmem:[%s4912 + $0x70] sm:$0xff]
    %v5125 = vld [vmem:[%s4912 + $0xa0] sm:$0xff]
    %v5126 = vld [vmem:[%s4912 + $0xb0] sm:$0xff]
    %v5127 = vld [vmem:[%s4912 + $0xc0] sm:$0xff]
    %v5128 = vld [vmem:[%s4912 + $0xd0] sm:$0xff]
    %v5129 = vld [vmem:[%s4912 + $0xe0] sm:$0xff]
    %v5130 = vld [vmem:[%s4912 + $0xf0] sm:$0xff]
    %v5131 = vld [vmem:[%s4912 + $0x100] sm:$0xff]
    %v5132 = vld [vmem:[%s4912 + $0x110] sm:$0xff]
    %v5133 = vld [vmem:[%s4912 + $0x1] sm:$0xff]
    %v5134 = vld [vmem:[%s4912 + $0x11] sm:$0xff]
    %v5135 = vld [vmem:[%s4912 + $0x21] sm:$0xff]
    %v5136 = vld [vmem:[%s4912 + $0x31] sm:$0xff]
    %v5137 = vld [vmem:[%s4912 + $0x41] sm:$0xff]
    %v5138 = vld [vmem:[%s4912 + $0x51] sm:$0xff]
    %v5139 = vld [vmem:[%s4912 + $0x61] sm:$0xff]
    %v5140 = vld [vmem:[%s4912 + $0x71] sm:$0xff]
    %v5141 = vld [vmem:[%s4912 + $0xa1] sm:$0xff]
    %v5142 = vld [vmem:[%s4912 + $0xb1] sm:$0xff]
    %v5143 = vld [vmem:[%s4912 + $0xc1] sm:$0xff]
    %v5144 = vld [vmem:[%s4912 + $0xd1] sm:$0xff]
    %v5145 = vld [vmem:[%s4912 + $0xe1] sm:$0xff]
    %v5146 = vld [vmem:[%s4912 + $0xf1] sm:$0xff]
    %v5147 = vld [vmem:[%s4912 + $0x101] sm:$0xff]
    %v5148 = vld [vmem:[%s4912 + $0x111] sm:$0xff]
    %v5149 = vld [vmem:[%s4912 + $0x2] sm:$0xff]
    %v5150 = vld [vmem:[%s4912 + $0x12] sm:$0xff]
    %v5151 = vld [vmem:[%s4912 + $0x22] sm:$0xff]
    %v5152 = vld [vmem:[%s4912 + $0x32] sm:$0xff]
    %v5153 = vld [vmem:[%s4912 + $0x42] sm:$0xff]
    %v5154 = vld [vmem:[%s4912 + $0x52] sm:$0xff]
    %v5155 = vld [vmem:[%s4912 + $0x62] sm:$0xff]
    %v5156 = vld [vmem:[%s4912 + $0x72] sm:$0xff]
    %v5157 = vld [vmem:[%s4912 + $0xa2] sm:$0xff]
    %v5158 = vld [vmem:[%s4912 + $0xb2] sm:$0xff]
    %v5159 = vld [vmem:[%s4912 + $0xc2] sm:$0xff]
    %v5160 = vld [vmem:[%s4912 + $0xd2] sm:$0xff]
    %v5161 = vld [vmem:[%s4912 + $0xe2] sm:$0xff]
    %v5162 = vld [vmem:[%s4912 + $0xf2] sm:$0xff]
    %v5163 = vld [vmem:[%s4912 + $0x102] sm:$0xff]
    %v5164 = vld [vmem:[%s4912 + $0x112] sm:$0xff]
    %v5165 = vld [vmem:[%s4934] sm:$0xff]
    %v5166 = vld [vmem:[%s4934 + $0x10] sm:$0xff]
    %v5167 = vld [vmem:[%s4934 + $0x20] sm:$0xff]
    %v5168 = vld [vmem:[%s4934 + $0x30] sm:$0xff]
    %v5169 = vld [vmem:[%s4934 + $0x40] sm:$0xff]
    %v5170 = vld [vmem:[%s4934 + $0x50] sm:$0xff]
    %v5171 = vld [vmem:[%s4934 + $0x60] sm:$0xff]
    %v5172 = vld [vmem:[%s4934 + $0x70] sm:$0xff]
    %v5173 = vld [vmem:[%s4934 + $0xa0] sm:$0xff]
    %v5174 = vld [vmem:[%s4934 + $0xb0] sm:$0xff]
    %v5175 = vld [vmem:[%s4934 + $0xc0] sm:$0xff]
    %v5176 = vld [vmem:[%s4934 + $0xd0] sm:$0xff]
    %v5177 = vld [vmem:[%s4934 + $0xe0] sm:$0xff]
    %v5178 = vld [vmem:[%s4934 + $0xf0] sm:$0xff]
    %v5179 = vld [vmem:[%s4934 + $0x100] sm:$0xff]
    %v5180 = vld [vmem:[%s4934 + $0x110] sm:$0xff]
    %v5181 = vld [vmem:[%s4934 + $0x1] sm:$0xff]
    %v5182 = vld [vmem:[%s4934 + $0x11] sm:$0xff]
    %v5183 = vld [vmem:[%s4934 + $0x21] sm:$0xff]
    %v5184 = vld [vmem:[%s4934 + $0x31] sm:$0xff]
    %v5185 = vld [vmem:[%s4934 + $0x41] sm:$0xff]
    %v5186 = vld [vmem:[%s4934 + $0x51] sm:$0xff]
    %v5187 = vld [vmem:[%s4934 + $0x61] sm:$0xff]
    %v5188 = vld [vmem:[%s4934 + $0x71] sm:$0xff]
    %v5189 = vld [vmem:[%s4934 + $0xa1] sm:$0xff]
    %v5190 = vld [vmem:[%s4934 + $0xb1] sm:$0xff]
    %v5191 = vld [vmem:[%s4934 + $0xc1] sm:$0xff]
    %v5192 = vld [vmem:[%s4934 + $0xd1] sm:$0xff]
    %v5193 = vld [vmem:[%s4934 + $0xe1] sm:$0xff]
    %v5194 = vld [vmem:[%s4934 + $0xf1] sm:$0xff]
    %v5195 = vld [vmem:[%s4934 + $0x101] sm:$0xff]
    %v5196 = vld [vmem:[%s4934 + $0x111] sm:$0xff]
    %v5197 = vld [vmem:[%s4934 + $0x2] sm:$0xff]
    %v5198 = vld [vmem:[%s4934 + $0x12] sm:$0xff]
    %v5199 = vld [vmem:[%s4934 + $0x22] sm:$0xff]
    %v5200 = vld [vmem:[%s4934 + $0x32] sm:$0xff]
    %v5201 = vld [vmem:[%s4934 + $0x42] sm:$0xff]
    %v5202 = vld [vmem:[%s4934 + $0x52] sm:$0xff]
    %v5203 = vld [vmem:[%s4934 + $0x62] sm:$0xff]
    %v5204 = vld [vmem:[%s4934 + $0x72] sm:$0xff]
    %v5205 = vld [vmem:[%s4934 + $0xa2] sm:$0xff]
    %v5206 = vld [vmem:[%s4934 + $0xb2] sm:$0xff]
    %v5207 = vld [vmem:[%s4934 + $0xc2] sm:$0xff]
    %v5208 = vld [vmem:[%s4934 + $0xd2] sm:$0xff]
    %v5209 = vld [vmem:[%s4934 + $0xe2] sm:$0xff]
    %v5210 = vld [vmem:[%s4934 + $0xf2] sm:$0xff]
    %v5211 = vld [vmem:[%s4934 + $0x102] sm:$0xff]
    %v5212 = vld [vmem:[%s4934 + $0x112] sm:$0xff]
    %5229 = vrot.lane.b32.xlu0 %v5085, 32
    %v5230 = vpop.permute.xlu0 %5229
    %5231 = vrot.lane.b32.xlu0 %v5086, 32
    %v5232 = vpop.permute.xlu0 %5231
    %5233 = vrot.lane.b32.xlu0 %v5087, 32
    %v5234 = vpop.permute.xlu0 %5233
    %5235 = vrot.lane.b32.xlu0 %v5088, 32
    %v5236 = vpop.permute.xlu0 %5235
    %5237 = vrot.lane.b32.xlu0 %v5089, 32
    %v5238 = vpop.permute.xlu0 %5237
    %5239 = vrot.lane.b32.xlu0 %v5090, 32
    %v5240 = vpop.permute.xlu0 %5239
    %5241 = vrot.lane.b32.xlu0 %v5091, 32
    %v5242 = vpop.permute.xlu0 %5241
    %5243 = vrot.lane.b32.xlu0 %v5092, 32
    %v5244 = vpop.permute.xlu0 %5243
    %5245 = vrot.lane.b32.xlu0 %v5093, 32
    %v5246 = vpop.permute.xlu0 %5245
    %5247 = vrot.lane.b32.xlu0 %v5094, 32
    %v5248 = vpop.permute.xlu0 %5247
    %5249 = vrot.lane.b32.xlu0 %v5095, 32
    %v5250 = vpop.permute.xlu0 %5249
    %5251 = vrot.lane.b32.xlu0 %v5096, 32
    %v5252 = vpop.permute.xlu0 %5251
    %5253 = vrot.lane.b32.xlu0 %v5097, 32
    %v5254 = vpop.permute.xlu0 %5253
    %5255 = vrot.lane.b32.xlu0 %v5098, 32
    %v5256 = vpop.permute.xlu0 %5255
    %5257 = vrot.lane.b32.xlu0 %v5099, 32
    %v5258 = vpop.permute.xlu0 %5257
    %5259 = vrot.lane.b32.xlu0 %v5100, 32
    %v5260 = vpop.permute.xlu0 %5259
    %5293 = vrot.lane.b32.xlu0 %v5101, 64
    %v5294 = vpop.permute.xlu0 %5293
    %5295 = vrot.lane.b32.xlu0 %v5102, 64
    %v5296 = vpop.permute.xlu0 %5295
    %5297 = vrot.lane.b32.xlu0 %v5103, 64
    %v5298 = vpop.permute.xlu0 %5297
    %5299 = vrot.lane.b32.xlu0 %v5104, 64
    %v5300 = vpop.permute.xlu0 %5299
    %5301 = vrot.lane.b32.xlu0 %v5105, 64
    %v5302 = vpop.permute.xlu0 %5301
    %5303 = vrot.lane.b32.xlu0 %v5106, 64
    %v5304 = vpop.permute.xlu0 %5303
    %5305 = vrot.lane.b32.xlu0 %v5107, 64
    %v5306 = vpop.permute.xlu0 %5305
    %5307 = vrot.lane.b32.xlu0 %v5108, 64
    %v5308 = vpop.permute.xlu0 %5307
    %5309 = vrot.lane.b32.xlu0 %v5109, 64
    %v5310 = vpop.permute.xlu0 %5309
    %5311 = vrot.lane.b32.xlu0 %v5110, 64
    %v5312 = vpop.permute.xlu0 %5311
    %5313 = vrot.lane.b32.xlu0 %v5111, 64
    %v5314 = vpop.permute.xlu0 %5313
    %5315 = vrot.lane.b32.xlu0 %v5112, 64
    %v5316 = vpop.permute.xlu0 %5315
    %5317 = vrot.lane.b32.xlu0 %v5113, 64
    %v5318 = vpop.permute.xlu0 %5317
    %5319 = vrot.lane.b32.xlu0 %v5114, 64
    %v5320 = vpop.permute.xlu0 %5319
    %5321 = vrot.lane.b32.xlu0 %v5115, 64
    %v5322 = vpop.permute.xlu0 %5321
    %5323 = vrot.lane.b32.xlu0 %v5116, 64
    %v5324 = vpop.permute.xlu0 %5323
    %5357 = vrot.lane.b32.xlu0 %v5117, 96
    %v5358 = vpop.permute.xlu0 %5357
    %5359 = vrot.lane.b32.xlu0 %v5118, 96
    %v5360 = vpop.permute.xlu0 %5359
    %5361 = vrot.lane.b32.xlu0 %v5119, 96
    %v5362 = vpop.permute.xlu0 %5361
    %5363 = vrot.lane.b32.xlu0 %v5120, 96
    %v5364 = vpop.permute.xlu0 %5363
    %5365 = vrot.lane.b32.xlu0 %v5121, 96
    %v5366 = vpop.permute.xlu0 %5365
    %5367 = vrot.lane.b32.xlu0 %v5122, 96
    %v5368 = vpop.permute.xlu0 %5367
    %5369 = vrot.lane.b32.xlu0 %v5123, 96
    %v5370 = vpop.permute.xlu0 %5369
    %5371 = vrot.lane.b32.xlu0 %v5124, 96
    %v5372 = vpop.permute.xlu0 %5371
    %5373 = vrot.lane.b32.xlu0 %v5125, 96
    %v5374 = vpop.permute.xlu0 %5373
    %5375 = vrot.lane.b32.xlu0 %v5126, 96
    %v5376 = vpop.permute.xlu0 %5375
    %5377 = vrot.lane.b32.xlu0 %v5127, 96
    %v5378 = vpop.permute.xlu0 %5377
    %5379 = vrot.lane.b32.xlu0 %v5128, 96
    %v5380 = vpop.permute.xlu0 %5379
    %5381 = vrot.lane.b32.xlu0 %v5129, 96
    %v5382 = vpop.permute.xlu0 %5381
    %5383 = vrot.lane.b32.xlu0 %v5130, 96
    %v5384 = vpop.permute.xlu0 %5383
    %5385 = vrot.lane.b32.xlu0 %v5131, 96
    %v5386 = vpop.permute.xlu0 %5385
    %5387 = vrot.lane.b32.xlu0 %v5132, 96
    %v5388 = vpop.permute.xlu0 %5387
    %5421 = vrot.lane.b32.xlu0 %v5149, 32
    %v5422 = vpop.permute.xlu0 %5421
    %5423 = vrot.lane.b32.xlu0 %v5150, 32
    %v5424 = vpop.permute.xlu0 %5423
    %5425 = vrot.lane.b32.xlu0 %v5151, 32
    %v5426 = vpop.permute.xlu0 %5425
    %5427 = vrot.lane.b32.xlu0 %v5152, 32
    %v5428 = vpop.permute.xlu0 %5427
    %5429 = vrot.lane.b32.xlu0 %v5153, 32
    %v5430 = vpop.permute.xlu0 %5429
    %5431 = vrot.lane.b32.xlu0 %v5154, 32
    %v5432 = vpop.permute.xlu0 %5431
    %5433 = vrot.lane.b32.xlu0 %v5155, 32
    %v5434 = vpop.permute.xlu0 %5433
    %5435 = vrot.lane.b32.xlu0 %v5156, 32
    %v5436 = vpop.permute.xlu0 %5435
    %5437 = vrot.lane.b32.xlu0 %v5157, 32
    %v5438 = vpop.permute.xlu0 %5437
    %5439 = vrot.lane.b32.xlu0 %v5158, 32
    %v5440 = vpop.permute.xlu0 %5439
    %5441 = vrot.lane.b32.xlu0 %v5159, 32
    %v5442 = vpop.permute.xlu0 %5441
    %5443 = vrot.lane.b32.xlu0 %v5160, 32
    %v5444 = vpop.permute.xlu0 %5443
    %5445 = vrot.lane.b32.xlu0 %v5161, 32
    %v5446 = vpop.permute.xlu0 %5445
    %5447 = vrot.lane.b32.xlu0 %v5162, 32
    %v5448 = vpop.permute.xlu0 %5447
    %5449 = vrot.lane.b32.xlu0 %v5163, 32
    %v5450 = vpop.permute.xlu0 %5449
    %5451 = vrot.lane.b32.xlu0 %v5164, 32
    %v5452 = vpop.permute.xlu0 %5451
    %5485 = vrot.lane.b32.xlu0 %v5165, 64
    %v5486 = vpop.permute.xlu0 %5485
    %5487 = vrot.lane.b32.xlu0 %v5166, 64
    %v5488 = vpop.permute.xlu0 %5487
    %5489 = vrot.lane.b32.xlu0 %v5167, 64
    %v5490 = vpop.permute.xlu0 %5489
    %5491 = vrot.lane.b32.xlu0 %v5168, 64
    %v5492 = vpop.permute.xlu0 %5491
    %5493 = vrot.lane.b32.xlu0 %v5169, 64
    %v5494 = vpop.permute.xlu0 %5493
    %5495 = vrot.lane.b32.xlu0 %v5170, 64
    %v5496 = vpop.permute.xlu0 %5495
    %5497 = vrot.lane.b32.xlu0 %v5171, 64
    %v5498 = vpop.permute.xlu0 %5497
    %5499 = vrot.lane.b32.xlu0 %v5172, 64
    %v5500 = vpop.permute.xlu0 %5499
    %5501 = vrot.lane.b32.xlu0 %v5173, 64
    %v5502 = vpop.permute.xlu0 %5501
    %5503 = vrot.lane.b32.xlu0 %v5174, 64
    %v5504 = vpop.permute.xlu0 %5503
    %5505 = vrot.lane.b32.xlu0 %v5175, 64
    %v5506 = vpop.permute.xlu0 %5505
    %5507 = vrot.lane.b32.xlu0 %v5176, 64
    %v5508 = vpop.permute.xlu0 %5507
    %5509 = vrot.lane.b32.xlu0 %v5177, 64
    %v5510 = vpop.permute.xlu0 %5509
    %5511 = vrot.lane.b32.xlu0 %v5178, 64
    %v5512 = vpop.permute.xlu0 %5511
    %5513 = vrot.lane.b32.xlu0 %v5179, 64
    %v5514 = vpop.permute.xlu0 %5513
    %5515 = vrot.lane.b32.xlu0 %v5180, 64
    %v5516 = vpop.permute.xlu0 %5515
    %5549 = vrot.lane.b32.xlu0 %v5181, 96
    %v5550 = vpop.permute.xlu0 %5549
    %5551 = vrot.lane.b32.xlu0 %v5182, 96
    %v5552 = vpop.permute.xlu0 %5551
    %5553 = vrot.lane.b32.xlu0 %v5183, 96
    %v5554 = vpop.permute.xlu0 %5553
    %5555 = vrot.lane.b32.xlu0 %v5184, 96
    %v5556 = vpop.permute.xlu0 %5555
    %5557 = vrot.lane.b32.xlu0 %v5185, 96
    %v5558 = vpop.permute.xlu0 %5557
    %5559 = vrot.lane.b32.xlu0 %v5186, 96
    %v5560 = vpop.permute.xlu0 %5559
    %5561 = vrot.lane.b32.xlu0 %v5187, 96
    %v5562 = vpop.permute.xlu0 %5561
    %5563 = vrot.lane.b32.xlu0 %v5188, 96
    %v5564 = vpop.permute.xlu0 %5563
    %5565 = vrot.lane.b32.xlu0 %v5189, 96
    %v5566 = vpop.permute.xlu0 %5565
    %5567 = vrot.lane.b32.xlu0 %v5190, 96
    %v5568 = vpop.permute.xlu0 %5567
    %5569 = vrot.lane.b32.xlu0 %v5191, 96
    %v5570 = vpop.permute.xlu0 %5569
    %5571 = vrot.lane.b32.xlu0 %v5192, 96
    %v5572 = vpop.permute.xlu0 %5571
    %5573 = vrot.lane.b32.xlu0 %v5193, 96
    %v5574 = vpop.permute.xlu0 %5573
    %5575 = vrot.lane.b32.xlu0 %v5194, 96
    %v5576 = vpop.permute.xlu0 %5575
    %5577 = vrot.lane.b32.xlu0 %v5195, 96
    %v5578 = vpop.permute.xlu0 %5577
    %5579 = vrot.lane.b32.xlu0 %v5196, 96
    %v5580 = vpop.permute.xlu0 %5579
    %v5597 = vsel %vm3763, %v5069, %v5230
    %v5598 = vsel %vm3763, %v5070, %v5232
    %v5599 = vsel %vm3763, %v5071, %v5234
    %v5600 = vsel %vm3763, %v5072, %v5236
    %v5601 = vsel %vm3763, %v5073, %v5238
    %v5602 = vsel %vm3763, %v5074, %v5240
    %v5603 = vsel %vm3763, %v5075, %v5242
    %v5604 = vsel %vm3763, %v5076, %v5244
    %v5605 = vsel %vm3763, %v5077, %v5246
    %v5606 = vsel %vm3763, %v5078, %v5248
    %v5607 = vsel %vm3763, %v5079, %v5250
    %v5608 = vsel %vm3763, %v5080, %v5252
    %v5609 = vsel %vm3763, %v5081, %v5254
    %v5610 = vsel %vm3763, %v5082, %v5256
    %v5611 = vsel %vm3763, %v5083, %v5258
    %v5612 = vsel %vm3763, %v5084, %v5260
    %vm5613 = vcmask 523264
    %v5614 = vsel %vm5613, %v5597, %v5294
    %v5615 = vsel %vm5613, %v5598, %v5296
    %v5616 = vsel %vm5613, %v5599, %v5298
    %v5617 = vsel %vm5613, %v5600, %v5300
    %v5618 = vsel %vm5613, %v5601, %v5302
    %v5619 = vsel %vm5613, %v5602, %v5304
    %v5620 = vsel %vm5613, %v5603, %v5306
    %v5621 = vsel %vm5613, %v5604, %v5308
    %v5622 = vsel %vm5613, %v5605, %v5310
    %v5623 = vsel %vm5613, %v5606, %v5312
    %v5624 = vsel %vm5613, %v5607, %v5314
    %v5625 = vsel %vm5613, %v5608, %v5316
    %v5626 = vsel %vm5613, %v5609, %v5318
    %v5627 = vsel %vm5613, %v5610, %v5320
    %v5628 = vsel %vm5613, %v5611, %v5322
    %v5629 = vsel %vm5613, %v5612, %v5324
    %vm5630 = vcmask 785408
    %v5631 = vsel %vm5630, %v5614, %v5358
    %v5632 = vsel %vm5630, %v5615, %v5360
    %v5633 = vsel %vm5630, %v5616, %v5362
    %v5634 = vsel %vm5630, %v5617, %v5364
    %v5635 = vsel %vm5630, %v5618, %v5366
    %v5636 = vsel %vm5630, %v5619, %v5368
    %v5637 = vsel %vm5630, %v5620, %v5370
    %v5638 = vsel %vm5630, %v5621, %v5372
    %v5639 = vsel %vm5630, %v5622, %v5374
    %v5640 = vsel %vm5630, %v5623, %v5376
    %v5641 = vsel %vm5630, %v5624, %v5378
    %v5642 = vsel %vm5630, %v5625, %v5380
    %v5643 = vsel %vm5630, %v5626, %v5382
    %v5644 = vsel %vm5630, %v5627, %v5384
    %v5645 = vsel %vm5630, %v5628, %v5386
    %v5646 = vsel %vm5630, %v5629, %v5388
    %v5647 = vsel %vm3763, %v5133, %v5422
    %v5648 = vsel %vm3763, %v5134, %v5424
    %v5649 = vsel %vm3763, %v5135, %v5426
    %v5650 = vsel %vm3763, %v5136, %v5428
    %v5651 = vsel %vm3763, %v5137, %v5430
    %v5652 = vsel %vm3763, %v5138, %v5432
    %v5653 = vsel %vm3763, %v5139, %v5434
    %v5654 = vsel %vm3763, %v5140, %v5436
    %v5655 = vsel %vm3763, %v5141, %v5438
    %v5656 = vsel %vm3763, %v5142, %v5440
    %v5657 = vsel %vm3763, %v5143, %v5442
    %v5658 = vsel %vm3763, %v5144, %v5444
    %v5659 = vsel %vm3763, %v5145, %v5446
    %v5660 = vsel %vm3763, %v5146, %v5448
    %v5661 = vsel %vm3763, %v5147, %v5450
    %v5662 = vsel %vm3763, %v5148, %v5452
    %v5663 = vsel %vm5613, %v5647, %v5486
    %v5664 = vsel %vm5613, %v5648, %v5488
    %v5665 = vsel %vm5613, %v5649, %v5490
    %v5666 = vsel %vm5613, %v5650, %v5492
    %v5667 = vsel %vm5613, %v5651, %v5494
    %v5668 = vsel %vm5613, %v5652, %v5496
    %v5669 = vsel %vm5613, %v5653, %v5498
    %v5670 = vsel %vm5613, %v5654, %v5500
    %v5671 = vsel %vm5613, %v5655, %v5502
    %v5672 = vsel %vm5613, %v5656, %v5504
    %v5673 = vsel %vm5613, %v5657, %v5506
    %v5674 = vsel %vm5613, %v5658, %v5508
    %v5675 = vsel %vm5613, %v5659, %v5510
    %v5676 = vsel %vm5613, %v5660, %v5512
    %v5677 = vsel %vm5613, %v5661, %v5514
    %v5678 = vsel %vm5613, %v5662, %v5516
    %v5679 = vsel %vm5630, %v5663, %v5550
    %v5680 = vsel %vm5630, %v5664, %v5552
    %v5681 = vsel %vm5630, %v5665, %v5554
    %v5682 = vsel %vm5630, %v5666, %v5556
    %v5683 = vsel %vm5630, %v5667, %v5558
    %v5684 = vsel %vm5630, %v5668, %v5560
    %v5685 = vsel %vm5630, %v5669, %v5562
    %v5686 = vsel %vm5630, %v5670, %v5564
    %v5687 = vsel %vm5630, %v5671, %v5566
    %v5688 = vsel %vm5630, %v5672, %v5568
    %v5689 = vsel %vm5630, %v5673, %v5570
    %v5690 = vsel %vm5630, %v5674, %v5572
    %v5691 = vsel %vm5630, %v5675, %v5574
    %v5692 = vsel %vm5630, %v5676, %v5576
    %v5693 = vsel %vm5630, %v5677, %v5578
    %v5694 = vsel %vm5630, %v5678, %v5580
    %v5695 = vld [vmem:[%s3] sm:$0xff]
    %v5696 = vld [vmem:[%s3 + $0x8] sm:$0xff]
    %v5697 = vld [vmem:[%s3 + $0x10] sm:$0xff]
    %v5698 = vld [vmem:[%s3 + $0x18] sm:$0xff]
    %v5699 = vld [vmem:[%s3 + $0x20] sm:$0xff]
    %v5700 = vld [vmem:[%s3 + $0x28] sm:$0xff]
    %v5701 = vld [vmem:[%s3 + $0x30] sm:$0xff]
    %v5702 = vld [vmem:[%s3 + $0x38] sm:$0xff]
    %v5703 = vld [vmem:[%s3 + $0x40] sm:$0xff]
    %v5704 = vld [vmem:[%s3 + $0x48] sm:$0xff]
    %v5705 = vld [vmem:[%s3 + $0x50] sm:$0xff]
    %v5706 = vld [vmem:[%s3 + $0x58] sm:$0xff]
    %v5707 = vld [vmem:[%s3 + $0x60] sm:$0xff]
    %v5708 = vld [vmem:[%s3 + $0x68] sm:$0xff]
    %v5709 = vld [vmem:[%s3 + $0x70] sm:$0xff]
    %v5710 = vld [vmem:[%s3 + $0x78] sm:$0xff]
    %v5711 = vld [vmem:[%s3 + $0x80] sm:$0xff]
    %v5712 = vld [vmem:[%s3 + $0x88] sm:$0xff]
    %v5713 = vld [vmem:[%s3 + $0x90] sm:$0xff]
    %v5714 = vld [vmem:[%s3 + $0x98] sm:$0xff]
    %v5715 = vld [vmem:[%s3 + $0xa0] sm:$0xff]
    %v5716 = vld [vmem:[%s3 + $0xa8] sm:$0xff]
    %v5717 = vld [vmem:[%s3 + $0xb0] sm:$0xff]
    %v5718 = vld [vmem:[%s3 + $0xb8] sm:$0xff]
    %v5719 = vld [vmem:[%s3 + $0xc0] sm:$0xff]
    %v5720 = vld [vmem:[%s3 + $0xc8] sm:$0xff]
    %v5721 = vld [vmem:[%s3 + $0xd0] sm:$0xff]
    %v5722 = vld [vmem:[%s3 + $0xd8] sm:$0xff]
    %v5723 = vld [vmem:[%s3 + $0xe0] sm:$0xff]
    %v5724 = vld [vmem:[%s3 + $0xe8] sm:$0xff]
    %v5725 = vld [vmem:[%s3 + $0xf0] sm:$0xff]
    %v5726 = vld [vmem:[%s3 + $0xf8] sm:$0xff]
    %v5727 = vld [vmem:[%s3 + $0x100] sm:$0xff]
    %v5728 = vld [vmem:[%s3 + $0x108] sm:$0xff]
    %v5729 = vld [vmem:[%s3 + $0x110] sm:$0xff]
    %v5730 = vld [vmem:[%s3 + $0x118] sm:$0xff]
    %v5732 = vsel %vm3763, %v5197, 0
    %v5735 = vsel %vm3763, %v5198, 0
    %v5738 = vsel %vm3763, %v5199, 0
    %v5741 = vsel %vm3763, %v5200, 0
    %v5744 = vsel %vm3763, %v5201, 0
    %v5747 = vsel %vm3763, %v5202, 0
    %v5750 = vsel %vm3763, %v5203, 0
    %v5753 = vsel %vm3763, %v5204, 0
    %v5756 = vsel %vm3763, %v5205, 0
    %v5759 = vsel %vm3763, %v5206, 0
    %v5762 = vsel %vm3763, %v5207, 0
    %v5765 = vsel %vm3763, %v5208, 0
    %v5768 = vsel %vm3763, %v5209, 0
    %v5771 = vsel %vm3763, %v5210, 0
    %v5774 = vsel %vm3763, %v5211, 0
    %v5777 = vsel %vm3763, %v5212, 0
    %5779 = vmatprep.subr.mxu0 0.0
    %5780 = vmatpush1.msra.mxu0 %v5695
    %5781 = vmatprep.subr.mxu0 0.0
    %5782 = vmatpush1.msra.mxu0 %v5696
    %5783 = vmatprep.subr.mxu0 0.0
    %5784 = vmatpush1.msra.mxu0 %v5697
    %5785 = vmatprep.subr.mxu0 0.0
    %5786 = vmatpush1.msra.mxu0 %v5698
    %5787 = vmatprep.subr.mxu0 0.0
    %5788 = vmatpush1.msra.mxu0 %v5699
    %5789 = vmatprep.subr.mxu0 0.0
    %5790 = vmatpush1.msra.mxu0 %v5700
    %5791 = vmatprep.subr.mxu0 0.0
    %5792 = vmatpush1.msra.mxu0 %v5701
    %5793 = vmatprep.subr.mxu0 0.0
    %5794 = vmatpush1.msra.mxu0 %v5702
    %5795 = vmatprep.subr.mxu0 0.0
    %5796 = vmatpush1.msra.mxu0 %v5703
    %5797 = vmatprep.subr.mxu0 0.0
    %5798 = vmatpush1.msra.mxu0 %v5704
    %5799 = vmatprep.subr.mxu0 0.0
    %5800 = vmatpush1.msra.mxu0 %v5705
    %5801 = vmatprep.subr.mxu0 0.0
    %5802 = vmatpush1.msra.mxu0 %v5706
    %5803 = vmatprep.subr.mxu0 0.0
    %5804 = vmatpush1.msra.mxu0 %v5707
    %5805 = vmatprep.subr.mxu0 0.0
    %5806 = vmatpush1.msra.mxu0 %v5708
    %5807 = vmatprep.subr.mxu0 0.0
    %5808 = vmatpush1.msra.mxu0 %v5709
    %5809 = vmatprep.subr.mxu0 0.0
    %5810 = vmatpush1.msra.mxu0 %v5710
    %5811 = vmatprep.subr.mxu0 0.0
    %5812 = vmatpush1.msra.mxu0 %v5711
    %5813 = vmatprep.subr.mxu0 0.0
    %5814 = vmatpush1.msra.mxu0 %v5712
    %5815 = vmatprep.subr.mxu0 0.0
    %5816 = vmatpush1.msra.mxu0 %v5713
    %5817 = vmatprep.subr.mxu0 0.0
    %5818 = vmatpush1.msra.mxu0 %v5714
    %5819 = vmatprep.subr.mxu0 0.0
    %5820 = vmatpush1.msra.mxu0 %v5715
    %5821 = vmatprep.subr.mxu0 0.0
    %5822 = vmatpush1.msra.mxu0 %v5716
    %5823 = vmatprep.subr.mxu0 0.0
    %5824 = vmatpush1.msra.mxu0 %v5717
    %5825 = vmatprep.subr.mxu0 0.0
    %5826 = vmatpush1.msra.mxu0 %v5718
    %5827 = vmatprep.subr.mxu0 0.0
    %5828 = vmatpush1.msra.mxu0 %v5719
    %5829 = vmatprep.subr.mxu0 0.0
    %5830 = vmatpush1.msra.mxu0 %v5720
    %5831 = vmatprep.subr.mxu0 0.0
    %5832 = vmatpush1.msra.mxu0 %v5721
    %5833 = vmatprep.subr.mxu0 0.0
    %5834 = vmatpush1.msra.mxu0 %v5722
    %5835 = vmatprep.subr.mxu0 0.0
    %5836 = vmatpush1.msra.mxu0 %v5723
    %5837 = vmatprep.subr.mxu0 0.0
    %5838 = vmatpush1.msra.mxu0 %v5724
    %5839 = vmatprep.subr.mxu0 0.0
    %5840 = vmatpush1.msra.mxu0 %v5725
    %5841 = vmatprep.subr.mxu0 0.0
    %5842 = vmatpush1.msra.mxu0 %v5726
    %5843 = vmatprep.mubr.f32.mxu0 %v5679
    %5844 = vmatmul.mubr.f32.gmra.mrb[0].mxu0 %v5631
    %v5845 = vpop.f32.mrb[0].mxu0
    %v5846 = vadd.f32 0.0, %v5845
    %v5847 = vpop.f32.mrb[0].mxu0
    %5848 = vmatprep.mubr.f32.mxu0 %v5680
    %5849 = vmatmul.mubr.f32.gmra.mrb[0].mxu0 %v5632
    %v5850 = vpop.f32.mrb[0].mxu0
    %v5851 = vadd.f32 0.0, %v5850
    %v5852 = vpop.f32.mrb[0].mxu0
    %5853 = vmatprep.mubr.f32.mxu0 %v5681
    %5854 = vmatmul.mubr.f32.gmra.mrb[0].mxu0 %v5633
    %v5855 = vpop.f32.mrb[0].mxu0
    %v5856 = vadd.f32 0.0, %v5855
    %v5857 = vpop.f32.mrb[0].mxu0
    %5858 = vmatprep.mubr.f32.mxu0 %v5682
    %5859 = vmatmul.mubr.f32.gmra.mrb[0].mxu0 %v5634
    %v5860 = vpop.f32.mrb[0].mxu0
    %v5861 = vadd.f32 0.0, %v5860
    %v5862 = vpop.f32.mrb[0].mxu0
    %5863 = vmatprep.mubr.f32.mxu0 %v5683
    %5864 = vmatmul.mubr.f32.gmra.mrb[0].mxu0 %v5635
    %v5865 = vpop.f32.mrb[0].mxu0
    %v5866 = vadd.f32 0.0, %v5865
    %v5867 = vpop.f32.mrb[0].mxu0
    %5868 = vmatprep.mubr.f32.mxu0 %v5684
    %5869 = vmatmul.mubr.f32.gmra.mrb[0].mxu0 %v5636
    %v5870 = vpop.f32.mrb[0].mxu0
    %v5871 = vadd.f32 0.0, %v5870
    %v5872 = vpop.f32.mrb[0].mxu0
    %5873 = vmatprep.mubr.f32.mxu0 %v5685
    %5874 = vmatmul.mubr.f32.gmra.mrb[0].mxu0 %v5637
    %v5875 = vpop.f32.mrb[0].mxu0
    %v5876 = vadd.f32 0.0, %v5875
    %v5877 = vpop.f32.mrb[0].mxu0
    %5878 = vmatprep.mubr.f32.mxu0 %v5686
    %5879 = vmatmul.mubr.f32.gmra.mrb[0].mxu0 %v5638
    %v5880 = vpop.f32.mrb[0].mxu0
    %v5881 = vadd.f32 0.0, %v5880
    %v5882 = vpop.f32.mrb[0].mxu0
    %5883 = vmatprep.mubr.f32.mxu0 %v5687
    %5884 = vmatmul.mubr.f32.gmra.mrb[0].mxu0 %v5639
    %v5885 = vpop.f32.mrb[0].mxu0
    %v5886 = vadd.f32 0.0, %v5885
    %v5887 = vpop.f32.mrb[0].mxu0
    %5888 = vmatprep.mubr.f32.mxu0 %v5688
    %5889 = vmatmul.mubr.f32.gmra.mrb[0].mxu0 %v5640
    %v5890 = vpop.f32.mrb[0].mxu0
    %v5891 = vadd.f32 0.0, %v5890
    %v5892 = vpop.f32.mrb[0].mxu0
    %5893 = vmatprep.mubr.f32.mxu0 %v5689
    %5894 = vmatmul.mubr.f32.gmra.mrb[0].mxu0 %v5641
    %v5895 = vpop.f32.mrb[0].mxu0
    %v5896 = vadd.f32 0.0, %v5895
    %v5897 = vpop.f32.mrb[0].mxu0
    %5898 = vmatprep.mubr.f32.mxu0 %v5690
    %5899 = vmatmul.mubr.f32.gmra.mrb[0].mxu0 %v5642
    %v5900 = vpop.f32.mrb[0].mxu0
    %v5901 = vadd.f32 0.0, %v5900
    %v5902 = vpop.f32.mrb[0].mxu0
    %5903 = vmatprep.mubr.f32.mxu0 %v5691
    %5904 = vmatmul.mubr.f32.gmra.mrb[0].mxu0 %v5643
    %v5905 = vpop.f32.mrb[0].mxu0
    %v5906 = vadd.f32 0.0, %v5905
    %v5907 = vpop.f32.mrb[0].mxu0
    %5908 = vmatprep.mubr.f32.mxu0 %v5692
    %5909 = vmatmul.mubr.f32.gmra.mrb[0].mxu0 %v5644
    %v5910 = vpop.f32.mrb[0].mxu0
    %v5911 = vadd.f32 0.0, %v5910
    %v5912 = vpop.f32.mrb[0].mxu0
    %5913 = vmatprep.mubr.f32.mxu0 %v5693
    %5914 = vmatmul.mubr.f32.gmra.mrb[0].mxu0 %v5645
    %v5915 = vpop.f32.mrb[0].mxu0
    %v5916 = vadd.f32 0.0, %v5915
    %v5917 = vpop.f32.mrb[0].mxu0
    %5918 = vmatprep.mubr.f32.mxu0 %v5694
    %5919 = vmatmul.mubr.f32.gmra.mrb[0].mxu0 %v5646
    %v5920 = vpop.f32.mrb[0].mxu0
    %v5921 = vadd.f32 0.0, %v5920
    %v5922 = vpop.f32.mrb[0].mxu0
    %5923 = vdwg.mxu0
    %5924 = vmatprep.subr.mxu0 0.0
    %5925 = vmatpush1.msra.mxu0 %v5727
    %5926 = vmatprep.subr.mxu0 0.0
    %5927 = vmatpush1.msra.mxu0 %v5728
    %5928 = vmatprep.subr.mxu0 0.0
    %5929 = vmatpush1.msra.mxu0 %v5729
    %5930 = vmatprep.subr.mxu0 0.0
    %5931 = vmatpush1.msra.mxu0 %v5730
    %5932 = vmatprep.subr.mxu0 0.0
    %5933 = vmatpush1.msra.mxu0 0.0
    %5934 = vmatprep.subr.mxu0 0.0
    %5935 = vmatpush1.msra.mxu0 0.0
    %5936 = vmatprep.subr.mxu0 0.0
    %5937 = vmatpush1.msra.mxu0 0.0
    %5938 = vmatprep.subr.mxu0 0.0
    %5939 = vmatpush1.msra.mxu0 0.0
    %5940 = vmatprep.subr.mxu0 0.0
    %5941 = vmatpush1.msra.mxu0 0.0
    %5942 = vmatprep.subr.mxu0 0.0
    %5943 = vmatpush1.msra.mxu0 0.0
    %5944 = vmatprep.subr.mxu0 0.0
    %5945 = vmatpush1.msra.mxu0 0.0
    %5946 = vmatprep.subr.mxu0 0.0
    %5947 = vmatpush1.msra.mxu0 0.0
    %5948 = vmatprep.subr.mxu0 0.0
    %5949 = vmatpush1.msra.mxu0 0.0
    %5950 = vmatprep.subr.mxu0 0.0
    %5951 = vmatpush1.msra.mxu0 0.0
    %5952 = vmatprep.subr.mxu0 0.0
    %5953 = vmatpush1.msra.mxu0 0.0
    %5954 = vmatprep.subr.mxu0 0.0
    %5955 = vmatpush1.msra.mxu0 0.0
    %5956 = vmatprep.subr.mxu0 0.0
    %5957 = vmatpush1.msra.mxu0 0.0
    %5958 = vmatprep.subr.mxu0 0.0
    %5959 = vmatpush1.msra.mxu0 0.0
    %5960 = vmatprep.subr.mxu0 0.0
    %5961 = vmatpush1.msra.mxu0 0.0
    %5962 = vmatprep.subr.mxu0 0.0
    %5963 = vmatpush1.msra.mxu0 0.0
    %5964 = vmatprep.subr.mxu0 0.0
    %5965 = vmatpush1.msra.mxu0 0.0
    %5966 = vmatprep.subr.mxu0 0.0
    %5967 = vmatpush1.msra.mxu0 0.0
    %5968 = vmatprep.subr.mxu0 0.0
    %5969 = vmatpush1.msra.mxu0 0.0
    %5970 = vmatprep.subr.mxu0 0.0
    %5971 = vmatpush1.msra.mxu0 0.0
    %5972 = vmatprep.subr.mxu0 0.0
    %5973 = vmatpush1.msra.mxu0 0.0
    %5974 = vmatprep.subr.mxu0 0.0
    %5975 = vmatpush1.msra.mxu0 0.0
    %5976 = vmatprep.subr.mxu0 0.0
    %5977 = vmatpush1.msra.mxu0 0.0
    %5978 = vmatprep.subr.mxu0 0.0
    %5979 = vmatpush1.msra.mxu0 0.0
    %5980 = vmatprep.subr.mxu0 0.0
    %5981 = vmatpush1.msra.mxu0 0.0
    %5982 = vmatprep.subr.mxu0 0.0
    %5983 = vmatpush1.msra.mxu0 0.0
    %5984 = vmatprep.subr.mxu0 0.0
    %5985 = vmatpush1.msra.mxu0 0.0
    %5986 = vmatprep.subr.mxu0 0.0
    %5987 = vmatpush1.msra.mxu0 0.0
    %5988 = vmatprep.mubr.f32.mxu0 0.0
    %5989 = vmatmul.mubr.f32.gmra.mrb[0].mxu0 %v5732
    %v5990 = vpop.f32.mrb[0].mxu0
    %v5991 = vadd.f32 %v5846, %v5990
    %v5992 = vpop.f32.mrb[0].mxu0
    %5993 = vmatprep.mubr.f32.mxu0 0.0
    %5994 = vmatmul.mubr.f32.gmra.mrb[0].mxu0 %v5735
    %v5995 = vpop.f32.mrb[0].mxu0
    %v5996 = vadd.f32 %v5851, %v5995
    %v5997 = vpop.f32.mrb[0].mxu0
    %5998 = vmatprep.mubr.f32.mxu0 0.0
    %5999 = vmatmul.mubr.f32.gmra.mrb[0].mxu0 %v5738
    %v6000 = vpop.f32.mrb[0].mxu0
    %v6001 = vadd.f32 %v5856, %v6000
    %v6002 = vpop.f32.mrb[0].mxu0
    %6003 = vmatprep.mubr.f32.mxu0 0.0
    %6004 = vmatmul.mubr.f32.gmra.mrb[0].mxu0 %v5741
    %v6005 = vpop.f32.mrb[0].mxu0
    %v6006 = vadd.f32 %v5861, %v6005
    %v6007 = vpop.f32.mrb[0].mxu0
    %6008 = vmatprep.mubr.f32.mxu0 0.0
    %6009 = vmatmul.mubr.f32.gmra.mrb[0].mxu0 %v5744
    %v6010 = vpop.f32.mrb[0].mxu0
    %v6011 = vadd.f32 %v5866, %v6010
    %v6012 = vpop.f32.mrb[0].mxu0
    %6013 = vmatprep.mubr.f32.mxu0 0.0
    %6014 = vmatmul.mubr.f32.gmra.mrb[0].mxu0 %v5747
    %v6015 = vpop.f32.mrb[0].mxu0
    %v6016 = vadd.f32 %v5871, %v6015
    %v6017 = vpop.f32.mrb[0].mxu0
    %6018 = vmatprep.mubr.f32.mxu0 0.0
    %6019 = vmatmul.mubr.f32.gmra.mrb[0].mxu0 %v5750
    %v6020 = vpop.f32.mrb[0].mxu0
    %v6021 = vadd.f32 %v5876, %v6020
    %v6022 = vpop.f32.mrb[0].mxu0
    %6023 = vmatprep.mubr.f32.mxu0 0.0
    %6024 = vmatmul.mubr.f32.gmra.mrb[0].mxu0 %v5753
    %v6025 = vpop.f32.mrb[0].mxu0
    %v6026 = vadd.f32 %v5881, %v6025
    %v6027 = vpop.f32.mrb[0].mxu0
    %6028 = vmatprep.mubr.f32.mxu0 0.0
    %6029 = vmatmul.mubr.f32.gmra.mrb[0].mxu0 %v5756
    %v6030 = vpop.f32.mrb[0].mxu0
    %v6031 = vadd.f32 %v5886, %v6030
    %v6032 = vpop.f32.mrb[0].mxu0
    %6033 = vmatprep.mubr.f32.mxu0 0.0
    %6034 = vmatmul.mubr.f32.gmra.mrb[0].mxu0 %v5759
    %v6035 = vpop.f32.mrb[0].mxu0
    %v6036 = vadd.f32 %v5891, %v6035
    %v6037 = vpop.f32.mrb[0].mxu0
    %6038 = vmatprep.mubr.f32.mxu0 0.0
    %6039 = vmatmul.mubr.f32.gmra.mrb[0].mxu0 %v5762
    %v6040 = vpop.f32.mrb[0].mxu0
    %v6041 = vadd.f32 %v5896, %v6040
    %v6042 = vpop.f32.mrb[0].mxu0
    %6043 = vmatprep.mubr.f32.mxu0 0.0
    %6044 = vmatmul.mubr.f32.gmra.mrb[0].mxu0 %v5765
    %v6045 = vpop.f32.mrb[0].mxu0
    %v6046 = vadd.f32 %v5901, %v6045
    %v6047 = vpop.f32.mrb[0].mxu0
    %6048 = vmatprep.mubr.f32.mxu0 0.0
    %6049 = vmatmul.mubr.f32.gmra.mrb[0].mxu0 %v5768
    %v6050 = vpop.f32.mrb[0].mxu0
    %v6051 = vadd.f32 %v5906, %v6050
    %v6052 = vpop.f32.mrb[0].mxu0
    %6053 = vmatprep.mubr.f32.mxu0 0.0
    %6054 = vmatmul.mubr.f32.gmra.mrb[0].mxu0 %v5771
    %v6055 = vpop.f32.mrb[0].mxu0
    %v6056 = vadd.f32 %v5911, %v6055
    %v6057 = vpop.f32.mrb[0].mxu0
    %6058 = vmatprep.mubr.f32.mxu0 0.0
    %6059 = vmatmul.mubr.f32.gmra.mrb[0].mxu0 %v5774
    %v6060 = vpop.f32.mrb[0].mxu0
    %v6061 = vadd.f32 %v5916, %v6060
    %v6062 = vpop.f32.mrb[0].mxu0
    %6063 = vmatprep.mubr.f32.mxu0 0.0
    %6064 = vmatmul.mubr.f32.gmra.mrb[0].mxu0 %v5777
    %v6065 = vpop.f32.mrb[0].mxu0
    %v6066 = vadd.f32 %v5921, %v6065
    %v6067 = vpop.f32.mrb[0].mxu0
    %6068 = vdwg.mxu0
    %6069 = vst.msk [vmem:[#allocation5] sm:$0xff] %vm5613, %v5991
    %6070 = vst.msk [vmem:[#allocation5 + $0x8] sm:$0xff] %vm5613, %v5996
    %6071 = vst.msk [vmem:[#allocation5 + $0x10] sm:$0xff] %vm5613, %v6001
    %6072 = vst.msk [vmem:[#allocation5 + $0x18] sm:$0xff] %vm5613, %v6006
    %6073 = vst.msk [vmem:[#allocation5 + $0x20] sm:$0xff] %vm5613, %v6011
    %6074 = vst.msk [vmem:[#allocation5 + $0x28] sm:$0xff] %vm5613, %v6016
    %6075 = vst.msk [vmem:[#allocation5 + $0x30] sm:$0xff] %vm5613, %v6021
    %6076 = vst.msk [vmem:[#allocation5 + $0x38] sm:$0xff] %vm5613, %v6026
    %6077 = vst.msk [vmem:[#allocation5 + $0x40] sm:$0xff] %vm5613, %v6031
    %6078 = vst.msk [vmem:[#allocation5 + $0x48] sm:$0xff] %vm5613, %v6036
    %6079 = vst.msk [vmem:[#allocation5 + $0x50] sm:$0xff] %vm5613, %v6041
    %6080 = vst.msk [vmem:[#allocation5 + $0x58] sm:$0xff] %vm5613, %v6046
    %6081 = vst.msk [vmem:[#allocation5 + $0x60] sm:$0xff] %vm5613, %v6051
    %6082 = vst.msk [vmem:[#allocation5 + $0x68] sm:$0xff] %vm5613, %v6056
    %6083 = vst.msk [vmem:[#allocation5 + $0x70] sm:$0xff] %vm5613, %v6061
    %6084 = vst.msk [vmem:[#allocation5 + $0x78] sm:$0xff] %vm5613, %v6066
    %v6085 = vld [vmem:[#allocation5] sm:$0x1]
    %v6086 = vld [vmem:[#allocation5 + $0x8] sm:$0x1]
    %v6087 = vld [vmem:[#allocation5 + $0x10] sm:$0x1]
    %v6088 = vld [vmem:[#allocation5 + $0x18] sm:$0x1]
    %v6089 = vld [vmem:[#allocation5 + $0x20] sm:$0x1]
    %v6090 = vld [vmem:[#allocation5 + $0x28] sm:$0x1]
    %v6091 = vld [vmem:[#allocation5 + $0x30] sm:$0x1]
    %v6092 = vld [vmem:[#allocation5 + $0x38] sm:$0x1]
    %v6093 = vld [vmem:[#allocation5 + $0x40] sm:$0x1]
    %v6094 = vld [vmem:[#allocation5 + $0x48] sm:$0x1]
    %v6095 = vld [vmem:[#allocation5 + $0x50] sm:$0x1]
    %v6096 = vld [vmem:[#allocation5 + $0x58] sm:$0x1]
    %v6097 = vld [vmem:[#allocation5 + $0x60] sm:$0x1]
    %v6098 = vld [vmem:[#allocation5 + $0x68] sm:$0x1]
    %v6099 = vld [vmem:[#allocation5 + $0x70] sm:$0x1]
    %v6100 = vld [vmem:[#allocation5 + $0x78] sm:$0x1]
    %v6101 = vld [vmem:[#allocation5 + $0x1] sm:$0x1]
    %v6102 = vld [vmem:[#allocation5 + $0x9] sm:$0x1]
    %v6103 = vld [vmem:[#allocation5 + $0x11] sm:$0x1]
    %v6104 = vld [vmem:[#allocation5 + $0x19] sm:$0x1]
    %v6105 = vld [vmem:[#allocation5 + $0x21] sm:$0x1]
    %v6106 = vld [vmem:[#allocation5 + $0x29] sm:$0x1]
    %v6107 = vld [vmem:[#allocation5 + $0x31] sm:$0x1]
    %v6108 = vld [vmem:[#allocation5 + $0x39] sm:$0x1]
    %v6109 = vld [vmem:[#allocation5 + $0x41] sm:$0x1]
    %v6110 = vld [vmem:[#allocation5 + $0x49] sm:$0x1]
    %v6111 = vld [vmem:[#allocation5 + $0x51] sm:$0x1]
    %v6112 = vld [vmem:[#allocation5 + $0x59] sm:$0x1]
    %v6113 = vld [vmem:[#allocation5 + $0x61] sm:$0x1]
    %v6114 = vld [vmem:[#allocation5 + $0x69] sm:$0x1]
    %v6115 = vld [vmem:[#allocation5 + $0x71] sm:$0x1]
    %v6116 = vld [vmem:[#allocation5 + $0x79] sm:$0x1]
    %v6117 = vmax.f32 %v6085, %v6101
    %v6118 = vmax.f32 %v6086, %v6102
    %v6119 = vmax.f32 %v6087, %v6103
    %v6120 = vmax.f32 %v6088, %v6104
    %v6121 = vmax.f32 %v6089, %v6105
    %v6122 = vmax.f32 %v6090, %v6106
    %v6123 = vmax.f32 %v6091, %v6107
    %v6124 = vmax.f32 %v6092, %v6108
    %v6125 = vmax.f32 %v6093, %v6109
    %v6126 = vmax.f32 %v6094, %v6110
    %v6127 = vmax.f32 %v6095, %v6111
    %v6128 = vmax.f32 %v6096, %v6112
    %v6129 = vmax.f32 %v6097, %v6113
    %v6130 = vmax.f32 %v6098, %v6114
    %v6131 = vmax.f32 %v6099, %v6115
    %v6132 = vmax.f32 %v6100, %v6116
    %v6149 = vrot.slane %v6118, 7
    %vm6150 = vcmask 1041409
    %v6151 = vsel %vm6150, %v6149, %v6117
    %v6152 = vrot.slane %v6119, 6
    %vm6153 = vcmask 1042434
    %v6154 = vsel %vm6153, %v6152, %v6151
    %v6155 = vrot.slane %v6120, 5
    %vm6156 = vcmask 1043459
    %v6157 = vsel %vm6156, %v6155, %v6154
    %v6158 = vrot.slane %v6121, 4
    %vm6159 = vcmask 1044484
    %v6160 = vsel %vm6159, %v6158, %v6157
    %v6161 = vrot.slane %v6122, 3
    %vm6162 = vcmask 1045509
    %v6163 = vsel %vm6162, %v6161, %v6160
    %v6164 = vrot.slane %v6123, 2
    %vm6165 = vcmask 1046534
    %v6166 = vsel %vm6165, %v6164, %v6163
    %v6167 = vrot.slane %v6124, 1
    %vm6168 = vcmask 1047559
    %v6169 = vsel %vm6168, %v6167, %v6166
    %v6170 = vrot.slane %v6126, 7
    %v6171 = vsel %vm6150, %v6170, %v6125
    %v6172 = vrot.slane %v6127, 6
    %v6173 = vsel %vm6153, %v6172, %v6171
    %v6174 = vrot.slane %v6128, 5
    %v6175 = vsel %vm6156, %v6174, %v6173
    %v6176 = vrot.slane %v6129, 4
    %v6177 = vsel %vm6159, %v6176, %v6175
    %v6178 = vrot.slane %v6130, 3
    %v6179 = vsel %vm6162, %v6178, %v6177
    %v6180 = vrot.slane %v6131, 2
    %v6181 = vsel %vm6165, %v6180, %v6179
    %v6182 = vrot.slane %v6132, 1
    %v6183 = vsel %vm6168, %v6182, %v6181
    %6186 = vst.msk [vmem:[#allocation6] sm:$0xff] %vm5613, %v6169
    %6187 = vst.msk [vmem:[#allocation6 + $0x10] sm:$0xff] %vm5613, %v6183
    %v6188 = vld [vmem:[#allocation5 + $0x2] sm:$0x1]
    %v6189 = vld [vmem:[#allocation5 + $0xa] sm:$0x1]
    %v6190 = vld [vmem:[#allocation5 + $0x12] sm:$0x1]
    %v6191 = vld [vmem:[#allocation5 + $0x1a] sm:$0x1]
    %v6192 = vld [vmem:[#allocation5 + $0x22] sm:$0x1]
    %v6193 = vld [vmem:[#allocation5 + $0x2a] sm:$0x1]
    %v6194 = vld [vmem:[#allocation5 + $0x32] sm:$0x1]
    %v6195 = vld [vmem:[#allocation5 + $0x3a] sm:$0x1]
    %v6196 = vld [vmem:[#allocation5 + $0x42] sm:$0x1]
    %v6197 = vld [vmem:[#allocation5 + $0x4a] sm:$0x1]
    %v6198 = vld [vmem:[#allocation5 + $0x52] sm:$0x1]
    %v6199 = vld [vmem:[#allocation5 + $0x5a] sm:$0x1]
    %v6200 = vld [vmem:[#allocation5 + $0x62] sm:$0x1]
    %v6201 = vld [vmem:[#allocation5 + $0x6a] sm:$0x1]
    %v6202 = vld [vmem:[#allocation5 + $0x72] sm:$0x1]
    %v6203 = vld [vmem:[#allocation5 + $0x7a] sm:$0x1]
    %v6204 = vld [vmem:[#allocation5 + $0x3] sm:$0x1]
    %v6205 = vld [vmem:[#allocation5 + $0xb] sm:$0x1]
    %v6206 = vld [vmem:[#allocation5 + $0x13] sm:$0x1]
    %v6207 = vld [vmem:[#allocation5 + $0x1b] sm:$0x1]
    %v6208 = vld [vmem:[#allocation5 + $0x23] sm:$0x1]
    %v6209 = vld [vmem:[#allocation5 + $0x2b] sm:$0x1]
    %v6210 = vld [vmem:[#allocation5 + $0x33] sm:$0x1]
    %v6211 = vld [vmem:[#allocation5 + $0x3b] sm:$0x1]
    %v6212 = vld [vmem:[#allocation5 + $0x43] sm:$0x1]
    %v6213 = vld [vmem:[#allocation5 + $0x4b] sm:$0x1]
    %v6214 = vld [vmem:[#allocation5 + $0x53] sm:$0x1]
    %v6215 = vld [vmem:[#allocation5 + $0x5b] sm:$0x1]
    %v6216 = vld [vmem:[#allocation5 + $0x63] sm:$0x1]
    %v6217 = vld [vmem:[#allocation5 + $0x6b] sm:$0x1]
    %v6218 = vld [vmem:[#allocation5 + $0x73] sm:$0x1]
    %v6219 = vld [vmem:[#allocation5 + $0x7b] sm:$0x1]
    %v6220 = vmax.f32 %v6188, %v6204
    %v6221 = vmax.f32 %v6189, %v6205
    %v6222 = vmax.f32 %v6190, %v6206
    %v6223 = vmax.f32 %v6191, %v6207
    %v6224 = vmax.f32 %v6192, %v6208
    %v6225 = vmax.f32 %v6193, %v6209
    %v6226 = vmax.f32 %v6194, %v6210
    %v6227 = vmax.f32 %v6195, %v6211
    %v6228 = vmax.f32 %v6196, %v6212
    %v6229 = vmax.f32 %v6197, %v6213
    %v6230 = vmax.f32 %v6198, %v6214
    %v6231 = vmax.f32 %v6199, %v6215
    %v6232 = vmax.f32 %v6200, %v6216
    %v6233 = vmax.f32 %v6201, %v6217
    %v6234 = vmax.f32 %v6202, %v6218
    %v6235 = vmax.f32 %v6203, %v6219
    %v6252 = vrot.slane %v6221, 7
    %v6253 = vsel %vm6150, %v6252, %v6220
    %v6254 = vrot.slane %v6222, 6
    %v6255 = vsel %vm6153, %v6254, %v6253
    %v6256 = vrot.slane %v6223, 5
    %v6257 = vsel %vm6156, %v6256, %v6255
    %v6258 = vrot.slane %v6224, 4
    %v6259 = vsel %vm6159, %v6258, %v6257
    %v6260 = vrot.slane %v6225, 3
    %v6261 = vsel %vm6162, %v6260, %v6259
    %v6262 = vrot.slane %v6226, 2
    %v6263 = vsel %vm6165, %v6262, %v6261
    %v6264 = vrot.slane %v6227, 1
    %v6265 = vsel %vm6168, %v6264, %v6263
    %v6266 = vrot.slane %v6229, 7
    %v6267 = vsel %vm6150, %v6266, %v6228
    %v6268 = vrot.slane %v6230, 6
    %v6269 = vsel %vm6153, %v6268, %v6267
    %v6270 = vrot.slane %v6231, 5
    %v6271 = vsel %vm6156, %v6270, %v6269
    %v6272 = vrot.slane %v6232, 4
    %v6273 = vsel %vm6159, %v6272, %v6271
    %v6274 = vrot.slane %v6233, 3
    %v6275 = vsel %vm6162, %v6274, %v6273
    %v6276 = vrot.slane %v6234, 2
    %v6277 = vsel %vm6165, %v6276, %v6275
    %v6278 = vrot.slane %v6235, 1
    %v6279 = vsel %vm6168, %v6278, %v6277
    %6280 = vrot.lane.b32.xlu0 %v6265, 64
    %v6281 = vpop.permute.xlu0 %6280
    %6282 = vrot.lane.b32.xlu0 %v6279, 64
    %v6283 = vpop.permute.xlu0 %6282
    %vm6286 = vcmask 1048064
    %6287 = vst.msk [vmem:[#allocation6] sm:$0xff] %vm6286, %v6281
    %6288 = vst.msk [vmem:[#allocation6 + $0x10] sm:$0xff] %vm6286, %v6283
    %v6289 = vld [vmem:[#allocation5 + $0x4] sm:$0x1]
    %v6290 = vld [vmem:[#allocation5 + $0xc] sm:$0x1]
    %v6291 = vld [vmem:[#allocation5 + $0x14] sm:$0x1]
    %v6292 = vld [vmem:[#allocation5 + $0x1c] sm:$0x1]
    %v6293 = vld [vmem:[#allocation5 + $0x24] sm:$0x1]
    %v6294 = vld [vmem:[#allocation5 + $0x2c] sm:$0x1]
    %v6295 = vld [vmem:[#allocation5 + $0x34] sm:$0x1]
    %v6296 = vld [vmem:[#allocation5 + $0x3c] sm:$0x1]
    %v6297 = vld [vmem:[#allocation5 + $0x44] sm:$0x1]
    %v6298 = vld [vmem:[#allocation5 + $0x4c] sm:$0x1]
    %v6299 = vld [vmem:[#allocation5 + $0x54] sm:$0x1]
    %v6300 = vld [vmem:[#allocation5 + $0x5c] sm:$0x1]
    %v6301 = vld [vmem:[#allocation5 + $0x64] sm:$0x1]
    %v6302 = vld [vmem:[#allocation5 + $0x6c] sm:$0x1]
    %v6303 = vld [vmem:[#allocation5 + $0x74] sm:$0x1]
    %v6304 = vld [vmem:[#allocation5 + $0x7c] sm:$0x1]
    %v6305 = vld [vmem:[#allocation5 + $0x5] sm:$0x1]
    %v6306 = vld [vmem:[#allocation5 + $0xd] sm:$0x1]
    %v6307 = vld [vmem:[#allocation5 + $0x15] sm:$0x1]
    %v6308 = vld [vmem:[#allocation5 + $0x1d] sm:$0x1]
    %v6309 = vld [vmem:[#allocation5 + $0x25] sm:$0x1]
    %v6310 = vld [vmem:[#allocation5 + $0x2d] sm:$0x1]
    %v6311 = vld [vmem:[#allocation5 + $0x35] sm:$0x1]
    %v6312 = vld [vmem:[#allocation5 + $0x3d] sm:$0x1]
    %v6313 = vld [vmem:[#allocation5 + $0x45] sm:$0x1]
    %v6314 = vld [vmem:[#allocation5 + $0x4d] sm:$0x1]
    %v6315 = vld [vmem:[#allocation5 + $0x55] sm:$0x1]
    %v6316 = vld [vmem:[#allocation5 + $0x5d] sm:$0x1]
    %v6317 = vld [vmem:[#allocation5 + $0x65] sm:$0x1]
    %v6318 = vld [vmem:[#allocation5 + $0x6d] sm:$0x1]
    %v6319 = vld [vmem:[#allocation5 + $0x75] sm:$0x1]
    %v6320 = vld [vmem:[#allocation5 + $0x7d] sm:$0x1]
    %v6321 = vmax.f32 %v6289, %v6305
    %v6322 = vmax.f32 %v6290, %v6306
    %v6323 = vmax.f32 %v6291, %v6307
    %v6324 = vmax.f32 %v6292, %v6308
    %v6325 = vmax.f32 %v6293, %v6309
    %v6326 = vmax.f32 %v6294, %v6310
    %v6327 = vmax.f32 %v6295, %v6311
    %v6328 = vmax.f32 %v6296, %v6312
    %v6329 = vmax.f32 %v6297, %v6313
    %v6330 = vmax.f32 %v6298, %v6314
    %v6331 = vmax.f32 %v6299, %v6315
    %v6332 = vmax.f32 %v6300, %v6316
    %v6333 = vmax.f32 %v6301, %v6317
    %v6334 = vmax.f32 %v6302, %v6318
    %v6335 = vmax.f32 %v6303, %v6319
    %v6336 = vmax.f32 %v6304, %v6320
    %v6353 = vrot.slane %v6322, 7
    %v6354 = vsel %vm6150, %v6353, %v6321
    %v6355 = vrot.slane %v6323, 6
    %v6356 = vsel %vm6153, %v6355, %v6354
    %v6357 = vrot.slane %v6324, 5
    %v6358 = vsel %vm6156, %v6357, %v6356
    %v6359 = vrot.slane %v6325, 4
    %v6360 = vsel %vm6159, %v6359, %v6358
    %v6361 = vrot.slane %v6326, 3
    %v6362 = vsel %vm6162, %v6361, %v6360
    %v6363 = vrot.slane %v6327, 2
    %v6364 = vsel %vm6165, %v6363, %v6362
    %v6365 = vrot.slane %v6328, 1
    %v6366 = vsel %vm6168, %v6365, %v6364
    %v6367 = vrot.slane %v6330, 7
    %v6368 = vsel %vm6150, %v6367, %v6329
    %v6369 = vrot.slane %v6331, 6
    %v6370 = vsel %vm6153, %v6369, %v6368
    %v6371 = vrot.slane %v6332, 5
    %v6372 = vsel %vm6156, %v6371, %v6370
    %v6373 = vrot.slane %v6333, 4
    %v6374 = vsel %vm6159, %v6373, %v6372
    %v6375 = vrot.slane %v6334, 3
    %v6376 = vsel %vm6162, %v6375, %v6374
    %v6377 = vrot.slane %v6335, 2
    %v6378 = vsel %vm6165, %v6377, %v6376
    %v6379 = vrot.slane %v6336, 1
    %v6380 = vsel %vm6168, %v6379, %v6378
    %6383 = vst.msk [vmem:[#allocation6 + $0x8] sm:$0xff] %vm5613, %v6366
    %6384 = vst.msk [vmem:[#allocation6 + $0x18] sm:$0xff] %vm5613, %v6380
    %v6385 = vld [vmem:[#allocation5 + $0x6] sm:$0x1]
    %v6386 = vld [vmem:[#allocation5 + $0xe] sm:$0x1]
    %v6387 = vld [vmem:[#allocation5 + $0x16] sm:$0x1]
    %v6388 = vld [vmem:[#allocation5 + $0x1e] sm:$0x1]
    %v6389 = vld [vmem:[#allocation5 + $0x26] sm:$0x1]
    %v6390 = vld [vmem:[#allocation5 + $0x2e] sm:$0x1]
    %v6391 = vld [vmem:[#allocation5 + $0x36] sm:$0x1]
    %v6392 = vld [vmem:[#allocation5 + $0x3e] sm:$0x1]
    %v6393 = vld [vmem:[#allocation5 + $0x46] sm:$0x1]
    %v6394 = vld [vmem:[#allocation5 + $0x4e] sm:$0x1]
    %v6395 = vld [vmem:[#allocation5 + $0x56] sm:$0x1]
    %v6396 = vld [vmem:[#allocation5 + $0x5e] sm:$0x1]
    %v6397 = vld [vmem:[#allocation5 + $0x66] sm:$0x1]
    %v6398 = vld [vmem:[#allocation5 + $0x6e] sm:$0x1]
    %v6399 = vld [vmem:[#allocation5 + $0x76] sm:$0x1]
    %v6400 = vld [vmem:[#allocation5 + $0x7e] sm:$0x1]
    %v6401 = vld [vmem:[#allocation5 + $0x7] sm:$0x1]
    %v6402 = vld [vmem:[#allocation5 + $0xf] sm:$0x1]
    %v6403 = vld [vmem:[#allocation5 + $0x17] sm:$0x1]
    %v6404 = vld [vmem:[#allocation5 + $0x1f] sm:$0x1]
    %v6405 = vld [vmem:[#allocation5 + $0x27] sm:$0x1]
    %v6406 = vld [vmem:[#allocation5 + $0x2f] sm:$0x1]
    %v6407 = vld [vmem:[#allocation5 + $0x37] sm:$0x1]
    %v6408 = vld [vmem:[#allocation5 + $0x3f] sm:$0x1]
    %v6409 = vld [vmem:[#allocation5 + $0x47] sm:$0x1]
    %v6410 = vld [vmem:[#allocation5 + $0x4f] sm:$0x1]
    %v6411 = vld [vmem:[#allocation5 + $0x57] sm:$0x1]
    %v6412 = vld [vmem:[#allocation5 + $0x5f] sm:$0x1]
    %v6413 = vld [vmem:[#allocation5 + $0x67] sm:$0x1]
    %v6414 = vld [vmem:[#allocation5 + $0x6f] sm:$0x1]
    %v6415 = vld [vmem:[#allocation5 + $0x77] sm:$0x1]
    %v6416 = vld [vmem:[#allocation5 + $0x7f] sm:$0x1]
    %v6417 = vmax.f32 %v6385, %v6401
    %v6418 = vmax.f32 %v6386, %v6402
    %v6419 = vmax.f32 %v6387, %v6403
    %v6420 = vmax.f32 %v6388, %v6404
    %v6421 = vmax.f32 %v6389, %v6405
    %v6422 = vmax.f32 %v6390, %v6406
    %v6423 = vmax.f32 %v6391, %v6407
    %v6424 = vmax.f32 %v6392, %v6408
    %v6425 = vmax.f32 %v6393, %v6409
    %v6426 = vmax.f32 %v6394, %v6410
    %v6427 = vmax.f32 %v6395, %v6411
    %v6428 = vmax.f32 %v6396, %v6412
    %v6429 = vmax.f32 %v6397, %v6413
    %v6430 = vmax.f32 %v6398, %v6414
    %v6431 = vmax.f32 %v6399, %v6415
    %v6432 = vmax.f32 %v6400, %v6416
    %v6449 = vrot.slane %v6418, 7
    %v6450 = vsel %vm6150, %v6449, %v6417
    %v6451 = vrot.slane %v6419, 6
    %v6452 = vsel %vm6153, %v6451, %v6450
    %v6453 = vrot.slane %v6420, 5
    %v6454 = vsel %vm6156, %v6453, %v6452
    %v6455 = vrot.slane %v6421, 4
    %v6456 = vsel %vm6159, %v6455, %v6454
    %v6457 = vrot.slane %v6422, 3
    %v6458 = vsel %vm6162, %v6457, %v6456
    %v6459 = vrot.slane %v6423, 2
    %v6460 = vsel %vm6165, %v6459, %v6458
    %v6461 = vrot.slane %v6424, 1
    %v6462 = vsel %vm6168, %v6461, %v6460
    %v6463 = vrot.slane %v6426, 7
    %v6464 = vsel %vm6150, %v6463, %v6425
    %v6465 = vrot.slane %v6427, 6
    %v6466 = vsel %vm6153, %v6465, %v6464
    %v6467 = vrot.slane %v6428, 5
    %v6468 = vsel %vm6156, %v6467, %v6466
    %v6469 = vrot.slane %v6429, 4
    %v6470 = vsel %vm6159, %v6469, %v6468
    %v6471 = vrot.slane %v6430, 3
    %v6472 = vsel %vm6162, %v6471, %v6470
    %v6473 = vrot.slane %v6431, 2
    %v6474 = vsel %vm6165, %v6473, %v6472
    %v6475 = vrot.slane %v6432, 1
    %v6476 = vsel %vm6168, %v6475, %v6474
    %6477 = vrot.lane.b32.xlu0 %v6462, 64
    %v6478 = vpop.permute.xlu0 %6477
    %6479 = vrot.lane.b32.xlu0 %v6476, 64
    %v6480 = vpop.permute.xlu0 %6479
    %6483 = vst.msk [vmem:[#allocation6 + $0x8] sm:$0xff] %vm6286, %v6478
    %6484 = vst.msk [vmem:[#allocation6 + $0x18] sm:$0xff] %vm6286, %v6480
    %v6485 = vld [vmem:[#allocation6] ss:$8 sm:$0x3]
    %s6486 = scalar_lea.vmem [#allocation6], 16
    %v6487 = vld [vmem:[%s6486] ss:$8 sm:$0x3]
    %s6488 = scalar_lea.vmem [#allocation6], 1
    %v6489 = vld [vmem:[%s6488] ss:$8 sm:$0x3]
    %s6490 = scalar_lea.vmem [#allocation6], 17
    %v6491 = vld [vmem:[%s6490] ss:$8 sm:$0x3]
    %v6492 = vmax.f32 %v6485, %v6489
    %v6493 = vmax.f32 %v6487, %v6491
    %v6494 = vld [vmem:[%s4] sm:$0x3]
    %v6496 = vlaneseq
    %v6497 = vshrl.u32 %v6496, 7
    %v6498 = vsub.s32 0, %v6497
    %v6499 = vrot.slane %v6494, %v6498
    %v6500 = vlaneseq
    %v6501 = vshrl.u32 %v6500, 7
    %v6502 = vsub.s32 1, %v6501
    %v6503 = vrot.slane %v6494, %v6502
    %v6504 = vcombine.low %v6499, %v6503
    %v6506 = vunpack.c.l.s4 1966171168
    %v6507 = vunpack.c.0.s8 %v6506
    %v6508 = vlaneseq
    %v6509 = vshrl.u32 %v6508, 7
    %v6510 = vsub.s32 %v6507, %v6509
    %v6511 = vrot.slane %v6504, %v6510
    %v6512 = vcombine.high %v6511, %v6511
    %v6514 = vunpack.c.l.s4 1966171168
    %v6515 = vunpack.c.0.s8 %v6514
    %v6516 = vlaneseq
    %v6517 = vshrl.u32 %v6516, 7
    %v6518 = vsub.s32 %v6515, %v6517
    %v6519 = vrot.slane %v6511, %v6518
    %v6521 = vunpack.c.l.s4 1966171168
    %v6522 = vunpack.c.0.s8 %v6521
    %v6523 = vlaneseq
    %v6524 = vshrl.u32 %v6523, 7
    %v6525 = vsub.s32 %v6522, %v6524
    %v6526 = vrot.slane %v6512, %v6525
    %v6529 = vadd.f32 %v6492, %v6519
    %v6530 = vadd.f32 %v6493, %v6526
    %v6531 = vmax.f32 %v6529, 0.0
    %v6532 = vmax.f32 %v6530, 0.0
    %v6535 = vcombine.low %v6531, %v6532
    %v6537 = vunpack.c.l.s4 1935823168
    %v6538 = vunpack.c.0.s8 %v6537
    %v6539 = vlaneseq
    %v6540 = vshrl.u32 %v6539, 7
    %v6541 = vsub.s32 %v6538, %v6540
    %v6542 = vrot.slane %v6535, %v6541
    %6544 = vst [vmem:[#allocation7] sm:$0xf] %v6542
    %s6545 = scalar_lea.vmem [#allocation6], 2
    %v6546 = vld [vmem:[%s6545] ss:$8 sm:$0x3]
    %s6547 = scalar_lea.vmem [#allocation6], 18
    %v6548 = vld [vmem:[%s6547] ss:$8 sm:$0x3]
    %s6549 = scalar_lea.vmem [#allocation6], 3
    %v6550 = vld [vmem:[%s6549] ss:$8 sm:$0x3]
    %s6551 = scalar_lea.vmem [#allocation6], 19
    %v6552 = vld [vmem:[%s6551] ss:$8 sm:$0x3]
    %v6553 = vmax.f32 %v6546, %v6550
    %v6554 = vmax.f32 %v6548, %v6552
    %v6555 = vld [vmem:[%s4] sm:$0x3]
    %v6557 = vlaneseq
    %v6558 = vshrl.u32 %v6557, 7
    %v6559 = vsub.s32 0, %v6558
    %v6560 = vrot.slane %v6555, %v6559
    %v6561 = vlaneseq
    %v6562 = vshrl.u32 %v6561, 7
    %v6563 = vsub.s32 1, %v6562
    %v6564 = vrot.slane %v6555, %v6563
    %v6565 = vcombine.low %v6560, %v6564
    %v6567 = vunpack.c.l.s4 1966171168
    %v6568 = vunpack.c.0.s8 %v6567
    %v6569 = vlaneseq
    %v6570 = vshrl.u32 %v6569, 7
    %v6571 = vsub.s32 %v6568, %v6570
    %v6572 = vrot.slane %v6565, %v6571
    %v6573 = vcombine.high %v6572, %v6572
    %v6575 = vunpack.c.l.s4 1966171168
    %v6576 = vunpack.c.0.s8 %v6575
    %v6577 = vlaneseq
    %v6578 = vshrl.u32 %v6577, 7
    %v6579 = vsub.s32 %v6576, %v6578
    %v6580 = vrot.slane %v6572, %v6579
    %v6582 = vunpack.c.l.s4 1966171168
    %v6583 = vunpack.c.0.s8 %v6582
    %v6584 = vlaneseq
    %v6585 = vshrl.u32 %v6584, 7
    %v6586 = vsub.s32 %v6583, %v6585
    %v6587 = vrot.slane %v6573, %v6586
    %v6590 = vadd.f32 %v6553, %v6580
    %v6591 = vadd.f32 %v6554, %v6587
    %v6592 = vmax.f32 %v6590, 0.0
    %v6593 = vmax.f32 %v6591, 0.0
    %v6596 = vcombine.low %v6592, %v6593
    %v6598 = vunpack.c.l.s4 1935823168
    %v6599 = vunpack.c.0.s8 %v6598
    %v6600 = vlaneseq
    %v6601 = vshrl.u32 %v6600, 7
    %v6602 = vsub.s32 %v6599, %v6601
    %v6603 = vrot.slane %v6596, %v6602
    %6605 = vst [vmem:[#allocation7 + $0x4] sm:$0xf] %v6603
    %s6606 = scalar_lea.vmem [#allocation6], 4
    %v6607 = vld [vmem:[%s6606] ss:$8 sm:$0x3]
    %s6608 = scalar_lea.vmem [#allocation6], 20
    %v6609 = vld [vmem:[%s6608] ss:$8 sm:$0x3]
    %s6610 = scalar_lea.vmem [#allocation6], 5
    %v6611 = vld [vmem:[%s6610] ss:$8 sm:$0x3]
    %s6612 = scalar_lea.vmem [#allocation6], 21
    %v6613 = vld [vmem:[%s6612] ss:$8 sm:$0x3]
    %v6614 = vmax.f32 %v6607, %v6611
    %v6615 = vmax.f32 %v6609, %v6613
    %v6616 = vld [vmem:[%s4] sm:$0x3]
    %v6618 = vlaneseq
    %v6619 = vshrl.u32 %v6618, 7
    %v6620 = vsub.s32 0, %v6619
    %v6621 = vrot.slane %v6616, %v6620
    %v6622 = vlaneseq
    %v6623 = vshrl.u32 %v6622, 7
    %v6624 = vsub.s32 1, %v6623
    %v6625 = vrot.slane %v6616, %v6624
    %v6626 = vcombine.low %v6621, %v6625
    %v6628 = vunpack.c.l.s4 1966171168
    %v6629 = vunpack.c.0.s8 %v6628
    %v6630 = vlaneseq
    %v6631 = vshrl.u32 %v6630, 7
    %v6632 = vsub.s32 %v6629, %v6631
    %v6633 = vrot.slane %v6626, %v6632
    %v6634 = vcombine.high %v6633, %v6633
    %v6636 = vunpack.c.l.s4 1966171168
    %v6637 = vunpack.c.0.s8 %v6636
    %v6638 = vlaneseq
    %v6639 = vshrl.u32 %v6638, 7
    %v6640 = vsub.s32 %v6637, %v6639
    %v6641 = vrot.slane %v6633, %v6640
    %v6643 = vunpack.c.l.s4 1966171168
    %v6644 = vunpack.c.0.s8 %v6643
    %v6645 = vlaneseq
    %v6646 = vshrl.u32 %v6645, 7
    %v6647 = vsub.s32 %v6644, %v6646
    %v6648 = vrot.slane %v6634, %v6647
    %v6651 = vadd.f32 %v6614, %v6641
    %v6652 = vadd.f32 %v6615, %v6648
    %v6653 = vmax.f32 %v6651, 0.0
    %v6654 = vmax.f32 %v6652, 0.0
    %v6657 = vcombine.low %v6653, %v6654
    %v6659 = vunpack.c.l.s4 1935823168
    %v6660 = vunpack.c.0.s8 %v6659
    %v6661 = vlaneseq
    %v6662 = vshrl.u32 %v6661, 7
    %v6663 = vsub.s32 %v6660, %v6662
    %v6664 = vrot.slane %v6657, %v6663
    %6666 = vst [vmem:[#allocation7 + $0x8] sm:$0xf] %v6664
    %s6667 = scalar_lea.vmem [#allocation6], 6
    %v6668 = vld [vmem:[%s6667] ss:$8 sm:$0x3]
    %s6669 = scalar_lea.vmem [#allocation6], 22
    %v6670 = vld [vmem:[%s6669] ss:$8 sm:$0x3]
    %s6671 = scalar_lea.vmem [#allocation6], 7
    %v6672 = vld [vmem:[%s6671] ss:$8 sm:$0x3]
    %s6673 = scalar_lea.vmem [#allocation6], 23
    %v6674 = vld [vmem:[%s6673] ss:$8 sm:$0x3]
    %v6675 = vmax.f32 %v6668, %v6672
    %v6676 = vmax.f32 %v6670, %v6674
    %v6677 = vld [vmem:[%s4] sm:$0x3]
    %v6679 = vlaneseq
    %v6680 = vshrl.u32 %v6679, 7
    %v6681 = vsub.s32 0, %v6680
    %v6682 = vrot.slane %v6677, %v6681
    %v6683 = vlaneseq
    %v6684 = vshrl.u32 %v6683, 7
    %v6685 = vsub.s32 1, %v6684
    %v6686 = vrot.slane %v6677, %v6685
    %v6687 = vcombine.low %v6682, %v6686
    %v6689 = vunpack.c.l.s4 1966171168
    %v6690 = vunpack.c.0.s8 %v6689
    %v6691 = vlaneseq
    %v6692 = vshrl.u32 %v6691, 7
    %v6693 = vsub.s32 %v6690, %v6692
    %v6694 = vrot.slane %v6687, %v6693
    %v6695 = vcombine.high %v6694, %v6694
    %v6697 = vunpack.c.l.s4 1966171168
    %v6698 = vunpack.c.0.s8 %v6697
    %v6699 = vlaneseq
    %v6700 = vshrl.u32 %v6699, 7
    %v6701 = vsub.s32 %v6698, %v6700
    %v6702 = vrot.slane %v6694, %v6701
    %v6704 = vunpack.c.l.s4 1966171168
    %v6705 = vunpack.c.0.s8 %v6704
    %v6706 = vlaneseq
    %v6707 = vshrl.u32 %v6706, 7
    %v6708 = vsub.s32 %v6705, %v6707
    %v6709 = vrot.slane %v6695, %v6708
    %v6712 = vadd.f32 %v6675, %v6702
    %v6713 = vadd.f32 %v6676, %v6709
    %v6714 = vmax.f32 %v6712, 0.0
    %v6715 = vmax.f32 %v6713, 0.0
    %v6718 = vcombine.low %v6714, %v6715
    %v6720 = vunpack.c.l.s4 1935823168
    %v6721 = vunpack.c.0.s8 %v6720
    %v6722 = vlaneseq
    %v6723 = vshrl.u32 %v6722, 7
    %v6724 = vsub.s32 %v6721, %v6723
    %v6725 = vrot.slane %v6718, %v6724
    %6727 = vst [vmem:[#allocation7 + $0xc] sm:$0xf] %v6725
    %v6728 = vld [vmem:[#allocation7] sm:$0xff]
    %v6729 = vld [vmem:[#allocation7 + $0x8] sm:$0xff]
    %v6730 = vld [vmem:[%s5] sm:$0xff]
    %v6731 = vld [vmem:[%s5 + $0x8] sm:$0xff]
    %v6732 = vld [vmem:[%s5 + $0x10] sm:$0xff]
    %v6733 = vld [vmem:[%s5 + $0x18] sm:$0xff]
    %v6734 = vld [vmem:[%s5 + $0x20] sm:$0xff]
    %v6735 = vld [vmem:[%s5 + $0x28] sm:$0xff]
    %v6736 = vld [vmem:[%s5 + $0x30] sm:$0xff]
    %v6737 = vld [vmem:[%s5 + $0x38] sm:$0xff]
    %v6738 = vld [vmem:[%s5 + $0x40] sm:$0xff]
    %v6739 = vld [vmem:[%s5 + $0x48] sm:$0xff]
    %v6740 = vld [vmem:[%s5 + $0x50] sm:$0xff]
    %v6741 = vld [vmem:[%s5 + $0x58] sm:$0xff]
    %v6742 = vld [vmem:[%s5 + $0x60] sm:$0xff]
    %v6743 = vld [vmem:[%s5 + $0x68] sm:$0xff]
    %v6744 = vld [vmem:[%s5 + $0x70] sm:$0xff]
    %v6745 = vld [vmem:[%s5 + $0x78] sm:$0xff]
    %v6746 = vld [vmem:[%s5 + $0x80] sm:$0xff]
    %v6747 = vld [vmem:[%s5 + $0x88] sm:$0xff]
    %v6748 = vld [vmem:[%s5 + $0x90] sm:$0xff]
    %v6749 = vld [vmem:[%s5 + $0x98] sm:$0xff]
    %v6750 = vld [vmem:[%s5 + $0xa0] sm:$0xff]
    %v6751 = vld [vmem:[%s5 + $0xa8] sm:$0xff]
    %v6752 = vld [vmem:[%s5 + $0xb0] sm:$0xff]
    %v6753 = vld [vmem:[%s5 + $0xb8] sm:$0xff]
    %v6754 = vld [vmem:[%s5 + $0xc0] sm:$0xff]
    %v6755 = vld [vmem:[%s5 + $0xc8] sm:$0xff]
    %v6756 = vld [vmem:[%s5 + $0xd0] sm:$0xff]
    %v6757 = vld [vmem:[%s5 + $0xd8] sm:$0xff]
    %v6758 = vld [vmem:[%s5 + $0xe0] sm:$0xff]
    %v6759 = vld [vmem:[%s5 + $0xe8] sm:$0xff]
    %v6760 = vld [vmem:[%s5 + $0xf0] sm:$0xff]
    %v6761 = vld [vmem:[%s5 + $0xf8] sm:$0xff]
    %v6762 = vld [vmem:[%s5 + $0x100] sm:$0xff]
    %v6763 = vld [vmem:[%s5 + $0x108] sm:$0xff]
    %v6764 = vld [vmem:[%s5 + $0x110] sm:$0xff]
    %v6765 = vld [vmem:[%s5 + $0x118] sm:$0xff]
    %v6766 = vld [vmem:[%s5 + $0x120] sm:$0xff]
    %v6767 = vld [vmem:[%s5 + $0x128] sm:$0xff]
    %v6768 = vld [vmem:[%s5 + $0x130] sm:$0xff]
    %v6769 = vld [vmem:[%s5 + $0x138] sm:$0xff]
    %v6770 = vld [vmem:[%s5 + $0x140] sm:$0xff]
    %v6771 = vld [vmem:[%s5 + $0x148] sm:$0xff]
    %v6772 = vld [vmem:[%s5 + $0x150] sm:$0xff]
    %v6773 = vld [vmem:[%s5 + $0x158] sm:$0xff]
    %v6774 = vld [vmem:[%s5 + $0x160] sm:$0xff]
    %v6775 = vld [vmem:[%s5 + $0x168] sm:$0xff]
    %v6776 = vld [vmem:[%s5 + $0x170] sm:$0xff]
    %v6777 = vld [vmem:[%s5 + $0x178] sm:$0xff]
    %v6778 = vld [vmem:[%s5 + $0x180] sm:$0xff]
    %v6779 = vld [vmem:[%s5 + $0x188] sm:$0xff]
    %v6780 = vld [vmem:[%s5 + $0x190] sm:$0xff]
    %v6781 = vld [vmem:[%s5 + $0x198] sm:$0xff]
    %v6782 = vld [vmem:[%s5 + $0x1a0] sm:$0xff]
    %v6783 = vld [vmem:[%s5 + $0x1a8] sm:$0xff]
    %v6784 = vld [vmem:[%s5 + $0x1b0] sm:$0xff]
    %v6785 = vld [vmem:[%s5 + $0x1b8] sm:$0xff]
    %v6786 = vld [vmem:[%s5 + $0x1c0] sm:$0xff]
    %v6787 = vld [vmem:[%s5 + $0x1c8] sm:$0xff]
    %v6788 = vld [vmem:[%s5 + $0x1d0] sm:$0xff]
    %v6789 = vld [vmem:[%s5 + $0x1d8] sm:$0xff]
    %v6790 = vld [vmem:[%s5 + $0x1e0] sm:$0xff]
    %v6791 = vld [vmem:[%s5 + $0x1e8] sm:$0xff]
    %v6792 = vld [vmem:[%s5 + $0x1f0] sm:$0xff]
    %v6793 = vld [vmem:[%s5 + $0x1f8] sm:$0xff]
    %v6794 = vld [vmem:[%s5 + $0x200] sm:$0xff]
    %v6795 = vld [vmem:[%s5 + $0x208] sm:$0xff]
    %v6796 = vld [vmem:[%s5 + $0x210] sm:$0xff]
    %v6797 = vld [vmem:[%s5 + $0x218] sm:$0xff]
    %v6798 = vld [vmem:[%s5 + $0x220] sm:$0xff]
    %v6799 = vld [vmem:[%s5 + $0x228] sm:$0xff]
    %v6800 = vld [vmem:[%s5 + $0x230] sm:$0xff]
    %v6801 = vld [vmem:[%s5 + $0x238] sm:$0xff]
    %v6802 = vld [vmem:[%s5 + $0x240] sm:$0xff]
    %v6803 = vld [vmem:[%s5 + $0x248] sm:$0xff]
    %v6804 = vld [vmem:[%s5 + $0x250] sm:$0xff]
    %v6805 = vld [vmem:[%s5 + $0x258] sm:$0xff]
    %v6806 = vld [vmem:[%s5 + $0x260] sm:$0xff]
    %v6807 = vld [vmem:[%s5 + $0x268] sm:$0xff]
    %v6808 = vld [vmem:[%s5 + $0x270] sm:$0xff]
    %v6809 = vld [vmem:[%s5 + $0x278] sm:$0xff]
    %v6810 = vld [vmem:[%s5 + $0x280] sm:$0xff]
    %v6811 = vld [vmem:[%s5 + $0x288] sm:$0xff]
    %v6812 = vld [vmem:[%s5 + $0x290] sm:$0xff]
    %v6813 = vld [vmem:[%s5 + $0x298] sm:$0xff]
    %v6814 = vld [vmem:[%s5 + $0x2a0] sm:$0xff]
    %v6815 = vld [vmem:[%s5 + $0x2a8] sm:$0xff]
    %v6816 = vld [vmem:[%s5 + $0x2b0] sm:$0xff]
    %v6817 = vld [vmem:[%s5 + $0x2b8] sm:$0xff]
    %v6818 = vld [vmem:[%s5 + $0x2c0] sm:$0xff]
    %v6819 = vld [vmem:[%s5 + $0x2c8] sm:$0xff]
    %v6820 = vld [vmem:[%s5 + $0x2d0] sm:$0xff]
    %v6821 = vld [vmem:[%s5 + $0x2d8] sm:$0xff]
    %v6822 = vld [vmem:[%s5 + $0x2e0] sm:$0xff]
    %v6823 = vld [vmem:[%s5 + $0x2e8] sm:$0xff]
    %v6824 = vld [vmem:[%s5 + $0x2f0] sm:$0xff]
    %v6825 = vld [vmem:[%s5 + $0x2f8] sm:$0xff]
    %v6826 = vld [vmem:[%s5 + $0x300] sm:$0xff]
    %v6827 = vld [vmem:[%s5 + $0x308] sm:$0xff]
    %v6828 = vld [vmem:[%s5 + $0x310] sm:$0xff]
    %v6829 = vld [vmem:[%s5 + $0x318] sm:$0xff]
    %v6830 = vld [vmem:[%s5 + $0x320] sm:$0xff]
    %v6831 = vld [vmem:[%s5 + $0x328] sm:$0xff]
    %v6832 = vld [vmem:[%s5 + $0x330] sm:$0xff]
    %v6833 = vld [vmem:[%s5 + $0x338] sm:$0xff]
    %v6834 = vld [vmem:[%s5 + $0x340] sm:$0xff]
    %v6835 = vld [vmem:[%s5 + $0x348] sm:$0xff]
    %v6836 = vld [vmem:[%s5 + $0x350] sm:$0xff]
    %v6837 = vld [vmem:[%s5 + $0x358] sm:$0xff]
    %v6838 = vld [vmem:[%s5 + $0x360] sm:$0xff]
    %v6839 = vld [vmem:[%s5 + $0x368] sm:$0xff]
    %v6840 = vld [vmem:[%s5 + $0x370] sm:$0xff]
    %v6841 = vld [vmem:[%s5 + $0x378] sm:$0xff]
    %v6842 = vld [vmem:[%s5 + $0x380] sm:$0xff]
    %v6843 = vld [vmem:[%s5 + $0x388] sm:$0xff]
    %v6844 = vld [vmem:[%s5 + $0x390] sm:$0xff]
    %v6845 = vld [vmem:[%s5 + $0x398] sm:$0xff]
    %v6846 = vld [vmem:[%s5 + $0x3a0] sm:$0xff]
    %v6847 = vld [vmem:[%s5 + $0x3a8] sm:$0xff]
    %v6848 = vld [vmem:[%s5 + $0x3b0] sm:$0xff]
    %v6849 = vld [vmem:[%s5 + $0x3b8] sm:$0xff]
    %v6850 = vld [vmem:[%s5 + $0x3c0] sm:$0xff]
    %v6851 = vld [vmem:[%s5 + $0x3c8] sm:$0xff]
    %v6852 = vld [vmem:[%s5 + $0x3d0] sm:$0xff]
    %v6853 = vld [vmem:[%s5 + $0x3d8] sm:$0xff]
    %v6854 = vld [vmem:[%s5 + $0x3e0] sm:$0xff]
    %v6855 = vld [vmem:[%s5 + $0x3e8] sm:$0xff]
    %v6856 = vld [vmem:[%s5 + $0x3f0] sm:$0xff]
    %v6857 = vld [vmem:[%s5 + $0x3f8] sm:$0xff]
    %v6858 = vld [vmem:[%s6] sm:$0x1]
    %v6860 = vlaneseq
    %v6861 = vshrl.u32 %v6860, 7
    %v6862 = vsub.s32 0, %v6861
    %v6863 = vrot.slane %v6858, %v6862
    %v6867 = vcombine.high %v6728, %v6728
    %v6869 = vunpack.c.l.s4 1983009808
    %v6870 = vunpack.c.0.s8 %v6869
    %v6871 = vlaneseq
    %v6872 = vshrl.u32 %v6871, 7
    %v6873 = vsub.s32 %v6870, %v6872
    %v6874 = vrot.slane %v6728, %v6873
    %v6876 = vunpack.c.l.s4 1983009808
    %v6877 = vunpack.c.0.s8 %v6876
    %v6878 = vlaneseq
    %v6879 = vshrl.u32 %v6878, 7
    %v6880 = vsub.s32 %v6877, %v6879
    %v6881 = vrot.slane %v6867, %v6880
    %v6882 = vcombine.high %v6874, %v6874
    %v6883 = vcombine.high %v6881, %v6881
    %v6884 = vcombine.high %v6729, %v6729
    %v6886 = vunpack.c.l.s4 1983009808
    %v6887 = vunpack.c.0.s8 %v6886
    %v6888 = vlaneseq
    %v6889 = vshrl.u32 %v6888, 7
    %v6890 = vsub.s32 %v6887, %v6889
    %v6891 = vrot.slane %v6729, %v6890
    %v6893 = vunpack.c.l.s4 1983009808
    %v6894 = vunpack.c.0.s8 %v6893
    %v6895 = vlaneseq
    %v6896 = vshrl.u32 %v6895, 7
    %v6897 = vsub.s32 %v6894, %v6896
    %v6898 = vrot.slane %v6884, %v6897
    %v6899 = vcombine.high %v6891, %v6891
    %v6900 = vcombine.high %v6898, %v6898
    %6909 = vmatprep.subr.mxu0 0.0
    %6910 = vmatpush1.msra.mxu0 %v6730
    %6911 = vmatprep.subr.mxu0 0.0
    %6912 = vmatpush1.msra.mxu0 %v6731
    %6913 = vmatprep.subr.mxu0 0.0
    %6914 = vmatpush1.msra.mxu0 %v6732
    %6915 = vmatprep.subr.mxu0 0.0
    %6916 = vmatpush1.msra.mxu0 %v6733
    %6917 = vmatprep.subr.mxu0 0.0
    %6918 = vmatpush1.msra.mxu0 %v6734
    %6919 = vmatprep.subr.mxu0 0.0
    %6920 = vmatpush1.msra.mxu0 %v6735
    %6921 = vmatprep.subr.mxu0 0.0
    %6922 = vmatpush1.msra.mxu0 %v6736
    %6923 = vmatprep.subr.mxu0 0.0
    %6924 = vmatpush1.msra.mxu0 %v6737
    %6925 = vmatprep.subr.mxu0 0.0
    %6926 = vmatpush1.msra.mxu0 %v6738
    %6927 = vmatprep.subr.mxu0 0.0
    %6928 = vmatpush1.msra.mxu0 %v6739
    %6929 = vmatprep.subr.mxu0 0.0
    %6930 = vmatpush1.msra.mxu0 %v6740
    %6931 = vmatprep.subr.mxu0 0.0
    %6932 = vmatpush1.msra.mxu0 %v6741
    %6933 = vmatprep.subr.mxu0 0.0
    %6934 = vmatpush1.msra.mxu0 %v6742
    %6935 = vmatprep.subr.mxu0 0.0
    %6936 = vmatpush1.msra.mxu0 %v6743
    %6937 = vmatprep.subr.mxu0 0.0
    %6938 = vmatpush1.msra.mxu0 %v6744
    %6939 = vmatprep.subr.mxu0 0.0
    %6940 = vmatpush1.msra.mxu0 %v6745
    %6941 = vmatprep.subr.mxu0 0.0
    %6942 = vmatpush1.msra.mxu0 %v6746
    %6943 = vmatprep.subr.mxu0 0.0
    %6944 = vmatpush1.msra.mxu0 %v6747
    %6945 = vmatprep.subr.mxu0 0.0
    %6946 = vmatpush1.msra.mxu0 %v6748
    %6947 = vmatprep.subr.mxu0 0.0
    %6948 = vmatpush1.msra.mxu0 %v6749
    %6949 = vmatprep.subr.mxu0 0.0
    %6950 = vmatpush1.msra.mxu0 %v6750
    %6951 = vmatprep.subr.mxu0 0.0
    %6952 = vmatpush1.msra.mxu0 %v6751
    %6953 = vmatprep.subr.mxu0 0.0
    %6954 = vmatpush1.msra.mxu0 %v6752
    %6955 = vmatprep.subr.mxu0 0.0
    %6956 = vmatpush1.msra.mxu0 %v6753
    %6957 = vmatprep.subr.mxu0 0.0
    %6958 = vmatpush1.msra.mxu0 %v6754
    %6959 = vmatprep.subr.mxu0 0.0
    %6960 = vmatpush1.msra.mxu0 %v6755
    %6961 = vmatprep.subr.mxu0 0.0
    %6962 = vmatpush1.msra.mxu0 %v6756
    %6963 = vmatprep.subr.mxu0 0.0
    %6964 = vmatpush1.msra.mxu0 %v6757
    %6965 = vmatprep.subr.mxu0 0.0
    %6966 = vmatpush1.msra.mxu0 %v6758
    %6967 = vmatprep.subr.mxu0 0.0
    %6968 = vmatpush1.msra.mxu0 %v6759
    %6969 = vmatprep.subr.mxu0 0.0
    %6970 = vmatpush1.msra.mxu0 %v6760
    %6971 = vmatprep.subr.mxu0 0.0
    %6972 = vmatpush1.msra.mxu0 %v6761
    %6973 = vmatprep.mubr.f32.mxu0 %v6882
    %6974 = vmatmul.mubr.f32.gmra.mrb[0].mxu0 %v6874
    %v6975 = vpop.f32.mrb[0].mxu0
    %v6976 = vadd.f32 %v6863, %v6975
    %v6977 = vpop.f32.mrb[0].mxu0
    %6978 = vdwg.mxu0
    %6979 = vmatprep.subr.mxu0 0.0
    %6980 = vmatpush1.msra.mxu0 %v6762
    %6981 = vmatprep.subr.mxu0 0.0
    %6982 = vmatpush1.msra.mxu0 %v6763
    %6983 = vmatprep.subr.mxu0 0.0
    %6984 = vmatpush1.msra.mxu0 %v6764
    %6985 = vmatprep.subr.mxu0 0.0
    %6986 = vmatpush1.msra.mxu0 %v6765
    %6987 = vmatprep.subr.mxu0 0.0
    %6988 = vmatpush1.msra.mxu0 %v6766
    %6989 = vmatprep.subr.mxu0 0.0
    %6990 = vmatpush1.msra.mxu0 %v6767
    %6991 = vmatprep.subr.mxu0 0.0
    %6992 = vmatpush1.msra.mxu0 %v6768
    %6993 = vmatprep.subr.mxu0 0.0
    %6994 = vmatpush1.msra.mxu0 %v6769
    %6995 = vmatprep.subr.mxu0 0.0
    %6996 = vmatpush1.msra.mxu0 %v6770
    %6997 = vmatprep.subr.mxu0 0.0
    %6998 = vmatpush1.msra.mxu0 %v6771
    %6999 = vmatprep.subr.mxu0 0.0
    %7000 = vmatpush1.msra.mxu0 %v6772
    %7001 = vmatprep.subr.mxu0 0.0
    %7002 = vmatpush1.msra.mxu0 %v6773
    %7003 = vmatprep.subr.mxu0 0.0
    %7004 = vmatpush1.msra.mxu0 %v6774
    %7005 = vmatprep.subr.mxu0 0.0
    %7006 = vmatpush1.msra.mxu0 %v6775
    %7007 = vmatprep.subr.mxu0 0.0
    %7008 = vmatpush1.msra.mxu0 %v6776
    %7009 = vmatprep.subr.mxu0 0.0
    %7010 = vmatpush1.msra.mxu0 %v6777
    %7011 = vmatprep.subr.mxu0 0.0
    %7012 = vmatpush1.msra.mxu0 %v6778
    %7013 = vmatprep.subr.mxu0 0.0
    %7014 = vmatpush1.msra.mxu0 %v6779
    %7015 = vmatprep.subr.mxu0 0.0
    %7016 = vmatpush1.msra.mxu0 %v6780
    %7017 = vmatprep.subr.mxu0 0.0
    %7018 = vmatpush1.msra.mxu0 %v6781
    %7019 = vmatprep.subr.mxu0 0.0
    %7020 = vmatpush1.msra.mxu0 %v6782
    %7021 = vmatprep.subr.mxu0 0.0
    %7022 = vmatpush1.msra.mxu0 %v6783
    %7023 = vmatprep.subr.mxu0 0.0
    %7024 = vmatpush1.msra.mxu0 %v6784
    %7025 = vmatprep.subr.mxu0 0.0
    %7026 = vmatpush1.msra.mxu0 %v6785
    %7027 = vmatprep.subr.mxu0 0.0
    %7028 = vmatpush1.msra.mxu0 %v6786
    %7029 = vmatprep.subr.mxu0 0.0
    %7030 = vmatpush1.msra.mxu0 %v6787
    %7031 = vmatprep.subr.mxu0 0.0
    %7032 = vmatpush1.msra.mxu0 %v6788
    %7033 = vmatprep.subr.mxu0 0.0
    %7034 = vmatpush1.msra.mxu0 %v6789
    %7035 = vmatprep.subr.mxu0 0.0
    %7036 = vmatpush1.msra.mxu0 %v6790
    %7037 = vmatprep.subr.mxu0 0.0
    %7038 = vmatpush1.msra.mxu0 %v6791
    %7039 = vmatprep.subr.mxu0 0.0
    %7040 = vmatpush1.msra.mxu0 %v6792
    %7041 = vmatprep.subr.mxu0 0.0
    %7042 = vmatpush1.msra.mxu0 %v6793
    %7043 = vmatprep.mubr.f32.mxu0 %v6883
    %7044 = vmatmul.mubr.f32.gmra.mrb[0].mxu0 %v6881
    %v7045 = vpop.f32.mrb[0].mxu0
    %v7046 = vadd.f32 %v6976, %v7045
    %v7047 = vpop.f32.mrb[0].mxu0
    %7048 = vdwg.mxu0
    %7049 = vmatprep.subr.mxu0 0.0
    %7050 = vmatpush1.msra.mxu0 %v6794
    %7051 = vmatprep.subr.mxu0 0.0
    %7052 = vmatpush1.msra.mxu0 %v6795
    %7053 = vmatprep.subr.mxu0 0.0
    %7054 = vmatpush1.msra.mxu0 %v6796
    %7055 = vmatprep.subr.mxu0 0.0
    %7056 = vmatpush1.msra.mxu0 %v6797
    %7057 = vmatprep.subr.mxu0 0.0
    %7058 = vmatpush1.msra.mxu0 %v6798
    %7059 = vmatprep.subr.mxu0 0.0
    %7060 = vmatpush1.msra.mxu0 %v6799
    %7061 = vmatprep.subr.mxu0 0.0
    %7062 = vmatpush1.msra.mxu0 %v6800
    %7063 = vmatprep.subr.mxu0 0.0
    %7064 = vmatpush1.msra.mxu0 %v6801
    %7065 = vmatprep.subr.mxu0 0.0
    %7066 = vmatpush1.msra.mxu0 %v6802
    %7067 = vmatprep.subr.mxu0 0.0
    %7068 = vmatpush1.msra.mxu0 %v6803
    %7069 = vmatprep.subr.mxu0 0.0
    %7070 = vmatpush1.msra.mxu0 %v6804
    %7071 = vmatprep.subr.mxu0 0.0
    %7072 = vmatpush1.msra.mxu0 %v6805
    %7073 = vmatprep.subr.mxu0 0.0
    %7074 = vmatpush1.msra.mxu0 %v6806
    %7075 = vmatprep.subr.mxu0 0.0
    %7076 = vmatpush1.msra.mxu0 %v6807
    %7077 = vmatprep.subr.mxu0 0.0
    %7078 = vmatpush1.msra.mxu0 %v6808
    %7079 = vmatprep.subr.mxu0 0.0
    %7080 = vmatpush1.msra.mxu0 %v6809
    %7081 = vmatprep.subr.mxu0 0.0
    %7082 = vmatpush1.msra.mxu0 %v6810
    %7083 = vmatprep.subr.mxu0 0.0
    %7084 = vmatpush1.msra.mxu0 %v6811
    %7085 = vmatprep.subr.mxu0 0.0
    %7086 = vmatpush1.msra.mxu0 %v6812
    %7087 = vmatprep.subr.mxu0 0.0
    %7088 = vmatpush1.msra.mxu0 %v6813
    %7089 = vmatprep.subr.mxu0 0.0
    %7090 = vmatpush1.msra.mxu0 %v6814
    %7091 = vmatprep.subr.mxu0 0.0
    %7092 = vmatpush1.msra.mxu0 %v6815
    %7093 = vmatprep.subr.mxu0 0.0
    %7094 = vmatpush1.msra.mxu0 %v6816
    %7095 = vmatprep.subr.mxu0 0.0
    %7096 = vmatpush1.msra.mxu0 %v6817
    %7097 = vmatprep.subr.mxu0 0.0
    %7098 = vmatpush1.msra.mxu0 %v6818
    %7099 = vmatprep.subr.mxu0 0.0
    %7100 = vmatpush1.msra.mxu0 %v6819
    %7101 = vmatprep.subr.mxu0 0.0
    %7102 = vmatpush1.msra.mxu0 %v6820
    %7103 = vmatprep.subr.mxu0 0.0
    %7104 = vmatpush1.msra.mxu0 %v6821
    %7105 = vmatprep.subr.mxu0 0.0
    %7106 = vmatpush1.msra.mxu0 %v6822
    %7107 = vmatprep.subr.mxu0 0.0
    %7108 = vmatpush1.msra.mxu0 %v6823
    %7109 = vmatprep.subr.mxu0 0.0
    %7110 = vmatpush1.msra.mxu0 %v6824
    %7111 = vmatprep.subr.mxu0 0.0
    %7112 = vmatpush1.msra.mxu0 %v6825
    %7113 = vmatprep.mubr.f32.mxu0 %v6899
    %7114 = vmatmul.mubr.f32.gmra.mrb[0].mxu0 %v6891
    %v7115 = vpop.f32.mrb[0].mxu0
    %v7116 = vadd.f32 %v7046, %v7115
    %v7117 = vpop.f32.mrb[0].mxu0
    %7118 = vdwg.mxu0
    %7119 = vmatprep.subr.mxu0 0.0
    %7120 = vmatpush1.msra.mxu0 %v6826
    %7121 = vmatprep.subr.mxu0 0.0
    %7122 = vmatpush1.msra.mxu0 %v6827
    %7123 = vmatprep.subr.mxu0 0.0
    %7124 = vmatpush1.msra.mxu0 %v6828
    %7125 = vmatprep.subr.mxu0 0.0
    %7126 = vmatpush1.msra.mxu0 %v6829
    %7127 = vmatprep.subr.mxu0 0.0
    %7128 = vmatpush1.msra.mxu0 %v6830
    %7129 = vmatprep.subr.mxu0 0.0
    %7130 = vmatpush1.msra.mxu0 %v6831
    %7131 = vmatprep.subr.mxu0 0.0
    %7132 = vmatpush1.msra.mxu0 %v6832
    %7133 = vmatprep.subr.mxu0 0.0
    %7134 = vmatpush1.msra.mxu0 %v6833
    %7135 = vmatprep.subr.mxu0 0.0
    %7136 = vmatpush1.msra.mxu0 %v6834
    %7137 = vmatprep.subr.mxu0 0.0
    %7138 = vmatpush1.msra.mxu0 %v6835
    %7139 = vmatprep.subr.mxu0 0.0
    %7140 = vmatpush1.msra.mxu0 %v6836
    %7141 = vmatprep.subr.mxu0 0.0
    %7142 = vmatpush1.msra.mxu0 %v6837
    %7143 = vmatprep.subr.mxu0 0.0
    %7144 = vmatpush1.msra.mxu0 %v6838
    %7145 = vmatprep.subr.mxu0 0.0
    %7146 = vmatpush1.msra.mxu0 %v6839
    %7147 = vmatprep.subr.mxu0 0.0
    %7148 = vmatpush1.msra.mxu0 %v6840
    %7149 = vmatprep.subr.mxu0 0.0
    %7150 = vmatpush1.msra.mxu0 %v6841
    %7151 = vmatprep.subr.mxu0 0.0
    %7152 = vmatpush1.msra.mxu0 %v6842
    %7153 = vmatprep.subr.mxu0 0.0
    %7154 = vmatpush1.msra.mxu0 %v6843
    %7155 = vmatprep.subr.mxu0 0.0
    %7156 = vmatpush1.msra.mxu0 %v6844
    %7157 = vmatprep.subr.mxu0 0.0
    %7158 = vmatpush1.msra.mxu0 %v6845
    %7159 = vmatprep.subr.mxu0 0.0
    %7160 = vmatpush1.msra.mxu0 %v6846
    %7161 = vmatprep.subr.mxu0 0.0
    %7162 = vmatpush1.msra.mxu0 %v6847
    %7163 = vmatprep.subr.mxu0 0.0
    %7164 = vmatpush1.msra.mxu0 %v6848
    %7165 = vmatprep.subr.mxu0 0.0
    %7166 = vmatpush1.msra.mxu0 %v6849
    %7167 = vmatprep.subr.mxu0 0.0
    %7168 = vmatpush1.msra.mxu0 %v6850
    %7169 = vmatprep.subr.mxu0 0.0
    %7170 = vmatpush1.msra.mxu0 %v6851
    %7171 = vmatprep.subr.mxu0 0.0
    %7172 = vmatpush1.msra.mxu0 %v6852
    %7173 = vmatprep.subr.mxu0 0.0
    %7174 = vmatpush1.msra.mxu0 %v6853
    %7175 = vmatprep.subr.mxu0 0.0
    %7176 = vmatpush1.msra.mxu0 %v6854
    %7177 = vmatprep.subr.mxu0 0.0
    %7178 = vmatpush1.msra.mxu0 %v6855
    %7179 = vmatprep.subr.mxu0 0.0
    %7180 = vmatpush1.msra.mxu0 %v6856
    %7181 = vmatprep.subr.mxu0 0.0
    %7182 = vmatpush1.msra.mxu0 %v6857
    %7183 = vmatprep.mubr.f32.mxu0 %v6900
    %7184 = vmatmul.mubr.f32.gmra.mrb[0].mxu0 %v6898
    %v7185 = vpop.f32.mrb[0].mxu0
    %v7186 = vadd.f32 %v7116, %v7185
    %v7187 = vpop.f32.mrb[0].mxu0
    %7188 = vdwg.mxu0
    %v7189 = vmax.f32 %v7186, 0.0
    %v7190 = vld [vmem:[%s7] sm:$0xff]
    %v7191 = vld [vmem:[%s7 + $0x8] sm:$0xff]
    %v7192 = vld [vmem:[%s7 + $0x10] sm:$0xff]
    %v7193 = vld [vmem:[%s7 + $0x18] sm:$0xff]
    %v7194 = vld [vmem:[%s7 + $0x20] sm:$0xff]
    %v7195 = vld [vmem:[%s7 + $0x28] sm:$0xff]
    %v7196 = vld [vmem:[%s7 + $0x30] sm:$0xff]
    %v7197 = vld [vmem:[%s7 + $0x38] sm:$0xff]
    %v7198 = vld [vmem:[%s7 + $0x40] sm:$0xff]
    %v7199 = vld [vmem:[%s7 + $0x48] sm:$0xff]
    %v7200 = vld [vmem:[%s7 + $0x50] sm:$0xff]
    %v7201 = vld [vmem:[%s7 + $0x58] sm:$0xff]
    %v7202 = vld [vmem:[%s7 + $0x60] sm:$0xff]
    %v7203 = vld [vmem:[%s7 + $0x68] sm:$0xff]
    %v7204 = vld [vmem:[%s7 + $0x70] sm:$0xff]
    %v7205 = vld [vmem:[%s7 + $0x78] sm:$0xff]
    %v7206 = vld [vmem:[%s8] sm:$0x1]
    %v7208 = vlaneseq
    %v7209 = vshrl.u32 %v7208, 7
    %v7210 = vsub.s32 0, %v7209
    %v7211 = vrot.slane %v7206, %v7210
    %7213 = vmatprep.subr.mxu0 0.0
    %7214 = vmatpush1.msra.mxu0 %v7190
    %7215 = vmatprep.subr.mxu0 0.0
    %7216 = vmatpush1.msra.mxu0 %v7191
    %7217 = vmatprep.subr.mxu0 0.0
    %7218 = vmatpush1.msra.mxu0 %v7192
    %7219 = vmatprep.subr.mxu0 0.0
    %7220 = vmatpush1.msra.mxu0 %v7193
    %7221 = vmatprep.subr.mxu0 0.0
    %7222 = vmatpush1.msra.mxu0 %v7194
    %7223 = vmatprep.subr.mxu0 0.0
    %7224 = vmatpush1.msra.mxu0 %v7195
    %7225 = vmatprep.subr.mxu0 0.0
    %7226 = vmatpush1.msra.mxu0 %v7196
    %7227 = vmatprep.subr.mxu0 0.0
    %7228 = vmatpush1.msra.mxu0 %v7197
    %7229 = vmatprep.subr.mxu0 0.0
    %7230 = vmatpush1.msra.mxu0 %v7198
    %7231 = vmatprep.subr.mxu0 0.0
    %7232 = vmatpush1.msra.mxu0 %v7199
    %7233 = vmatprep.subr.mxu0 0.0
    %7234 = vmatpush1.msra.mxu0 %v7200
    %7235 = vmatprep.subr.mxu0 0.0
    %7236 = vmatpush1.msra.mxu0 %v7201
    %7237 = vmatprep.subr.mxu0 0.0
    %7238 = vmatpush1.msra.mxu0 %v7202
    %7239 = vmatprep.subr.mxu0 0.0
    %7240 = vmatpush1.msra.mxu0 %v7203
    %7241 = vmatprep.subr.mxu0 0.0
    %7242 = vmatpush1.msra.mxu0 %v7204
    %7243 = vmatprep.subr.mxu0 0.0
    %7244 = vmatpush1.msra.mxu0 %v7205
    %7245 = vmatprep.subr.mxu0 0.0
    %7246 = vmatpush1.msra.mxu0 0.0
    %7247 = vmatprep.subr.mxu0 0.0
    %7248 = vmatpush1.msra.mxu0 0.0
    %7249 = vmatprep.subr.mxu0 0.0
    %7250 = vmatpush1.msra.mxu0 0.0
    %7251 = vmatprep.subr.mxu0 0.0
    %7252 = vmatpush1.msra.mxu0 0.0
    %7253 = vmatprep.subr.mxu0 0.0
    %7254 = vmatpush1.msra.mxu0 0.0
    %7255 = vmatprep.subr.mxu0 0.0
    %7256 = vmatpush1.msra.mxu0 0.0
    %7257 = vmatprep.subr.mxu0 0.0
    %7258 = vmatpush1.msra.mxu0 0.0
    %7259 = vmatprep.subr.mxu0 0.0
    %7260 = vmatpush1.msra.mxu0 0.0
    %7261 = vmatprep.subr.mxu0 0.0
    %7262 = vmatpush1.msra.mxu0 0.0
    %7263 = vmatprep.subr.mxu0 0.0
    %7264 = vmatpush1.msra.mxu0 0.0
    %7265 = vmatprep.subr.mxu0 0.0
    %7266 = vmatpush1.msra.mxu0 0.0
    %7267 = vmatprep.subr.mxu0 0.0
    %7268 = vmatpush1.msra.mxu0 0.0
    %7269 = vmatprep.subr.mxu0 0.0
    %7270 = vmatpush1.msra.mxu0 0.0
    %7271 = vmatprep.subr.mxu0 0.0
    %7272 = vmatpush1.msra.mxu0 0.0
    %7273 = vmatprep.subr.mxu0 0.0
    %7274 = vmatpush1.msra.mxu0 0.0
    %7275 = vmatprep.subr.mxu0 0.0
    %7276 = vmatpush1.msra.mxu0 0.0
    %7277 = vmatprep.mubr.f32.mxu0 0.0
    %7278 = vmatmul.mubr.f32.gmra.mrb[0].mxu0 %v7189
    %v7279 = vpop.f32.mrb[0].mxu0
    %v7280 = vadd.f32 %v7211, %v7279
    %v7281 = vpop.f32.mrb[0].mxu0
    %7282 = vdwg.mxu0
    %vm7283 = vcmask 74752
    %7284 = vst.msk [vmem:[#allocation8] sm:$0x3] %vm7283, %v7280
    // Predicated region
    $region38: #{_lambda_.1} parent=1 // pred_check
      _
    $region39: #{_lambda_.1} parent=1 // pred_check_branch
      %7286 = sbr.rel (0) target = $region41
    $region40: #{_lambda_.1} parent=1 // pred_region
      %s7288 = ssub.s32 32, 32
      %7289 = vsyncadd [#allocation9], %s7288
      %s7291 = sshll.u32 [#allocation8], 4
      %s7292 = int_to_ptr.vmem [resolvable:$true] %s7291
      %7294 = dma.vmem_to_hbm [thread:$0]  %s7292, 32, %s9, [#allocation9]
    $region41: #{_lambda_.1} parent=1 // pred_fallthru
      _
    // Predicated region
    $region42: #{_lambda_.1} parent=1 // pred_check
      _
    $region43: #{_lambda_.1} parent=1 // pred_check_branch
      %7296 = sbr.rel (0) target = $region45
    $region44: #{_lambda_.1} parent=1 // pred_region
      %7297 = dma.done [#allocation9], 32
    $region45: #{_lambda_.1} parent=1 // pred_fallthru
      _
    %7298 = vsyncpa [#allocation9], 1

</llo_original>
